<compile_context>
chip_gen: v5e
topology: v5e:2x2
jax: 0.10.0
libtpu: 0.0.40
codegen_flags: <defaults>
</compile_context>

<pallas_src>
import jax
import jax.numpy as jnp
from jax.experimental import pallas as pl
from jax.experimental.pallas import tpu as pltpu


def _stable_softplus(x):
    # log(1 + exp(x)) without overflow; identical to the naive form for small x.
    return jnp.maximum(x, 0.0) + jnp.log1p(jnp.exp(-jnp.abs(x)))


def _tree_sum(terms):
    # Pairwise summation: shortens the serial FMA chain of the feature reduce.
    while len(terms) > 1:
        nxt = [terms[i] + terms[i + 1] for i in range(0, len(terms) - 1, 2)]
        if len(terms) % 2 == 1:
            nxt.append(terms[-1])
        terms = nxt
    return terms[0]


def planar_flow_kernel(b_ref, m_ref, wf_ref, uf_ref, z_ref, z_out_ref, ld_ref):
    # SMEM scalars: b_ref (NS,), m_ref (NS,), wf_ref (NS*D,), uf_ref (NS*D,)
    # VMEM: z_ref / z_out_ref (D, 8, L), ld_ref (8, L); L = TB // 8.
    dim = z_ref.shape[0]
    num_steps = b_ref.shape[0]

    # Keep z as D separate (8, L) slabs -> register resident across the loop.
    zs = [z_ref[d].astype(jnp.float32) for d in range(dim)]

    # Running product of (|1 + phi.u_hat| + eps); one log at the very end.
    prod = jnp.ones_like(zs[0])

    # Fully-unrolled serial step loop; all parameters are SMEM scalar operands.
    for k in range(num_steps):
        base = k * dim

        # affine = w_k . z + b_k : D scalar*vector products + tree sum (VPU only).
        affine = _tree_sum([zs[d] * wf_ref[base + d] for d in range(dim)])
        affine = affine + b_ref[k]
        t = jnp.tanh(affine)                                   # (8, L), EUP

        # z <- z + u_hat_k * tanh(affine)  (scalar coefficients, no broadcasts)
        for d in range(dim):
            zs[d] = zs[d] + t * uf_ref[base + d]

        # phi . u_hat = (1 - t^2) * (w_k . u_hat_k) = (1 - t^2) * m_wu_k
        dot = (1.0 - t * t) * m_ref[k]
        prod = prod * (jnp.abs(1.0 + dot) + 1e-8)

    for d in range(dim):
        z_out_ref[d] = zs[d].astype(z_out_ref.dtype)
    ld_ref[...] = (-jnp.log(prod)).astype(ld_ref.dtype)


def planar_flow(z, W, Bc, U, *, tb=1024):
    """z: (B, D) float32; W/U: (num_steps, D); Bc: (num_steps, 1).

    Returns (z_out (B, D), sum_logdet (B, 1)) matching PlanarFlow.forward.
    """
    B, D = z.shape
    NS = W.shape[0]

    # ---- Parameter-only prologue, hoisted out of the kernel (runs once) ----
    Wf = W.astype(jnp.float32)                               # (NS, D)
    Uf = U.astype(jnp.float32)                               # (NS, D)
    wu = jnp.sum(Wf * Uf, axis=1)                            # (NS,)
    m_wu = _stable_softplus(wu) - 1.0                        # (NS,)
    wnorm2 = jnp.sum(Wf * Wf, axis=1)                        # (NS,)
    # NOTE: no epsilon on ||w||^2, matching the PyTorch module exactly.
    u_hat = Uf + ((m_wu - wu) / wnorm2)[:, None] * Wf        # (NS, D)

    b_vec = Bc.reshape(NS).astype(jnp.float32)               # (NS,)   -> SMEM
    w_flat = Wf.reshape(NS * D)                              # (NS*D,) -> SMEM
    u_flat = u_hat.reshape(NS * D)                           # (NS*D,) -> SMEM

    # ---- Sublane/lane-dense batch layout: (B, D) -> (D, 8, Bp/8) ----
    # TODO(synk): if callers can produce/consume the (D, B) layout directly,
    # these transposes (2 extra HBM passes) could be dropped.
    zt = jnp.transpose(z).astype(jnp.float32)                # (D, B)

    S = 8
    if B <= tb:
        TB = ((B + S - 1) // S) * S          # single tile (pad batch to sublane mult)
    else:
        if tb % 1024 != 0:
            raise ValueError("tb must be a multiple of 1024 when B > tb "
                             "(lane width TB//8 must be a multiple of 128)")
        TB = tb
    Bp = ((B + TB - 1) // TB) * TB
    if Bp != B:
        zt = jnp.pad(zt, ((0, 0), (0, Bp - B)))
    L = TB // S
    Lp = Bp // S
    # Contiguous reshape: batch b lands at (sublane, lane) = (b // Lp, b % Lp).
    z3 = zt.reshape(D, S, Lp)
    grid = (Bp // TB,)

    smem_spec = pl.BlockSpec(memory_space=pltpu.MemorySpace.SMEM)
    z_out3, ld3 = pl.pallas_call(
        planar_flow_kernel,
        out_shape=(
            jax.ShapeDtypeStruct((D, S, Lp), jnp.float32),
            jax.ShapeDtypeStruct((S, Lp), jnp.float32),
        ),
        grid_spec=pltpu.PrefetchScalarGridSpec(
            num_scalar_prefetch=0,
            grid=grid,
            in_specs=[
                smem_spec,                                      # b      (NS,)
                smem_spec,                                      # m_wu   (NS,)
                smem_spec,                                      # w      (NS*D,)
                smem_spec,                                      # u_hat  (NS*D,)
                pl.BlockSpec((D, S, L), lambda i: (0, 0, i)),   # z tile
            ],
            out_specs=[
                pl.BlockSpec((D, S, L), lambda i: (0, 0, i)),
                pl.BlockSpec((S, L), lambda i: (0, i)),
            ],
        ),
        compiler_params=pltpu.CompilerParams(
            # Batch tiles are independent -> shard across TensorCores (v7x).
            dimension_semantics=("parallel",),
        ),
    )(b_vec, m_wu, w_flat, u_flat, z3)

    z_out = jnp.transpose(z_out3.reshape(D, Bp)[:, :B])       # (B, D)
    logdet = ld3.reshape(Bp)[:B].reshape(B, 1)                 # (B, 1)
    return z_out, logdet


def planar_flow_ref(z, W, Bc, U):
    """Pure-JAX reference of the PyTorch forward pass."""
    sld = jnp.zeros((z.shape[0], 1), dtype=jnp.float32)
    for k in range(W.shape[0]):
        w, u, b = W[k], U[k], Bc[k, 0]
        wu = jnp.dot(w, u)
        m_wu = -1.0 + _stable_softplus(wu)
        u_hat = u + (m_wu - wu) * w / jnp.sum(w * w)
        affine = (z @ w + b)[:, None]
        t = jnp.tanh(affine)
        z = z + u_hat[None, :] * t
        phi = w[None, :] * (1.0 - t * t)
        dot = jnp.sum(phi * u_hat[None, :], axis=-1, keepdims=True)
        sld = sld + (-jnp.log(jnp.abs(1.0 + dot) + 1e-8))
    return z, sld


if __name__ == "__main__":
    dim = 20
    num_steps = 20
    batch = 128

    key = jax.random.PRNGKey(0)
    kz, kw, kb, ku = jax.random.split(key, 4)

    # Deterministic synthetic parameters (match torch.randn(...) * 0.01 shapes).
    W = jax.random.normal(kw, (num_steps, dim), dtype=jnp.float32) * 0.01
    Bc = jax.random.normal(kb, (num_steps, 1), dtype=jnp.float32) * 0.01
    U = jax.random.normal(ku, (num_steps, dim), dtype=jnp.float32) * 0.01

    z = jax.random.normal(kz, (batch, dim), dtype=jnp.float32)

    z_out, logdet_out = planar_flow(z, W, Bc, U)
    jax.block_until_ready((z_out, logdet_out))

    # Correctness check against pure-JAX reference.
    z_ref, ld_ref = planar_flow_ref(z, W, Bc, U)
    assert z_out.shape == (batch, dim) and logdet_out.shape == (batch, 1)
    assert jnp.allclose(z_out, z_ref, atol=2e-5, rtol=1e-5)
    assert jnp.allclose(logdet_out, ld_ref, atol=2e-5, rtol=1e-5)

    print("KERNEL_OK")
</pallas_src>

<mosaic_0001>
module attributes {stable_mosaic.version = 11 : i64} {
  func.func @planar_flow_kernel(%arg0: i32, %arg1: memref<20xf32, #tpu.memory_space<smem>>, %arg2: memref<20xf32, #tpu.memory_space<smem>>, %arg3: memref<400xf32, #tpu.memory_space<smem>>, %arg4: memref<400xf32, #tpu.memory_space<smem>>, %arg5: memref<20x8x16xf32, #tpu.memory_space<vmem>>, %arg6: memref<20x8x16xf32, #tpu.memory_space<vmem>>, %arg7: memref<8x16xf32, #tpu.memory_space<vmem>>) attributes {dimension_semantics = [#tpu.dimension_semantics<parallel>], iteration_bounds = array<i64: 1>, scalar_prefetch = 0 : i64, scratch_operands = 0 : i64, tpu.core_type = #tpu.core_type<tc>, window_params = [{transform_indices = @transform_0, window_bounds = array<i64: 20>}, {transform_indices = @transform_1, window_bounds = array<i64: 20>}, {transform_indices = @transform_2, window_bounds = array<i64: 400>}, {transform_indices = @transform_3, window_bounds = array<i64: 400>}, {transform_indices = @transform_4, window_bounds = array<i64: 20, 8, 16>}, {transform_indices = @transform_5, window_bounds = array<i64: 20, 8, 16>}, {transform_indices = @transform_6, window_bounds = array<i64: 8, 16>}]} {
    %c0 = arith.constant 0 : index
    %c0_0 = arith.constant 0 : index
    %c0_1 = arith.constant 0 : index
    %0 = vector.load %arg5[%c0, %c0_0, %c0_1] : memref<20x8x16xf32, #tpu.memory_space<vmem>>, vector<1x8x16xf32>
    %1 = vector.shape_cast %0 : vector<1x8x16xf32> to vector<8x16xf32>
    %c1 = arith.constant 1 : index
    %c0_2 = arith.constant 0 : index
    %c0_3 = arith.constant 0 : index
    %2 = vector.load %arg5[%c1, %c0_2, %c0_3] : memref<20x8x16xf32, #tpu.memory_space<vmem>>, vector<1x8x16xf32>
    %3 = vector.shape_cast %2 : vector<1x8x16xf32> to vector<8x16xf32>
    %c2 = arith.constant 2 : index
    %c0_4 = arith.constant 0 : index
    %c0_5 = arith.constant 0 : index
    %4 = vector.load %arg5[%c2, %c0_4, %c0_5] : memref<20x8x16xf32, #tpu.memory_space<vmem>>, vector<1x8x16xf32>
    %5 = vector.shape_cast %4 : vector<1x8x16xf32> to vector<8x16xf32>
    %c3 = arith.constant 3 : index
    %c0_6 = arith.constant 0 : index
    %c0_7 = arith.constant 0 : index
    %6 = vector.load %arg5[%c3, %c0_6, %c0_7] : memref<20x8x16xf32, #tpu.memory_space<vmem>>, vector<1x8x16xf32>
    %7 = vector.shape_cast %6 : vector<1x8x16xf32> to vector<8x16xf32>
    %c4 = arith.constant 4 : index
    %c0_8 = arith.constant 0 : index
    %c0_9 = arith.constant 0 : index
    %8 = vector.load %arg5[%c4, %c0_8, %c0_9] : memref<20x8x16xf32, #tpu.memory_space<vmem>>, vector<1x8x16xf32>
    %9 = vector.shape_cast %8 : vector<1x8x16xf32> to vector<8x16xf32>
    %c5 = arith.constant 5 : index
    %c0_10 = arith.constant 0 : index
    %c0_11 = arith.constant 0 : index
    %10 = vector.load %arg5[%c5, %c0_10, %c0_11] : memref<20x8x16xf32, #tpu.memory_space<vmem>>, vector<1x8x16xf32>
    %11 = vector.shape_cast %10 : vector<1x8x16xf32> to vector<8x16xf32>
    %c6 = arith.constant 6 : index
    %c0_12 = arith.constant 0 : index
    %c0_13 = arith.constant 0 : index
    %12 = vector.load %arg5[%c6, %c0_12, %c0_13] : memref<20x8x16xf32, #tpu.memory_space<vmem>>, vector<1x8x16xf32>
    %13 = vector.shape_cast %12 : vector<1x8x16xf32> to vector<8x16xf32>
    %c7 = arith.constant 7 : index
    %c0_14 = arith.constant 0 : index
    %c0_15 = arith.constant 0 : index
    %14 = vector.load %arg5[%c7, %c0_14, %c0_15] : memref<20x8x16xf32, #tpu.memory_space<vmem>>, vector<1x8x16xf32>
    %15 = vector.shape_cast %14 : vector<1x8x16xf32> to vector<8x16xf32>
    %c8 = arith.constant 8 : index
    %c0_16 = arith.constant 0 : index
    %c0_17 = arith.constant 0 : index
    %16 = vector.load %arg5[%c8, %c0_16, %c0_17] : memref<20x8x16xf32, #tpu.memory_space<vmem>>, vector<1x8x16xf32>
    %17 = vector.shape_cast %16 : vector<1x8x16xf32> to vector<8x16xf32>
    %c9 = arith.constant 9 : index
    %c0_18 = arith.constant 0 : index
    %c0_19 = arith.constant 0 : index
    %18 = vector.load %arg5[%c9, %c0_18, %c0_19] : memref<20x8x16xf32, #tpu.memory_space<vmem>>, vector<1x8x16xf32>
    %19 = vector.shape_cast %18 : vector<1x8x16xf32> to vector<8x16xf32>
    %c10 = arith.constant 10 : index
    %c0_20 = arith.constant 0 : index
    %c0_21 = arith.constant 0 : index
    %20 = vector.load %arg5[%c10, %c0_20, %c0_21] : memref<20x8x16xf32, #tpu.memory_space<vmem>>, vector<1x8x16xf32>
    %21 = vector.shape_cast %20 : vector<1x8x16xf32> to vector<8x16xf32>
    %c11 = arith.constant 11 : index
    %c0_22 = arith.constant 0 : index
    %c0_23 = arith.constant 0 : index
    %22 = vector.load %arg5[%c11, %c0_22, %c0_23] : memref<20x8x16xf32, #tpu.memory_space<vmem>>, vector<1x8x16xf32>
    %23 = vector.shape_cast %22 : vector<1x8x16xf32> to vector<8x16xf32>
    %c12 = arith.constant 12 : index
    %c0_24 = arith.constant 0 : index
    %c0_25 = arith.constant 0 : index
    %24 = vector.load %arg5[%c12, %c0_24, %c0_25] : memref<20x8x16xf32, #tpu.memory_space<vmem>>, vector<1x8x16xf32>
    %25 = vector.shape_cast %24 : vector<1x8x16xf32> to vector<8x16xf32>
    %c13 = arith.constant 13 : index
    %c0_26 = arith.constant 0 : index
    %c0_27 = arith.constant 0 : index
    %26 = vector.load %arg5[%c13, %c0_26, %c0_27] : memref<20x8x16xf32, #tpu.memory_space<vmem>>, vector<1x8x16xf32>
    %27 = vector.shape_cast %26 : vector<1x8x16xf32> to vector<8x16xf32>
    %c14 = arith.constant 14 : index
    %c0_28 = arith.constant 0 : index
    %c0_29 = arith.constant 0 : index
    %28 = vector.load %arg5[%c14, %c0_28, %c0_29] : memref<20x8x16xf32, #tpu.memory_space<vmem>>, vector<1x8x16xf32>
    %29 = vector.shape_cast %28 : vector<1x8x16xf32> to vector<8x16xf32>
    %c15 = arith.constant 15 : index
    %c0_30 = arith.constant 0 : index
    %c0_31 = arith.constant 0 : index
    %30 = vector.load %arg5[%c15, %c0_30, %c0_31] : memref<20x8x16xf32, #tpu.memory_space<vmem>>, vector<1x8x16xf32>
    %31 = vector.shape_cast %30 : vector<1x8x16xf32> to vector<8x16xf32>
    %c16 = arith.constant 16 : index
    %c0_32 = arith.constant 0 : index
    %c0_33 = arith.constant 0 : index
    %32 = vector.load %arg5[%c16, %c0_32, %c0_33] : memref<20x8x16xf32, #tpu.memory_space<vmem>>, vector<1x8x16xf32>
    %33 = vector.shape_cast %32 : vector<1x8x16xf32> to vector<8x16xf32>
    %c17 = arith.constant 17 : index
    %c0_34 = arith.constant 0 : index
    %c0_35 = arith.constant 0 : index
    %34 = vector.load %arg5[%c17, %c0_34, %c0_35] : memref<20x8x16xf32, #tpu.memory_space<vmem>>, vector<1x8x16xf32>
    %35 = vector.shape_cast %34 : vector<1x8x16xf32> to vector<8x16xf32>
    %c18 = arith.constant 18 : index
    %c0_36 = arith.constant 0 : index
    %c0_37 = arith.constant 0 : index
    %36 = vector.load %arg5[%c18, %c0_36, %c0_37] : memref<20x8x16xf32, #tpu.memory_space<vmem>>, vector<1x8x16xf32>
    %37 = vector.shape_cast %36 : vector<1x8x16xf32> to vector<8x16xf32>
    %c19 = arith.constant 19 : index
    %c0_38 = arith.constant 0 : index
    %c0_39 = arith.constant 0 : index
    %38 = vector.load %arg5[%c19, %c0_38, %c0_39] : memref<20x8x16xf32, #tpu.memory_space<vmem>>, vector<1x8x16xf32>
    %39 = vector.shape_cast %38 : vector<1x8x16xf32> to vector<8x16xf32>
    %cst = arith.constant 1.000000e+00 : f32
    %40 = vector.broadcast %cst : f32 to vector<8x16xf32>
    %c0_40 = arith.constant 0 : index
    %41 = memref.load %arg3[%c0_40] : memref<400xf32, #tpu.memory_space<smem>>
    %42 = vector.broadcast %41 : f32 to vector<8x16xf32>
    %43 = arith.mulf %1, %42 : vector<8x16xf32>
    %c1_41 = arith.constant 1 : index
    %44 = memref.load %arg3[%c1_41] : memref<400xf32, #tpu.memory_space<smem>>
    %45 = vector.broadcast %44 : f32 to vector<8x16xf32>
    %46 = arith.mulf %3, %45 : vector<8x16xf32>
    %c2_42 = arith.constant 2 : index
    %47 = memref.load %arg3[%c2_42] : memref<400xf32, #tpu.memory_space<smem>>
    %48 = vector.broadcast %47 : f32 to vector<8x16xf32>
    %49 = arith.mulf %5, %48 : vector<8x16xf32>
    %c3_43 = arith.constant 3 : index
    %50 = memref.load %arg3[%c3_43] : memref<400xf32, #tpu.memory_space<smem>>
    %51 = vector.broadcast %50 : f32 to vector<8x16xf32>
    %52 = arith.mulf %7, %51 : vector<8x16xf32>
    %c4_44 = arith.constant 4 : index
    %53 = memref.load %arg3[%c4_44] : memref<400xf32, #tpu.memory_space<smem>>
    %54 = vector.broadcast %53 : f32 to vector<8x16xf32>
    %55 = arith.mulf %9, %54 : vector<8x16xf32>
    %c5_45 = arith.constant 5 : index
    %56 = memref.load %arg3[%c5_45] : memref<400xf32, #tpu.memory_space<smem>>
    %57 = vector.broadcast %56 : f32 to vector<8x16xf32>
    %58 = arith.mulf %11, %57 : vector<8x16xf32>
    %c6_46 = arith.constant 6 : index
    %59 = memref.load %arg3[%c6_46] : memref<400xf32, #tpu.memory_space<smem>>
    %60 = vector.broadcast %59 : f32 to vector<8x16xf32>
    %61 = arith.mulf %13, %60 : vector<8x16xf32>
    %c7_47 = arith.constant 7 : index
    %62 = memref.load %arg3[%c7_47] : memref<400xf32, #tpu.memory_space<smem>>
    %63 = vector.broadcast %62 : f32 to vector<8x16xf32>
    %64 = arith.mulf %15, %63 : vector<8x16xf32>
    %c8_48 = arith.constant 8 : index
    %65 = memref.load %arg3[%c8_48] : memref<400xf32, #tpu.memory_space<smem>>
    %66 = vector.broadcast %65 : f32 to vector<8x16xf32>
    %67 = arith.mulf %17, %66 : vector<8x16xf32>
    %c9_49 = arith.constant 9 : index
    %68 = memref.load %arg3[%c9_49] : memref<400xf32, #tpu.memory_space<smem>>
    %69 = vector.broadcast %68 : f32 to vector<8x16xf32>
    %70 = arith.mulf %19, %69 : vector<8x16xf32>
    %c10_50 = arith.constant 10 : index
    %71 = memref.load %arg3[%c10_50] : memref<400xf32, #tpu.memory_space<smem>>
    %72 = vector.broadcast %71 : f32 to vector<8x16xf32>
    %73 = arith.mulf %21, %72 : vector<8x16xf32>
    %c11_51 = arith.constant 11 : index
    %74 = memref.load %arg3[%c11_51] : memref<400xf32, #tpu.memory_space<smem>>
    %75 = vector.broadcast %74 : f32 to vector<8x16xf32>
    %76 = arith.mulf %23, %75 : vector<8x16xf32>
    %c12_52 = arith.constant 12 : index
    %77 = memref.load %arg3[%c12_52] : memref<400xf32, #tpu.memory_space<smem>>
    %78 = vector.broadcast %77 : f32 to vector<8x16xf32>
    %79 = arith.mulf %25, %78 : vector<8x16xf32>
    %c13_53 = arith.constant 13 : index
    %80 = memref.load %arg3[%c13_53] : memref<400xf32, #tpu.memory_space<smem>>
    %81 = vector.broadcast %80 : f32 to vector<8x16xf32>
    %82 = arith.mulf %27, %81 : vector<8x16xf32>
    %c14_54 = arith.constant 14 : index
    %83 = memref.load %arg3[%c14_54] : memref<400xf32, #tpu.memory_space<smem>>
    %84 = vector.broadcast %83 : f32 to vector<8x16xf32>
    %85 = arith.mulf %29, %84 : vector<8x16xf32>
    %c15_55 = arith.constant 15 : index
    %86 = memref.load %arg3[%c15_55] : memref<400xf32, #tpu.memory_space<smem>>
    %87 = vector.broadcast %86 : f32 to vector<8x16xf32>
    %88 = arith.mulf %31, %87 : vector<8x16xf32>
    %c16_56 = arith.constant 16 : index
    %89 = memref.load %arg3[%c16_56] : memref<400xf32, #tpu.memory_space<smem>>
    %90 = vector.broadcast %89 : f32 to vector<8x16xf32>
    %91 = arith.mulf %33, %90 : vector<8x16xf32>
    %c17_57 = arith.constant 17 : index
    %92 = memref.load %arg3[%c17_57] : memref<400xf32, #tpu.memory_space<smem>>
    %93 = vector.broadcast %92 : f32 to vector<8x16xf32>
    %94 = arith.mulf %35, %93 : vector<8x16xf32>
    %c18_58 = arith.constant 18 : index
    %95 = memref.load %arg3[%c18_58] : memref<400xf32, #tpu.memory_space<smem>>
    %96 = vector.broadcast %95 : f32 to vector<8x16xf32>
    %97 = arith.mulf %37, %96 : vector<8x16xf32>
    %c19_59 = arith.constant 19 : index
    %98 = memref.load %arg3[%c19_59] : memref<400xf32, #tpu.memory_space<smem>>
    %99 = vector.broadcast %98 : f32 to vector<8x16xf32>
    %100 = arith.mulf %39, %99 : vector<8x16xf32>
    %101 = arith.addf %43, %46 : vector<8x16xf32>
    %102 = arith.addf %49, %52 : vector<8x16xf32>
    %103 = arith.addf %55, %58 : vector<8x16xf32>
    %104 = arith.addf %61, %64 : vector<8x16xf32>
    %105 = arith.addf %67, %70 : vector<8x16xf32>
    %106 = arith.addf %73, %76 : vector<8x16xf32>
    %107 = arith.addf %79, %82 : vector<8x16xf32>
    %108 = arith.addf %85, %88 : vector<8x16xf32>
    %109 = arith.addf %91, %94 : vector<8x16xf32>
    %110 = arith.addf %97, %100 : vector<8x16xf32>
    %111 = arith.addf %101, %102 : vector<8x16xf32>
    %112 = arith.addf %103, %104 : vector<8x16xf32>
    %113 = arith.addf %105, %106 : vector<8x16xf32>
    %114 = arith.addf %107, %108 : vector<8x16xf32>
    %115 = arith.addf %109, %110 : vector<8x16xf32>
    %116 = arith.addf %111, %112 : vector<8x16xf32>
    %117 = arith.addf %113, %114 : vector<8x16xf32>
    %118 = arith.addf %116, %117 : vector<8x16xf32>
    %119 = arith.addf %118, %115 : vector<8x16xf32>
    %c0_60 = arith.constant 0 : index
    %120 = memref.load %arg1[%c0_60] : memref<20xf32, #tpu.memory_space<smem>>
    %121 = vector.broadcast %120 : f32 to vector<8x16xf32>
    %122 = arith.addf %119, %121 : vector<8x16xf32>
    %123 = math.tanh %122 : vector<8x16xf32>
    %c0_61 = arith.constant 0 : index
    %124 = memref.load %arg4[%c0_61] : memref<400xf32, #tpu.memory_space<smem>>
    %125 = vector.broadcast %124 : f32 to vector<8x16xf32>
    %126 = arith.mulf %123, %125 : vector<8x16xf32>
    %127 = arith.addf %1, %126 : vector<8x16xf32>
    %c1_62 = arith.constant 1 : index
    %128 = memref.load %arg4[%c1_62] : memref<400xf32, #tpu.memory_space<smem>>
    %129 = vector.broadcast %128 : f32 to vector<8x16xf32>
    %130 = arith.mulf %123, %129 : vector<8x16xf32>
    %131 = arith.addf %3, %130 : vector<8x16xf32>
    %c2_63 = arith.constant 2 : index
    %132 = memref.load %arg4[%c2_63] : memref<400xf32, #tpu.memory_space<smem>>
    %133 = vector.broadcast %132 : f32 to vector<8x16xf32>
    %134 = arith.mulf %123, %133 : vector<8x16xf32>
    %135 = arith.addf %5, %134 : vector<8x16xf32>
    %c3_64 = arith.constant 3 : index
    %136 = memref.load %arg4[%c3_64] : memref<400xf32, #tpu.memory_space<smem>>
    %137 = vector.broadcast %136 : f32 to vector<8x16xf32>
    %138 = arith.mulf %123, %137 : vector<8x16xf32>
    %139 = arith.addf %7, %138 : vector<8x16xf32>
    %c4_65 = arith.constant 4 : index
    %140 = memref.load %arg4[%c4_65] : memref<400xf32, #tpu.memory_space<smem>>
    %141 = vector.broadcast %140 : f32 to vector<8x16xf32>
    %142 = arith.mulf %123, %141 : vector<8x16xf32>
    %143 = arith.addf %9, %142 : vector<8x16xf32>
    %c5_66 = arith.constant 5 : index
    %144 = memref.load %arg4[%c5_66] : memref<400xf32, #tpu.memory_space<smem>>
    %145 = vector.broadcast %144 : f32 to vector<8x16xf32>
    %146 = arith.mulf %123, %145 : vector<8x16xf32>
    %147 = arith.addf %11, %146 : vector<8x16xf32>
    %c6_67 = arith.constant 6 : index
    %148 = memref.load %arg4[%c6_67] : memref<400xf32, #tpu.memory_space<smem>>
    %149 = vector.broadcast %148 : f32 to vector<8x16xf32>
    %150 = arith.mulf %123, %149 : vector<8x16xf32>
    %151 = arith.addf %13, %150 : vector<8x16xf32>
    %c7_68 = arith.constant 7 : index
    %152 = memref.load %arg4[%c7_68] : memref<400xf32, #tpu.memory_space<smem>>
    %153 = vector.broadcast %152 : f32 to vector<8x16xf32>
    %154 = arith.mulf %123, %153 : vector<8x16xf32>
    %155 = arith.addf %15, %154 : vector<8x16xf32>
    %c8_69 = arith.constant 8 : index
    %156 = memref.load %arg4[%c8_69] : memref<400xf32, #tpu.memory_space<smem>>
    %157 = vector.broadcast %156 : f32 to vector<8x16xf32>
    %158 = arith.mulf %123, %157 : vector<8x16xf32>
    %159 = arith.addf %17, %158 : vector<8x16xf32>
    %c9_70 = arith.constant 9 : index
    %160 = memref.load %arg4[%c9_70] : memref<400xf32, #tpu.memory_space<smem>>
    %161 = vector.broadcast %160 : f32 to vector<8x16xf32>
    %162 = arith.mulf %123, %161 : vector<8x16xf32>
    %163 = arith.addf %19, %162 : vector<8x16xf32>
    %c10_71 = arith.constant 10 : index
    %164 = memref.load %arg4[%c10_71] : memref<400xf32, #tpu.memory_space<smem>>
    %165 = vector.broadcast %164 : f32 to vector<8x16xf32>
    %166 = arith.mulf %123, %165 : vector<8x16xf32>
    %167 = arith.addf %21, %166 : vector<8x16xf32>
    %c11_72 = arith.constant 11 : index
    %168 = memref.load %arg4[%c11_72] : memref<400xf32, #tpu.memory_space<smem>>
    %169 = vector.broadcast %168 : f32 to vector<8x16xf32>
    %170 = arith.mulf %123, %169 : vector<8x16xf32>
    %171 = arith.addf %23, %170 : vector<8x16xf32>
    %c12_73 = arith.constant 12 : index
    %172 = memref.load %arg4[%c12_73] : memref<400xf32, #tpu.memory_space<smem>>
    %173 = vector.broadcast %172 : f32 to vector<8x16xf32>
    %174 = arith.mulf %123, %173 : vector<8x16xf32>
    %175 = arith.addf %25, %174 : vector<8x16xf32>
    %c13_74 = arith.constant 13 : index
    %176 = memref.load %arg4[%c13_74] : memref<400xf32, #tpu.memory_space<smem>>
    %177 = vector.broadcast %176 : f32 to vector<8x16xf32>
    %178 = arith.mulf %123, %177 : vector<8x16xf32>
    %179 = arith.addf %27, %178 : vector<8x16xf32>
    %c14_75 = arith.constant 14 : index
    %180 = memref.load %arg4[%c14_75] : memref<400xf32, #tpu.memory_space<smem>>
    %181 = vector.broadcast %180 : f32 to vector<8x16xf32>
    %182 = arith.mulf %123, %181 : vector<8x16xf32>
    %183 = arith.addf %29, %182 : vector<8x16xf32>
    %c15_76 = arith.constant 15 : index
    %184 = memref.load %arg4[%c15_76] : memref<400xf32, #tpu.memory_space<smem>>
    %185 = vector.broadcast %184 : f32 to vector<8x16xf32>
    %186 = arith.mulf %123, %185 : vector<8x16xf32>
    %187 = arith.addf %31, %186 : vector<8x16xf32>
    %c16_77 = arith.constant 16 : index
    %188 = memref.load %arg4[%c16_77] : memref<400xf32, #tpu.memory_space<smem>>
    %189 = vector.broadcast %188 : f32 to vector<8x16xf32>
    %190 = arith.mulf %123, %189 : vector<8x16xf32>
    %191 = arith.addf %33, %190 : vector<8x16xf32>
    %c17_78 = arith.constant 17 : index
    %192 = memref.load %arg4[%c17_78] : memref<400xf32, #tpu.memory_space<smem>>
    %193 = vector.broadcast %192 : f32 to vector<8x16xf32>
    %194 = arith.mulf %123, %193 : vector<8x16xf32>
    %195 = arith.addf %35, %194 : vector<8x16xf32>
    %c18_79 = arith.constant 18 : index
    %196 = memref.load %arg4[%c18_79] : memref<400xf32, #tpu.memory_space<smem>>
    %197 = vector.broadcast %196 : f32 to vector<8x16xf32>
    %198 = arith.mulf %123, %197 : vector<8x16xf32>
    %199 = arith.addf %37, %198 : vector<8x16xf32>
    %c19_80 = arith.constant 19 : index
    %200 = memref.load %arg4[%c19_80] : memref<400xf32, #tpu.memory_space<smem>>
    %201 = vector.broadcast %200 : f32 to vector<8x16xf32>
    %202 = arith.mulf %123, %201 : vector<8x16xf32>
    %203 = arith.addf %39, %202 : vector<8x16xf32>
    %204 = arith.mulf %123, %123 : vector<8x16xf32>
    %cst_81 = arith.constant 1.000000e+00 : f32
    %205 = vector.broadcast %cst_81 : f32 to vector<8x16xf32>
    %206 = arith.subf %205, %204 : vector<8x16xf32>
    %c0_82 = arith.constant 0 : index
    %207 = memref.load %arg2[%c0_82] : memref<20xf32, #tpu.memory_space<smem>>
    %208 = vector.broadcast %207 : f32 to vector<8x16xf32>
    %209 = arith.mulf %206, %208 : vector<8x16xf32>
    %cst_83 = arith.constant 1.000000e+00 : f32
    %210 = vector.broadcast %cst_83 : f32 to vector<8x16xf32>
    %211 = arith.addf %210, %209 : vector<8x16xf32>
    %212 = math.absf %211 : vector<8x16xf32>
    %cst_84 = arith.constant 9.99999993E-9 : f32
    %213 = vector.broadcast %cst_84 : f32 to vector<8x16xf32>
    %214 = arith.addf %212, %213 : vector<8x16xf32>
    %215 = arith.mulf %40, %214 : vector<8x16xf32>
    %c20 = arith.constant 20 : index
    %216 = memref.load %arg3[%c20] : memref<400xf32, #tpu.memory_space<smem>>
    %217 = vector.broadcast %216 : f32 to vector<8x16xf32>
    %218 = arith.mulf %127, %217 : vector<8x16xf32>
    %c21 = arith.constant 21 : index
    %219 = memref.load %arg3[%c21] : memref<400xf32, #tpu.memory_space<smem>>
    %220 = vector.broadcast %219 : f32 to vector<8x16xf32>
    %221 = arith.mulf %131, %220 : vector<8x16xf32>
    %c22 = arith.constant 22 : index
    %222 = memref.load %arg3[%c22] : memref<400xf32, #tpu.memory_space<smem>>
    %223 = vector.broadcast %222 : f32 to vector<8x16xf32>
    %224 = arith.mulf %135, %223 : vector<8x16xf32>
    %c23 = arith.constant 23 : index
    %225 = memref.load %arg3[%c23] : memref<400xf32, #tpu.memory_space<smem>>
    %226 = vector.broadcast %225 : f32 to vector<8x16xf32>
    %227 = arith.mulf %139, %226 : vector<8x16xf32>
    %c24 = arith.constant 24 : index
    %228 = memref.load %arg3[%c24] : memref<400xf32, #tpu.memory_space<smem>>
    %229 = vector.broadcast %228 : f32 to vector<8x16xf32>
    %230 = arith.mulf %143, %229 : vector<8x16xf32>
    %c25 = arith.constant 25 : index
    %231 = memref.load %arg3[%c25] : memref<400xf32, #tpu.memory_space<smem>>
    %232 = vector.broadcast %231 : f32 to vector<8x16xf32>
    %233 = arith.mulf %147, %232 : vector<8x16xf32>
    %c26 = arith.constant 26 : index
    %234 = memref.load %arg3[%c26] : memref<400xf32, #tpu.memory_space<smem>>
    %235 = vector.broadcast %234 : f32 to vector<8x16xf32>
    %236 = arith.mulf %151, %235 : vector<8x16xf32>
    %c27 = arith.constant 27 : index
    %237 = memref.load %arg3[%c27] : memref<400xf32, #tpu.memory_space<smem>>
    %238 = vector.broadcast %237 : f32 to vector<8x16xf32>
    %239 = arith.mulf %155, %238 : vector<8x16xf32>
    %c28 = arith.constant 28 : index
    %240 = memref.load %arg3[%c28] : memref<400xf32, #tpu.memory_space<smem>>
    %241 = vector.broadcast %240 : f32 to vector<8x16xf32>
    %242 = arith.mulf %159, %241 : vector<8x16xf32>
    %c29 = arith.constant 29 : index
    %243 = memref.load %arg3[%c29] : memref<400xf32, #tpu.memory_space<smem>>
    %244 = vector.broadcast %243 : f32 to vector<8x16xf32>
    %245 = arith.mulf %163, %244 : vector<8x16xf32>
    %c30 = arith.constant 30 : index
    %246 = memref.load %arg3[%c30] : memref<400xf32, #tpu.memory_space<smem>>
    %247 = vector.broadcast %246 : f32 to vector<8x16xf32>
    %248 = arith.mulf %167, %247 : vector<8x16xf32>
    %c31 = arith.constant 31 : index
    %249 = memref.load %arg3[%c31] : memref<400xf32, #tpu.memory_space<smem>>
    %250 = vector.broadcast %249 : f32 to vector<8x16xf32>
    %251 = arith.mulf %171, %250 : vector<8x16xf32>
    %c32 = arith.constant 32 : index
    %252 = memref.load %arg3[%c32] : memref<400xf32, #tpu.memory_space<smem>>
    %253 = vector.broadcast %252 : f32 to vector<8x16xf32>
    %254 = arith.mulf %175, %253 : vector<8x16xf32>
    %c33 = arith.constant 33 : index
    %255 = memref.load %arg3[%c33] : memref<400xf32, #tpu.memory_space<smem>>
    %256 = vector.broadcast %255 : f32 to vector<8x16xf32>
    %257 = arith.mulf %179, %256 : vector<8x16xf32>
    %c34 = arith.constant 34 : index
    %258 = memref.load %arg3[%c34] : memref<400xf32, #tpu.memory_space<smem>>
    %259 = vector.broadcast %258 : f32 to vector<8x16xf32>
    %260 = arith.mulf %183, %259 : vector<8x16xf32>
    %c35 = arith.constant 35 : index
    %261 = memref.load %arg3[%c35] : memref<400xf32, #tpu.memory_space<smem>>
    %262 = vector.broadcast %261 : f32 to vector<8x16xf32>
    %263 = arith.mulf %187, %262 : vector<8x16xf32>
    %c36 = arith.constant 36 : index
    %264 = memref.load %arg3[%c36] : memref<400xf32, #tpu.memory_space<smem>>
    %265 = vector.broadcast %264 : f32 to vector<8x16xf32>
    %266 = arith.mulf %191, %265 : vector<8x16xf32>
    %c37 = arith.constant 37 : index
    %267 = memref.load %arg3[%c37] : memref<400xf32, #tpu.memory_space<smem>>
    %268 = vector.broadcast %267 : f32 to vector<8x16xf32>
    %269 = arith.mulf %195, %268 : vector<8x16xf32>
    %c38 = arith.constant 38 : index
    %270 = memref.load %arg3[%c38] : memref<400xf32, #tpu.memory_space<smem>>
    %271 = vector.broadcast %270 : f32 to vector<8x16xf32>
    %272 = arith.mulf %199, %271 : vector<8x16xf32>
    %c39 = arith.constant 39 : index
    %273 = memref.load %arg3[%c39] : memref<400xf32, #tpu.memory_space<smem>>
    %274 = vector.broadcast %273 : f32 to vector<8x16xf32>
    %275 = arith.mulf %203, %274 : vector<8x16xf32>
    %276 = arith.addf %218, %221 : vector<8x16xf32>
    %277 = arith.addf %224, %227 : vector<8x16xf32>
    %278 = arith.addf %230, %233 : vector<8x16xf32>
    %279 = arith.addf %236, %239 : vector<8x16xf32>
    %280 = arith.addf %242, %245 : vector<8x16xf32>
    %281 = arith.addf %248, %251 : vector<8x16xf32>
    %282 = arith.addf %254, %257 : vector<8x16xf32>
    %283 = arith.addf %260, %263 : vector<8x16xf32>
    %284 = arith.addf %266, %269 : vector<8x16xf32>
    %285 = arith.addf %272, %275 : vector<8x16xf32>
    %286 = arith.addf %276, %277 : vector<8x16xf32>
    %287 = arith.addf %278, %279 : vector<8x16xf32>
    %288 = arith.addf %280, %281 : vector<8x16xf32>
    %289 = arith.addf %282, %283 : vector<8x16xf32>
    %290 = arith.addf %284, %285 : vector<8x16xf32>
    %291 = arith.addf %286, %287 : vector<8x16xf32>
    %292 = arith.addf %288, %289 : vector<8x16xf32>
    %293 = arith.addf %291, %292 : vector<8x16xf32>
    %294 = arith.addf %293, %290 : vector<8x16xf32>
    %c1_85 = arith.constant 1 : index
    %295 = memref.load %arg1[%c1_85] : memref<20xf32, #tpu.memory_space<smem>>
    %296 = vector.broadcast %295 : f32 to vector<8x16xf32>
    %297 = arith.addf %294, %296 : vector<8x16xf32>
    %298 = math.tanh %297 : vector<8x16xf32>
    %c20_86 = arith.constant 20 : index
    %299 = memref.load %arg4[%c20_86] : memref<400xf32, #tpu.memory_space<smem>>
    %300 = vector.broadcast %299 : f32 to vector<8x16xf32>
    %301 = arith.mulf %298, %300 : vector<8x16xf32>
    %302 = arith.addf %127, %301 : vector<8x16xf32>
    %c21_87 = arith.constant 21 : index
    %303 = memref.load %arg4[%c21_87] : memref<400xf32, #tpu.memory_space<smem>>
    %304 = vector.broadcast %303 : f32 to vector<8x16xf32>
    %305 = arith.mulf %298, %304 : vector<8x16xf32>
    %306 = arith.addf %131, %305 : vector<8x16xf32>
    %c22_88 = arith.constant 22 : index
    %307 = memref.load %arg4[%c22_88] : memref<400xf32, #tpu.memory_space<smem>>
    %308 = vector.broadcast %307 : f32 to vector<8x16xf32>
    %309 = arith.mulf %298, %308 : vector<8x16xf32>
    %310 = arith.addf %135, %309 : vector<8x16xf32>
    %c23_89 = arith.constant 23 : index
    %311 = memref.load %arg4[%c23_89] : memref<400xf32, #tpu.memory_space<smem>>
    %312 = vector.broadcast %311 : f32 to vector<8x16xf32>
    %313 = arith.mulf %298, %312 : vector<8x16xf32>
    %314 = arith.addf %139, %313 : vector<8x16xf32>
    %c24_90 = arith.constant 24 : index
    %315 = memref.load %arg4[%c24_90] : memref<400xf32, #tpu.memory_space<smem>>
    %316 = vector.broadcast %315 : f32 to vector<8x16xf32>
    %317 = arith.mulf %298, %316 : vector<8x16xf32>
    %318 = arith.addf %143, %317 : vector<8x16xf32>
    %c25_91 = arith.constant 25 : index
    %319 = memref.load %arg4[%c25_91] : memref<400xf32, #tpu.memory_space<smem>>
    %320 = vector.broadcast %319 : f32 to vector<8x16xf32>
    %321 = arith.mulf %298, %320 : vector<8x16xf32>
    %322 = arith.addf %147, %321 : vector<8x16xf32>
    %c26_92 = arith.constant 26 : index
    %323 = memref.load %arg4[%c26_92] : memref<400xf32, #tpu.memory_space<smem>>
    %324 = vector.broadcast %323 : f32 to vector<8x16xf32>
    %325 = arith.mulf %298, %324 : vector<8x16xf32>
    %326 = arith.addf %151, %325 : vector<8x16xf32>
    %c27_93 = arith.constant 27 : index
    %327 = memref.load %arg4[%c27_93] : memref<400xf32, #tpu.memory_space<smem>>
    %328 = vector.broadcast %327 : f32 to vector<8x16xf32>
    %329 = arith.mulf %298, %328 : vector<8x16xf32>
    %330 = arith.addf %155, %329 : vector<8x16xf32>
    %c28_94 = arith.constant 28 : index
    %331 = memref.load %arg4[%c28_94] : memref<400xf32, #tpu.memory_space<smem>>
    %332 = vector.broadcast %331 : f32 to vector<8x16xf32>
    %333 = arith.mulf %298, %332 : vector<8x16xf32>
    %334 = arith.addf %159, %333 : vector<8x16xf32>
    %c29_95 = arith.constant 29 : index
    %335 = memref.load %arg4[%c29_95] : memref<400xf32, #tpu.memory_space<smem>>
    %336 = vector.broadcast %335 : f32 to vector<8x16xf32>
    %337 = arith.mulf %298, %336 : vector<8x16xf32>
    %338 = arith.addf %163, %337 : vector<8x16xf32>
    %c30_96 = arith.constant 30 : index
    %339 = memref.load %arg4[%c30_96] : memref<400xf32, #tpu.memory_space<smem>>
    %340 = vector.broadcast %339 : f32 to vector<8x16xf32>
    %341 = arith.mulf %298, %340 : vector<8x16xf32>
    %342 = arith.addf %167, %341 : vector<8x16xf32>
    %c31_97 = arith.constant 31 : index
    %343 = memref.load %arg4[%c31_97] : memref<400xf32, #tpu.memory_space<smem>>
    %344 = vector.broadcast %343 : f32 to vector<8x16xf32>
    %345 = arith.mulf %298, %344 : vector<8x16xf32>
    %346 = arith.addf %171, %345 : vector<8x16xf32>
    %c32_98 = arith.constant 32 : index
    %347 = memref.load %arg4[%c32_98] : memref<400xf32, #tpu.memory_space<smem>>
    %348 = vector.broadcast %347 : f32 to vector<8x16xf32>
    %349 = arith.mulf %298, %348 : vector<8x16xf32>
    %350 = arith.addf %175, %349 : vector<8x16xf32>
    %c33_99 = arith.constant 33 : index
    %351 = memref.load %arg4[%c33_99] : memref<400xf32, #tpu.memory_space<smem>>
    %352 = vector.broadcast %351 : f32 to vector<8x16xf32>
    %353 = arith.mulf %298, %352 : vector<8x16xf32>
    %354 = arith.addf %179, %353 : vector<8x16xf32>
    %c34_100 = arith.constant 34 : index
    %355 = memref.load %arg4[%c34_100] : memref<400xf32, #tpu.memory_space<smem>>
    %356 = vector.broadcast %355 : f32 to vector<8x16xf32>
    %357 = arith.mulf %298, %356 : vector<8x16xf32>
    %358 = arith.addf %183, %357 : vector<8x16xf32>
    %c35_101 = arith.constant 35 : index
    %359 = memref.load %arg4[%c35_101] : memref<400xf32, #tpu.memory_space<smem>>
    %360 = vector.broadcast %359 : f32 to vector<8x16xf32>
    %361 = arith.mulf %298, %360 : vector<8x16xf32>
    %362 = arith.addf %187, %361 : vector<8x16xf32>
    %c36_102 = arith.constant 36 : index
    %363 = memref.load %arg4[%c36_102] : memref<400xf32, #tpu.memory_space<smem>>
    %364 = vector.broadcast %363 : f32 to vector<8x16xf32>
    %365 = arith.mulf %298, %364 : vector<8x16xf32>
    %366 = arith.addf %191, %365 : vector<8x16xf32>
    %c37_103 = arith.constant 37 : index
    %367 = memref.load %arg4[%c37_103] : memref<400xf32, #tpu.memory_space<smem>>
    %368 = vector.broadcast %367 : f32 to vector<8x16xf32>
    %369 = arith.mulf %298, %368 : vector<8x16xf32>
    %370 = arith.addf %195, %369 : vector<8x16xf32>
    %c38_104 = arith.constant 38 : index
    %371 = memref.load %arg4[%c38_104] : memref<400xf32, #tpu.memory_space<smem>>
    %372 = vector.broadcast %371 : f32 to vector<8x16xf32>
    %373 = arith.mulf %298, %372 : vector<8x16xf32>
    %374 = arith.addf %199, %373 : vector<8x16xf32>
    %c39_105 = arith.constant 39 : index
    %375 = memref.load %arg4[%c39_105] : memref<400xf32, #tpu.memory_space<smem>>
    %376 = vector.broadcast %375 : f32 to vector<8x16xf32>
    %377 = arith.mulf %298, %376 : vector<8x16xf32>
    %378 = arith.addf %203, %377 : vector<8x16xf32>
    %379 = arith.mulf %298, %298 : vector<8x16xf32>
    %cst_106 = arith.constant 1.000000e+00 : f32
    %380 = vector.broadcast %cst_106 : f32 to vector<8x16xf32>
    %381 = arith.subf %380, %379 : vector<8x16xf32>
    %c1_107 = arith.constant 1 : index
    %382 = memref.load %arg2[%c1_107] : memref<20xf32, #tpu.memory_space<smem>>
    %383 = vector.broadcast %382 : f32 to vector<8x16xf32>
    %384 = arith.mulf %381, %383 : vector<8x16xf32>
    %cst_108 = arith.constant 1.000000e+00 : f32
    %385 = vector.broadcast %cst_108 : f32 to vector<8x16xf32>
    %386 = arith.addf %385, %384 : vector<8x16xf32>
    %387 = math.absf %386 : vector<8x16xf32>
    %cst_109 = arith.constant 9.99999993E-9 : f32
    %388 = vector.broadcast %cst_109 : f32 to vector<8x16xf32>
    %389 = arith.addf %387, %388 : vector<8x16xf32>
    %390 = arith.mulf %215, %389 : vector<8x16xf32>
    %c40 = arith.constant 40 : index
    %391 = memref.load %arg3[%c40] : memref<400xf32, #tpu.memory_space<smem>>
    %392 = vector.broadcast %391 : f32 to vector<8x16xf32>
    %393 = arith.mulf %302, %392 : vector<8x16xf32>
    %c41 = arith.constant 41 : index
    %394 = memref.load %arg3[%c41] : memref<400xf32, #tpu.memory_space<smem>>
    %395 = vector.broadcast %394 : f32 to vector<8x16xf32>
    %396 = arith.mulf %306, %395 : vector<8x16xf32>
    %c42 = arith.constant 42 : index
    %397 = memref.load %arg3[%c42] : memref<400xf32, #tpu.memory_space<smem>>
    %398 = vector.broadcast %397 : f32 to vector<8x16xf32>
    %399 = arith.mulf %310, %398 : vector<8x16xf32>
    %c43 = arith.constant 43 : index
    %400 = memref.load %arg3[%c43] : memref<400xf32, #tpu.memory_space<smem>>
    %401 = vector.broadcast %400 : f32 to vector<8x16xf32>
    %402 = arith.mulf %314, %401 : vector<8x16xf32>
    %c44 = arith.constant 44 : index
    %403 = memref.load %arg3[%c44] : memref<400xf32, #tpu.memory_space<smem>>
    %404 = vector.broadcast %403 : f32 to vector<8x16xf32>
    %405 = arith.mulf %318, %404 : vector<8x16xf32>
    %c45 = arith.constant 45 : index
    %406 = memref.load %arg3[%c45] : memref<400xf32, #tpu.memory_space<smem>>
    %407 = vector.broadcast %406 : f32 to vector<8x16xf32>
    %408 = arith.mulf %322, %407 : vector<8x16xf32>
    %c46 = arith.constant 46 : index
    %409 = memref.load %arg3[%c46] : memref<400xf32, #tpu.memory_space<smem>>
    %410 = vector.broadcast %409 : f32 to vector<8x16xf32>
    %411 = arith.mulf %326, %410 : vector<8x16xf32>
    %c47 = arith.constant 47 : index
    %412 = memref.load %arg3[%c47] : memref<400xf32, #tpu.memory_space<smem>>
    %413 = vector.broadcast %412 : f32 to vector<8x16xf32>
    %414 = arith.mulf %330, %413 : vector<8x16xf32>
    %c48 = arith.constant 48 : index
    %415 = memref.load %arg3[%c48] : memref<400xf32, #tpu.memory_space<smem>>
    %416 = vector.broadcast %415 : f32 to vector<8x16xf32>
    %417 = arith.mulf %334, %416 : vector<8x16xf32>
    %c49 = arith.constant 49 : index
    %418 = memref.load %arg3[%c49] : memref<400xf32, #tpu.memory_space<smem>>
    %419 = vector.broadcast %418 : f32 to vector<8x16xf32>
    %420 = arith.mulf %338, %419 : vector<8x16xf32>
    %c50 = arith.constant 50 : index
    %421 = memref.load %arg3[%c50] : memref<400xf32, #tpu.memory_space<smem>>
    %422 = vector.broadcast %421 : f32 to vector<8x16xf32>
    %423 = arith.mulf %342, %422 : vector<8x16xf32>
    %c51 = arith.constant 51 : index
    %424 = memref.load %arg3[%c51] : memref<400xf32, #tpu.memory_space<smem>>
    %425 = vector.broadcast %424 : f32 to vector<8x16xf32>
    %426 = arith.mulf %346, %425 : vector<8x16xf32>
    %c52 = arith.constant 52 : index
    %427 = memref.load %arg3[%c52] : memref<400xf32, #tpu.memory_space<smem>>
    %428 = vector.broadcast %427 : f32 to vector<8x16xf32>
    %429 = arith.mulf %350, %428 : vector<8x16xf32>
    %c53 = arith.constant 53 : index
    %430 = memref.load %arg3[%c53] : memref<400xf32, #tpu.memory_space<smem>>
    %431 = vector.broadcast %430 : f32 to vector<8x16xf32>
    %432 = arith.mulf %354, %431 : vector<8x16xf32>
    %c54 = arith.constant 54 : index
    %433 = memref.load %arg3[%c54] : memref<400xf32, #tpu.memory_space<smem>>
    %434 = vector.broadcast %433 : f32 to vector<8x16xf32>
    %435 = arith.mulf %358, %434 : vector<8x16xf32>
    %c55 = arith.constant 55 : index
    %436 = memref.load %arg3[%c55] : memref<400xf32, #tpu.memory_space<smem>>
    %437 = vector.broadcast %436 : f32 to vector<8x16xf32>
    %438 = arith.mulf %362, %437 : vector<8x16xf32>
    %c56 = arith.constant 56 : index
    %439 = memref.load %arg3[%c56] : memref<400xf32, #tpu.memory_space<smem>>
    %440 = vector.broadcast %439 : f32 to vector<8x16xf32>
    %441 = arith.mulf %366, %440 : vector<8x16xf32>
    %c57 = arith.constant 57 : index
    %442 = memref.load %arg3[%c57] : memref<400xf32, #tpu.memory_space<smem>>
    %443 = vector.broadcast %442 : f32 to vector<8x16xf32>
    %444 = arith.mulf %370, %443 : vector<8x16xf32>
    %c58 = arith.constant 58 : index
    %445 = memref.load %arg3[%c58] : memref<400xf32, #tpu.memory_space<smem>>
    %446 = vector.broadcast %445 : f32 to vector<8x16xf32>
    %447 = arith.mulf %374, %446 : vector<8x16xf32>
    %c59 = arith.constant 59 : index
    %448 = memref.load %arg3[%c59] : memref<400xf32, #tpu.memory_space<smem>>
    %449 = vector.broadcast %448 : f32 to vector<8x16xf32>
    %450 = arith.mulf %378, %449 : vector<8x16xf32>
    %451 = arith.addf %393, %396 : vector<8x16xf32>
    %452 = arith.addf %399, %402 : vector<8x16xf32>
    %453 = arith.addf %405, %408 : vector<8x16xf32>
    %454 = arith.addf %411, %414 : vector<8x16xf32>
    %455 = arith.addf %417, %420 : vector<8x16xf32>
    %456 = arith.addf %423, %426 : vector<8x16xf32>
    %457 = arith.addf %429, %432 : vector<8x16xf32>
    %458 = arith.addf %435, %438 : vector<8x16xf32>
    %459 = arith.addf %441, %444 : vector<8x16xf32>
    %460 = arith.addf %447, %450 : vector<8x16xf32>
    %461 = arith.addf %451, %452 : vector<8x16xf32>
    %462 = arith.addf %453, %454 : vector<8x16xf32>
    %463 = arith.addf %455, %456 : vector<8x16xf32>
    %464 = arith.addf %457, %458 : vector<8x16xf32>
    %465 = arith.addf %459, %460 : vector<8x16xf32>
    %466 = arith.addf %461, %462 : vector<8x16xf32>
    %467 = arith.addf %463, %464 : vector<8x16xf32>
    %468 = arith.addf %466, %467 : vector<8x16xf32>
    %469 = arith.addf %468, %465 : vector<8x16xf32>
    %c2_110 = arith.constant 2 : index
    %470 = memref.load %arg1[%c2_110] : memref<20xf32, #tpu.memory_space<smem>>
    %471 = vector.broadcast %470 : f32 to vector<8x16xf32>
    %472 = arith.addf %469, %471 : vector<8x16xf32>
    %473 = math.tanh %472 : vector<8x16xf32>
    %c40_111 = arith.constant 40 : index
    %474 = memref.load %arg4[%c40_111] : memref<400xf32, #tpu.memory_space<smem>>
    %475 = vector.broadcast %474 : f32 to vector<8x16xf32>
    %476 = arith.mulf %473, %475 : vector<8x16xf32>
    %477 = arith.addf %302, %476 : vector<8x16xf32>
    %c41_112 = arith.constant 41 : index
    %478 = memref.load %arg4[%c41_112] : memref<400xf32, #tpu.memory_space<smem>>
    %479 = vector.broadcast %478 : f32 to vector<8x16xf32>
    %480 = arith.mulf %473, %479 : vector<8x16xf32>
    %481 = arith.addf %306, %480 : vector<8x16xf32>
    %c42_113 = arith.constant 42 : index
    %482 = memref.load %arg4[%c42_113] : memref<400xf32, #tpu.memory_space<smem>>
    %483 = vector.broadcast %482 : f32 to vector<8x16xf32>
    %484 = arith.mulf %473, %483 : vector<8x16xf32>
    %485 = arith.addf %310, %484 : vector<8x16xf32>
    %c43_114 = arith.constant 43 : index
    %486 = memref.load %arg4[%c43_114] : memref<400xf32, #tpu.memory_space<smem>>
    %487 = vector.broadcast %486 : f32 to vector<8x16xf32>
    %488 = arith.mulf %473, %487 : vector<8x16xf32>
    %489 = arith.addf %314, %488 : vector<8x16xf32>
    %c44_115 = arith.constant 44 : index
    %490 = memref.load %arg4[%c44_115] : memref<400xf32, #tpu.memory_space<smem>>
    %491 = vector.broadcast %490 : f32 to vector<8x16xf32>
    %492 = arith.mulf %473, %491 : vector<8x16xf32>
    %493 = arith.addf %318, %492 : vector<8x16xf32>
    %c45_116 = arith.constant 45 : index
    %494 = memref.load %arg4[%c45_116] : memref<400xf32, #tpu.memory_space<smem>>
    %495 = vector.broadcast %494 : f32 to vector<8x16xf32>
    %496 = arith.mulf %473, %495 : vector<8x16xf32>
    %497 = arith.addf %322, %496 : vector<8x16xf32>
    %c46_117 = arith.constant 46 : index
    %498 = memref.load %arg4[%c46_117] : memref<400xf32, #tpu.memory_space<smem>>
    %499 = vector.broadcast %498 : f32 to vector<8x16xf32>
    %500 = arith.mulf %473, %499 : vector<8x16xf32>
    %501 = arith.addf %326, %500 : vector<8x16xf32>
    %c47_118 = arith.constant 47 : index
    %502 = memref.load %arg4[%c47_118] : memref<400xf32, #tpu.memory_space<smem>>
    %503 = vector.broadcast %502 : f32 to vector<8x16xf32>
    %504 = arith.mulf %473, %503 : vector<8x16xf32>
    %505 = arith.addf %330, %504 : vector<8x16xf32>
    %c48_119 = arith.constant 48 : index
    %506 = memref.load %arg4[%c48_119] : memref<400xf32, #tpu.memory_space<smem>>
    %507 = vector.broadcast %506 : f32 to vector<8x16xf32>
    %508 = arith.mulf %473, %507 : vector<8x16xf32>
    %509 = arith.addf %334, %508 : vector<8x16xf32>
    %c49_120 = arith.constant 49 : index
    %510 = memref.load %arg4[%c49_120] : memref<400xf32, #tpu.memory_space<smem>>
    %511 = vector.broadcast %510 : f32 to vector<8x16xf32>
    %512 = arith.mulf %473, %511 : vector<8x16xf32>
    %513 = arith.addf %338, %512 : vector<8x16xf32>
    %c50_121 = arith.constant 50 : index
    %514 = memref.load %arg4[%c50_121] : memref<400xf32, #tpu.memory_space<smem>>
    %515 = vector.broadcast %514 : f32 to vector<8x16xf32>
    %516 = arith.mulf %473, %515 : vector<8x16xf32>
    %517 = arith.addf %342, %516 : vector<8x16xf32>
    %c51_122 = arith.constant 51 : index
    %518 = memref.load %arg4[%c51_122] : memref<400xf32, #tpu.memory_space<smem>>
    %519 = vector.broadcast %518 : f32 to vector<8x16xf32>
    %520 = arith.mulf %473, %519 : vector<8x16xf32>
    %521 = arith.addf %346, %520 : vector<8x16xf32>
    %c52_123 = arith.constant 52 : index
    %522 = memref.load %arg4[%c52_123] : memref<400xf32, #tpu.memory_space<smem>>
    %523 = vector.broadcast %522 : f32 to vector<8x16xf32>
    %524 = arith.mulf %473, %523 : vector<8x16xf32>
    %525 = arith.addf %350, %524 : vector<8x16xf32>
    %c53_124 = arith.constant 53 : index
    %526 = memref.load %arg4[%c53_124] : memref<400xf32, #tpu.memory_space<smem>>
    %527 = vector.broadcast %526 : f32 to vector<8x16xf32>
    %528 = arith.mulf %473, %527 : vector<8x16xf32>
    %529 = arith.addf %354, %528 : vector<8x16xf32>
    %c54_125 = arith.constant 54 : index
    %530 = memref.load %arg4[%c54_125] : memref<400xf32, #tpu.memory_space<smem>>
    %531 = vector.broadcast %530 : f32 to vector<8x16xf32>
    %532 = arith.mulf %473, %531 : vector<8x16xf32>
    %533 = arith.addf %358, %532 : vector<8x16xf32>
    %c55_126 = arith.constant 55 : index
    %534 = memref.load %arg4[%c55_126] : memref<400xf32, #tpu.memory_space<smem>>
    %535 = vector.broadcast %534 : f32 to vector<8x16xf32>
    %536 = arith.mulf %473, %535 : vector<8x16xf32>
    %537 = arith.addf %362, %536 : vector<8x16xf32>
    %c56_127 = arith.constant 56 : index
    %538 = memref.load %arg4[%c56_127] : memref<400xf32, #tpu.memory_space<smem>>
    %539 = vector.broadcast %538 : f32 to vector<8x16xf32>
    %540 = arith.mulf %473, %539 : vector<8x16xf32>
    %541 = arith.addf %366, %540 : vector<8x16xf32>
    %c57_128 = arith.constant 57 : index
    %542 = memref.load %arg4[%c57_128] : memref<400xf32, #tpu.memory_space<smem>>
    %543 = vector.broadcast %542 : f32 to vector<8x16xf32>
    %544 = arith.mulf %473, %543 : vector<8x16xf32>
    %545 = arith.addf %370, %544 : vector<8x16xf32>
    %c58_129 = arith.constant 58 : index
    %546 = memref.load %arg4[%c58_129] : memref<400xf32, #tpu.memory_space<smem>>
    %547 = vector.broadcast %546 : f32 to vector<8x16xf32>
    %548 = arith.mulf %473, %547 : vector<8x16xf32>
    %549 = arith.addf %374, %548 : vector<8x16xf32>
    %c59_130 = arith.constant 59 : index
    %550 = memref.load %arg4[%c59_130] : memref<400xf32, #tpu.memory_space<smem>>
    %551 = vector.broadcast %550 : f32 to vector<8x16xf32>
    %552 = arith.mulf %473, %551 : vector<8x16xf32>
    %553 = arith.addf %378, %552 : vector<8x16xf32>
    %554 = arith.mulf %473, %473 : vector<8x16xf32>
    %cst_131 = arith.constant 1.000000e+00 : f32
    %555 = vector.broadcast %cst_131 : f32 to vector<8x16xf32>
    %556 = arith.subf %555, %554 : vector<8x16xf32>
    %c2_132 = arith.constant 2 : index
    %557 = memref.load %arg2[%c2_132] : memref<20xf32, #tpu.memory_space<smem>>
    %558 = vector.broadcast %557 : f32 to vector<8x16xf32>
    %559 = arith.mulf %556, %558 : vector<8x16xf32>
    %cst_133 = arith.constant 1.000000e+00 : f32
    %560 = vector.broadcast %cst_133 : f32 to vector<8x16xf32>
    %561 = arith.addf %560, %559 : vector<8x16xf32>
    %562 = math.absf %561 : vector<8x16xf32>
    %cst_134 = arith.constant 9.99999993E-9 : f32
    %563 = vector.broadcast %cst_134 : f32 to vector<8x16xf32>
    %564 = arith.addf %562, %563 : vector<8x16xf32>
    %565 = arith.mulf %390, %564 : vector<8x16xf32>
    %c60 = arith.constant 60 : index
    %566 = memref.load %arg3[%c60] : memref<400xf32, #tpu.memory_space<smem>>
    %567 = vector.broadcast %566 : f32 to vector<8x16xf32>
    %568 = arith.mulf %477, %567 : vector<8x16xf32>
    %c61 = arith.constant 61 : index
    %569 = memref.load %arg3[%c61] : memref<400xf32, #tpu.memory_space<smem>>
    %570 = vector.broadcast %569 : f32 to vector<8x16xf32>
    %571 = arith.mulf %481, %570 : vector<8x16xf32>
    %c62 = arith.constant 62 : index
    %572 = memref.load %arg3[%c62] : memref<400xf32, #tpu.memory_space<smem>>
    %573 = vector.broadcast %572 : f32 to vector<8x16xf32>
    %574 = arith.mulf %485, %573 : vector<8x16xf32>
    %c63 = arith.constant 63 : index
    %575 = memref.load %arg3[%c63] : memref<400xf32, #tpu.memory_space<smem>>
    %576 = vector.broadcast %575 : f32 to vector<8x16xf32>
    %577 = arith.mulf %489, %576 : vector<8x16xf32>
    %c64 = arith.constant 64 : index
    %578 = memref.load %arg3[%c64] : memref<400xf32, #tpu.memory_space<smem>>
    %579 = vector.broadcast %578 : f32 to vector<8x16xf32>
    %580 = arith.mulf %493, %579 : vector<8x16xf32>
    %c65 = arith.constant 65 : index
    %581 = memref.load %arg3[%c65] : memref<400xf32, #tpu.memory_space<smem>>
    %582 = vector.broadcast %581 : f32 to vector<8x16xf32>
    %583 = arith.mulf %497, %582 : vector<8x16xf32>
    %c66 = arith.constant 66 : index
    %584 = memref.load %arg3[%c66] : memref<400xf32, #tpu.memory_space<smem>>
    %585 = vector.broadcast %584 : f32 to vector<8x16xf32>
    %586 = arith.mulf %501, %585 : vector<8x16xf32>
    %c67 = arith.constant 67 : index
    %587 = memref.load %arg3[%c67] : memref<400xf32, #tpu.memory_space<smem>>
    %588 = vector.broadcast %587 : f32 to vector<8x16xf32>
    %589 = arith.mulf %505, %588 : vector<8x16xf32>
    %c68 = arith.constant 68 : index
    %590 = memref.load %arg3[%c68] : memref<400xf32, #tpu.memory_space<smem>>
    %591 = vector.broadcast %590 : f32 to vector<8x16xf32>
    %592 = arith.mulf %509, %591 : vector<8x16xf32>
    %c69 = arith.constant 69 : index
    %593 = memref.load %arg3[%c69] : memref<400xf32, #tpu.memory_space<smem>>
    %594 = vector.broadcast %593 : f32 to vector<8x16xf32>
    %595 = arith.mulf %513, %594 : vector<8x16xf32>
    %c70 = arith.constant 70 : index
    %596 = memref.load %arg3[%c70] : memref<400xf32, #tpu.memory_space<smem>>
    %597 = vector.broadcast %596 : f32 to vector<8x16xf32>
    %598 = arith.mulf %517, %597 : vector<8x16xf32>
    %c71 = arith.constant 71 : index
    %599 = memref.load %arg3[%c71] : memref<400xf32, #tpu.memory_space<smem>>
    %600 = vector.broadcast %599 : f32 to vector<8x16xf32>
    %601 = arith.mulf %521, %600 : vector<8x16xf32>
    %c72 = arith.constant 72 : index
    %602 = memref.load %arg3[%c72] : memref<400xf32, #tpu.memory_space<smem>>
    %603 = vector.broadcast %602 : f32 to vector<8x16xf32>
    %604 = arith.mulf %525, %603 : vector<8x16xf32>
    %c73 = arith.constant 73 : index
    %605 = memref.load %arg3[%c73] : memref<400xf32, #tpu.memory_space<smem>>
    %606 = vector.broadcast %605 : f32 to vector<8x16xf32>
    %607 = arith.mulf %529, %606 : vector<8x16xf32>
    %c74 = arith.constant 74 : index
    %608 = memref.load %arg3[%c74] : memref<400xf32, #tpu.memory_space<smem>>
    %609 = vector.broadcast %608 : f32 to vector<8x16xf32>
    %610 = arith.mulf %533, %609 : vector<8x16xf32>
    %c75 = arith.constant 75 : index
    %611 = memref.load %arg3[%c75] : memref<400xf32, #tpu.memory_space<smem>>
    %612 = vector.broadcast %611 : f32 to vector<8x16xf32>
    %613 = arith.mulf %537, %612 : vector<8x16xf32>
    %c76 = arith.constant 76 : index
    %614 = memref.load %arg3[%c76] : memref<400xf32, #tpu.memory_space<smem>>
    %615 = vector.broadcast %614 : f32 to vector<8x16xf32>
    %616 = arith.mulf %541, %615 : vector<8x16xf32>
    %c77 = arith.constant 77 : index
    %617 = memref.load %arg3[%c77] : memref<400xf32, #tpu.memory_space<smem>>
    %618 = vector.broadcast %617 : f32 to vector<8x16xf32>
    %619 = arith.mulf %545, %618 : vector<8x16xf32>
    %c78 = arith.constant 78 : index
    %620 = memref.load %arg3[%c78] : memref<400xf32, #tpu.memory_space<smem>>
    %621 = vector.broadcast %620 : f32 to vector<8x16xf32>
    %622 = arith.mulf %549, %621 : vector<8x16xf32>
    %c79 = arith.constant 79 : index
    %623 = memref.load %arg3[%c79] : memref<400xf32, #tpu.memory_space<smem>>
    %624 = vector.broadcast %623 : f32 to vector<8x16xf32>
    %625 = arith.mulf %553, %624 : vector<8x16xf32>
    %626 = arith.addf %568, %571 : vector<8x16xf32>
    %627 = arith.addf %574, %577 : vector<8x16xf32>
    %628 = arith.addf %580, %583 : vector<8x16xf32>
    %629 = arith.addf %586, %589 : vector<8x16xf32>
    %630 = arith.addf %592, %595 : vector<8x16xf32>
    %631 = arith.addf %598, %601 : vector<8x16xf32>
    %632 = arith.addf %604, %607 : vector<8x16xf32>
    %633 = arith.addf %610, %613 : vector<8x16xf32>
    %634 = arith.addf %616, %619 : vector<8x16xf32>
    %635 = arith.addf %622, %625 : vector<8x16xf32>
    %636 = arith.addf %626, %627 : vector<8x16xf32>
    %637 = arith.addf %628, %629 : vector<8x16xf32>
    %638 = arith.addf %630, %631 : vector<8x16xf32>
    %639 = arith.addf %632, %633 : vector<8x16xf32>
    %640 = arith.addf %634, %635 : vector<8x16xf32>
    %641 = arith.addf %636, %637 : vector<8x16xf32>
    %642 = arith.addf %638, %639 : vector<8x16xf32>
    %643 = arith.addf %641, %642 : vector<8x16xf32>
    %644 = arith.addf %643, %640 : vector<8x16xf32>
    %c3_135 = arith.constant 3 : index
    %645 = memref.load %arg1[%c3_135] : memref<20xf32, #tpu.memory_space<smem>>
    %646 = vector.broadcast %645 : f32 to vector<8x16xf32>
    %647 = arith.addf %644, %646 : vector<8x16xf32>
    %648 = math.tanh %647 : vector<8x16xf32>
    %c60_136 = arith.constant 60 : index
    %649 = memref.load %arg4[%c60_136] : memref<400xf32, #tpu.memory_space<smem>>
    %650 = vector.broadcast %649 : f32 to vector<8x16xf32>
    %651 = arith.mulf %648, %650 : vector<8x16xf32>
    %652 = arith.addf %477, %651 : vector<8x16xf32>
    %c61_137 = arith.constant 61 : index
    %653 = memref.load %arg4[%c61_137] : memref<400xf32, #tpu.memory_space<smem>>
    %654 = vector.broadcast %653 : f32 to vector<8x16xf32>
    %655 = arith.mulf %648, %654 : vector<8x16xf32>
    %656 = arith.addf %481, %655 : vector<8x16xf32>
    %c62_138 = arith.constant 62 : index
    %657 = memref.load %arg4[%c62_138] : memref<400xf32, #tpu.memory_space<smem>>
    %658 = vector.broadcast %657 : f32 to vector<8x16xf32>
    %659 = arith.mulf %648, %658 : vector<8x16xf32>
    %660 = arith.addf %485, %659 : vector<8x16xf32>
    %c63_139 = arith.constant 63 : index
    %661 = memref.load %arg4[%c63_139] : memref<400xf32, #tpu.memory_space<smem>>
    %662 = vector.broadcast %661 : f32 to vector<8x16xf32>
    %663 = arith.mulf %648, %662 : vector<8x16xf32>
    %664 = arith.addf %489, %663 : vector<8x16xf32>
    %c64_140 = arith.constant 64 : index
    %665 = memref.load %arg4[%c64_140] : memref<400xf32, #tpu.memory_space<smem>>
    %666 = vector.broadcast %665 : f32 to vector<8x16xf32>
    %667 = arith.mulf %648, %666 : vector<8x16xf32>
    %668 = arith.addf %493, %667 : vector<8x16xf32>
    %c65_141 = arith.constant 65 : index
    %669 = memref.load %arg4[%c65_141] : memref<400xf32, #tpu.memory_space<smem>>
    %670 = vector.broadcast %669 : f32 to vector<8x16xf32>
    %671 = arith.mulf %648, %670 : vector<8x16xf32>
    %672 = arith.addf %497, %671 : vector<8x16xf32>
    %c66_142 = arith.constant 66 : index
    %673 = memref.load %arg4[%c66_142] : memref<400xf32, #tpu.memory_space<smem>>
    %674 = vector.broadcast %673 : f32 to vector<8x16xf32>
    %675 = arith.mulf %648, %674 : vector<8x16xf32>
    %676 = arith.addf %501, %675 : vector<8x16xf32>
    %c67_143 = arith.constant 67 : index
    %677 = memref.load %arg4[%c67_143] : memref<400xf32, #tpu.memory_space<smem>>
    %678 = vector.broadcast %677 : f32 to vector<8x16xf32>
    %679 = arith.mulf %648, %678 : vector<8x16xf32>
    %680 = arith.addf %505, %679 : vector<8x16xf32>
    %c68_144 = arith.constant 68 : index
    %681 = memref.load %arg4[%c68_144] : memref<400xf32, #tpu.memory_space<smem>>
    %682 = vector.broadcast %681 : f32 to vector<8x16xf32>
    %683 = arith.mulf %648, %682 : vector<8x16xf32>
    %684 = arith.addf %509, %683 : vector<8x16xf32>
    %c69_145 = arith.constant 69 : index
    %685 = memref.load %arg4[%c69_145] : memref<400xf32, #tpu.memory_space<smem>>
    %686 = vector.broadcast %685 : f32 to vector<8x16xf32>
    %687 = arith.mulf %648, %686 : vector<8x16xf32>
    %688 = arith.addf %513, %687 : vector<8x16xf32>
    %c70_146 = arith.constant 70 : index
    %689 = memref.load %arg4[%c70_146] : memref<400xf32, #tpu.memory_space<smem>>
    %690 = vector.broadcast %689 : f32 to vector<8x16xf32>
    %691 = arith.mulf %648, %690 : vector<8x16xf32>
    %692 = arith.addf %517, %691 : vector<8x16xf32>
    %c71_147 = arith.constant 71 : index
    %693 = memref.load %arg4[%c71_147] : memref<400xf32, #tpu.memory_space<smem>>
    %694 = vector.broadcast %693 : f32 to vector<8x16xf32>
    %695 = arith.mulf %648, %694 : vector<8x16xf32>
    %696 = arith.addf %521, %695 : vector<8x16xf32>
    %c72_148 = arith.constant 72 : index
    %697 = memref.load %arg4[%c72_148] : memref<400xf32, #tpu.memory_space<smem>>
    %698 = vector.broadcast %697 : f32 to vector<8x16xf32>
    %699 = arith.mulf %648, %698 : vector<8x16xf32>
    %700 = arith.addf %525, %699 : vector<8x16xf32>
    %c73_149 = arith.constant 73 : index
    %701 = memref.load %arg4[%c73_149] : memref<400xf32, #tpu.memory_space<smem>>
    %702 = vector.broadcast %701 : f32 to vector<8x16xf32>
    %703 = arith.mulf %648, %702 : vector<8x16xf32>
    %704 = arith.addf %529, %703 : vector<8x16xf32>
    %c74_150 = arith.constant 74 : index
    %705 = memref.load %arg4[%c74_150] : memref<400xf32, #tpu.memory_space<smem>>
    %706 = vector.broadcast %705 : f32 to vector<8x16xf32>
    %707 = arith.mulf %648, %706 : vector<8x16xf32>
    %708 = arith.addf %533, %707 : vector<8x16xf32>
    %c75_151 = arith.constant 75 : index
    %709 = memref.load %arg4[%c75_151] : memref<400xf32, #tpu.memory_space<smem>>
    %710 = vector.broadcast %709 : f32 to vector<8x16xf32>
    %711 = arith.mulf %648, %710 : vector<8x16xf32>
    %712 = arith.addf %537, %711 : vector<8x16xf32>
    %c76_152 = arith.constant 76 : index
    %713 = memref.load %arg4[%c76_152] : memref<400xf32, #tpu.memory_space<smem>>
    %714 = vector.broadcast %713 : f32 to vector<8x16xf32>
    %715 = arith.mulf %648, %714 : vector<8x16xf32>
    %716 = arith.addf %541, %715 : vector<8x16xf32>
    %c77_153 = arith.constant 77 : index
    %717 = memref.load %arg4[%c77_153] : memref<400xf32, #tpu.memory_space<smem>>
    %718 = vector.broadcast %717 : f32 to vector<8x16xf32>
    %719 = arith.mulf %648, %718 : vector<8x16xf32>
    %720 = arith.addf %545, %719 : vector<8x16xf32>
    %c78_154 = arith.constant 78 : index
    %721 = memref.load %arg4[%c78_154] : memref<400xf32, #tpu.memory_space<smem>>
    %722 = vector.broadcast %721 : f32 to vector<8x16xf32>
    %723 = arith.mulf %648, %722 : vector<8x16xf32>
    %724 = arith.addf %549, %723 : vector<8x16xf32>
    %c79_155 = arith.constant 79 : index
    %725 = memref.load %arg4[%c79_155] : memref<400xf32, #tpu.memory_space<smem>>
    %726 = vector.broadcast %725 : f32 to vector<8x16xf32>
    %727 = arith.mulf %648, %726 : vector<8x16xf32>
    %728 = arith.addf %553, %727 : vector<8x16xf32>
    %729 = arith.mulf %648, %648 : vector<8x16xf32>
    %cst_156 = arith.constant 1.000000e+00 : f32
    %730 = vector.broadcast %cst_156 : f32 to vector<8x16xf32>
    %731 = arith.subf %730, %729 : vector<8x16xf32>
    %c3_157 = arith.constant 3 : index
    %732 = memref.load %arg2[%c3_157] : memref<20xf32, #tpu.memory_space<smem>>
    %733 = vector.broadcast %732 : f32 to vector<8x16xf32>
    %734 = arith.mulf %731, %733 : vector<8x16xf32>
    %cst_158 = arith.constant 1.000000e+00 : f32
    %735 = vector.broadcast %cst_158 : f32 to vector<8x16xf32>
    %736 = arith.addf %735, %734 : vector<8x16xf32>
    %737 = math.absf %736 : vector<8x16xf32>
    %cst_159 = arith.constant 9.99999993E-9 : f32
    %738 = vector.broadcast %cst_159 : f32 to vector<8x16xf32>
    %739 = arith.addf %737, %738 : vector<8x16xf32>
    %740 = arith.mulf %565, %739 : vector<8x16xf32>
    %c80 = arith.constant 80 : index
    %741 = memref.load %arg3[%c80] : memref<400xf32, #tpu.memory_space<smem>>
    %742 = vector.broadcast %741 : f32 to vector<8x16xf32>
    %743 = arith.mulf %652, %742 : vector<8x16xf32>
    %c81 = arith.constant 81 : index
    %744 = memref.load %arg3[%c81] : memref<400xf32, #tpu.memory_space<smem>>
    %745 = vector.broadcast %744 : f32 to vector<8x16xf32>
    %746 = arith.mulf %656, %745 : vector<8x16xf32>
    %c82 = arith.constant 82 : index
    %747 = memref.load %arg3[%c82] : memref<400xf32, #tpu.memory_space<smem>>
    %748 = vector.broadcast %747 : f32 to vector<8x16xf32>
    %749 = arith.mulf %660, %748 : vector<8x16xf32>
    %c83 = arith.constant 83 : index
    %750 = memref.load %arg3[%c83] : memref<400xf32, #tpu.memory_space<smem>>
    %751 = vector.broadcast %750 : f32 to vector<8x16xf32>
    %752 = arith.mulf %664, %751 : vector<8x16xf32>
    %c84 = arith.constant 84 : index
    %753 = memref.load %arg3[%c84] : memref<400xf32, #tpu.memory_space<smem>>
    %754 = vector.broadcast %753 : f32 to vector<8x16xf32>
    %755 = arith.mulf %668, %754 : vector<8x16xf32>
    %c85 = arith.constant 85 : index
    %756 = memref.load %arg3[%c85] : memref<400xf32, #tpu.memory_space<smem>>
    %757 = vector.broadcast %756 : f32 to vector<8x16xf32>
    %758 = arith.mulf %672, %757 : vector<8x16xf32>
    %c86 = arith.constant 86 : index
    %759 = memref.load %arg3[%c86] : memref<400xf32, #tpu.memory_space<smem>>
    %760 = vector.broadcast %759 : f32 to vector<8x16xf32>
    %761 = arith.mulf %676, %760 : vector<8x16xf32>
    %c87 = arith.constant 87 : index
    %762 = memref.load %arg3[%c87] : memref<400xf32, #tpu.memory_space<smem>>
    %763 = vector.broadcast %762 : f32 to vector<8x16xf32>
    %764 = arith.mulf %680, %763 : vector<8x16xf32>
    %c88 = arith.constant 88 : index
    %765 = memref.load %arg3[%c88] : memref<400xf32, #tpu.memory_space<smem>>
    %766 = vector.broadcast %765 : f32 to vector<8x16xf32>
    %767 = arith.mulf %684, %766 : vector<8x16xf32>
    %c89 = arith.constant 89 : index
    %768 = memref.load %arg3[%c89] : memref<400xf32, #tpu.memory_space<smem>>
    %769 = vector.broadcast %768 : f32 to vector<8x16xf32>
    %770 = arith.mulf %688, %769 : vector<8x16xf32>
    %c90 = arith.constant 90 : index
    %771 = memref.load %arg3[%c90] : memref<400xf32, #tpu.memory_space<smem>>
    %772 = vector.broadcast %771 : f32 to vector<8x16xf32>
    %773 = arith.mulf %692, %772 : vector<8x16xf32>
    %c91 = arith.constant 91 : index
    %774 = memref.load %arg3[%c91] : memref<400xf32, #tpu.memory_space<smem>>
    %775 = vector.broadcast %774 : f32 to vector<8x16xf32>
    %776 = arith.mulf %696, %775 : vector<8x16xf32>
    %c92 = arith.constant 92 : index
    %777 = memref.load %arg3[%c92] : memref<400xf32, #tpu.memory_space<smem>>
    %778 = vector.broadcast %777 : f32 to vector<8x16xf32>
    %779 = arith.mulf %700, %778 : vector<8x16xf32>
    %c93 = arith.constant 93 : index
    %780 = memref.load %arg3[%c93] : memref<400xf32, #tpu.memory_space<smem>>
    %781 = vector.broadcast %780 : f32 to vector<8x16xf32>
    %782 = arith.mulf %704, %781 : vector<8x16xf32>
    %c94 = arith.constant 94 : index
    %783 = memref.load %arg3[%c94] : memref<400xf32, #tpu.memory_space<smem>>
    %784 = vector.broadcast %783 : f32 to vector<8x16xf32>
    %785 = arith.mulf %708, %784 : vector<8x16xf32>
    %c95 = arith.constant 95 : index
    %786 = memref.load %arg3[%c95] : memref<400xf32, #tpu.memory_space<smem>>
    %787 = vector.broadcast %786 : f32 to vector<8x16xf32>
    %788 = arith.mulf %712, %787 : vector<8x16xf32>
    %c96 = arith.constant 96 : index
    %789 = memref.load %arg3[%c96] : memref<400xf32, #tpu.memory_space<smem>>
    %790 = vector.broadcast %789 : f32 to vector<8x16xf32>
    %791 = arith.mulf %716, %790 : vector<8x16xf32>
    %c97 = arith.constant 97 : index
    %792 = memref.load %arg3[%c97] : memref<400xf32, #tpu.memory_space<smem>>
    %793 = vector.broadcast %792 : f32 to vector<8x16xf32>
    %794 = arith.mulf %720, %793 : vector<8x16xf32>
    %c98 = arith.constant 98 : index
    %795 = memref.load %arg3[%c98] : memref<400xf32, #tpu.memory_space<smem>>
    %796 = vector.broadcast %795 : f32 to vector<8x16xf32>
    %797 = arith.mulf %724, %796 : vector<8x16xf32>
    %c99 = arith.constant 99 : index
    %798 = memref.load %arg3[%c99] : memref<400xf32, #tpu.memory_space<smem>>
    %799 = vector.broadcast %798 : f32 to vector<8x16xf32>
    %800 = arith.mulf %728, %799 : vector<8x16xf32>
    %801 = arith.addf %743, %746 : vector<8x16xf32>
    %802 = arith.addf %749, %752 : vector<8x16xf32>
    %803 = arith.addf %755, %758 : vector<8x16xf32>
    %804 = arith.addf %761, %764 : vector<8x16xf32>
    %805 = arith.addf %767, %770 : vector<8x16xf32>
    %806 = arith.addf %773, %776 : vector<8x16xf32>
    %807 = arith.addf %779, %782 : vector<8x16xf32>
    %808 = arith.addf %785, %788 : vector<8x16xf32>
    %809 = arith.addf %791, %794 : vector<8x16xf32>
    %810 = arith.addf %797, %800 : vector<8x16xf32>
    %811 = arith.addf %801, %802 : vector<8x16xf32>
    %812 = arith.addf %803, %804 : vector<8x16xf32>
    %813 = arith.addf %805, %806 : vector<8x16xf32>
    %814 = arith.addf %807, %808 : vector<8x16xf32>
    %815 = arith.addf %809, %810 : vector<8x16xf32>
    %816 = arith.addf %811, %812 : vector<8x16xf32>
    %817 = arith.addf %813, %814 : vector<8x16xf32>
    %818 = arith.addf %816, %817 : vector<8x16xf32>
    %819 = arith.addf %818, %815 : vector<8x16xf32>
    %c4_160 = arith.constant 4 : index
    %820 = memref.load %arg1[%c4_160] : memref<20xf32, #tpu.memory_space<smem>>
    %821 = vector.broadcast %820 : f32 to vector<8x16xf32>
    %822 = arith.addf %819, %821 : vector<8x16xf32>
    %823 = math.tanh %822 : vector<8x16xf32>
    %c80_161 = arith.constant 80 : index
    %824 = memref.load %arg4[%c80_161] : memref<400xf32, #tpu.memory_space<smem>>
    %825 = vector.broadcast %824 : f32 to vector<8x16xf32>
    %826 = arith.mulf %823, %825 : vector<8x16xf32>
    %827 = arith.addf %652, %826 : vector<8x16xf32>
    %c81_162 = arith.constant 81 : index
    %828 = memref.load %arg4[%c81_162] : memref<400xf32, #tpu.memory_space<smem>>
    %829 = vector.broadcast %828 : f32 to vector<8x16xf32>
    %830 = arith.mulf %823, %829 : vector<8x16xf32>
    %831 = arith.addf %656, %830 : vector<8x16xf32>
    %c82_163 = arith.constant 82 : index
    %832 = memref.load %arg4[%c82_163] : memref<400xf32, #tpu.memory_space<smem>>
    %833 = vector.broadcast %832 : f32 to vector<8x16xf32>
    %834 = arith.mulf %823, %833 : vector<8x16xf32>
    %835 = arith.addf %660, %834 : vector<8x16xf32>
    %c83_164 = arith.constant 83 : index
    %836 = memref.load %arg4[%c83_164] : memref<400xf32, #tpu.memory_space<smem>>
    %837 = vector.broadcast %836 : f32 to vector<8x16xf32>
    %838 = arith.mulf %823, %837 : vector<8x16xf32>
    %839 = arith.addf %664, %838 : vector<8x16xf32>
    %c84_165 = arith.constant 84 : index
    %840 = memref.load %arg4[%c84_165] : memref<400xf32, #tpu.memory_space<smem>>
    %841 = vector.broadcast %840 : f32 to vector<8x16xf32>
    %842 = arith.mulf %823, %841 : vector<8x16xf32>
    %843 = arith.addf %668, %842 : vector<8x16xf32>
    %c85_166 = arith.constant 85 : index
    %844 = memref.load %arg4[%c85_166] : memref<400xf32, #tpu.memory_space<smem>>
    %845 = vector.broadcast %844 : f32 to vector<8x16xf32>
    %846 = arith.mulf %823, %845 : vector<8x16xf32>
    %847 = arith.addf %672, %846 : vector<8x16xf32>
    %c86_167 = arith.constant 86 : index
    %848 = memref.load %arg4[%c86_167] : memref<400xf32, #tpu.memory_space<smem>>
    %849 = vector.broadcast %848 : f32 to vector<8x16xf32>
    %850 = arith.mulf %823, %849 : vector<8x16xf32>
    %851 = arith.addf %676, %850 : vector<8x16xf32>
    %c87_168 = arith.constant 87 : index
    %852 = memref.load %arg4[%c87_168] : memref<400xf32, #tpu.memory_space<smem>>
    %853 = vector.broadcast %852 : f32 to vector<8x16xf32>
    %854 = arith.mulf %823, %853 : vector<8x16xf32>
    %855 = arith.addf %680, %854 : vector<8x16xf32>
    %c88_169 = arith.constant 88 : index
    %856 = memref.load %arg4[%c88_169] : memref<400xf32, #tpu.memory_space<smem>>
    %857 = vector.broadcast %856 : f32 to vector<8x16xf32>
    %858 = arith.mulf %823, %857 : vector<8x16xf32>
    %859 = arith.addf %684, %858 : vector<8x16xf32>
    %c89_170 = arith.constant 89 : index
    %860 = memref.load %arg4[%c89_170] : memref<400xf32, #tpu.memory_space<smem>>
    %861 = vector.broadcast %860 : f32 to vector<8x16xf32>
    %862 = arith.mulf %823, %861 : vector<8x16xf32>
    %863 = arith.addf %688, %862 : vector<8x16xf32>
    %c90_171 = arith.constant 90 : index
    %864 = memref.load %arg4[%c90_171] : memref<400xf32, #tpu.memory_space<smem>>
    %865 = vector.broadcast %864 : f32 to vector<8x16xf32>
    %866 = arith.mulf %823, %865 : vector<8x16xf32>
    %867 = arith.addf %692, %866 : vector<8x16xf32>
    %c91_172 = arith.constant 91 : index
    %868 = memref.load %arg4[%c91_172] : memref<400xf32, #tpu.memory_space<smem>>
    %869 = vector.broadcast %868 : f32 to vector<8x16xf32>
    %870 = arith.mulf %823, %869 : vector<8x16xf32>
    %871 = arith.addf %696, %870 : vector<8x16xf32>
    %c92_173 = arith.constant 92 : index
    %872 = memref.load %arg4[%c92_173] : memref<400xf32, #tpu.memory_space<smem>>
    %873 = vector.broadcast %872 : f32 to vector<8x16xf32>
    %874 = arith.mulf %823, %873 : vector<8x16xf32>
    %875 = arith.addf %700, %874 : vector<8x16xf32>
    %c93_174 = arith.constant 93 : index
    %876 = memref.load %arg4[%c93_174] : memref<400xf32, #tpu.memory_space<smem>>
    %877 = vector.broadcast %876 : f32 to vector<8x16xf32>
    %878 = arith.mulf %823, %877 : vector<8x16xf32>
    %879 = arith.addf %704, %878 : vector<8x16xf32>
    %c94_175 = arith.constant 94 : index
    %880 = memref.load %arg4[%c94_175] : memref<400xf32, #tpu.memory_space<smem>>
    %881 = vector.broadcast %880 : f32 to vector<8x16xf32>
    %882 = arith.mulf %823, %881 : vector<8x16xf32>
    %883 = arith.addf %708, %882 : vector<8x16xf32>
    %c95_176 = arith.constant 95 : index
    %884 = memref.load %arg4[%c95_176] : memref<400xf32, #tpu.memory_space<smem>>
    %885 = vector.broadcast %884 : f32 to vector<8x16xf32>
    %886 = arith.mulf %823, %885 : vector<8x16xf32>
    %887 = arith.addf %712, %886 : vector<8x16xf32>
    %c96_177 = arith.constant 96 : index
    %888 = memref.load %arg4[%c96_177] : memref<400xf32, #tpu.memory_space<smem>>
    %889 = vector.broadcast %888 : f32 to vector<8x16xf32>
    %890 = arith.mulf %823, %889 : vector<8x16xf32>
    %891 = arith.addf %716, %890 : vector<8x16xf32>
    %c97_178 = arith.constant 97 : index
    %892 = memref.load %arg4[%c97_178] : memref<400xf32, #tpu.memory_space<smem>>
    %893 = vector.broadcast %892 : f32 to vector<8x16xf32>
    %894 = arith.mulf %823, %893 : vector<8x16xf32>
    %895 = arith.addf %720, %894 : vector<8x16xf32>
    %c98_179 = arith.constant 98 : index
    %896 = memref.load %arg4[%c98_179] : memref<400xf32, #tpu.memory_space<smem>>
    %897 = vector.broadcast %896 : f32 to vector<8x16xf32>
    %898 = arith.mulf %823, %897 : vector<8x16xf32>
    %899 = arith.addf %724, %898 : vector<8x16xf32>
    %c99_180 = arith.constant 99 : index
    %900 = memref.load %arg4[%c99_180] : memref<400xf32, #tpu.memory_space<smem>>
    %901 = vector.broadcast %900 : f32 to vector<8x16xf32>
    %902 = arith.mulf %823, %901 : vector<8x16xf32>
    %903 = arith.addf %728, %902 : vector<8x16xf32>
    %904 = arith.mulf %823, %823 : vector<8x16xf32>
    %cst_181 = arith.constant 1.000000e+00 : f32
    %905 = vector.broadcast %cst_181 : f32 to vector<8x16xf32>
    %906 = arith.subf %905, %904 : vector<8x16xf32>
    %c4_182 = arith.constant 4 : index
    %907 = memref.load %arg2[%c4_182] : memref<20xf32, #tpu.memory_space<smem>>
    %908 = vector.broadcast %907 : f32 to vector<8x16xf32>
    %909 = arith.mulf %906, %908 : vector<8x16xf32>
    %cst_183 = arith.constant 1.000000e+00 : f32
    %910 = vector.broadcast %cst_183 : f32 to vector<8x16xf32>
    %911 = arith.addf %910, %909 : vector<8x16xf32>
    %912 = math.absf %911 : vector<8x16xf32>
    %cst_184 = arith.constant 9.99999993E-9 : f32
    %913 = vector.broadcast %cst_184 : f32 to vector<8x16xf32>
    %914 = arith.addf %912, %913 : vector<8x16xf32>
    %915 = arith.mulf %740, %914 : vector<8x16xf32>
    %c100 = arith.constant 100 : index
    %916 = memref.load %arg3[%c100] : memref<400xf32, #tpu.memory_space<smem>>
    %917 = vector.broadcast %916 : f32 to vector<8x16xf32>
    %918 = arith.mulf %827, %917 : vector<8x16xf32>
    %c101 = arith.constant 101 : index
    %919 = memref.load %arg3[%c101] : memref<400xf32, #tpu.memory_space<smem>>
    %920 = vector.broadcast %919 : f32 to vector<8x16xf32>
    %921 = arith.mulf %831, %920 : vector<8x16xf32>
    %c102 = arith.constant 102 : index
    %922 = memref.load %arg3[%c102] : memref<400xf32, #tpu.memory_space<smem>>
    %923 = vector.broadcast %922 : f32 to vector<8x16xf32>
    %924 = arith.mulf %835, %923 : vector<8x16xf32>
    %c103 = arith.constant 103 : index
    %925 = memref.load %arg3[%c103] : memref<400xf32, #tpu.memory_space<smem>>
    %926 = vector.broadcast %925 : f32 to vector<8x16xf32>
    %927 = arith.mulf %839, %926 : vector<8x16xf32>
    %c104 = arith.constant 104 : index
    %928 = memref.load %arg3[%c104] : memref<400xf32, #tpu.memory_space<smem>>
    %929 = vector.broadcast %928 : f32 to vector<8x16xf32>
    %930 = arith.mulf %843, %929 : vector<8x16xf32>
    %c105 = arith.constant 105 : index
    %931 = memref.load %arg3[%c105] : memref<400xf32, #tpu.memory_space<smem>>
    %932 = vector.broadcast %931 : f32 to vector<8x16xf32>
    %933 = arith.mulf %847, %932 : vector<8x16xf32>
    %c106 = arith.constant 106 : index
    %934 = memref.load %arg3[%c106] : memref<400xf32, #tpu.memory_space<smem>>
    %935 = vector.broadcast %934 : f32 to vector<8x16xf32>
    %936 = arith.mulf %851, %935 : vector<8x16xf32>
    %c107 = arith.constant 107 : index
    %937 = memref.load %arg3[%c107] : memref<400xf32, #tpu.memory_space<smem>>
    %938 = vector.broadcast %937 : f32 to vector<8x16xf32>
    %939 = arith.mulf %855, %938 : vector<8x16xf32>
    %c108 = arith.constant 108 : index
    %940 = memref.load %arg3[%c108] : memref<400xf32, #tpu.memory_space<smem>>
    %941 = vector.broadcast %940 : f32 to vector<8x16xf32>
    %942 = arith.mulf %859, %941 : vector<8x16xf32>
    %c109 = arith.constant 109 : index
    %943 = memref.load %arg3[%c109] : memref<400xf32, #tpu.memory_space<smem>>
    %944 = vector.broadcast %943 : f32 to vector<8x16xf32>
    %945 = arith.mulf %863, %944 : vector<8x16xf32>
    %c110 = arith.constant 110 : index
    %946 = memref.load %arg3[%c110] : memref<400xf32, #tpu.memory_space<smem>>
    %947 = vector.broadcast %946 : f32 to vector<8x16xf32>
    %948 = arith.mulf %867, %947 : vector<8x16xf32>
    %c111 = arith.constant 111 : index
    %949 = memref.load %arg3[%c111] : memref<400xf32, #tpu.memory_space<smem>>
    %950 = vector.broadcast %949 : f32 to vector<8x16xf32>
    %951 = arith.mulf %871, %950 : vector<8x16xf32>
    %c112 = arith.constant 112 : index
    %952 = memref.load %arg3[%c112] : memref<400xf32, #tpu.memory_space<smem>>
    %953 = vector.broadcast %952 : f32 to vector<8x16xf32>
    %954 = arith.mulf %875, %953 : vector<8x16xf32>
    %c113 = arith.constant 113 : index
    %955 = memref.load %arg3[%c113] : memref<400xf32, #tpu.memory_space<smem>>
    %956 = vector.broadcast %955 : f32 to vector<8x16xf32>
    %957 = arith.mulf %879, %956 : vector<8x16xf32>
    %c114 = arith.constant 114 : index
    %958 = memref.load %arg3[%c114] : memref<400xf32, #tpu.memory_space<smem>>
    %959 = vector.broadcast %958 : f32 to vector<8x16xf32>
    %960 = arith.mulf %883, %959 : vector<8x16xf32>
    %c115 = arith.constant 115 : index
    %961 = memref.load %arg3[%c115] : memref<400xf32, #tpu.memory_space<smem>>
    %962 = vector.broadcast %961 : f32 to vector<8x16xf32>
    %963 = arith.mulf %887, %962 : vector<8x16xf32>
    %c116 = arith.constant 116 : index
    %964 = memref.load %arg3[%c116] : memref<400xf32, #tpu.memory_space<smem>>
    %965 = vector.broadcast %964 : f32 to vector<8x16xf32>
    %966 = arith.mulf %891, %965 : vector<8x16xf32>
    %c117 = arith.constant 117 : index
    %967 = memref.load %arg3[%c117] : memref<400xf32, #tpu.memory_space<smem>>
    %968 = vector.broadcast %967 : f32 to vector<8x16xf32>
    %969 = arith.mulf %895, %968 : vector<8x16xf32>
    %c118 = arith.constant 118 : index
    %970 = memref.load %arg3[%c118] : memref<400xf32, #tpu.memory_space<smem>>
    %971 = vector.broadcast %970 : f32 to vector<8x16xf32>
    %972 = arith.mulf %899, %971 : vector<8x16xf32>
    %c119 = arith.constant 119 : index
    %973 = memref.load %arg3[%c119] : memref<400xf32, #tpu.memory_space<smem>>
    %974 = vector.broadcast %973 : f32 to vector<8x16xf32>
    %975 = arith.mulf %903, %974 : vector<8x16xf32>
    %976 = arith.addf %918, %921 : vector<8x16xf32>
    %977 = arith.addf %924, %927 : vector<8x16xf32>
    %978 = arith.addf %930, %933 : vector<8x16xf32>
    %979 = arith.addf %936, %939 : vector<8x16xf32>
    %980 = arith.addf %942, %945 : vector<8x16xf32>
    %981 = arith.addf %948, %951 : vector<8x16xf32>
    %982 = arith.addf %954, %957 : vector<8x16xf32>
    %983 = arith.addf %960, %963 : vector<8x16xf32>
    %984 = arith.addf %966, %969 : vector<8x16xf32>
    %985 = arith.addf %972, %975 : vector<8x16xf32>
    %986 = arith.addf %976, %977 : vector<8x16xf32>
    %987 = arith.addf %978, %979 : vector<8x16xf32>
    %988 = arith.addf %980, %981 : vector<8x16xf32>
    %989 = arith.addf %982, %983 : vector<8x16xf32>
    %990 = arith.addf %984, %985 : vector<8x16xf32>
    %991 = arith.addf %986, %987 : vector<8x16xf32>
    %992 = arith.addf %988, %989 : vector<8x16xf32>
    %993 = arith.addf %991, %992 : vector<8x16xf32>
    %994 = arith.addf %993, %990 : vector<8x16xf32>
    %c5_185 = arith.constant 5 : index
    %995 = memref.load %arg1[%c5_185] : memref<20xf32, #tpu.memory_space<smem>>
    %996 = vector.broadcast %995 : f32 to vector<8x16xf32>
    %997 = arith.addf %994, %996 : vector<8x16xf32>
    %998 = math.tanh %997 : vector<8x16xf32>
    %c100_186 = arith.constant 100 : index
    %999 = memref.load %arg4[%c100_186] : memref<400xf32, #tpu.memory_space<smem>>
    %1000 = vector.broadcast %999 : f32 to vector<8x16xf32>
    %1001 = arith.mulf %998, %1000 : vector<8x16xf32>
    %1002 = arith.addf %827, %1001 : vector<8x16xf32>
    %c101_187 = arith.constant 101 : index
    %1003 = memref.load %arg4[%c101_187] : memref<400xf32, #tpu.memory_space<smem>>
    %1004 = vector.broadcast %1003 : f32 to vector<8x16xf32>
    %1005 = arith.mulf %998, %1004 : vector<8x16xf32>
    %1006 = arith.addf %831, %1005 : vector<8x16xf32>
    %c102_188 = arith.constant 102 : index
    %1007 = memref.load %arg4[%c102_188] : memref<400xf32, #tpu.memory_space<smem>>
    %1008 = vector.broadcast %1007 : f32 to vector<8x16xf32>
    %1009 = arith.mulf %998, %1008 : vector<8x16xf32>
    %1010 = arith.addf %835, %1009 : vector<8x16xf32>
    %c103_189 = arith.constant 103 : index
    %1011 = memref.load %arg4[%c103_189] : memref<400xf32, #tpu.memory_space<smem>>
    %1012 = vector.broadcast %1011 : f32 to vector<8x16xf32>
    %1013 = arith.mulf %998, %1012 : vector<8x16xf32>
    %1014 = arith.addf %839, %1013 : vector<8x16xf32>
    %c104_190 = arith.constant 104 : index
    %1015 = memref.load %arg4[%c104_190] : memref<400xf32, #tpu.memory_space<smem>>
    %1016 = vector.broadcast %1015 : f32 to vector<8x16xf32>
    %1017 = arith.mulf %998, %1016 : vector<8x16xf32>
    %1018 = arith.addf %843, %1017 : vector<8x16xf32>
    %c105_191 = arith.constant 105 : index
    %1019 = memref.load %arg4[%c105_191] : memref<400xf32, #tpu.memory_space<smem>>
    %1020 = vector.broadcast %1019 : f32 to vector<8x16xf32>
    %1021 = arith.mulf %998, %1020 : vector<8x16xf32>
    %1022 = arith.addf %847, %1021 : vector<8x16xf32>
    %c106_192 = arith.constant 106 : index
    %1023 = memref.load %arg4[%c106_192] : memref<400xf32, #tpu.memory_space<smem>>
    %1024 = vector.broadcast %1023 : f32 to vector<8x16xf32>
    %1025 = arith.mulf %998, %1024 : vector<8x16xf32>
    %1026 = arith.addf %851, %1025 : vector<8x16xf32>
    %c107_193 = arith.constant 107 : index
    %1027 = memref.load %arg4[%c107_193] : memref<400xf32, #tpu.memory_space<smem>>
    %1028 = vector.broadcast %1027 : f32 to vector<8x16xf32>
    %1029 = arith.mulf %998, %1028 : vector<8x16xf32>
    %1030 = arith.addf %855, %1029 : vector<8x16xf32>
    %c108_194 = arith.constant 108 : index
    %1031 = memref.load %arg4[%c108_194] : memref<400xf32, #tpu.memory_space<smem>>
    %1032 = vector.broadcast %1031 : f32 to vector<8x16xf32>
    %1033 = arith.mulf %998, %1032 : vector<8x16xf32>
    %1034 = arith.addf %859, %1033 : vector<8x16xf32>
    %c109_195 = arith.constant 109 : index
    %1035 = memref.load %arg4[%c109_195] : memref<400xf32, #tpu.memory_space<smem>>
    %1036 = vector.broadcast %1035 : f32 to vector<8x16xf32>
    %1037 = arith.mulf %998, %1036 : vector<8x16xf32>
    %1038 = arith.addf %863, %1037 : vector<8x16xf32>
    %c110_196 = arith.constant 110 : index
    %1039 = memref.load %arg4[%c110_196] : memref<400xf32, #tpu.memory_space<smem>>
    %1040 = vector.broadcast %1039 : f32 to vector<8x16xf32>
    %1041 = arith.mulf %998, %1040 : vector<8x16xf32>
    %1042 = arith.addf %867, %1041 : vector<8x16xf32>
    %c111_197 = arith.constant 111 : index
    %1043 = memref.load %arg4[%c111_197] : memref<400xf32, #tpu.memory_space<smem>>
    %1044 = vector.broadcast %1043 : f32 to vector<8x16xf32>
    %1045 = arith.mulf %998, %1044 : vector<8x16xf32>
    %1046 = arith.addf %871, %1045 : vector<8x16xf32>
    %c112_198 = arith.constant 112 : index
    %1047 = memref.load %arg4[%c112_198] : memref<400xf32, #tpu.memory_space<smem>>
    %1048 = vector.broadcast %1047 : f32 to vector<8x16xf32>
    %1049 = arith.mulf %998, %1048 : vector<8x16xf32>
    %1050 = arith.addf %875, %1049 : vector<8x16xf32>
    %c113_199 = arith.constant 113 : index
    %1051 = memref.load %arg4[%c113_199] : memref<400xf32, #tpu.memory_space<smem>>
    %1052 = vector.broadcast %1051 : f32 to vector<8x16xf32>
    %1053 = arith.mulf %998, %1052 : vector<8x16xf32>
    %1054 = arith.addf %879, %1053 : vector<8x16xf32>
    %c114_200 = arith.constant 114 : index
    %1055 = memref.load %arg4[%c114_200] : memref<400xf32, #tpu.memory_space<smem>>
    %1056 = vector.broadcast %1055 : f32 to vector<8x16xf32>
    %1057 = arith.mulf %998, %1056 : vector<8x16xf32>
    %1058 = arith.addf %883, %1057 : vector<8x16xf32>
    %c115_201 = arith.constant 115 : index
    %1059 = memref.load %arg4[%c115_201] : memref<400xf32, #tpu.memory_space<smem>>
    %1060 = vector.broadcast %1059 : f32 to vector<8x16xf32>
    %1061 = arith.mulf %998, %1060 : vector<8x16xf32>
    %1062 = arith.addf %887, %1061 : vector<8x16xf32>
    %c116_202 = arith.constant 116 : index
    %1063 = memref.load %arg4[%c116_202] : memref<400xf32, #tpu.memory_space<smem>>
    %1064 = vector.broadcast %1063 : f32 to vector<8x16xf32>
    %1065 = arith.mulf %998, %1064 : vector<8x16xf32>
    %1066 = arith.addf %891, %1065 : vector<8x16xf32>
    %c117_203 = arith.constant 117 : index
    %1067 = memref.load %arg4[%c117_203] : memref<400xf32, #tpu.memory_space<smem>>
    %1068 = vector.broadcast %1067 : f32 to vector<8x16xf32>
    %1069 = arith.mulf %998, %1068 : vector<8x16xf32>
    %1070 = arith.addf %895, %1069 : vector<8x16xf32>
    %c118_204 = arith.constant 118 : index
    %1071 = memref.load %arg4[%c118_204] : memref<400xf32, #tpu.memory_space<smem>>
    %1072 = vector.broadcast %1071 : f32 to vector<8x16xf32>
    %1073 = arith.mulf %998, %1072 : vector<8x16xf32>
    %1074 = arith.addf %899, %1073 : vector<8x16xf32>
    %c119_205 = arith.constant 119 : index
    %1075 = memref.load %arg4[%c119_205] : memref<400xf32, #tpu.memory_space<smem>>
    %1076 = vector.broadcast %1075 : f32 to vector<8x16xf32>
    %1077 = arith.mulf %998, %1076 : vector<8x16xf32>
    %1078 = arith.addf %903, %1077 : vector<8x16xf32>
    %1079 = arith.mulf %998, %998 : vector<8x16xf32>
    %cst_206 = arith.constant 1.000000e+00 : f32
    %1080 = vector.broadcast %cst_206 : f32 to vector<8x16xf32>
    %1081 = arith.subf %1080, %1079 : vector<8x16xf32>
    %c5_207 = arith.constant 5 : index
    %1082 = memref.load %arg2[%c5_207] : memref<20xf32, #tpu.memory_space<smem>>
    %1083 = vector.broadcast %1082 : f32 to vector<8x16xf32>
    %1084 = arith.mulf %1081, %1083 : vector<8x16xf32>
    %cst_208 = arith.constant 1.000000e+00 : f32
    %1085 = vector.broadcast %cst_208 : f32 to vector<8x16xf32>
    %1086 = arith.addf %1085, %1084 : vector<8x16xf32>
    %1087 = math.absf %1086 : vector<8x16xf32>
    %cst_209 = arith.constant 9.99999993E-9 : f32
    %1088 = vector.broadcast %cst_209 : f32 to vector<8x16xf32>
    %1089 = arith.addf %1087, %1088 : vector<8x16xf32>
    %1090 = arith.mulf %915, %1089 : vector<8x16xf32>
    %c120 = arith.constant 120 : index
    %1091 = memref.load %arg3[%c120] : memref<400xf32, #tpu.memory_space<smem>>
    %1092 = vector.broadcast %1091 : f32 to vector<8x16xf32>
    %1093 = arith.mulf %1002, %1092 : vector<8x16xf32>
    %c121 = arith.constant 121 : index
    %1094 = memref.load %arg3[%c121] : memref<400xf32, #tpu.memory_space<smem>>
    %1095 = vector.broadcast %1094 : f32 to vector<8x16xf32>
    %1096 = arith.mulf %1006, %1095 : vector<8x16xf32>
    %c122 = arith.constant 122 : index
    %1097 = memref.load %arg3[%c122] : memref<400xf32, #tpu.memory_space<smem>>
    %1098 = vector.broadcast %1097 : f32 to vector<8x16xf32>
    %1099 = arith.mulf %1010, %1098 : vector<8x16xf32>
    %c123 = arith.constant 123 : index
    %1100 = memref.load %arg3[%c123] : memref<400xf32, #tpu.memory_space<smem>>
    %1101 = vector.broadcast %1100 : f32 to vector<8x16xf32>
    %1102 = arith.mulf %1014, %1101 : vector<8x16xf32>
    %c124 = arith.constant 124 : index
    %1103 = memref.load %arg3[%c124] : memref<400xf32, #tpu.memory_space<smem>>
    %1104 = vector.broadcast %1103 : f32 to vector<8x16xf32>
    %1105 = arith.mulf %1018, %1104 : vector<8x16xf32>
    %c125 = arith.constant 125 : index
    %1106 = memref.load %arg3[%c125] : memref<400xf32, #tpu.memory_space<smem>>
    %1107 = vector.broadcast %1106 : f32 to vector<8x16xf32>
    %1108 = arith.mulf %1022, %1107 : vector<8x16xf32>
    %c126 = arith.constant 126 : index
    %1109 = memref.load %arg3[%c126] : memref<400xf32, #tpu.memory_space<smem>>
    %1110 = vector.broadcast %1109 : f32 to vector<8x16xf32>
    %1111 = arith.mulf %1026, %1110 : vector<8x16xf32>
    %c127 = arith.constant 127 : index
    %1112 = memref.load %arg3[%c127] : memref<400xf32, #tpu.memory_space<smem>>
    %1113 = vector.broadcast %1112 : f32 to vector<8x16xf32>
    %1114 = arith.mulf %1030, %1113 : vector<8x16xf32>
    %c128 = arith.constant 128 : index
    %1115 = memref.load %arg3[%c128] : memref<400xf32, #tpu.memory_space<smem>>
    %1116 = vector.broadcast %1115 : f32 to vector<8x16xf32>
    %1117 = arith.mulf %1034, %1116 : vector<8x16xf32>
    %c129 = arith.constant 129 : index
    %1118 = memref.load %arg3[%c129] : memref<400xf32, #tpu.memory_space<smem>>
    %1119 = vector.broadcast %1118 : f32 to vector<8x16xf32>
    %1120 = arith.mulf %1038, %1119 : vector<8x16xf32>
    %c130 = arith.constant 130 : index
    %1121 = memref.load %arg3[%c130] : memref<400xf32, #tpu.memory_space<smem>>
    %1122 = vector.broadcast %1121 : f32 to vector<8x16xf32>
    %1123 = arith.mulf %1042, %1122 : vector<8x16xf32>
    %c131 = arith.constant 131 : index
    %1124 = memref.load %arg3[%c131] : memref<400xf32, #tpu.memory_space<smem>>
    %1125 = vector.broadcast %1124 : f32 to vector<8x16xf32>
    %1126 = arith.mulf %1046, %1125 : vector<8x16xf32>
    %c132 = arith.constant 132 : index
    %1127 = memref.load %arg3[%c132] : memref<400xf32, #tpu.memory_space<smem>>
    %1128 = vector.broadcast %1127 : f32 to vector<8x16xf32>
    %1129 = arith.mulf %1050, %1128 : vector<8x16xf32>
    %c133 = arith.constant 133 : index
    %1130 = memref.load %arg3[%c133] : memref<400xf32, #tpu.memory_space<smem>>
    %1131 = vector.broadcast %1130 : f32 to vector<8x16xf32>
    %1132 = arith.mulf %1054, %1131 : vector<8x16xf32>
    %c134 = arith.constant 134 : index
    %1133 = memref.load %arg3[%c134] : memref<400xf32, #tpu.memory_space<smem>>
    %1134 = vector.broadcast %1133 : f32 to vector<8x16xf32>
    %1135 = arith.mulf %1058, %1134 : vector<8x16xf32>
    %c135 = arith.constant 135 : index
    %1136 = memref.load %arg3[%c135] : memref<400xf32, #tpu.memory_space<smem>>
    %1137 = vector.broadcast %1136 : f32 to vector<8x16xf32>
    %1138 = arith.mulf %1062, %1137 : vector<8x16xf32>
    %c136 = arith.constant 136 : index
    %1139 = memref.load %arg3[%c136] : memref<400xf32, #tpu.memory_space<smem>>
    %1140 = vector.broadcast %1139 : f32 to vector<8x16xf32>
    %1141 = arith.mulf %1066, %1140 : vector<8x16xf32>
    %c137 = arith.constant 137 : index
    %1142 = memref.load %arg3[%c137] : memref<400xf32, #tpu.memory_space<smem>>
    %1143 = vector.broadcast %1142 : f32 to vector<8x16xf32>
    %1144 = arith.mulf %1070, %1143 : vector<8x16xf32>
    %c138 = arith.constant 138 : index
    %1145 = memref.load %arg3[%c138] : memref<400xf32, #tpu.memory_space<smem>>
    %1146 = vector.broadcast %1145 : f32 to vector<8x16xf32>
    %1147 = arith.mulf %1074, %1146 : vector<8x16xf32>
    %c139 = arith.constant 139 : index
    %1148 = memref.load %arg3[%c139] : memref<400xf32, #tpu.memory_space<smem>>
    %1149 = vector.broadcast %1148 : f32 to vector<8x16xf32>
    %1150 = arith.mulf %1078, %1149 : vector<8x16xf32>
    %1151 = arith.addf %1093, %1096 : vector<8x16xf32>
    %1152 = arith.addf %1099, %1102 : vector<8x16xf32>
    %1153 = arith.addf %1105, %1108 : vector<8x16xf32>
    %1154 = arith.addf %1111, %1114 : vector<8x16xf32>
    %1155 = arith.addf %1117, %1120 : vector<8x16xf32>
    %1156 = arith.addf %1123, %1126 : vector<8x16xf32>
    %1157 = arith.addf %1129, %1132 : vector<8x16xf32>
    %1158 = arith.addf %1135, %1138 : vector<8x16xf32>
    %1159 = arith.addf %1141, %1144 : vector<8x16xf32>
    %1160 = arith.addf %1147, %1150 : vector<8x16xf32>
    %1161 = arith.addf %1151, %1152 : vector<8x16xf32>
    %1162 = arith.addf %1153, %1154 : vector<8x16xf32>
    %1163 = arith.addf %1155, %1156 : vector<8x16xf32>
    %1164 = arith.addf %1157, %1158 : vector<8x16xf32>
    %1165 = arith.addf %1159, %1160 : vector<8x16xf32>
    %1166 = arith.addf %1161, %1162 : vector<8x16xf32>
    %1167 = arith.addf %1163, %1164 : vector<8x16xf32>
    %1168 = arith.addf %1166, %1167 : vector<8x16xf32>
    %1169 = arith.addf %1168, %1165 : vector<8x16xf32>
    %c6_210 = arith.constant 6 : index
    %1170 = memref.load %arg1[%c6_210] : memref<20xf32, #tpu.memory_space<smem>>
    %1171 = vector.broadcast %1170 : f32 to vector<8x16xf32>
    %1172 = arith.addf %1169, %1171 : vector<8x16xf32>
    %1173 = math.tanh %1172 : vector<8x16xf32>
    %c120_211 = arith.constant 120 : index
    %1174 = memref.load %arg4[%c120_211] : memref<400xf32, #tpu.memory_space<smem>>
    %1175 = vector.broadcast %1174 : f32 to vector<8x16xf32>
    %1176 = arith.mulf %1173, %1175 : vector<8x16xf32>
    %1177 = arith.addf %1002, %1176 : vector<8x16xf32>
    %c121_212 = arith.constant 121 : index
    %1178 = memref.load %arg4[%c121_212] : memref<400xf32, #tpu.memory_space<smem>>
    %1179 = vector.broadcast %1178 : f32 to vector<8x16xf32>
    %1180 = arith.mulf %1173, %1179 : vector<8x16xf32>
    %1181 = arith.addf %1006, %1180 : vector<8x16xf32>
    %c122_213 = arith.constant 122 : index
    %1182 = memref.load %arg4[%c122_213] : memref<400xf32, #tpu.memory_space<smem>>
    %1183 = vector.broadcast %1182 : f32 to vector<8x16xf32>
    %1184 = arith.mulf %1173, %1183 : vector<8x16xf32>
    %1185 = arith.addf %1010, %1184 : vector<8x16xf32>
    %c123_214 = arith.constant 123 : index
    %1186 = memref.load %arg4[%c123_214] : memref<400xf32, #tpu.memory_space<smem>>
    %1187 = vector.broadcast %1186 : f32 to vector<8x16xf32>
    %1188 = arith.mulf %1173, %1187 : vector<8x16xf32>
    %1189 = arith.addf %1014, %1188 : vector<8x16xf32>
    %c124_215 = arith.constant 124 : index
    %1190 = memref.load %arg4[%c124_215] : memref<400xf32, #tpu.memory_space<smem>>
    %1191 = vector.broadcast %1190 : f32 to vector<8x16xf32>
    %1192 = arith.mulf %1173, %1191 : vector<8x16xf32>
    %1193 = arith.addf %1018, %1192 : vector<8x16xf32>
    %c125_216 = arith.constant 125 : index
    %1194 = memref.load %arg4[%c125_216] : memref<400xf32, #tpu.memory_space<smem>>
    %1195 = vector.broadcast %1194 : f32 to vector<8x16xf32>
    %1196 = arith.mulf %1173, %1195 : vector<8x16xf32>
    %1197 = arith.addf %1022, %1196 : vector<8x16xf32>
    %c126_217 = arith.constant 126 : index
    %1198 = memref.load %arg4[%c126_217] : memref<400xf32, #tpu.memory_space<smem>>
    %1199 = vector.broadcast %1198 : f32 to vector<8x16xf32>
    %1200 = arith.mulf %1173, %1199 : vector<8x16xf32>
    %1201 = arith.addf %1026, %1200 : vector<8x16xf32>
    %c127_218 = arith.constant 127 : index
    %1202 = memref.load %arg4[%c127_218] : memref<400xf32, #tpu.memory_space<smem>>
    %1203 = vector.broadcast %1202 : f32 to vector<8x16xf32>
    %1204 = arith.mulf %1173, %1203 : vector<8x16xf32>
    %1205 = arith.addf %1030, %1204 : vector<8x16xf32>
    %c128_219 = arith.constant 128 : index
    %1206 = memref.load %arg4[%c128_219] : memref<400xf32, #tpu.memory_space<smem>>
    %1207 = vector.broadcast %1206 : f32 to vector<8x16xf32>
    %1208 = arith.mulf %1173, %1207 : vector<8x16xf32>
    %1209 = arith.addf %1034, %1208 : vector<8x16xf32>
    %c129_220 = arith.constant 129 : index
    %1210 = memref.load %arg4[%c129_220] : memref<400xf32, #tpu.memory_space<smem>>
    %1211 = vector.broadcast %1210 : f32 to vector<8x16xf32>
    %1212 = arith.mulf %1173, %1211 : vector<8x16xf32>
    %1213 = arith.addf %1038, %1212 : vector<8x16xf32>
    %c130_221 = arith.constant 130 : index
    %1214 = memref.load %arg4[%c130_221] : memref<400xf32, #tpu.memory_space<smem>>
    %1215 = vector.broadcast %1214 : f32 to vector<8x16xf32>
    %1216 = arith.mulf %1173, %1215 : vector<8x16xf32>
    %1217 = arith.addf %1042, %1216 : vector<8x16xf32>
    %c131_222 = arith.constant 131 : index
    %1218 = memref.load %arg4[%c131_222] : memref<400xf32, #tpu.memory_space<smem>>
    %1219 = vector.broadcast %1218 : f32 to vector<8x16xf32>
    %1220 = arith.mulf %1173, %1219 : vector<8x16xf32>
    %1221 = arith.addf %1046, %1220 : vector<8x16xf32>
    %c132_223 = arith.constant 132 : index
    %1222 = memref.load %arg4[%c132_223] : memref<400xf32, #tpu.memory_space<smem>>
    %1223 = vector.broadcast %1222 : f32 to vector<8x16xf32>
    %1224 = arith.mulf %1173, %1223 : vector<8x16xf32>
    %1225 = arith.addf %1050, %1224 : vector<8x16xf32>
    %c133_224 = arith.constant 133 : index
    %1226 = memref.load %arg4[%c133_224] : memref<400xf32, #tpu.memory_space<smem>>
    %1227 = vector.broadcast %1226 : f32 to vector<8x16xf32>
    %1228 = arith.mulf %1173, %1227 : vector<8x16xf32>
    %1229 = arith.addf %1054, %1228 : vector<8x16xf32>
    %c134_225 = arith.constant 134 : index
    %1230 = memref.load %arg4[%c134_225] : memref<400xf32, #tpu.memory_space<smem>>
    %1231 = vector.broadcast %1230 : f32 to vector<8x16xf32>
    %1232 = arith.mulf %1173, %1231 : vector<8x16xf32>
    %1233 = arith.addf %1058, %1232 : vector<8x16xf32>
    %c135_226 = arith.constant 135 : index
    %1234 = memref.load %arg4[%c135_226] : memref<400xf32, #tpu.memory_space<smem>>
    %1235 = vector.broadcast %1234 : f32 to vector<8x16xf32>
    %1236 = arith.mulf %1173, %1235 : vector<8x16xf32>
    %1237 = arith.addf %1062, %1236 : vector<8x16xf32>
    %c136_227 = arith.constant 136 : index
    %1238 = memref.load %arg4[%c136_227] : memref<400xf32, #tpu.memory_space<smem>>
    %1239 = vector.broadcast %1238 : f32 to vector<8x16xf32>
    %1240 = arith.mulf %1173, %1239 : vector<8x16xf32>
    %1241 = arith.addf %1066, %1240 : vector<8x16xf32>
    %c137_228 = arith.constant 137 : index
    %1242 = memref.load %arg4[%c137_228] : memref<400xf32, #tpu.memory_space<smem>>
    %1243 = vector.broadcast %1242 : f32 to vector<8x16xf32>
    %1244 = arith.mulf %1173, %1243 : vector<8x16xf32>
    %1245 = arith.addf %1070, %1244 : vector<8x16xf32>
    %c138_229 = arith.constant 138 : index
    %1246 = memref.load %arg4[%c138_229] : memref<400xf32, #tpu.memory_space<smem>>
    %1247 = vector.broadcast %1246 : f32 to vector<8x16xf32>
    %1248 = arith.mulf %1173, %1247 : vector<8x16xf32>
    %1249 = arith.addf %1074, %1248 : vector<8x16xf32>
    %c139_230 = arith.constant 139 : index
    %1250 = memref.load %arg4[%c139_230] : memref<400xf32, #tpu.memory_space<smem>>
    %1251 = vector.broadcast %1250 : f32 to vector<8x16xf32>
    %1252 = arith.mulf %1173, %1251 : vector<8x16xf32>
    %1253 = arith.addf %1078, %1252 : vector<8x16xf32>
    %1254 = arith.mulf %1173, %1173 : vector<8x16xf32>
    %cst_231 = arith.constant 1.000000e+00 : f32
    %1255 = vector.broadcast %cst_231 : f32 to vector<8x16xf32>
    %1256 = arith.subf %1255, %1254 : vector<8x16xf32>
    %c6_232 = arith.constant 6 : index
    %1257 = memref.load %arg2[%c6_232] : memref<20xf32, #tpu.memory_space<smem>>
    %1258 = vector.broadcast %1257 : f32 to vector<8x16xf32>
    %1259 = arith.mulf %1256, %1258 : vector<8x16xf32>
    %cst_233 = arith.constant 1.000000e+00 : f32
    %1260 = vector.broadcast %cst_233 : f32 to vector<8x16xf32>
    %1261 = arith.addf %1260, %1259 : vector<8x16xf32>
    %1262 = math.absf %1261 : vector<8x16xf32>
    %cst_234 = arith.constant 9.99999993E-9 : f32
    %1263 = vector.broadcast %cst_234 : f32 to vector<8x16xf32>
    %1264 = arith.addf %1262, %1263 : vector<8x16xf32>
    %1265 = arith.mulf %1090, %1264 : vector<8x16xf32>
    %c140 = arith.constant 140 : index
    %1266 = memref.load %arg3[%c140] : memref<400xf32, #tpu.memory_space<smem>>
    %1267 = vector.broadcast %1266 : f32 to vector<8x16xf32>
    %1268 = arith.mulf %1177, %1267 : vector<8x16xf32>
    %c141 = arith.constant 141 : index
    %1269 = memref.load %arg3[%c141] : memref<400xf32, #tpu.memory_space<smem>>
    %1270 = vector.broadcast %1269 : f32 to vector<8x16xf32>
    %1271 = arith.mulf %1181, %1270 : vector<8x16xf32>
    %c142 = arith.constant 142 : index
    %1272 = memref.load %arg3[%c142] : memref<400xf32, #tpu.memory_space<smem>>
    %1273 = vector.broadcast %1272 : f32 to vector<8x16xf32>
    %1274 = arith.mulf %1185, %1273 : vector<8x16xf32>
    %c143 = arith.constant 143 : index
    %1275 = memref.load %arg3[%c143] : memref<400xf32, #tpu.memory_space<smem>>
    %1276 = vector.broadcast %1275 : f32 to vector<8x16xf32>
    %1277 = arith.mulf %1189, %1276 : vector<8x16xf32>
    %c144 = arith.constant 144 : index
    %1278 = memref.load %arg3[%c144] : memref<400xf32, #tpu.memory_space<smem>>
    %1279 = vector.broadcast %1278 : f32 to vector<8x16xf32>
    %1280 = arith.mulf %1193, %1279 : vector<8x16xf32>
    %c145 = arith.constant 145 : index
    %1281 = memref.load %arg3[%c145] : memref<400xf32, #tpu.memory_space<smem>>
    %1282 = vector.broadcast %1281 : f32 to vector<8x16xf32>
    %1283 = arith.mulf %1197, %1282 : vector<8x16xf32>
    %c146 = arith.constant 146 : index
    %1284 = memref.load %arg3[%c146] : memref<400xf32, #tpu.memory_space<smem>>
    %1285 = vector.broadcast %1284 : f32 to vector<8x16xf32>
    %1286 = arith.mulf %1201, %1285 : vector<8x16xf32>
    %c147 = arith.constant 147 : index
    %1287 = memref.load %arg3[%c147] : memref<400xf32, #tpu.memory_space<smem>>
    %1288 = vector.broadcast %1287 : f32 to vector<8x16xf32>
    %1289 = arith.mulf %1205, %1288 : vector<8x16xf32>
    %c148 = arith.constant 148 : index
    %1290 = memref.load %arg3[%c148] : memref<400xf32, #tpu.memory_space<smem>>
    %1291 = vector.broadcast %1290 : f32 to vector<8x16xf32>
    %1292 = arith.mulf %1209, %1291 : vector<8x16xf32>
    %c149 = arith.constant 149 : index
    %1293 = memref.load %arg3[%c149] : memref<400xf32, #tpu.memory_space<smem>>
    %1294 = vector.broadcast %1293 : f32 to vector<8x16xf32>
    %1295 = arith.mulf %1213, %1294 : vector<8x16xf32>
    %c150 = arith.constant 150 : index
    %1296 = memref.load %arg3[%c150] : memref<400xf32, #tpu.memory_space<smem>>
    %1297 = vector.broadcast %1296 : f32 to vector<8x16xf32>
    %1298 = arith.mulf %1217, %1297 : vector<8x16xf32>
    %c151 = arith.constant 151 : index
    %1299 = memref.load %arg3[%c151] : memref<400xf32, #tpu.memory_space<smem>>
    %1300 = vector.broadcast %1299 : f32 to vector<8x16xf32>
    %1301 = arith.mulf %1221, %1300 : vector<8x16xf32>
    %c152 = arith.constant 152 : index
    %1302 = memref.load %arg3[%c152] : memref<400xf32, #tpu.memory_space<smem>>
    %1303 = vector.broadcast %1302 : f32 to vector<8x16xf32>
    %1304 = arith.mulf %1225, %1303 : vector<8x16xf32>
    %c153 = arith.constant 153 : index
    %1305 = memref.load %arg3[%c153] : memref<400xf32, #tpu.memory_space<smem>>
    %1306 = vector.broadcast %1305 : f32 to vector<8x16xf32>
    %1307 = arith.mulf %1229, %1306 : vector<8x16xf32>
    %c154 = arith.constant 154 : index
    %1308 = memref.load %arg3[%c154] : memref<400xf32, #tpu.memory_space<smem>>
    %1309 = vector.broadcast %1308 : f32 to vector<8x16xf32>
    %1310 = arith.mulf %1233, %1309 : vector<8x16xf32>
    %c155 = arith.constant 155 : index
    %1311 = memref.load %arg3[%c155] : memref<400xf32, #tpu.memory_space<smem>>
    %1312 = vector.broadcast %1311 : f32 to vector<8x16xf32>
    %1313 = arith.mulf %1237, %1312 : vector<8x16xf32>
    %c156 = arith.constant 156 : index
    %1314 = memref.load %arg3[%c156] : memref<400xf32, #tpu.memory_space<smem>>
    %1315 = vector.broadcast %1314 : f32 to vector<8x16xf32>
    %1316 = arith.mulf %1241, %1315 : vector<8x16xf32>
    %c157 = arith.constant 157 : index
    %1317 = memref.load %arg3[%c157] : memref<400xf32, #tpu.memory_space<smem>>
    %1318 = vector.broadcast %1317 : f32 to vector<8x16xf32>
    %1319 = arith.mulf %1245, %1318 : vector<8x16xf32>
    %c158 = arith.constant 158 : index
    %1320 = memref.load %arg3[%c158] : memref<400xf32, #tpu.memory_space<smem>>
    %1321 = vector.broadcast %1320 : f32 to vector<8x16xf32>
    %1322 = arith.mulf %1249, %1321 : vector<8x16xf32>
    %c159 = arith.constant 159 : index
    %1323 = memref.load %arg3[%c159] : memref<400xf32, #tpu.memory_space<smem>>
    %1324 = vector.broadcast %1323 : f32 to vector<8x16xf32>
    %1325 = arith.mulf %1253, %1324 : vector<8x16xf32>
    %1326 = arith.addf %1268, %1271 : vector<8x16xf32>
    %1327 = arith.addf %1274, %1277 : vector<8x16xf32>
    %1328 = arith.addf %1280, %1283 : vector<8x16xf32>
    %1329 = arith.addf %1286, %1289 : vector<8x16xf32>
    %1330 = arith.addf %1292, %1295 : vector<8x16xf32>
    %1331 = arith.addf %1298, %1301 : vector<8x16xf32>
    %1332 = arith.addf %1304, %1307 : vector<8x16xf32>
    %1333 = arith.addf %1310, %1313 : vector<8x16xf32>
    %1334 = arith.addf %1316, %1319 : vector<8x16xf32>
    %1335 = arith.addf %1322, %1325 : vector<8x16xf32>
    %1336 = arith.addf %1326, %1327 : vector<8x16xf32>
    %1337 = arith.addf %1328, %1329 : vector<8x16xf32>
    %1338 = arith.addf %1330, %1331 : vector<8x16xf32>
    %1339 = arith.addf %1332, %1333 : vector<8x16xf32>
    %1340 = arith.addf %1334, %1335 : vector<8x16xf32>
    %1341 = arith.addf %1336, %1337 : vector<8x16xf32>
    %1342 = arith.addf %1338, %1339 : vector<8x16xf32>
    %1343 = arith.addf %1341, %1342 : vector<8x16xf32>
    %1344 = arith.addf %1343, %1340 : vector<8x16xf32>
    %c7_235 = arith.constant 7 : index
    %1345 = memref.load %arg1[%c7_235] : memref<20xf32, #tpu.memory_space<smem>>
    %1346 = vector.broadcast %1345 : f32 to vector<8x16xf32>
    %1347 = arith.addf %1344, %1346 : vector<8x16xf32>
    %1348 = math.tanh %1347 : vector<8x16xf32>
    %c140_236 = arith.constant 140 : index
    %1349 = memref.load %arg4[%c140_236] : memref<400xf32, #tpu.memory_space<smem>>
    %1350 = vector.broadcast %1349 : f32 to vector<8x16xf32>
    %1351 = arith.mulf %1348, %1350 : vector<8x16xf32>
    %1352 = arith.addf %1177, %1351 : vector<8x16xf32>
    %c141_237 = arith.constant 141 : index
    %1353 = memref.load %arg4[%c141_237] : memref<400xf32, #tpu.memory_space<smem>>
    %1354 = vector.broadcast %1353 : f32 to vector<8x16xf32>
    %1355 = arith.mulf %1348, %1354 : vector<8x16xf32>
    %1356 = arith.addf %1181, %1355 : vector<8x16xf32>
    %c142_238 = arith.constant 142 : index
    %1357 = memref.load %arg4[%c142_238] : memref<400xf32, #tpu.memory_space<smem>>
    %1358 = vector.broadcast %1357 : f32 to vector<8x16xf32>
    %1359 = arith.mulf %1348, %1358 : vector<8x16xf32>
    %1360 = arith.addf %1185, %1359 : vector<8x16xf32>
    %c143_239 = arith.constant 143 : index
    %1361 = memref.load %arg4[%c143_239] : memref<400xf32, #tpu.memory_space<smem>>
    %1362 = vector.broadcast %1361 : f32 to vector<8x16xf32>
    %1363 = arith.mulf %1348, %1362 : vector<8x16xf32>
    %1364 = arith.addf %1189, %1363 : vector<8x16xf32>
    %c144_240 = arith.constant 144 : index
    %1365 = memref.load %arg4[%c144_240] : memref<400xf32, #tpu.memory_space<smem>>
    %1366 = vector.broadcast %1365 : f32 to vector<8x16xf32>
    %1367 = arith.mulf %1348, %1366 : vector<8x16xf32>
    %1368 = arith.addf %1193, %1367 : vector<8x16xf32>
    %c145_241 = arith.constant 145 : index
    %1369 = memref.load %arg4[%c145_241] : memref<400xf32, #tpu.memory_space<smem>>
    %1370 = vector.broadcast %1369 : f32 to vector<8x16xf32>
    %1371 = arith.mulf %1348, %1370 : vector<8x16xf32>
    %1372 = arith.addf %1197, %1371 : vector<8x16xf32>
    %c146_242 = arith.constant 146 : index
    %1373 = memref.load %arg4[%c146_242] : memref<400xf32, #tpu.memory_space<smem>>
    %1374 = vector.broadcast %1373 : f32 to vector<8x16xf32>
    %1375 = arith.mulf %1348, %1374 : vector<8x16xf32>
    %1376 = arith.addf %1201, %1375 : vector<8x16xf32>
    %c147_243 = arith.constant 147 : index
    %1377 = memref.load %arg4[%c147_243] : memref<400xf32, #tpu.memory_space<smem>>
    %1378 = vector.broadcast %1377 : f32 to vector<8x16xf32>
    %1379 = arith.mulf %1348, %1378 : vector<8x16xf32>
    %1380 = arith.addf %1205, %1379 : vector<8x16xf32>
    %c148_244 = arith.constant 148 : index
    %1381 = memref.load %arg4[%c148_244] : memref<400xf32, #tpu.memory_space<smem>>
    %1382 = vector.broadcast %1381 : f32 to vector<8x16xf32>
    %1383 = arith.mulf %1348, %1382 : vector<8x16xf32>
    %1384 = arith.addf %1209, %1383 : vector<8x16xf32>
    %c149_245 = arith.constant 149 : index
    %1385 = memref.load %arg4[%c149_245] : memref<400xf32, #tpu.memory_space<smem>>
    %1386 = vector.broadcast %1385 : f32 to vector<8x16xf32>
    %1387 = arith.mulf %1348, %1386 : vector<8x16xf32>
    %1388 = arith.addf %1213, %1387 : vector<8x16xf32>
    %c150_246 = arith.constant 150 : index
    %1389 = memref.load %arg4[%c150_246] : memref<400xf32, #tpu.memory_space<smem>>
    %1390 = vector.broadcast %1389 : f32 to vector<8x16xf32>
    %1391 = arith.mulf %1348, %1390 : vector<8x16xf32>
    %1392 = arith.addf %1217, %1391 : vector<8x16xf32>
    %c151_247 = arith.constant 151 : index
    %1393 = memref.load %arg4[%c151_247] : memref<400xf32, #tpu.memory_space<smem>>
    %1394 = vector.broadcast %1393 : f32 to vector<8x16xf32>
    %1395 = arith.mulf %1348, %1394 : vector<8x16xf32>
    %1396 = arith.addf %1221, %1395 : vector<8x16xf32>
    %c152_248 = arith.constant 152 : index
    %1397 = memref.load %arg4[%c152_248] : memref<400xf32, #tpu.memory_space<smem>>
    %1398 = vector.broadcast %1397 : f32 to vector<8x16xf32>
    %1399 = arith.mulf %1348, %1398 : vector<8x16xf32>
    %1400 = arith.addf %1225, %1399 : vector<8x16xf32>
    %c153_249 = arith.constant 153 : index
    %1401 = memref.load %arg4[%c153_249] : memref<400xf32, #tpu.memory_space<smem>>
    %1402 = vector.broadcast %1401 : f32 to vector<8x16xf32>
    %1403 = arith.mulf %1348, %1402 : vector<8x16xf32>
    %1404 = arith.addf %1229, %1403 : vector<8x16xf32>
    %c154_250 = arith.constant 154 : index
    %1405 = memref.load %arg4[%c154_250] : memref<400xf32, #tpu.memory_space<smem>>
    %1406 = vector.broadcast %1405 : f32 to vector<8x16xf32>
    %1407 = arith.mulf %1348, %1406 : vector<8x16xf32>
    %1408 = arith.addf %1233, %1407 : vector<8x16xf32>
    %c155_251 = arith.constant 155 : index
    %1409 = memref.load %arg4[%c155_251] : memref<400xf32, #tpu.memory_space<smem>>
    %1410 = vector.broadcast %1409 : f32 to vector<8x16xf32>
    %1411 = arith.mulf %1348, %1410 : vector<8x16xf32>
    %1412 = arith.addf %1237, %1411 : vector<8x16xf32>
    %c156_252 = arith.constant 156 : index
    %1413 = memref.load %arg4[%c156_252] : memref<400xf32, #tpu.memory_space<smem>>
    %1414 = vector.broadcast %1413 : f32 to vector<8x16xf32>
    %1415 = arith.mulf %1348, %1414 : vector<8x16xf32>
    %1416 = arith.addf %1241, %1415 : vector<8x16xf32>
    %c157_253 = arith.constant 157 : index
    %1417 = memref.load %arg4[%c157_253] : memref<400xf32, #tpu.memory_space<smem>>
    %1418 = vector.broadcast %1417 : f32 to vector<8x16xf32>
    %1419 = arith.mulf %1348, %1418 : vector<8x16xf32>
    %1420 = arith.addf %1245, %1419 : vector<8x16xf32>
    %c158_254 = arith.constant 158 : index
    %1421 = memref.load %arg4[%c158_254] : memref<400xf32, #tpu.memory_space<smem>>
    %1422 = vector.broadcast %1421 : f32 to vector<8x16xf32>
    %1423 = arith.mulf %1348, %1422 : vector<8x16xf32>
    %1424 = arith.addf %1249, %1423 : vector<8x16xf32>
    %c159_255 = arith.constant 159 : index
    %1425 = memref.load %arg4[%c159_255] : memref<400xf32, #tpu.memory_space<smem>>
    %1426 = vector.broadcast %1425 : f32 to vector<8x16xf32>
    %1427 = arith.mulf %1348, %1426 : vector<8x16xf32>
    %1428 = arith.addf %1253, %1427 : vector<8x16xf32>
    %1429 = arith.mulf %1348, %1348 : vector<8x16xf32>
    %cst_256 = arith.constant 1.000000e+00 : f32
    %1430 = vector.broadcast %cst_256 : f32 to vector<8x16xf32>
    %1431 = arith.subf %1430, %1429 : vector<8x16xf32>
    %c7_257 = arith.constant 7 : index
    %1432 = memref.load %arg2[%c7_257] : memref<20xf32, #tpu.memory_space<smem>>
    %1433 = vector.broadcast %1432 : f32 to vector<8x16xf32>
    %1434 = arith.mulf %1431, %1433 : vector<8x16xf32>
    %cst_258 = arith.constant 1.000000e+00 : f32
    %1435 = vector.broadcast %cst_258 : f32 to vector<8x16xf32>
    %1436 = arith.addf %1435, %1434 : vector<8x16xf32>
    %1437 = math.absf %1436 : vector<8x16xf32>
    %cst_259 = arith.constant 9.99999993E-9 : f32
    %1438 = vector.broadcast %cst_259 : f32 to vector<8x16xf32>
    %1439 = arith.addf %1437, %1438 : vector<8x16xf32>
    %1440 = arith.mulf %1265, %1439 : vector<8x16xf32>
    %c160 = arith.constant 160 : index
    %1441 = memref.load %arg3[%c160] : memref<400xf32, #tpu.memory_space<smem>>
    %1442 = vector.broadcast %1441 : f32 to vector<8x16xf32>
    %1443 = arith.mulf %1352, %1442 : vector<8x16xf32>
    %c161 = arith.constant 161 : index
    %1444 = memref.load %arg3[%c161] : memref<400xf32, #tpu.memory_space<smem>>
    %1445 = vector.broadcast %1444 : f32 to vector<8x16xf32>
    %1446 = arith.mulf %1356, %1445 : vector<8x16xf32>
    %c162 = arith.constant 162 : index
    %1447 = memref.load %arg3[%c162] : memref<400xf32, #tpu.memory_space<smem>>
    %1448 = vector.broadcast %1447 : f32 to vector<8x16xf32>
    %1449 = arith.mulf %1360, %1448 : vector<8x16xf32>
    %c163 = arith.constant 163 : index
    %1450 = memref.load %arg3[%c163] : memref<400xf32, #tpu.memory_space<smem>>
    %1451 = vector.broadcast %1450 : f32 to vector<8x16xf32>
    %1452 = arith.mulf %1364, %1451 : vector<8x16xf32>
    %c164 = arith.constant 164 : index
    %1453 = memref.load %arg3[%c164] : memref<400xf32, #tpu.memory_space<smem>>
    %1454 = vector.broadcast %1453 : f32 to vector<8x16xf32>
    %1455 = arith.mulf %1368, %1454 : vector<8x16xf32>
    %c165 = arith.constant 165 : index
    %1456 = memref.load %arg3[%c165] : memref<400xf32, #tpu.memory_space<smem>>
    %1457 = vector.broadcast %1456 : f32 to vector<8x16xf32>
    %1458 = arith.mulf %1372, %1457 : vector<8x16xf32>
    %c166 = arith.constant 166 : index
    %1459 = memref.load %arg3[%c166] : memref<400xf32, #tpu.memory_space<smem>>
    %1460 = vector.broadcast %1459 : f32 to vector<8x16xf32>
    %1461 = arith.mulf %1376, %1460 : vector<8x16xf32>
    %c167 = arith.constant 167 : index
    %1462 = memref.load %arg3[%c167] : memref<400xf32, #tpu.memory_space<smem>>
    %1463 = vector.broadcast %1462 : f32 to vector<8x16xf32>
    %1464 = arith.mulf %1380, %1463 : vector<8x16xf32>
    %c168 = arith.constant 168 : index
    %1465 = memref.load %arg3[%c168] : memref<400xf32, #tpu.memory_space<smem>>
    %1466 = vector.broadcast %1465 : f32 to vector<8x16xf32>
    %1467 = arith.mulf %1384, %1466 : vector<8x16xf32>
    %c169 = arith.constant 169 : index
    %1468 = memref.load %arg3[%c169] : memref<400xf32, #tpu.memory_space<smem>>
    %1469 = vector.broadcast %1468 : f32 to vector<8x16xf32>
    %1470 = arith.mulf %1388, %1469 : vector<8x16xf32>
    %c170 = arith.constant 170 : index
    %1471 = memref.load %arg3[%c170] : memref<400xf32, #tpu.memory_space<smem>>
    %1472 = vector.broadcast %1471 : f32 to vector<8x16xf32>
    %1473 = arith.mulf %1392, %1472 : vector<8x16xf32>
    %c171 = arith.constant 171 : index
    %1474 = memref.load %arg3[%c171] : memref<400xf32, #tpu.memory_space<smem>>
    %1475 = vector.broadcast %1474 : f32 to vector<8x16xf32>
    %1476 = arith.mulf %1396, %1475 : vector<8x16xf32>
    %c172 = arith.constant 172 : index
    %1477 = memref.load %arg3[%c172] : memref<400xf32, #tpu.memory_space<smem>>
    %1478 = vector.broadcast %1477 : f32 to vector<8x16xf32>
    %1479 = arith.mulf %1400, %1478 : vector<8x16xf32>
    %c173 = arith.constant 173 : index
    %1480 = memref.load %arg3[%c173] : memref<400xf32, #tpu.memory_space<smem>>
    %1481 = vector.broadcast %1480 : f32 to vector<8x16xf32>
    %1482 = arith.mulf %1404, %1481 : vector<8x16xf32>
    %c174 = arith.constant 174 : index
    %1483 = memref.load %arg3[%c174] : memref<400xf32, #tpu.memory_space<smem>>
    %1484 = vector.broadcast %1483 : f32 to vector<8x16xf32>
    %1485 = arith.mulf %1408, %1484 : vector<8x16xf32>
    %c175 = arith.constant 175 : index
    %1486 = memref.load %arg3[%c175] : memref<400xf32, #tpu.memory_space<smem>>
    %1487 = vector.broadcast %1486 : f32 to vector<8x16xf32>
    %1488 = arith.mulf %1412, %1487 : vector<8x16xf32>
    %c176 = arith.constant 176 : index
    %1489 = memref.load %arg3[%c176] : memref<400xf32, #tpu.memory_space<smem>>
    %1490 = vector.broadcast %1489 : f32 to vector<8x16xf32>
    %1491 = arith.mulf %1416, %1490 : vector<8x16xf32>
    %c177 = arith.constant 177 : index
    %1492 = memref.load %arg3[%c177] : memref<400xf32, #tpu.memory_space<smem>>
    %1493 = vector.broadcast %1492 : f32 to vector<8x16xf32>
    %1494 = arith.mulf %1420, %1493 : vector<8x16xf32>
    %c178 = arith.constant 178 : index
    %1495 = memref.load %arg3[%c178] : memref<400xf32, #tpu.memory_space<smem>>
    %1496 = vector.broadcast %1495 : f32 to vector<8x16xf32>
    %1497 = arith.mulf %1424, %1496 : vector<8x16xf32>
    %c179 = arith.constant 179 : index
    %1498 = memref.load %arg3[%c179] : memref<400xf32, #tpu.memory_space<smem>>
    %1499 = vector.broadcast %1498 : f32 to vector<8x16xf32>
    %1500 = arith.mulf %1428, %1499 : vector<8x16xf32>
    %1501 = arith.addf %1443, %1446 : vector<8x16xf32>
    %1502 = arith.addf %1449, %1452 : vector<8x16xf32>
    %1503 = arith.addf %1455, %1458 : vector<8x16xf32>
    %1504 = arith.addf %1461, %1464 : vector<8x16xf32>
    %1505 = arith.addf %1467, %1470 : vector<8x16xf32>
    %1506 = arith.addf %1473, %1476 : vector<8x16xf32>
    %1507 = arith.addf %1479, %1482 : vector<8x16xf32>
    %1508 = arith.addf %1485, %1488 : vector<8x16xf32>
    %1509 = arith.addf %1491, %1494 : vector<8x16xf32>
    %1510 = arith.addf %1497, %1500 : vector<8x16xf32>
    %1511 = arith.addf %1501, %1502 : vector<8x16xf32>
    %1512 = arith.addf %1503, %1504 : vector<8x16xf32>
    %1513 = arith.addf %1505, %1506 : vector<8x16xf32>
    %1514 = arith.addf %1507, %1508 : vector<8x16xf32>
    %1515 = arith.addf %1509, %1510 : vector<8x16xf32>
    %1516 = arith.addf %1511, %1512 : vector<8x16xf32>
    %1517 = arith.addf %1513, %1514 : vector<8x16xf32>
    %1518 = arith.addf %1516, %1517 : vector<8x16xf32>
    %1519 = arith.addf %1518, %1515 : vector<8x16xf32>
    %c8_260 = arith.constant 8 : index
    %1520 = memref.load %arg1[%c8_260] : memref<20xf32, #tpu.memory_space<smem>>
    %1521 = vector.broadcast %1520 : f32 to vector<8x16xf32>
    %1522 = arith.addf %1519, %1521 : vector<8x16xf32>
    %1523 = math.tanh %1522 : vector<8x16xf32>
    %c160_261 = arith.constant 160 : index
    %1524 = memref.load %arg4[%c160_261] : memref<400xf32, #tpu.memory_space<smem>>
    %1525 = vector.broadcast %1524 : f32 to vector<8x16xf32>
    %1526 = arith.mulf %1523, %1525 : vector<8x16xf32>
    %1527 = arith.addf %1352, %1526 : vector<8x16xf32>
    %c161_262 = arith.constant 161 : index
    %1528 = memref.load %arg4[%c161_262] : memref<400xf32, #tpu.memory_space<smem>>
    %1529 = vector.broadcast %1528 : f32 to vector<8x16xf32>
    %1530 = arith.mulf %1523, %1529 : vector<8x16xf32>
    %1531 = arith.addf %1356, %1530 : vector<8x16xf32>
    %c162_263 = arith.constant 162 : index
    %1532 = memref.load %arg4[%c162_263] : memref<400xf32, #tpu.memory_space<smem>>
    %1533 = vector.broadcast %1532 : f32 to vector<8x16xf32>
    %1534 = arith.mulf %1523, %1533 : vector<8x16xf32>
    %1535 = arith.addf %1360, %1534 : vector<8x16xf32>
    %c163_264 = arith.constant 163 : index
    %1536 = memref.load %arg4[%c163_264] : memref<400xf32, #tpu.memory_space<smem>>
    %1537 = vector.broadcast %1536 : f32 to vector<8x16xf32>
    %1538 = arith.mulf %1523, %1537 : vector<8x16xf32>
    %1539 = arith.addf %1364, %1538 : vector<8x16xf32>
    %c164_265 = arith.constant 164 : index
    %1540 = memref.load %arg4[%c164_265] : memref<400xf32, #tpu.memory_space<smem>>
    %1541 = vector.broadcast %1540 : f32 to vector<8x16xf32>
    %1542 = arith.mulf %1523, %1541 : vector<8x16xf32>
    %1543 = arith.addf %1368, %1542 : vector<8x16xf32>
    %c165_266 = arith.constant 165 : index
    %1544 = memref.load %arg4[%c165_266] : memref<400xf32, #tpu.memory_space<smem>>
    %1545 = vector.broadcast %1544 : f32 to vector<8x16xf32>
    %1546 = arith.mulf %1523, %1545 : vector<8x16xf32>
    %1547 = arith.addf %1372, %1546 : vector<8x16xf32>
    %c166_267 = arith.constant 166 : index
    %1548 = memref.load %arg4[%c166_267] : memref<400xf32, #tpu.memory_space<smem>>
    %1549 = vector.broadcast %1548 : f32 to vector<8x16xf32>
    %1550 = arith.mulf %1523, %1549 : vector<8x16xf32>
    %1551 = arith.addf %1376, %1550 : vector<8x16xf32>
    %c167_268 = arith.constant 167 : index
    %1552 = memref.load %arg4[%c167_268] : memref<400xf32, #tpu.memory_space<smem>>
    %1553 = vector.broadcast %1552 : f32 to vector<8x16xf32>
    %1554 = arith.mulf %1523, %1553 : vector<8x16xf32>
    %1555 = arith.addf %1380, %1554 : vector<8x16xf32>
    %c168_269 = arith.constant 168 : index
    %1556 = memref.load %arg4[%c168_269] : memref<400xf32, #tpu.memory_space<smem>>
    %1557 = vector.broadcast %1556 : f32 to vector<8x16xf32>
    %1558 = arith.mulf %1523, %1557 : vector<8x16xf32>
    %1559 = arith.addf %1384, %1558 : vector<8x16xf32>
    %c169_270 = arith.constant 169 : index
    %1560 = memref.load %arg4[%c169_270] : memref<400xf32, #tpu.memory_space<smem>>
    %1561 = vector.broadcast %1560 : f32 to vector<8x16xf32>
    %1562 = arith.mulf %1523, %1561 : vector<8x16xf32>
    %1563 = arith.addf %1388, %1562 : vector<8x16xf32>
    %c170_271 = arith.constant 170 : index
    %1564 = memref.load %arg4[%c170_271] : memref<400xf32, #tpu.memory_space<smem>>
    %1565 = vector.broadcast %1564 : f32 to vector<8x16xf32>
    %1566 = arith.mulf %1523, %1565 : vector<8x16xf32>
    %1567 = arith.addf %1392, %1566 : vector<8x16xf32>
    %c171_272 = arith.constant 171 : index
    %1568 = memref.load %arg4[%c171_272] : memref<400xf32, #tpu.memory_space<smem>>
    %1569 = vector.broadcast %1568 : f32 to vector<8x16xf32>
    %1570 = arith.mulf %1523, %1569 : vector<8x16xf32>
    %1571 = arith.addf %1396, %1570 : vector<8x16xf32>
    %c172_273 = arith.constant 172 : index
    %1572 = memref.load %arg4[%c172_273] : memref<400xf32, #tpu.memory_space<smem>>
    %1573 = vector.broadcast %1572 : f32 to vector<8x16xf32>
    %1574 = arith.mulf %1523, %1573 : vector<8x16xf32>
    %1575 = arith.addf %1400, %1574 : vector<8x16xf32>
    %c173_274 = arith.constant 173 : index
    %1576 = memref.load %arg4[%c173_274] : memref<400xf32, #tpu.memory_space<smem>>
    %1577 = vector.broadcast %1576 : f32 to vector<8x16xf32>
    %1578 = arith.mulf %1523, %1577 : vector<8x16xf32>
    %1579 = arith.addf %1404, %1578 : vector<8x16xf32>
    %c174_275 = arith.constant 174 : index
    %1580 = memref.load %arg4[%c174_275] : memref<400xf32, #tpu.memory_space<smem>>
    %1581 = vector.broadcast %1580 : f32 to vector<8x16xf32>
    %1582 = arith.mulf %1523, %1581 : vector<8x16xf32>
    %1583 = arith.addf %1408, %1582 : vector<8x16xf32>
    %c175_276 = arith.constant 175 : index
    %1584 = memref.load %arg4[%c175_276] : memref<400xf32, #tpu.memory_space<smem>>
    %1585 = vector.broadcast %1584 : f32 to vector<8x16xf32>
    %1586 = arith.mulf %1523, %1585 : vector<8x16xf32>
    %1587 = arith.addf %1412, %1586 : vector<8x16xf32>
    %c176_277 = arith.constant 176 : index
    %1588 = memref.load %arg4[%c176_277] : memref<400xf32, #tpu.memory_space<smem>>
    %1589 = vector.broadcast %1588 : f32 to vector<8x16xf32>
    %1590 = arith.mulf %1523, %1589 : vector<8x16xf32>
    %1591 = arith.addf %1416, %1590 : vector<8x16xf32>
    %c177_278 = arith.constant 177 : index
    %1592 = memref.load %arg4[%c177_278] : memref<400xf32, #tpu.memory_space<smem>>
    %1593 = vector.broadcast %1592 : f32 to vector<8x16xf32>
    %1594 = arith.mulf %1523, %1593 : vector<8x16xf32>
    %1595 = arith.addf %1420, %1594 : vector<8x16xf32>
    %c178_279 = arith.constant 178 : index
    %1596 = memref.load %arg4[%c178_279] : memref<400xf32, #tpu.memory_space<smem>>
    %1597 = vector.broadcast %1596 : f32 to vector<8x16xf32>
    %1598 = arith.mulf %1523, %1597 : vector<8x16xf32>
    %1599 = arith.addf %1424, %1598 : vector<8x16xf32>
    %c179_280 = arith.constant 179 : index
    %1600 = memref.load %arg4[%c179_280] : memref<400xf32, #tpu.memory_space<smem>>
    %1601 = vector.broadcast %1600 : f32 to vector<8x16xf32>
    %1602 = arith.mulf %1523, %1601 : vector<8x16xf32>
    %1603 = arith.addf %1428, %1602 : vector<8x16xf32>
    %1604 = arith.mulf %1523, %1523 : vector<8x16xf32>
    %cst_281 = arith.constant 1.000000e+00 : f32
    %1605 = vector.broadcast %cst_281 : f32 to vector<8x16xf32>
    %1606 = arith.subf %1605, %1604 : vector<8x16xf32>
    %c8_282 = arith.constant 8 : index
    %1607 = memref.load %arg2[%c8_282] : memref<20xf32, #tpu.memory_space<smem>>
    %1608 = vector.broadcast %1607 : f32 to vector<8x16xf32>
    %1609 = arith.mulf %1606, %1608 : vector<8x16xf32>
    %cst_283 = arith.constant 1.000000e+00 : f32
    %1610 = vector.broadcast %cst_283 : f32 to vector<8x16xf32>
    %1611 = arith.addf %1610, %1609 : vector<8x16xf32>
    %1612 = math.absf %1611 : vector<8x16xf32>
    %cst_284 = arith.constant 9.99999993E-9 : f32
    %1613 = vector.broadcast %cst_284 : f32 to vector<8x16xf32>
    %1614 = arith.addf %1612, %1613 : vector<8x16xf32>
    %1615 = arith.mulf %1440, %1614 : vector<8x16xf32>
    %c180 = arith.constant 180 : index
    %1616 = memref.load %arg3[%c180] : memref<400xf32, #tpu.memory_space<smem>>
    %1617 = vector.broadcast %1616 : f32 to vector<8x16xf32>
    %1618 = arith.mulf %1527, %1617 : vector<8x16xf32>
    %c181 = arith.constant 181 : index
    %1619 = memref.load %arg3[%c181] : memref<400xf32, #tpu.memory_space<smem>>
    %1620 = vector.broadcast %1619 : f32 to vector<8x16xf32>
    %1621 = arith.mulf %1531, %1620 : vector<8x16xf32>
    %c182 = arith.constant 182 : index
    %1622 = memref.load %arg3[%c182] : memref<400xf32, #tpu.memory_space<smem>>
    %1623 = vector.broadcast %1622 : f32 to vector<8x16xf32>
    %1624 = arith.mulf %1535, %1623 : vector<8x16xf32>
    %c183 = arith.constant 183 : index
    %1625 = memref.load %arg3[%c183] : memref<400xf32, #tpu.memory_space<smem>>
    %1626 = vector.broadcast %1625 : f32 to vector<8x16xf32>
    %1627 = arith.mulf %1539, %1626 : vector<8x16xf32>
    %c184 = arith.constant 184 : index
    %1628 = memref.load %arg3[%c184] : memref<400xf32, #tpu.memory_space<smem>>
    %1629 = vector.broadcast %1628 : f32 to vector<8x16xf32>
    %1630 = arith.mulf %1543, %1629 : vector<8x16xf32>
    %c185 = arith.constant 185 : index
    %1631 = memref.load %arg3[%c185] : memref<400xf32, #tpu.memory_space<smem>>
    %1632 = vector.broadcast %1631 : f32 to vector<8x16xf32>
    %1633 = arith.mulf %1547, %1632 : vector<8x16xf32>
    %c186 = arith.constant 186 : index
    %1634 = memref.load %arg3[%c186] : memref<400xf32, #tpu.memory_space<smem>>
    %1635 = vector.broadcast %1634 : f32 to vector<8x16xf32>
    %1636 = arith.mulf %1551, %1635 : vector<8x16xf32>
    %c187 = arith.constant 187 : index
    %1637 = memref.load %arg3[%c187] : memref<400xf32, #tpu.memory_space<smem>>
    %1638 = vector.broadcast %1637 : f32 to vector<8x16xf32>
    %1639 = arith.mulf %1555, %1638 : vector<8x16xf32>
    %c188 = arith.constant 188 : index
    %1640 = memref.load %arg3[%c188] : memref<400xf32, #tpu.memory_space<smem>>
    %1641 = vector.broadcast %1640 : f32 to vector<8x16xf32>
    %1642 = arith.mulf %1559, %1641 : vector<8x16xf32>
    %c189 = arith.constant 189 : index
    %1643 = memref.load %arg3[%c189] : memref<400xf32, #tpu.memory_space<smem>>
    %1644 = vector.broadcast %1643 : f32 to vector<8x16xf32>
    %1645 = arith.mulf %1563, %1644 : vector<8x16xf32>
    %c190 = arith.constant 190 : index
    %1646 = memref.load %arg3[%c190] : memref<400xf32, #tpu.memory_space<smem>>
    %1647 = vector.broadcast %1646 : f32 to vector<8x16xf32>
    %1648 = arith.mulf %1567, %1647 : vector<8x16xf32>
    %c191 = arith.constant 191 : index
    %1649 = memref.load %arg3[%c191] : memref<400xf32, #tpu.memory_space<smem>>
    %1650 = vector.broadcast %1649 : f32 to vector<8x16xf32>
    %1651 = arith.mulf %1571, %1650 : vector<8x16xf32>
    %c192 = arith.constant 192 : index
    %1652 = memref.load %arg3[%c192] : memref<400xf32, #tpu.memory_space<smem>>
    %1653 = vector.broadcast %1652 : f32 to vector<8x16xf32>
    %1654 = arith.mulf %1575, %1653 : vector<8x16xf32>
    %c193 = arith.constant 193 : index
    %1655 = memref.load %arg3[%c193] : memref<400xf32, #tpu.memory_space<smem>>
    %1656 = vector.broadcast %1655 : f32 to vector<8x16xf32>
    %1657 = arith.mulf %1579, %1656 : vector<8x16xf32>
    %c194 = arith.constant 194 : index
    %1658 = memref.load %arg3[%c194] : memref<400xf32, #tpu.memory_space<smem>>
    %1659 = vector.broadcast %1658 : f32 to vector<8x16xf32>
    %1660 = arith.mulf %1583, %1659 : vector<8x16xf32>
    %c195 = arith.constant 195 : index
    %1661 = memref.load %arg3[%c195] : memref<400xf32, #tpu.memory_space<smem>>
    %1662 = vector.broadcast %1661 : f32 to vector<8x16xf32>
    %1663 = arith.mulf %1587, %1662 : vector<8x16xf32>
    %c196 = arith.constant 196 : index
    %1664 = memref.load %arg3[%c196] : memref<400xf32, #tpu.memory_space<smem>>
    %1665 = vector.broadcast %1664 : f32 to vector<8x16xf32>
    %1666 = arith.mulf %1591, %1665 : vector<8x16xf32>
    %c197 = arith.constant 197 : index
    %1667 = memref.load %arg3[%c197] : memref<400xf32, #tpu.memory_space<smem>>
    %1668 = vector.broadcast %1667 : f32 to vector<8x16xf32>
    %1669 = arith.mulf %1595, %1668 : vector<8x16xf32>
    %c198 = arith.constant 198 : index
    %1670 = memref.load %arg3[%c198] : memref<400xf32, #tpu.memory_space<smem>>
    %1671 = vector.broadcast %1670 : f32 to vector<8x16xf32>
    %1672 = arith.mulf %1599, %1671 : vector<8x16xf32>
    %c199 = arith.constant 199 : index
    %1673 = memref.load %arg3[%c199] : memref<400xf32, #tpu.memory_space<smem>>
    %1674 = vector.broadcast %1673 : f32 to vector<8x16xf32>
    %1675 = arith.mulf %1603, %1674 : vector<8x16xf32>
    %1676 = arith.addf %1618, %1621 : vector<8x16xf32>
    %1677 = arith.addf %1624, %1627 : vector<8x16xf32>
    %1678 = arith.addf %1630, %1633 : vector<8x16xf32>
    %1679 = arith.addf %1636, %1639 : vector<8x16xf32>
    %1680 = arith.addf %1642, %1645 : vector<8x16xf32>
    %1681 = arith.addf %1648, %1651 : vector<8x16xf32>
    %1682 = arith.addf %1654, %1657 : vector<8x16xf32>
    %1683 = arith.addf %1660, %1663 : vector<8x16xf32>
    %1684 = arith.addf %1666, %1669 : vector<8x16xf32>
    %1685 = arith.addf %1672, %1675 : vector<8x16xf32>
    %1686 = arith.addf %1676, %1677 : vector<8x16xf32>
    %1687 = arith.addf %1678, %1679 : vector<8x16xf32>
    %1688 = arith.addf %1680, %1681 : vector<8x16xf32>
    %1689 = arith.addf %1682, %1683 : vector<8x16xf32>
    %1690 = arith.addf %1684, %1685 : vector<8x16xf32>
    %1691 = arith.addf %1686, %1687 : vector<8x16xf32>
    %1692 = arith.addf %1688, %1689 : vector<8x16xf32>
    %1693 = arith.addf %1691, %1692 : vector<8x16xf32>
    %1694 = arith.addf %1693, %1690 : vector<8x16xf32>
    %c9_285 = arith.constant 9 : index
    %1695 = memref.load %arg1[%c9_285] : memref<20xf32, #tpu.memory_space<smem>>
    %1696 = vector.broadcast %1695 : f32 to vector<8x16xf32>
    %1697 = arith.addf %1694, %1696 : vector<8x16xf32>
    %1698 = math.tanh %1697 : vector<8x16xf32>
    %c180_286 = arith.constant 180 : index
    %1699 = memref.load %arg4[%c180_286] : memref<400xf32, #tpu.memory_space<smem>>
    %1700 = vector.broadcast %1699 : f32 to vector<8x16xf32>
    %1701 = arith.mulf %1698, %1700 : vector<8x16xf32>
    %1702 = arith.addf %1527, %1701 : vector<8x16xf32>
    %c181_287 = arith.constant 181 : index
    %1703 = memref.load %arg4[%c181_287] : memref<400xf32, #tpu.memory_space<smem>>
    %1704 = vector.broadcast %1703 : f32 to vector<8x16xf32>
    %1705 = arith.mulf %1698, %1704 : vector<8x16xf32>
    %1706 = arith.addf %1531, %1705 : vector<8x16xf32>
    %c182_288 = arith.constant 182 : index
    %1707 = memref.load %arg4[%c182_288] : memref<400xf32, #tpu.memory_space<smem>>
    %1708 = vector.broadcast %1707 : f32 to vector<8x16xf32>
    %1709 = arith.mulf %1698, %1708 : vector<8x16xf32>
    %1710 = arith.addf %1535, %1709 : vector<8x16xf32>
    %c183_289 = arith.constant 183 : index
    %1711 = memref.load %arg4[%c183_289] : memref<400xf32, #tpu.memory_space<smem>>
    %1712 = vector.broadcast %1711 : f32 to vector<8x16xf32>
    %1713 = arith.mulf %1698, %1712 : vector<8x16xf32>
    %1714 = arith.addf %1539, %1713 : vector<8x16xf32>
    %c184_290 = arith.constant 184 : index
    %1715 = memref.load %arg4[%c184_290] : memref<400xf32, #tpu.memory_space<smem>>
    %1716 = vector.broadcast %1715 : f32 to vector<8x16xf32>
    %1717 = arith.mulf %1698, %1716 : vector<8x16xf32>
    %1718 = arith.addf %1543, %1717 : vector<8x16xf32>
    %c185_291 = arith.constant 185 : index
    %1719 = memref.load %arg4[%c185_291] : memref<400xf32, #tpu.memory_space<smem>>
    %1720 = vector.broadcast %1719 : f32 to vector<8x16xf32>
    %1721 = arith.mulf %1698, %1720 : vector<8x16xf32>
    %1722 = arith.addf %1547, %1721 : vector<8x16xf32>
    %c186_292 = arith.constant 186 : index
    %1723 = memref.load %arg4[%c186_292] : memref<400xf32, #tpu.memory_space<smem>>
    %1724 = vector.broadcast %1723 : f32 to vector<8x16xf32>
    %1725 = arith.mulf %1698, %1724 : vector<8x16xf32>
    %1726 = arith.addf %1551, %1725 : vector<8x16xf32>
    %c187_293 = arith.constant 187 : index
    %1727 = memref.load %arg4[%c187_293] : memref<400xf32, #tpu.memory_space<smem>>
    %1728 = vector.broadcast %1727 : f32 to vector<8x16xf32>
    %1729 = arith.mulf %1698, %1728 : vector<8x16xf32>
    %1730 = arith.addf %1555, %1729 : vector<8x16xf32>
    %c188_294 = arith.constant 188 : index
    %1731 = memref.load %arg4[%c188_294] : memref<400xf32, #tpu.memory_space<smem>>
    %1732 = vector.broadcast %1731 : f32 to vector<8x16xf32>
    %1733 = arith.mulf %1698, %1732 : vector<8x16xf32>
    %1734 = arith.addf %1559, %1733 : vector<8x16xf32>
    %c189_295 = arith.constant 189 : index
    %1735 = memref.load %arg4[%c189_295] : memref<400xf32, #tpu.memory_space<smem>>
    %1736 = vector.broadcast %1735 : f32 to vector<8x16xf32>
    %1737 = arith.mulf %1698, %1736 : vector<8x16xf32>
    %1738 = arith.addf %1563, %1737 : vector<8x16xf32>
    %c190_296 = arith.constant 190 : index
    %1739 = memref.load %arg4[%c190_296] : memref<400xf32, #tpu.memory_space<smem>>
    %1740 = vector.broadcast %1739 : f32 to vector<8x16xf32>
    %1741 = arith.mulf %1698, %1740 : vector<8x16xf32>
    %1742 = arith.addf %1567, %1741 : vector<8x16xf32>
    %c191_297 = arith.constant 191 : index
    %1743 = memref.load %arg4[%c191_297] : memref<400xf32, #tpu.memory_space<smem>>
    %1744 = vector.broadcast %1743 : f32 to vector<8x16xf32>
    %1745 = arith.mulf %1698, %1744 : vector<8x16xf32>
    %1746 = arith.addf %1571, %1745 : vector<8x16xf32>
    %c192_298 = arith.constant 192 : index
    %1747 = memref.load %arg4[%c192_298] : memref<400xf32, #tpu.memory_space<smem>>
    %1748 = vector.broadcast %1747 : f32 to vector<8x16xf32>
    %1749 = arith.mulf %1698, %1748 : vector<8x16xf32>
    %1750 = arith.addf %1575, %1749 : vector<8x16xf32>
    %c193_299 = arith.constant 193 : index
    %1751 = memref.load %arg4[%c193_299] : memref<400xf32, #tpu.memory_space<smem>>
    %1752 = vector.broadcast %1751 : f32 to vector<8x16xf32>
    %1753 = arith.mulf %1698, %1752 : vector<8x16xf32>
    %1754 = arith.addf %1579, %1753 : vector<8x16xf32>
    %c194_300 = arith.constant 194 : index
    %1755 = memref.load %arg4[%c194_300] : memref<400xf32, #tpu.memory_space<smem>>
    %1756 = vector.broadcast %1755 : f32 to vector<8x16xf32>
    %1757 = arith.mulf %1698, %1756 : vector<8x16xf32>
    %1758 = arith.addf %1583, %1757 : vector<8x16xf32>
    %c195_301 = arith.constant 195 : index
    %1759 = memref.load %arg4[%c195_301] : memref<400xf32, #tpu.memory_space<smem>>
    %1760 = vector.broadcast %1759 : f32 to vector<8x16xf32>
    %1761 = arith.mulf %1698, %1760 : vector<8x16xf32>
    %1762 = arith.addf %1587, %1761 : vector<8x16xf32>
    %c196_302 = arith.constant 196 : index
    %1763 = memref.load %arg4[%c196_302] : memref<400xf32, #tpu.memory_space<smem>>
    %1764 = vector.broadcast %1763 : f32 to vector<8x16xf32>
    %1765 = arith.mulf %1698, %1764 : vector<8x16xf32>
    %1766 = arith.addf %1591, %1765 : vector<8x16xf32>
    %c197_303 = arith.constant 197 : index
    %1767 = memref.load %arg4[%c197_303] : memref<400xf32, #tpu.memory_space<smem>>
    %1768 = vector.broadcast %1767 : f32 to vector<8x16xf32>
    %1769 = arith.mulf %1698, %1768 : vector<8x16xf32>
    %1770 = arith.addf %1595, %1769 : vector<8x16xf32>
    %c198_304 = arith.constant 198 : index
    %1771 = memref.load %arg4[%c198_304] : memref<400xf32, #tpu.memory_space<smem>>
    %1772 = vector.broadcast %1771 : f32 to vector<8x16xf32>
    %1773 = arith.mulf %1698, %1772 : vector<8x16xf32>
    %1774 = arith.addf %1599, %1773 : vector<8x16xf32>
    %c199_305 = arith.constant 199 : index
    %1775 = memref.load %arg4[%c199_305] : memref<400xf32, #tpu.memory_space<smem>>
    %1776 = vector.broadcast %1775 : f32 to vector<8x16xf32>
    %1777 = arith.mulf %1698, %1776 : vector<8x16xf32>
    %1778 = arith.addf %1603, %1777 : vector<8x16xf32>
    %1779 = arith.mulf %1698, %1698 : vector<8x16xf32>
    %cst_306 = arith.constant 1.000000e+00 : f32
    %1780 = vector.broadcast %cst_306 : f32 to vector<8x16xf32>
    %1781 = arith.subf %1780, %1779 : vector<8x16xf32>
    %c9_307 = arith.constant 9 : index
    %1782 = memref.load %arg2[%c9_307] : memref<20xf32, #tpu.memory_space<smem>>
    %1783 = vector.broadcast %1782 : f32 to vector<8x16xf32>
    %1784 = arith.mulf %1781, %1783 : vector<8x16xf32>
    %cst_308 = arith.constant 1.000000e+00 : f32
    %1785 = vector.broadcast %cst_308 : f32 to vector<8x16xf32>
    %1786 = arith.addf %1785, %1784 : vector<8x16xf32>
    %1787 = math.absf %1786 : vector<8x16xf32>
    %cst_309 = arith.constant 9.99999993E-9 : f32
    %1788 = vector.broadcast %cst_309 : f32 to vector<8x16xf32>
    %1789 = arith.addf %1787, %1788 : vector<8x16xf32>
    %1790 = arith.mulf %1615, %1789 : vector<8x16xf32>
    %c200 = arith.constant 200 : index
    %1791 = memref.load %arg3[%c200] : memref<400xf32, #tpu.memory_space<smem>>
    %1792 = vector.broadcast %1791 : f32 to vector<8x16xf32>
    %1793 = arith.mulf %1702, %1792 : vector<8x16xf32>
    %c201 = arith.constant 201 : index
    %1794 = memref.load %arg3[%c201] : memref<400xf32, #tpu.memory_space<smem>>
    %1795 = vector.broadcast %1794 : f32 to vector<8x16xf32>
    %1796 = arith.mulf %1706, %1795 : vector<8x16xf32>
    %c202 = arith.constant 202 : index
    %1797 = memref.load %arg3[%c202] : memref<400xf32, #tpu.memory_space<smem>>
    %1798 = vector.broadcast %1797 : f32 to vector<8x16xf32>
    %1799 = arith.mulf %1710, %1798 : vector<8x16xf32>
    %c203 = arith.constant 203 : index
    %1800 = memref.load %arg3[%c203] : memref<400xf32, #tpu.memory_space<smem>>
    %1801 = vector.broadcast %1800 : f32 to vector<8x16xf32>
    %1802 = arith.mulf %1714, %1801 : vector<8x16xf32>
    %c204 = arith.constant 204 : index
    %1803 = memref.load %arg3[%c204] : memref<400xf32, #tpu.memory_space<smem>>
    %1804 = vector.broadcast %1803 : f32 to vector<8x16xf32>
    %1805 = arith.mulf %1718, %1804 : vector<8x16xf32>
    %c205 = arith.constant 205 : index
    %1806 = memref.load %arg3[%c205] : memref<400xf32, #tpu.memory_space<smem>>
    %1807 = vector.broadcast %1806 : f32 to vector<8x16xf32>
    %1808 = arith.mulf %1722, %1807 : vector<8x16xf32>
    %c206 = arith.constant 206 : index
    %1809 = memref.load %arg3[%c206] : memref<400xf32, #tpu.memory_space<smem>>
    %1810 = vector.broadcast %1809 : f32 to vector<8x16xf32>
    %1811 = arith.mulf %1726, %1810 : vector<8x16xf32>
    %c207 = arith.constant 207 : index
    %1812 = memref.load %arg3[%c207] : memref<400xf32, #tpu.memory_space<smem>>
    %1813 = vector.broadcast %1812 : f32 to vector<8x16xf32>
    %1814 = arith.mulf %1730, %1813 : vector<8x16xf32>
    %c208 = arith.constant 208 : index
    %1815 = memref.load %arg3[%c208] : memref<400xf32, #tpu.memory_space<smem>>
    %1816 = vector.broadcast %1815 : f32 to vector<8x16xf32>
    %1817 = arith.mulf %1734, %1816 : vector<8x16xf32>
    %c209 = arith.constant 209 : index
    %1818 = memref.load %arg3[%c209] : memref<400xf32, #tpu.memory_space<smem>>
    %1819 = vector.broadcast %1818 : f32 to vector<8x16xf32>
    %1820 = arith.mulf %1738, %1819 : vector<8x16xf32>
    %c210 = arith.constant 210 : index
    %1821 = memref.load %arg3[%c210] : memref<400xf32, #tpu.memory_space<smem>>
    %1822 = vector.broadcast %1821 : f32 to vector<8x16xf32>
    %1823 = arith.mulf %1742, %1822 : vector<8x16xf32>
    %c211 = arith.constant 211 : index
    %1824 = memref.load %arg3[%c211] : memref<400xf32, #tpu.memory_space<smem>>
    %1825 = vector.broadcast %1824 : f32 to vector<8x16xf32>
    %1826 = arith.mulf %1746, %1825 : vector<8x16xf32>
    %c212 = arith.constant 212 : index
    %1827 = memref.load %arg3[%c212] : memref<400xf32, #tpu.memory_space<smem>>
    %1828 = vector.broadcast %1827 : f32 to vector<8x16xf32>
    %1829 = arith.mulf %1750, %1828 : vector<8x16xf32>
    %c213 = arith.constant 213 : index
    %1830 = memref.load %arg3[%c213] : memref<400xf32, #tpu.memory_space<smem>>
    %1831 = vector.broadcast %1830 : f32 to vector<8x16xf32>
    %1832 = arith.mulf %1754, %1831 : vector<8x16xf32>
    %c214 = arith.constant 214 : index
    %1833 = memref.load %arg3[%c214] : memref<400xf32, #tpu.memory_space<smem>>
    %1834 = vector.broadcast %1833 : f32 to vector<8x16xf32>
    %1835 = arith.mulf %1758, %1834 : vector<8x16xf32>
    %c215 = arith.constant 215 : index
    %1836 = memref.load %arg3[%c215] : memref<400xf32, #tpu.memory_space<smem>>
    %1837 = vector.broadcast %1836 : f32 to vector<8x16xf32>
    %1838 = arith.mulf %1762, %1837 : vector<8x16xf32>
    %c216 = arith.constant 216 : index
    %1839 = memref.load %arg3[%c216] : memref<400xf32, #tpu.memory_space<smem>>
    %1840 = vector.broadcast %1839 : f32 to vector<8x16xf32>
    %1841 = arith.mulf %1766, %1840 : vector<8x16xf32>
    %c217 = arith.constant 217 : index
    %1842 = memref.load %arg3[%c217] : memref<400xf32, #tpu.memory_space<smem>>
    %1843 = vector.broadcast %1842 : f32 to vector<8x16xf32>
    %1844 = arith.mulf %1770, %1843 : vector<8x16xf32>
    %c218 = arith.constant 218 : index
    %1845 = memref.load %arg3[%c218] : memref<400xf32, #tpu.memory_space<smem>>
    %1846 = vector.broadcast %1845 : f32 to vector<8x16xf32>
    %1847 = arith.mulf %1774, %1846 : vector<8x16xf32>
    %c219 = arith.constant 219 : index
    %1848 = memref.load %arg3[%c219] : memref<400xf32, #tpu.memory_space<smem>>
    %1849 = vector.broadcast %1848 : f32 to vector<8x16xf32>
    %1850 = arith.mulf %1778, %1849 : vector<8x16xf32>
    %1851 = arith.addf %1793, %1796 : vector<8x16xf32>
    %1852 = arith.addf %1799, %1802 : vector<8x16xf32>
    %1853 = arith.addf %1805, %1808 : vector<8x16xf32>
    %1854 = arith.addf %1811, %1814 : vector<8x16xf32>
    %1855 = arith.addf %1817, %1820 : vector<8x16xf32>
    %1856 = arith.addf %1823, %1826 : vector<8x16xf32>
    %1857 = arith.addf %1829, %1832 : vector<8x16xf32>
    %1858 = arith.addf %1835, %1838 : vector<8x16xf32>
    %1859 = arith.addf %1841, %1844 : vector<8x16xf32>
    %1860 = arith.addf %1847, %1850 : vector<8x16xf32>
    %1861 = arith.addf %1851, %1852 : vector<8x16xf32>
    %1862 = arith.addf %1853, %1854 : vector<8x16xf32>
    %1863 = arith.addf %1855, %1856 : vector<8x16xf32>
    %1864 = arith.addf %1857, %1858 : vector<8x16xf32>
    %1865 = arith.addf %1859, %1860 : vector<8x16xf32>
    %1866 = arith.addf %1861, %1862 : vector<8x16xf32>
    %1867 = arith.addf %1863, %1864 : vector<8x16xf32>
    %1868 = arith.addf %1866, %1867 : vector<8x16xf32>
    %1869 = arith.addf %1868, %1865 : vector<8x16xf32>
    %c10_310 = arith.constant 10 : index
    %1870 = memref.load %arg1[%c10_310] : memref<20xf32, #tpu.memory_space<smem>>
    %1871 = vector.broadcast %1870 : f32 to vector<8x16xf32>
    %1872 = arith.addf %1869, %1871 : vector<8x16xf32>
    %1873 = math.tanh %1872 : vector<8x16xf32>
    %c200_311 = arith.constant 200 : index
    %1874 = memref.load %arg4[%c200_311] : memref<400xf32, #tpu.memory_space<smem>>
    %1875 = vector.broadcast %1874 : f32 to vector<8x16xf32>
    %1876 = arith.mulf %1873, %1875 : vector<8x16xf32>
    %1877 = arith.addf %1702, %1876 : vector<8x16xf32>
    %c201_312 = arith.constant 201 : index
    %1878 = memref.load %arg4[%c201_312] : memref<400xf32, #tpu.memory_space<smem>>
    %1879 = vector.broadcast %1878 : f32 to vector<8x16xf32>
    %1880 = arith.mulf %1873, %1879 : vector<8x16xf32>
    %1881 = arith.addf %1706, %1880 : vector<8x16xf32>
    %c202_313 = arith.constant 202 : index
    %1882 = memref.load %arg4[%c202_313] : memref<400xf32, #tpu.memory_space<smem>>
    %1883 = vector.broadcast %1882 : f32 to vector<8x16xf32>
    %1884 = arith.mulf %1873, %1883 : vector<8x16xf32>
    %1885 = arith.addf %1710, %1884 : vector<8x16xf32>
    %c203_314 = arith.constant 203 : index
    %1886 = memref.load %arg4[%c203_314] : memref<400xf32, #tpu.memory_space<smem>>
    %1887 = vector.broadcast %1886 : f32 to vector<8x16xf32>
    %1888 = arith.mulf %1873, %1887 : vector<8x16xf32>
    %1889 = arith.addf %1714, %1888 : vector<8x16xf32>
    %c204_315 = arith.constant 204 : index
    %1890 = memref.load %arg4[%c204_315] : memref<400xf32, #tpu.memory_space<smem>>
    %1891 = vector.broadcast %1890 : f32 to vector<8x16xf32>
    %1892 = arith.mulf %1873, %1891 : vector<8x16xf32>
    %1893 = arith.addf %1718, %1892 : vector<8x16xf32>
    %c205_316 = arith.constant 205 : index
    %1894 = memref.load %arg4[%c205_316] : memref<400xf32, #tpu.memory_space<smem>>
    %1895 = vector.broadcast %1894 : f32 to vector<8x16xf32>
    %1896 = arith.mulf %1873, %1895 : vector<8x16xf32>
    %1897 = arith.addf %1722, %1896 : vector<8x16xf32>
    %c206_317 = arith.constant 206 : index
    %1898 = memref.load %arg4[%c206_317] : memref<400xf32, #tpu.memory_space<smem>>
    %1899 = vector.broadcast %1898 : f32 to vector<8x16xf32>
    %1900 = arith.mulf %1873, %1899 : vector<8x16xf32>
    %1901 = arith.addf %1726, %1900 : vector<8x16xf32>
    %c207_318 = arith.constant 207 : index
    %1902 = memref.load %arg4[%c207_318] : memref<400xf32, #tpu.memory_space<smem>>
    %1903 = vector.broadcast %1902 : f32 to vector<8x16xf32>
    %1904 = arith.mulf %1873, %1903 : vector<8x16xf32>
    %1905 = arith.addf %1730, %1904 : vector<8x16xf32>
    %c208_319 = arith.constant 208 : index
    %1906 = memref.load %arg4[%c208_319] : memref<400xf32, #tpu.memory_space<smem>>
    %1907 = vector.broadcast %1906 : f32 to vector<8x16xf32>
    %1908 = arith.mulf %1873, %1907 : vector<8x16xf32>
    %1909 = arith.addf %1734, %1908 : vector<8x16xf32>
    %c209_320 = arith.constant 209 : index
    %1910 = memref.load %arg4[%c209_320] : memref<400xf32, #tpu.memory_space<smem>>
    %1911 = vector.broadcast %1910 : f32 to vector<8x16xf32>
    %1912 = arith.mulf %1873, %1911 : vector<8x16xf32>
    %1913 = arith.addf %1738, %1912 : vector<8x16xf32>
    %c210_321 = arith.constant 210 : index
    %1914 = memref.load %arg4[%c210_321] : memref<400xf32, #tpu.memory_space<smem>>
    %1915 = vector.broadcast %1914 : f32 to vector<8x16xf32>
    %1916 = arith.mulf %1873, %1915 : vector<8x16xf32>
    %1917 = arith.addf %1742, %1916 : vector<8x16xf32>
    %c211_322 = arith.constant 211 : index
    %1918 = memref.load %arg4[%c211_322] : memref<400xf32, #tpu.memory_space<smem>>
    %1919 = vector.broadcast %1918 : f32 to vector<8x16xf32>
    %1920 = arith.mulf %1873, %1919 : vector<8x16xf32>
    %1921 = arith.addf %1746, %1920 : vector<8x16xf32>
    %c212_323 = arith.constant 212 : index
    %1922 = memref.load %arg4[%c212_323] : memref<400xf32, #tpu.memory_space<smem>>
    %1923 = vector.broadcast %1922 : f32 to vector<8x16xf32>
    %1924 = arith.mulf %1873, %1923 : vector<8x16xf32>
    %1925 = arith.addf %1750, %1924 : vector<8x16xf32>
    %c213_324 = arith.constant 213 : index
    %1926 = memref.load %arg4[%c213_324] : memref<400xf32, #tpu.memory_space<smem>>
    %1927 = vector.broadcast %1926 : f32 to vector<8x16xf32>
    %1928 = arith.mulf %1873, %1927 : vector<8x16xf32>
    %1929 = arith.addf %1754, %1928 : vector<8x16xf32>
    %c214_325 = arith.constant 214 : index
    %1930 = memref.load %arg4[%c214_325] : memref<400xf32, #tpu.memory_space<smem>>
    %1931 = vector.broadcast %1930 : f32 to vector<8x16xf32>
    %1932 = arith.mulf %1873, %1931 : vector<8x16xf32>
    %1933 = arith.addf %1758, %1932 : vector<8x16xf32>
    %c215_326 = arith.constant 215 : index
    %1934 = memref.load %arg4[%c215_326] : memref<400xf32, #tpu.memory_space<smem>>
    %1935 = vector.broadcast %1934 : f32 to vector<8x16xf32>
    %1936 = arith.mulf %1873, %1935 : vector<8x16xf32>
    %1937 = arith.addf %1762, %1936 : vector<8x16xf32>
    %c216_327 = arith.constant 216 : index
    %1938 = memref.load %arg4[%c216_327] : memref<400xf32, #tpu.memory_space<smem>>
    %1939 = vector.broadcast %1938 : f32 to vector<8x16xf32>
    %1940 = arith.mulf %1873, %1939 : vector<8x16xf32>
    %1941 = arith.addf %1766, %1940 : vector<8x16xf32>
    %c217_328 = arith.constant 217 : index
    %1942 = memref.load %arg4[%c217_328] : memref<400xf32, #tpu.memory_space<smem>>
    %1943 = vector.broadcast %1942 : f32 to vector<8x16xf32>
    %1944 = arith.mulf %1873, %1943 : vector<8x16xf32>
    %1945 = arith.addf %1770, %1944 : vector<8x16xf32>
    %c218_329 = arith.constant 218 : index
    %1946 = memref.load %arg4[%c218_329] : memref<400xf32, #tpu.memory_space<smem>>
    %1947 = vector.broadcast %1946 : f32 to vector<8x16xf32>
    %1948 = arith.mulf %1873, %1947 : vector<8x16xf32>
    %1949 = arith.addf %1774, %1948 : vector<8x16xf32>
    %c219_330 = arith.constant 219 : index
    %1950 = memref.load %arg4[%c219_330] : memref<400xf32, #tpu.memory_space<smem>>
    %1951 = vector.broadcast %1950 : f32 to vector<8x16xf32>
    %1952 = arith.mulf %1873, %1951 : vector<8x16xf32>
    %1953 = arith.addf %1778, %1952 : vector<8x16xf32>
    %1954 = arith.mulf %1873, %1873 : vector<8x16xf32>
    %cst_331 = arith.constant 1.000000e+00 : f32
    %1955 = vector.broadcast %cst_331 : f32 to vector<8x16xf32>
    %1956 = arith.subf %1955, %1954 : vector<8x16xf32>
    %c10_332 = arith.constant 10 : index
    %1957 = memref.load %arg2[%c10_332] : memref<20xf32, #tpu.memory_space<smem>>
    %1958 = vector.broadcast %1957 : f32 to vector<8x16xf32>
    %1959 = arith.mulf %1956, %1958 : vector<8x16xf32>
    %cst_333 = arith.constant 1.000000e+00 : f32
    %1960 = vector.broadcast %cst_333 : f32 to vector<8x16xf32>
    %1961 = arith.addf %1960, %1959 : vector<8x16xf32>
    %1962 = math.absf %1961 : vector<8x16xf32>
    %cst_334 = arith.constant 9.99999993E-9 : f32
    %1963 = vector.broadcast %cst_334 : f32 to vector<8x16xf32>
    %1964 = arith.addf %1962, %1963 : vector<8x16xf32>
    %1965 = arith.mulf %1790, %1964 : vector<8x16xf32>
    %c220 = arith.constant 220 : index
    %1966 = memref.load %arg3[%c220] : memref<400xf32, #tpu.memory_space<smem>>
    %1967 = vector.broadcast %1966 : f32 to vector<8x16xf32>
    %1968 = arith.mulf %1877, %1967 : vector<8x16xf32>
    %c221 = arith.constant 221 : index
    %1969 = memref.load %arg3[%c221] : memref<400xf32, #tpu.memory_space<smem>>
    %1970 = vector.broadcast %1969 : f32 to vector<8x16xf32>
    %1971 = arith.mulf %1881, %1970 : vector<8x16xf32>
    %c222 = arith.constant 222 : index
    %1972 = memref.load %arg3[%c222] : memref<400xf32, #tpu.memory_space<smem>>
    %1973 = vector.broadcast %1972 : f32 to vector<8x16xf32>
    %1974 = arith.mulf %1885, %1973 : vector<8x16xf32>
    %c223 = arith.constant 223 : index
    %1975 = memref.load %arg3[%c223] : memref<400xf32, #tpu.memory_space<smem>>
    %1976 = vector.broadcast %1975 : f32 to vector<8x16xf32>
    %1977 = arith.mulf %1889, %1976 : vector<8x16xf32>
    %c224 = arith.constant 224 : index
    %1978 = memref.load %arg3[%c224] : memref<400xf32, #tpu.memory_space<smem>>
    %1979 = vector.broadcast %1978 : f32 to vector<8x16xf32>
    %1980 = arith.mulf %1893, %1979 : vector<8x16xf32>
    %c225 = arith.constant 225 : index
    %1981 = memref.load %arg3[%c225] : memref<400xf32, #tpu.memory_space<smem>>
    %1982 = vector.broadcast %1981 : f32 to vector<8x16xf32>
    %1983 = arith.mulf %1897, %1982 : vector<8x16xf32>
    %c226 = arith.constant 226 : index
    %1984 = memref.load %arg3[%c226] : memref<400xf32, #tpu.memory_space<smem>>
    %1985 = vector.broadcast %1984 : f32 to vector<8x16xf32>
    %1986 = arith.mulf %1901, %1985 : vector<8x16xf32>
    %c227 = arith.constant 227 : index
    %1987 = memref.load %arg3[%c227] : memref<400xf32, #tpu.memory_space<smem>>
    %1988 = vector.broadcast %1987 : f32 to vector<8x16xf32>
    %1989 = arith.mulf %1905, %1988 : vector<8x16xf32>
    %c228 = arith.constant 228 : index
    %1990 = memref.load %arg3[%c228] : memref<400xf32, #tpu.memory_space<smem>>
    %1991 = vector.broadcast %1990 : f32 to vector<8x16xf32>
    %1992 = arith.mulf %1909, %1991 : vector<8x16xf32>
    %c229 = arith.constant 229 : index
    %1993 = memref.load %arg3[%c229] : memref<400xf32, #tpu.memory_space<smem>>
    %1994 = vector.broadcast %1993 : f32 to vector<8x16xf32>
    %1995 = arith.mulf %1913, %1994 : vector<8x16xf32>
    %c230 = arith.constant 230 : index
    %1996 = memref.load %arg3[%c230] : memref<400xf32, #tpu.memory_space<smem>>
    %1997 = vector.broadcast %1996 : f32 to vector<8x16xf32>
    %1998 = arith.mulf %1917, %1997 : vector<8x16xf32>
    %c231 = arith.constant 231 : index
    %1999 = memref.load %arg3[%c231] : memref<400xf32, #tpu.memory_space<smem>>
    %2000 = vector.broadcast %1999 : f32 to vector<8x16xf32>
    %2001 = arith.mulf %1921, %2000 : vector<8x16xf32>
    %c232 = arith.constant 232 : index
    %2002 = memref.load %arg3[%c232] : memref<400xf32, #tpu.memory_space<smem>>
    %2003 = vector.broadcast %2002 : f32 to vector<8x16xf32>
    %2004 = arith.mulf %1925, %2003 : vector<8x16xf32>
    %c233 = arith.constant 233 : index
    %2005 = memref.load %arg3[%c233] : memref<400xf32, #tpu.memory_space<smem>>
    %2006 = vector.broadcast %2005 : f32 to vector<8x16xf32>
    %2007 = arith.mulf %1929, %2006 : vector<8x16xf32>
    %c234 = arith.constant 234 : index
    %2008 = memref.load %arg3[%c234] : memref<400xf32, #tpu.memory_space<smem>>
    %2009 = vector.broadcast %2008 : f32 to vector<8x16xf32>
    %2010 = arith.mulf %1933, %2009 : vector<8x16xf32>
    %c235 = arith.constant 235 : index
    %2011 = memref.load %arg3[%c235] : memref<400xf32, #tpu.memory_space<smem>>
    %2012 = vector.broadcast %2011 : f32 to vector<8x16xf32>
    %2013 = arith.mulf %1937, %2012 : vector<8x16xf32>
    %c236 = arith.constant 236 : index
    %2014 = memref.load %arg3[%c236] : memref<400xf32, #tpu.memory_space<smem>>
    %2015 = vector.broadcast %2014 : f32 to vector<8x16xf32>
    %2016 = arith.mulf %1941, %2015 : vector<8x16xf32>
    %c237 = arith.constant 237 : index
    %2017 = memref.load %arg3[%c237] : memref<400xf32, #tpu.memory_space<smem>>
    %2018 = vector.broadcast %2017 : f32 to vector<8x16xf32>
    %2019 = arith.mulf %1945, %2018 : vector<8x16xf32>
    %c238 = arith.constant 238 : index
    %2020 = memref.load %arg3[%c238] : memref<400xf32, #tpu.memory_space<smem>>
    %2021 = vector.broadcast %2020 : f32 to vector<8x16xf32>
    %2022 = arith.mulf %1949, %2021 : vector<8x16xf32>
    %c239 = arith.constant 239 : index
    %2023 = memref.load %arg3[%c239] : memref<400xf32, #tpu.memory_space<smem>>
    %2024 = vector.broadcast %2023 : f32 to vector<8x16xf32>
    %2025 = arith.mulf %1953, %2024 : vector<8x16xf32>
    %2026 = arith.addf %1968, %1971 : vector<8x16xf32>
    %2027 = arith.addf %1974, %1977 : vector<8x16xf32>
    %2028 = arith.addf %1980, %1983 : vector<8x16xf32>
    %2029 = arith.addf %1986, %1989 : vector<8x16xf32>
    %2030 = arith.addf %1992, %1995 : vector<8x16xf32>
    %2031 = arith.addf %1998, %2001 : vector<8x16xf32>
    %2032 = arith.addf %2004, %2007 : vector<8x16xf32>
    %2033 = arith.addf %2010, %2013 : vector<8x16xf32>
    %2034 = arith.addf %2016, %2019 : vector<8x16xf32>
    %2035 = arith.addf %2022, %2025 : vector<8x16xf32>
    %2036 = arith.addf %2026, %2027 : vector<8x16xf32>
    %2037 = arith.addf %2028, %2029 : vector<8x16xf32>
    %2038 = arith.addf %2030, %2031 : vector<8x16xf32>
    %2039 = arith.addf %2032, %2033 : vector<8x16xf32>
    %2040 = arith.addf %2034, %2035 : vector<8x16xf32>
    %2041 = arith.addf %2036, %2037 : vector<8x16xf32>
    %2042 = arith.addf %2038, %2039 : vector<8x16xf32>
    %2043 = arith.addf %2041, %2042 : vector<8x16xf32>
    %2044 = arith.addf %2043, %2040 : vector<8x16xf32>
    %c11_335 = arith.constant 11 : index
    %2045 = memref.load %arg1[%c11_335] : memref<20xf32, #tpu.memory_space<smem>>
    %2046 = vector.broadcast %2045 : f32 to vector<8x16xf32>
    %2047 = arith.addf %2044, %2046 : vector<8x16xf32>
    %2048 = math.tanh %2047 : vector<8x16xf32>
    %c220_336 = arith.constant 220 : index
    %2049 = memref.load %arg4[%c220_336] : memref<400xf32, #tpu.memory_space<smem>>
    %2050 = vector.broadcast %2049 : f32 to vector<8x16xf32>
    %2051 = arith.mulf %2048, %2050 : vector<8x16xf32>
    %2052 = arith.addf %1877, %2051 : vector<8x16xf32>
    %c221_337 = arith.constant 221 : index
    %2053 = memref.load %arg4[%c221_337] : memref<400xf32, #tpu.memory_space<smem>>
    %2054 = vector.broadcast %2053 : f32 to vector<8x16xf32>
    %2055 = arith.mulf %2048, %2054 : vector<8x16xf32>
    %2056 = arith.addf %1881, %2055 : vector<8x16xf32>
    %c222_338 = arith.constant 222 : index
    %2057 = memref.load %arg4[%c222_338] : memref<400xf32, #tpu.memory_space<smem>>
    %2058 = vector.broadcast %2057 : f32 to vector<8x16xf32>
    %2059 = arith.mulf %2048, %2058 : vector<8x16xf32>
    %2060 = arith.addf %1885, %2059 : vector<8x16xf32>
    %c223_339 = arith.constant 223 : index
    %2061 = memref.load %arg4[%c223_339] : memref<400xf32, #tpu.memory_space<smem>>
    %2062 = vector.broadcast %2061 : f32 to vector<8x16xf32>
    %2063 = arith.mulf %2048, %2062 : vector<8x16xf32>
    %2064 = arith.addf %1889, %2063 : vector<8x16xf32>
    %c224_340 = arith.constant 224 : index
    %2065 = memref.load %arg4[%c224_340] : memref<400xf32, #tpu.memory_space<smem>>
    %2066 = vector.broadcast %2065 : f32 to vector<8x16xf32>
    %2067 = arith.mulf %2048, %2066 : vector<8x16xf32>
    %2068 = arith.addf %1893, %2067 : vector<8x16xf32>
    %c225_341 = arith.constant 225 : index
    %2069 = memref.load %arg4[%c225_341] : memref<400xf32, #tpu.memory_space<smem>>
    %2070 = vector.broadcast %2069 : f32 to vector<8x16xf32>
    %2071 = arith.mulf %2048, %2070 : vector<8x16xf32>
    %2072 = arith.addf %1897, %2071 : vector<8x16xf32>
    %c226_342 = arith.constant 226 : index
    %2073 = memref.load %arg4[%c226_342] : memref<400xf32, #tpu.memory_space<smem>>
    %2074 = vector.broadcast %2073 : f32 to vector<8x16xf32>
    %2075 = arith.mulf %2048, %2074 : vector<8x16xf32>
    %2076 = arith.addf %1901, %2075 : vector<8x16xf32>
    %c227_343 = arith.constant 227 : index
    %2077 = memref.load %arg4[%c227_343] : memref<400xf32, #tpu.memory_space<smem>>
    %2078 = vector.broadcast %2077 : f32 to vector<8x16xf32>
    %2079 = arith.mulf %2048, %2078 : vector<8x16xf32>
    %2080 = arith.addf %1905, %2079 : vector<8x16xf32>
    %c228_344 = arith.constant 228 : index
    %2081 = memref.load %arg4[%c228_344] : memref<400xf32, #tpu.memory_space<smem>>
    %2082 = vector.broadcast %2081 : f32 to vector<8x16xf32>
    %2083 = arith.mulf %2048, %2082 : vector<8x16xf32>
    %2084 = arith.addf %1909, %2083 : vector<8x16xf32>
    %c229_345 = arith.constant 229 : index
    %2085 = memref.load %arg4[%c229_345] : memref<400xf32, #tpu.memory_space<smem>>
    %2086 = vector.broadcast %2085 : f32 to vector<8x16xf32>
    %2087 = arith.mulf %2048, %2086 : vector<8x16xf32>
    %2088 = arith.addf %1913, %2087 : vector<8x16xf32>
    %c230_346 = arith.constant 230 : index
    %2089 = memref.load %arg4[%c230_346] : memref<400xf32, #tpu.memory_space<smem>>
    %2090 = vector.broadcast %2089 : f32 to vector<8x16xf32>
    %2091 = arith.mulf %2048, %2090 : vector<8x16xf32>
    %2092 = arith.addf %1917, %2091 : vector<8x16xf32>
    %c231_347 = arith.constant 231 : index
    %2093 = memref.load %arg4[%c231_347] : memref<400xf32, #tpu.memory_space<smem>>
    %2094 = vector.broadcast %2093 : f32 to vector<8x16xf32>
    %2095 = arith.mulf %2048, %2094 : vector<8x16xf32>
    %2096 = arith.addf %1921, %2095 : vector<8x16xf32>
    %c232_348 = arith.constant 232 : index
    %2097 = memref.load %arg4[%c232_348] : memref<400xf32, #tpu.memory_space<smem>>
    %2098 = vector.broadcast %2097 : f32 to vector<8x16xf32>
    %2099 = arith.mulf %2048, %2098 : vector<8x16xf32>
    %2100 = arith.addf %1925, %2099 : vector<8x16xf32>
    %c233_349 = arith.constant 233 : index
    %2101 = memref.load %arg4[%c233_349] : memref<400xf32, #tpu.memory_space<smem>>
    %2102 = vector.broadcast %2101 : f32 to vector<8x16xf32>
    %2103 = arith.mulf %2048, %2102 : vector<8x16xf32>
    %2104 = arith.addf %1929, %2103 : vector<8x16xf32>
    %c234_350 = arith.constant 234 : index
    %2105 = memref.load %arg4[%c234_350] : memref<400xf32, #tpu.memory_space<smem>>
    %2106 = vector.broadcast %2105 : f32 to vector<8x16xf32>
    %2107 = arith.mulf %2048, %2106 : vector<8x16xf32>
    %2108 = arith.addf %1933, %2107 : vector<8x16xf32>
    %c235_351 = arith.constant 235 : index
    %2109 = memref.load %arg4[%c235_351] : memref<400xf32, #tpu.memory_space<smem>>
    %2110 = vector.broadcast %2109 : f32 to vector<8x16xf32>
    %2111 = arith.mulf %2048, %2110 : vector<8x16xf32>
    %2112 = arith.addf %1937, %2111 : vector<8x16xf32>
    %c236_352 = arith.constant 236 : index
    %2113 = memref.load %arg4[%c236_352] : memref<400xf32, #tpu.memory_space<smem>>
    %2114 = vector.broadcast %2113 : f32 to vector<8x16xf32>
    %2115 = arith.mulf %2048, %2114 : vector<8x16xf32>
    %2116 = arith.addf %1941, %2115 : vector<8x16xf32>
    %c237_353 = arith.constant 237 : index
    %2117 = memref.load %arg4[%c237_353] : memref<400xf32, #tpu.memory_space<smem>>
    %2118 = vector.broadcast %2117 : f32 to vector<8x16xf32>
    %2119 = arith.mulf %2048, %2118 : vector<8x16xf32>
    %2120 = arith.addf %1945, %2119 : vector<8x16xf32>
    %c238_354 = arith.constant 238 : index
    %2121 = memref.load %arg4[%c238_354] : memref<400xf32, #tpu.memory_space<smem>>
    %2122 = vector.broadcast %2121 : f32 to vector<8x16xf32>
    %2123 = arith.mulf %2048, %2122 : vector<8x16xf32>
    %2124 = arith.addf %1949, %2123 : vector<8x16xf32>
    %c239_355 = arith.constant 239 : index
    %2125 = memref.load %arg4[%c239_355] : memref<400xf32, #tpu.memory_space<smem>>
    %2126 = vector.broadcast %2125 : f32 to vector<8x16xf32>
    %2127 = arith.mulf %2048, %2126 : vector<8x16xf32>
    %2128 = arith.addf %1953, %2127 : vector<8x16xf32>
    %2129 = arith.mulf %2048, %2048 : vector<8x16xf32>
    %cst_356 = arith.constant 1.000000e+00 : f32
    %2130 = vector.broadcast %cst_356 : f32 to vector<8x16xf32>
    %2131 = arith.subf %2130, %2129 : vector<8x16xf32>
    %c11_357 = arith.constant 11 : index
    %2132 = memref.load %arg2[%c11_357] : memref<20xf32, #tpu.memory_space<smem>>
    %2133 = vector.broadcast %2132 : f32 to vector<8x16xf32>
    %2134 = arith.mulf %2131, %2133 : vector<8x16xf32>
    %cst_358 = arith.constant 1.000000e+00 : f32
    %2135 = vector.broadcast %cst_358 : f32 to vector<8x16xf32>
    %2136 = arith.addf %2135, %2134 : vector<8x16xf32>
    %2137 = math.absf %2136 : vector<8x16xf32>
    %cst_359 = arith.constant 9.99999993E-9 : f32
    %2138 = vector.broadcast %cst_359 : f32 to vector<8x16xf32>
    %2139 = arith.addf %2137, %2138 : vector<8x16xf32>
    %2140 = arith.mulf %1965, %2139 : vector<8x16xf32>
    %c240 = arith.constant 240 : index
    %2141 = memref.load %arg3[%c240] : memref<400xf32, #tpu.memory_space<smem>>
    %2142 = vector.broadcast %2141 : f32 to vector<8x16xf32>
    %2143 = arith.mulf %2052, %2142 : vector<8x16xf32>
    %c241 = arith.constant 241 : index
    %2144 = memref.load %arg3[%c241] : memref<400xf32, #tpu.memory_space<smem>>
    %2145 = vector.broadcast %2144 : f32 to vector<8x16xf32>
    %2146 = arith.mulf %2056, %2145 : vector<8x16xf32>
    %c242 = arith.constant 242 : index
    %2147 = memref.load %arg3[%c242] : memref<400xf32, #tpu.memory_space<smem>>
    %2148 = vector.broadcast %2147 : f32 to vector<8x16xf32>
    %2149 = arith.mulf %2060, %2148 : vector<8x16xf32>
    %c243 = arith.constant 243 : index
    %2150 = memref.load %arg3[%c243] : memref<400xf32, #tpu.memory_space<smem>>
    %2151 = vector.broadcast %2150 : f32 to vector<8x16xf32>
    %2152 = arith.mulf %2064, %2151 : vector<8x16xf32>
    %c244 = arith.constant 244 : index
    %2153 = memref.load %arg3[%c244] : memref<400xf32, #tpu.memory_space<smem>>
    %2154 = vector.broadcast %2153 : f32 to vector<8x16xf32>
    %2155 = arith.mulf %2068, %2154 : vector<8x16xf32>
    %c245 = arith.constant 245 : index
    %2156 = memref.load %arg3[%c245] : memref<400xf32, #tpu.memory_space<smem>>
    %2157 = vector.broadcast %2156 : f32 to vector<8x16xf32>
    %2158 = arith.mulf %2072, %2157 : vector<8x16xf32>
    %c246 = arith.constant 246 : index
    %2159 = memref.load %arg3[%c246] : memref<400xf32, #tpu.memory_space<smem>>
    %2160 = vector.broadcast %2159 : f32 to vector<8x16xf32>
    %2161 = arith.mulf %2076, %2160 : vector<8x16xf32>
    %c247 = arith.constant 247 : index
    %2162 = memref.load %arg3[%c247] : memref<400xf32, #tpu.memory_space<smem>>
    %2163 = vector.broadcast %2162 : f32 to vector<8x16xf32>
    %2164 = arith.mulf %2080, %2163 : vector<8x16xf32>
    %c248 = arith.constant 248 : index
    %2165 = memref.load %arg3[%c248] : memref<400xf32, #tpu.memory_space<smem>>
    %2166 = vector.broadcast %2165 : f32 to vector<8x16xf32>
    %2167 = arith.mulf %2084, %2166 : vector<8x16xf32>
    %c249 = arith.constant 249 : index
    %2168 = memref.load %arg3[%c249] : memref<400xf32, #tpu.memory_space<smem>>
    %2169 = vector.broadcast %2168 : f32 to vector<8x16xf32>
    %2170 = arith.mulf %2088, %2169 : vector<8x16xf32>
    %c250 = arith.constant 250 : index
    %2171 = memref.load %arg3[%c250] : memref<400xf32, #tpu.memory_space<smem>>
    %2172 = vector.broadcast %2171 : f32 to vector<8x16xf32>
    %2173 = arith.mulf %2092, %2172 : vector<8x16xf32>
    %c251 = arith.constant 251 : index
    %2174 = memref.load %arg3[%c251] : memref<400xf32, #tpu.memory_space<smem>>
    %2175 = vector.broadcast %2174 : f32 to vector<8x16xf32>
    %2176 = arith.mulf %2096, %2175 : vector<8x16xf32>
    %c252 = arith.constant 252 : index
    %2177 = memref.load %arg3[%c252] : memref<400xf32, #tpu.memory_space<smem>>
    %2178 = vector.broadcast %2177 : f32 to vector<8x16xf32>
    %2179 = arith.mulf %2100, %2178 : vector<8x16xf32>
    %c253 = arith.constant 253 : index
    %2180 = memref.load %arg3[%c253] : memref<400xf32, #tpu.memory_space<smem>>
    %2181 = vector.broadcast %2180 : f32 to vector<8x16xf32>
    %2182 = arith.mulf %2104, %2181 : vector<8x16xf32>
    %c254 = arith.constant 254 : index
    %2183 = memref.load %arg3[%c254] : memref<400xf32, #tpu.memory_space<smem>>
    %2184 = vector.broadcast %2183 : f32 to vector<8x16xf32>
    %2185 = arith.mulf %2108, %2184 : vector<8x16xf32>
    %c255 = arith.constant 255 : index
    %2186 = memref.load %arg3[%c255] : memref<400xf32, #tpu.memory_space<smem>>
    %2187 = vector.broadcast %2186 : f32 to vector<8x16xf32>
    %2188 = arith.mulf %2112, %2187 : vector<8x16xf32>
    %c256 = arith.constant 256 : index
    %2189 = memref.load %arg3[%c256] : memref<400xf32, #tpu.memory_space<smem>>
    %2190 = vector.broadcast %2189 : f32 to vector<8x16xf32>
    %2191 = arith.mulf %2116, %2190 : vector<8x16xf32>
    %c257 = arith.constant 257 : index
    %2192 = memref.load %arg3[%c257] : memref<400xf32, #tpu.memory_space<smem>>
    %2193 = vector.broadcast %2192 : f32 to vector<8x16xf32>
    %2194 = arith.mulf %2120, %2193 : vector<8x16xf32>
    %c258 = arith.constant 258 : index
    %2195 = memref.load %arg3[%c258] : memref<400xf32, #tpu.memory_space<smem>>
    %2196 = vector.broadcast %2195 : f32 to vector<8x16xf32>
    %2197 = arith.mulf %2124, %2196 : vector<8x16xf32>
    %c259 = arith.constant 259 : index
    %2198 = memref.load %arg3[%c259] : memref<400xf32, #tpu.memory_space<smem>>
    %2199 = vector.broadcast %2198 : f32 to vector<8x16xf32>
    %2200 = arith.mulf %2128, %2199 : vector<8x16xf32>
    %2201 = arith.addf %2143, %2146 : vector<8x16xf32>
    %2202 = arith.addf %2149, %2152 : vector<8x16xf32>
    %2203 = arith.addf %2155, %2158 : vector<8x16xf32>
    %2204 = arith.addf %2161, %2164 : vector<8x16xf32>
    %2205 = arith.addf %2167, %2170 : vector<8x16xf32>
    %2206 = arith.addf %2173, %2176 : vector<8x16xf32>
    %2207 = arith.addf %2179, %2182 : vector<8x16xf32>
    %2208 = arith.addf %2185, %2188 : vector<8x16xf32>
    %2209 = arith.addf %2191, %2194 : vector<8x16xf32>
    %2210 = arith.addf %2197, %2200 : vector<8x16xf32>
    %2211 = arith.addf %2201, %2202 : vector<8x16xf32>
    %2212 = arith.addf %2203, %2204 : vector<8x16xf32>
    %2213 = arith.addf %2205, %2206 : vector<8x16xf32>
    %2214 = arith.addf %2207, %2208 : vector<8x16xf32>
    %2215 = arith.addf %2209, %2210 : vector<8x16xf32>
    %2216 = arith.addf %2211, %2212 : vector<8x16xf32>
    %2217 = arith.addf %2213, %2214 : vector<8x16xf32>
    %2218 = arith.addf %2216, %2217 : vector<8x16xf32>
    %2219 = arith.addf %2218, %2215 : vector<8x16xf32>
    %c12_360 = arith.constant 12 : index
    %2220 = memref.load %arg1[%c12_360] : memref<20xf32, #tpu.memory_space<smem>>
    %2221 = vector.broadcast %2220 : f32 to vector<8x16xf32>
    %2222 = arith.addf %2219, %2221 : vector<8x16xf32>
    %2223 = math.tanh %2222 : vector<8x16xf32>
    %c240_361 = arith.constant 240 : index
    %2224 = memref.load %arg4[%c240_361] : memref<400xf32, #tpu.memory_space<smem>>
    %2225 = vector.broadcast %2224 : f32 to vector<8x16xf32>
    %2226 = arith.mulf %2223, %2225 : vector<8x16xf32>
    %2227 = arith.addf %2052, %2226 : vector<8x16xf32>
    %c241_362 = arith.constant 241 : index
    %2228 = memref.load %arg4[%c241_362] : memref<400xf32, #tpu.memory_space<smem>>
    %2229 = vector.broadcast %2228 : f32 to vector<8x16xf32>
    %2230 = arith.mulf %2223, %2229 : vector<8x16xf32>
    %2231 = arith.addf %2056, %2230 : vector<8x16xf32>
    %c242_363 = arith.constant 242 : index
    %2232 = memref.load %arg4[%c242_363] : memref<400xf32, #tpu.memory_space<smem>>
    %2233 = vector.broadcast %2232 : f32 to vector<8x16xf32>
    %2234 = arith.mulf %2223, %2233 : vector<8x16xf32>
    %2235 = arith.addf %2060, %2234 : vector<8x16xf32>
    %c243_364 = arith.constant 243 : index
    %2236 = memref.load %arg4[%c243_364] : memref<400xf32, #tpu.memory_space<smem>>
    %2237 = vector.broadcast %2236 : f32 to vector<8x16xf32>
    %2238 = arith.mulf %2223, %2237 : vector<8x16xf32>
    %2239 = arith.addf %2064, %2238 : vector<8x16xf32>
    %c244_365 = arith.constant 244 : index
    %2240 = memref.load %arg4[%c244_365] : memref<400xf32, #tpu.memory_space<smem>>
    %2241 = vector.broadcast %2240 : f32 to vector<8x16xf32>
    %2242 = arith.mulf %2223, %2241 : vector<8x16xf32>
    %2243 = arith.addf %2068, %2242 : vector<8x16xf32>
    %c245_366 = arith.constant 245 : index
    %2244 = memref.load %arg4[%c245_366] : memref<400xf32, #tpu.memory_space<smem>>
    %2245 = vector.broadcast %2244 : f32 to vector<8x16xf32>
    %2246 = arith.mulf %2223, %2245 : vector<8x16xf32>
    %2247 = arith.addf %2072, %2246 : vector<8x16xf32>
    %c246_367 = arith.constant 246 : index
    %2248 = memref.load %arg4[%c246_367] : memref<400xf32, #tpu.memory_space<smem>>
    %2249 = vector.broadcast %2248 : f32 to vector<8x16xf32>
    %2250 = arith.mulf %2223, %2249 : vector<8x16xf32>
    %2251 = arith.addf %2076, %2250 : vector<8x16xf32>
    %c247_368 = arith.constant 247 : index
    %2252 = memref.load %arg4[%c247_368] : memref<400xf32, #tpu.memory_space<smem>>
    %2253 = vector.broadcast %2252 : f32 to vector<8x16xf32>
    %2254 = arith.mulf %2223, %2253 : vector<8x16xf32>
    %2255 = arith.addf %2080, %2254 : vector<8x16xf32>
    %c248_369 = arith.constant 248 : index
    %2256 = memref.load %arg4[%c248_369] : memref<400xf32, #tpu.memory_space<smem>>
    %2257 = vector.broadcast %2256 : f32 to vector<8x16xf32>
    %2258 = arith.mulf %2223, %2257 : vector<8x16xf32>
    %2259 = arith.addf %2084, %2258 : vector<8x16xf32>
    %c249_370 = arith.constant 249 : index
    %2260 = memref.load %arg4[%c249_370] : memref<400xf32, #tpu.memory_space<smem>>
    %2261 = vector.broadcast %2260 : f32 to vector<8x16xf32>
    %2262 = arith.mulf %2223, %2261 : vector<8x16xf32>
    %2263 = arith.addf %2088, %2262 : vector<8x16xf32>
    %c250_371 = arith.constant 250 : index
    %2264 = memref.load %arg4[%c250_371] : memref<400xf32, #tpu.memory_space<smem>>
    %2265 = vector.broadcast %2264 : f32 to vector<8x16xf32>
    %2266 = arith.mulf %2223, %2265 : vector<8x16xf32>
    %2267 = arith.addf %2092, %2266 : vector<8x16xf32>
    %c251_372 = arith.constant 251 : index
    %2268 = memref.load %arg4[%c251_372] : memref<400xf32, #tpu.memory_space<smem>>
    %2269 = vector.broadcast %2268 : f32 to vector<8x16xf32>
    %2270 = arith.mulf %2223, %2269 : vector<8x16xf32>
    %2271 = arith.addf %2096, %2270 : vector<8x16xf32>
    %c252_373 = arith.constant 252 : index
    %2272 = memref.load %arg4[%c252_373] : memref<400xf32, #tpu.memory_space<smem>>
    %2273 = vector.broadcast %2272 : f32 to vector<8x16xf32>
    %2274 = arith.mulf %2223, %2273 : vector<8x16xf32>
    %2275 = arith.addf %2100, %2274 : vector<8x16xf32>
    %c253_374 = arith.constant 253 : index
    %2276 = memref.load %arg4[%c253_374] : memref<400xf32, #tpu.memory_space<smem>>
    %2277 = vector.broadcast %2276 : f32 to vector<8x16xf32>
    %2278 = arith.mulf %2223, %2277 : vector<8x16xf32>
    %2279 = arith.addf %2104, %2278 : vector<8x16xf32>
    %c254_375 = arith.constant 254 : index
    %2280 = memref.load %arg4[%c254_375] : memref<400xf32, #tpu.memory_space<smem>>
    %2281 = vector.broadcast %2280 : f32 to vector<8x16xf32>
    %2282 = arith.mulf %2223, %2281 : vector<8x16xf32>
    %2283 = arith.addf %2108, %2282 : vector<8x16xf32>
    %c255_376 = arith.constant 255 : index
    %2284 = memref.load %arg4[%c255_376] : memref<400xf32, #tpu.memory_space<smem>>
    %2285 = vector.broadcast %2284 : f32 to vector<8x16xf32>
    %2286 = arith.mulf %2223, %2285 : vector<8x16xf32>
    %2287 = arith.addf %2112, %2286 : vector<8x16xf32>
    %c256_377 = arith.constant 256 : index
    %2288 = memref.load %arg4[%c256_377] : memref<400xf32, #tpu.memory_space<smem>>
    %2289 = vector.broadcast %2288 : f32 to vector<8x16xf32>
    %2290 = arith.mulf %2223, %2289 : vector<8x16xf32>
    %2291 = arith.addf %2116, %2290 : vector<8x16xf32>
    %c257_378 = arith.constant 257 : index
    %2292 = memref.load %arg4[%c257_378] : memref<400xf32, #tpu.memory_space<smem>>
    %2293 = vector.broadcast %2292 : f32 to vector<8x16xf32>
    %2294 = arith.mulf %2223, %2293 : vector<8x16xf32>
    %2295 = arith.addf %2120, %2294 : vector<8x16xf32>
    %c258_379 = arith.constant 258 : index
    %2296 = memref.load %arg4[%c258_379] : memref<400xf32, #tpu.memory_space<smem>>
    %2297 = vector.broadcast %2296 : f32 to vector<8x16xf32>
    %2298 = arith.mulf %2223, %2297 : vector<8x16xf32>
    %2299 = arith.addf %2124, %2298 : vector<8x16xf32>
    %c259_380 = arith.constant 259 : index
    %2300 = memref.load %arg4[%c259_380] : memref<400xf32, #tpu.memory_space<smem>>
    %2301 = vector.broadcast %2300 : f32 to vector<8x16xf32>
    %2302 = arith.mulf %2223, %2301 : vector<8x16xf32>
    %2303 = arith.addf %2128, %2302 : vector<8x16xf32>
    %2304 = arith.mulf %2223, %2223 : vector<8x16xf32>
    %cst_381 = arith.constant 1.000000e+00 : f32
    %2305 = vector.broadcast %cst_381 : f32 to vector<8x16xf32>
    %2306 = arith.subf %2305, %2304 : vector<8x16xf32>
    %c12_382 = arith.constant 12 : index
    %2307 = memref.load %arg2[%c12_382] : memref<20xf32, #tpu.memory_space<smem>>
    %2308 = vector.broadcast %2307 : f32 to vector<8x16xf32>
    %2309 = arith.mulf %2306, %2308 : vector<8x16xf32>
    %cst_383 = arith.constant 1.000000e+00 : f32
    %2310 = vector.broadcast %cst_383 : f32 to vector<8x16xf32>
    %2311 = arith.addf %2310, %2309 : vector<8x16xf32>
    %2312 = math.absf %2311 : vector<8x16xf32>
    %cst_384 = arith.constant 9.99999993E-9 : f32
    %2313 = vector.broadcast %cst_384 : f32 to vector<8x16xf32>
    %2314 = arith.addf %2312, %2313 : vector<8x16xf32>
    %2315 = arith.mulf %2140, %2314 : vector<8x16xf32>
    %c260 = arith.constant 260 : index
    %2316 = memref.load %arg3[%c260] : memref<400xf32, #tpu.memory_space<smem>>
    %2317 = vector.broadcast %2316 : f32 to vector<8x16xf32>
    %2318 = arith.mulf %2227, %2317 : vector<8x16xf32>
    %c261 = arith.constant 261 : index
    %2319 = memref.load %arg3[%c261] : memref<400xf32, #tpu.memory_space<smem>>
    %2320 = vector.broadcast %2319 : f32 to vector<8x16xf32>
    %2321 = arith.mulf %2231, %2320 : vector<8x16xf32>
    %c262 = arith.constant 262 : index
    %2322 = memref.load %arg3[%c262] : memref<400xf32, #tpu.memory_space<smem>>
    %2323 = vector.broadcast %2322 : f32 to vector<8x16xf32>
    %2324 = arith.mulf %2235, %2323 : vector<8x16xf32>
    %c263 = arith.constant 263 : index
    %2325 = memref.load %arg3[%c263] : memref<400xf32, #tpu.memory_space<smem>>
    %2326 = vector.broadcast %2325 : f32 to vector<8x16xf32>
    %2327 = arith.mulf %2239, %2326 : vector<8x16xf32>
    %c264 = arith.constant 264 : index
    %2328 = memref.load %arg3[%c264] : memref<400xf32, #tpu.memory_space<smem>>
    %2329 = vector.broadcast %2328 : f32 to vector<8x16xf32>
    %2330 = arith.mulf %2243, %2329 : vector<8x16xf32>
    %c265 = arith.constant 265 : index
    %2331 = memref.load %arg3[%c265] : memref<400xf32, #tpu.memory_space<smem>>
    %2332 = vector.broadcast %2331 : f32 to vector<8x16xf32>
    %2333 = arith.mulf %2247, %2332 : vector<8x16xf32>
    %c266 = arith.constant 266 : index
    %2334 = memref.load %arg3[%c266] : memref<400xf32, #tpu.memory_space<smem>>
    %2335 = vector.broadcast %2334 : f32 to vector<8x16xf32>
    %2336 = arith.mulf %2251, %2335 : vector<8x16xf32>
    %c267 = arith.constant 267 : index
    %2337 = memref.load %arg3[%c267] : memref<400xf32, #tpu.memory_space<smem>>
    %2338 = vector.broadcast %2337 : f32 to vector<8x16xf32>
    %2339 = arith.mulf %2255, %2338 : vector<8x16xf32>
    %c268 = arith.constant 268 : index
    %2340 = memref.load %arg3[%c268] : memref<400xf32, #tpu.memory_space<smem>>
    %2341 = vector.broadcast %2340 : f32 to vector<8x16xf32>
    %2342 = arith.mulf %2259, %2341 : vector<8x16xf32>
    %c269 = arith.constant 269 : index
    %2343 = memref.load %arg3[%c269] : memref<400xf32, #tpu.memory_space<smem>>
    %2344 = vector.broadcast %2343 : f32 to vector<8x16xf32>
    %2345 = arith.mulf %2263, %2344 : vector<8x16xf32>
    %c270 = arith.constant 270 : index
    %2346 = memref.load %arg3[%c270] : memref<400xf32, #tpu.memory_space<smem>>
    %2347 = vector.broadcast %2346 : f32 to vector<8x16xf32>
    %2348 = arith.mulf %2267, %2347 : vector<8x16xf32>
    %c271 = arith.constant 271 : index
    %2349 = memref.load %arg3[%c271] : memref<400xf32, #tpu.memory_space<smem>>
    %2350 = vector.broadcast %2349 : f32 to vector<8x16xf32>
    %2351 = arith.mulf %2271, %2350 : vector<8x16xf32>
    %c272 = arith.constant 272 : index
    %2352 = memref.load %arg3[%c272] : memref<400xf32, #tpu.memory_space<smem>>
    %2353 = vector.broadcast %2352 : f32 to vector<8x16xf32>
    %2354 = arith.mulf %2275, %2353 : vector<8x16xf32>
    %c273 = arith.constant 273 : index
    %2355 = memref.load %arg3[%c273] : memref<400xf32, #tpu.memory_space<smem>>
    %2356 = vector.broadcast %2355 : f32 to vector<8x16xf32>
    %2357 = arith.mulf %2279, %2356 : vector<8x16xf32>
    %c274 = arith.constant 274 : index
    %2358 = memref.load %arg3[%c274] : memref<400xf32, #tpu.memory_space<smem>>
    %2359 = vector.broadcast %2358 : f32 to vector<8x16xf32>
    %2360 = arith.mulf %2283, %2359 : vector<8x16xf32>
    %c275 = arith.constant 275 : index
    %2361 = memref.load %arg3[%c275] : memref<400xf32, #tpu.memory_space<smem>>
    %2362 = vector.broadcast %2361 : f32 to vector<8x16xf32>
    %2363 = arith.mulf %2287, %2362 : vector<8x16xf32>
    %c276 = arith.constant 276 : index
    %2364 = memref.load %arg3[%c276] : memref<400xf32, #tpu.memory_space<smem>>
    %2365 = vector.broadcast %2364 : f32 to vector<8x16xf32>
    %2366 = arith.mulf %2291, %2365 : vector<8x16xf32>
    %c277 = arith.constant 277 : index
    %2367 = memref.load %arg3[%c277] : memref<400xf32, #tpu.memory_space<smem>>
    %2368 = vector.broadcast %2367 : f32 to vector<8x16xf32>
    %2369 = arith.mulf %2295, %2368 : vector<8x16xf32>
    %c278 = arith.constant 278 : index
    %2370 = memref.load %arg3[%c278] : memref<400xf32, #tpu.memory_space<smem>>
    %2371 = vector.broadcast %2370 : f32 to vector<8x16xf32>
    %2372 = arith.mulf %2299, %2371 : vector<8x16xf32>
    %c279 = arith.constant 279 : index
    %2373 = memref.load %arg3[%c279] : memref<400xf32, #tpu.memory_space<smem>>
    %2374 = vector.broadcast %2373 : f32 to vector<8x16xf32>
    %2375 = arith.mulf %2303, %2374 : vector<8x16xf32>
    %2376 = arith.addf %2318, %2321 : vector<8x16xf32>
    %2377 = arith.addf %2324, %2327 : vector<8x16xf32>
    %2378 = arith.addf %2330, %2333 : vector<8x16xf32>
    %2379 = arith.addf %2336, %2339 : vector<8x16xf32>
    %2380 = arith.addf %2342, %2345 : vector<8x16xf32>
    %2381 = arith.addf %2348, %2351 : vector<8x16xf32>
    %2382 = arith.addf %2354, %2357 : vector<8x16xf32>
    %2383 = arith.addf %2360, %2363 : vector<8x16xf32>
    %2384 = arith.addf %2366, %2369 : vector<8x16xf32>
    %2385 = arith.addf %2372, %2375 : vector<8x16xf32>
    %2386 = arith.addf %2376, %2377 : vector<8x16xf32>
    %2387 = arith.addf %2378, %2379 : vector<8x16xf32>
    %2388 = arith.addf %2380, %2381 : vector<8x16xf32>
    %2389 = arith.addf %2382, %2383 : vector<8x16xf32>
    %2390 = arith.addf %2384, %2385 : vector<8x16xf32>
    %2391 = arith.addf %2386, %2387 : vector<8x16xf32>
    %2392 = arith.addf %2388, %2389 : vector<8x16xf32>
    %2393 = arith.addf %2391, %2392 : vector<8x16xf32>
    %2394 = arith.addf %2393, %2390 : vector<8x16xf32>
    %c13_385 = arith.constant 13 : index
    %2395 = memref.load %arg1[%c13_385] : memref<20xf32, #tpu.memory_space<smem>>
    %2396 = vector.broadcast %2395 : f32 to vector<8x16xf32>
    %2397 = arith.addf %2394, %2396 : vector<8x16xf32>
    %2398 = math.tanh %2397 : vector<8x16xf32>
    %c260_386 = arith.constant 260 : index
    %2399 = memref.load %arg4[%c260_386] : memref<400xf32, #tpu.memory_space<smem>>
    %2400 = vector.broadcast %2399 : f32 to vector<8x16xf32>
    %2401 = arith.mulf %2398, %2400 : vector<8x16xf32>
    %2402 = arith.addf %2227, %2401 : vector<8x16xf32>
    %c261_387 = arith.constant 261 : index
    %2403 = memref.load %arg4[%c261_387] : memref<400xf32, #tpu.memory_space<smem>>
    %2404 = vector.broadcast %2403 : f32 to vector<8x16xf32>
    %2405 = arith.mulf %2398, %2404 : vector<8x16xf32>
    %2406 = arith.addf %2231, %2405 : vector<8x16xf32>
    %c262_388 = arith.constant 262 : index
    %2407 = memref.load %arg4[%c262_388] : memref<400xf32, #tpu.memory_space<smem>>
    %2408 = vector.broadcast %2407 : f32 to vector<8x16xf32>
    %2409 = arith.mulf %2398, %2408 : vector<8x16xf32>
    %2410 = arith.addf %2235, %2409 : vector<8x16xf32>
    %c263_389 = arith.constant 263 : index
    %2411 = memref.load %arg4[%c263_389] : memref<400xf32, #tpu.memory_space<smem>>
    %2412 = vector.broadcast %2411 : f32 to vector<8x16xf32>
    %2413 = arith.mulf %2398, %2412 : vector<8x16xf32>
    %2414 = arith.addf %2239, %2413 : vector<8x16xf32>
    %c264_390 = arith.constant 264 : index
    %2415 = memref.load %arg4[%c264_390] : memref<400xf32, #tpu.memory_space<smem>>
    %2416 = vector.broadcast %2415 : f32 to vector<8x16xf32>
    %2417 = arith.mulf %2398, %2416 : vector<8x16xf32>
    %2418 = arith.addf %2243, %2417 : vector<8x16xf32>
    %c265_391 = arith.constant 265 : index
    %2419 = memref.load %arg4[%c265_391] : memref<400xf32, #tpu.memory_space<smem>>
    %2420 = vector.broadcast %2419 : f32 to vector<8x16xf32>
    %2421 = arith.mulf %2398, %2420 : vector<8x16xf32>
    %2422 = arith.addf %2247, %2421 : vector<8x16xf32>
    %c266_392 = arith.constant 266 : index
    %2423 = memref.load %arg4[%c266_392] : memref<400xf32, #tpu.memory_space<smem>>
    %2424 = vector.broadcast %2423 : f32 to vector<8x16xf32>
    %2425 = arith.mulf %2398, %2424 : vector<8x16xf32>
    %2426 = arith.addf %2251, %2425 : vector<8x16xf32>
    %c267_393 = arith.constant 267 : index
    %2427 = memref.load %arg4[%c267_393] : memref<400xf32, #tpu.memory_space<smem>>
    %2428 = vector.broadcast %2427 : f32 to vector<8x16xf32>
    %2429 = arith.mulf %2398, %2428 : vector<8x16xf32>
    %2430 = arith.addf %2255, %2429 : vector<8x16xf32>
    %c268_394 = arith.constant 268 : index
    %2431 = memref.load %arg4[%c268_394] : memref<400xf32, #tpu.memory_space<smem>>
    %2432 = vector.broadcast %2431 : f32 to vector<8x16xf32>
    %2433 = arith.mulf %2398, %2432 : vector<8x16xf32>
    %2434 = arith.addf %2259, %2433 : vector<8x16xf32>
    %c269_395 = arith.constant 269 : index
    %2435 = memref.load %arg4[%c269_395] : memref<400xf32, #tpu.memory_space<smem>>
    %2436 = vector.broadcast %2435 : f32 to vector<8x16xf32>
    %2437 = arith.mulf %2398, %2436 : vector<8x16xf32>
    %2438 = arith.addf %2263, %2437 : vector<8x16xf32>
    %c270_396 = arith.constant 270 : index
    %2439 = memref.load %arg4[%c270_396] : memref<400xf32, #tpu.memory_space<smem>>
    %2440 = vector.broadcast %2439 : f32 to vector<8x16xf32>
    %2441 = arith.mulf %2398, %2440 : vector<8x16xf32>
    %2442 = arith.addf %2267, %2441 : vector<8x16xf32>
    %c271_397 = arith.constant 271 : index
    %2443 = memref.load %arg4[%c271_397] : memref<400xf32, #tpu.memory_space<smem>>
    %2444 = vector.broadcast %2443 : f32 to vector<8x16xf32>
    %2445 = arith.mulf %2398, %2444 : vector<8x16xf32>
    %2446 = arith.addf %2271, %2445 : vector<8x16xf32>
    %c272_398 = arith.constant 272 : index
    %2447 = memref.load %arg4[%c272_398] : memref<400xf32, #tpu.memory_space<smem>>
    %2448 = vector.broadcast %2447 : f32 to vector<8x16xf32>
    %2449 = arith.mulf %2398, %2448 : vector<8x16xf32>
    %2450 = arith.addf %2275, %2449 : vector<8x16xf32>
    %c273_399 = arith.constant 273 : index
    %2451 = memref.load %arg4[%c273_399] : memref<400xf32, #tpu.memory_space<smem>>
    %2452 = vector.broadcast %2451 : f32 to vector<8x16xf32>
    %2453 = arith.mulf %2398, %2452 : vector<8x16xf32>
    %2454 = arith.addf %2279, %2453 : vector<8x16xf32>
    %c274_400 = arith.constant 274 : index
    %2455 = memref.load %arg4[%c274_400] : memref<400xf32, #tpu.memory_space<smem>>
    %2456 = vector.broadcast %2455 : f32 to vector<8x16xf32>
    %2457 = arith.mulf %2398, %2456 : vector<8x16xf32>
    %2458 = arith.addf %2283, %2457 : vector<8x16xf32>
    %c275_401 = arith.constant 275 : index
    %2459 = memref.load %arg4[%c275_401] : memref<400xf32, #tpu.memory_space<smem>>
    %2460 = vector.broadcast %2459 : f32 to vector<8x16xf32>
    %2461 = arith.mulf %2398, %2460 : vector<8x16xf32>
    %2462 = arith.addf %2287, %2461 : vector<8x16xf32>
    %c276_402 = arith.constant 276 : index
    %2463 = memref.load %arg4[%c276_402] : memref<400xf32, #tpu.memory_space<smem>>
    %2464 = vector.broadcast %2463 : f32 to vector<8x16xf32>
    %2465 = arith.mulf %2398, %2464 : vector<8x16xf32>
    %2466 = arith.addf %2291, %2465 : vector<8x16xf32>
    %c277_403 = arith.constant 277 : index
    %2467 = memref.load %arg4[%c277_403] : memref<400xf32, #tpu.memory_space<smem>>
    %2468 = vector.broadcast %2467 : f32 to vector<8x16xf32>
    %2469 = arith.mulf %2398, %2468 : vector<8x16xf32>
    %2470 = arith.addf %2295, %2469 : vector<8x16xf32>
    %c278_404 = arith.constant 278 : index
    %2471 = memref.load %arg4[%c278_404] : memref<400xf32, #tpu.memory_space<smem>>
    %2472 = vector.broadcast %2471 : f32 to vector<8x16xf32>
    %2473 = arith.mulf %2398, %2472 : vector<8x16xf32>
    %2474 = arith.addf %2299, %2473 : vector<8x16xf32>
    %c279_405 = arith.constant 279 : index
    %2475 = memref.load %arg4[%c279_405] : memref<400xf32, #tpu.memory_space<smem>>
    %2476 = vector.broadcast %2475 : f32 to vector<8x16xf32>
    %2477 = arith.mulf %2398, %2476 : vector<8x16xf32>
    %2478 = arith.addf %2303, %2477 : vector<8x16xf32>
    %2479 = arith.mulf %2398, %2398 : vector<8x16xf32>
    %cst_406 = arith.constant 1.000000e+00 : f32
    %2480 = vector.broadcast %cst_406 : f32 to vector<8x16xf32>
    %2481 = arith.subf %2480, %2479 : vector<8x16xf32>
    %c13_407 = arith.constant 13 : index
    %2482 = memref.load %arg2[%c13_407] : memref<20xf32, #tpu.memory_space<smem>>
    %2483 = vector.broadcast %2482 : f32 to vector<8x16xf32>
    %2484 = arith.mulf %2481, %2483 : vector<8x16xf32>
    %cst_408 = arith.constant 1.000000e+00 : f32
    %2485 = vector.broadcast %cst_408 : f32 to vector<8x16xf32>
    %2486 = arith.addf %2485, %2484 : vector<8x16xf32>
    %2487 = math.absf %2486 : vector<8x16xf32>
    %cst_409 = arith.constant 9.99999993E-9 : f32
    %2488 = vector.broadcast %cst_409 : f32 to vector<8x16xf32>
    %2489 = arith.addf %2487, %2488 : vector<8x16xf32>
    %2490 = arith.mulf %2315, %2489 : vector<8x16xf32>
    %c280 = arith.constant 280 : index
    %2491 = memref.load %arg3[%c280] : memref<400xf32, #tpu.memory_space<smem>>
    %2492 = vector.broadcast %2491 : f32 to vector<8x16xf32>
    %2493 = arith.mulf %2402, %2492 : vector<8x16xf32>
    %c281 = arith.constant 281 : index
    %2494 = memref.load %arg3[%c281] : memref<400xf32, #tpu.memory_space<smem>>
    %2495 = vector.broadcast %2494 : f32 to vector<8x16xf32>
    %2496 = arith.mulf %2406, %2495 : vector<8x16xf32>
    %c282 = arith.constant 282 : index
    %2497 = memref.load %arg3[%c282] : memref<400xf32, #tpu.memory_space<smem>>
    %2498 = vector.broadcast %2497 : f32 to vector<8x16xf32>
    %2499 = arith.mulf %2410, %2498 : vector<8x16xf32>
    %c283 = arith.constant 283 : index
    %2500 = memref.load %arg3[%c283] : memref<400xf32, #tpu.memory_space<smem>>
    %2501 = vector.broadcast %2500 : f32 to vector<8x16xf32>
    %2502 = arith.mulf %2414, %2501 : vector<8x16xf32>
    %c284 = arith.constant 284 : index
    %2503 = memref.load %arg3[%c284] : memref<400xf32, #tpu.memory_space<smem>>
    %2504 = vector.broadcast %2503 : f32 to vector<8x16xf32>
    %2505 = arith.mulf %2418, %2504 : vector<8x16xf32>
    %c285 = arith.constant 285 : index
    %2506 = memref.load %arg3[%c285] : memref<400xf32, #tpu.memory_space<smem>>
    %2507 = vector.broadcast %2506 : f32 to vector<8x16xf32>
    %2508 = arith.mulf %2422, %2507 : vector<8x16xf32>
    %c286 = arith.constant 286 : index
    %2509 = memref.load %arg3[%c286] : memref<400xf32, #tpu.memory_space<smem>>
    %2510 = vector.broadcast %2509 : f32 to vector<8x16xf32>
    %2511 = arith.mulf %2426, %2510 : vector<8x16xf32>
    %c287 = arith.constant 287 : index
    %2512 = memref.load %arg3[%c287] : memref<400xf32, #tpu.memory_space<smem>>
    %2513 = vector.broadcast %2512 : f32 to vector<8x16xf32>
    %2514 = arith.mulf %2430, %2513 : vector<8x16xf32>
    %c288 = arith.constant 288 : index
    %2515 = memref.load %arg3[%c288] : memref<400xf32, #tpu.memory_space<smem>>
    %2516 = vector.broadcast %2515 : f32 to vector<8x16xf32>
    %2517 = arith.mulf %2434, %2516 : vector<8x16xf32>
    %c289 = arith.constant 289 : index
    %2518 = memref.load %arg3[%c289] : memref<400xf32, #tpu.memory_space<smem>>
    %2519 = vector.broadcast %2518 : f32 to vector<8x16xf32>
    %2520 = arith.mulf %2438, %2519 : vector<8x16xf32>
    %c290 = arith.constant 290 : index
    %2521 = memref.load %arg3[%c290] : memref<400xf32, #tpu.memory_space<smem>>
    %2522 = vector.broadcast %2521 : f32 to vector<8x16xf32>
    %2523 = arith.mulf %2442, %2522 : vector<8x16xf32>
    %c291 = arith.constant 291 : index
    %2524 = memref.load %arg3[%c291] : memref<400xf32, #tpu.memory_space<smem>>
    %2525 = vector.broadcast %2524 : f32 to vector<8x16xf32>
    %2526 = arith.mulf %2446, %2525 : vector<8x16xf32>
    %c292 = arith.constant 292 : index
    %2527 = memref.load %arg3[%c292] : memref<400xf32, #tpu.memory_space<smem>>
    %2528 = vector.broadcast %2527 : f32 to vector<8x16xf32>
    %2529 = arith.mulf %2450, %2528 : vector<8x16xf32>
    %c293 = arith.constant 293 : index
    %2530 = memref.load %arg3[%c293] : memref<400xf32, #tpu.memory_space<smem>>
    %2531 = vector.broadcast %2530 : f32 to vector<8x16xf32>
    %2532 = arith.mulf %2454, %2531 : vector<8x16xf32>
    %c294 = arith.constant 294 : index
    %2533 = memref.load %arg3[%c294] : memref<400xf32, #tpu.memory_space<smem>>
    %2534 = vector.broadcast %2533 : f32 to vector<8x16xf32>
    %2535 = arith.mulf %2458, %2534 : vector<8x16xf32>
    %c295 = arith.constant 295 : index
    %2536 = memref.load %arg3[%c295] : memref<400xf32, #tpu.memory_space<smem>>
    %2537 = vector.broadcast %2536 : f32 to vector<8x16xf32>
    %2538 = arith.mulf %2462, %2537 : vector<8x16xf32>
    %c296 = arith.constant 296 : index
    %2539 = memref.load %arg3[%c296] : memref<400xf32, #tpu.memory_space<smem>>
    %2540 = vector.broadcast %2539 : f32 to vector<8x16xf32>
    %2541 = arith.mulf %2466, %2540 : vector<8x16xf32>
    %c297 = arith.constant 297 : index
    %2542 = memref.load %arg3[%c297] : memref<400xf32, #tpu.memory_space<smem>>
    %2543 = vector.broadcast %2542 : f32 to vector<8x16xf32>
    %2544 = arith.mulf %2470, %2543 : vector<8x16xf32>
    %c298 = arith.constant 298 : index
    %2545 = memref.load %arg3[%c298] : memref<400xf32, #tpu.memory_space<smem>>
    %2546 = vector.broadcast %2545 : f32 to vector<8x16xf32>
    %2547 = arith.mulf %2474, %2546 : vector<8x16xf32>
    %c299 = arith.constant 299 : index
    %2548 = memref.load %arg3[%c299] : memref<400xf32, #tpu.memory_space<smem>>
    %2549 = vector.broadcast %2548 : f32 to vector<8x16xf32>
    %2550 = arith.mulf %2478, %2549 : vector<8x16xf32>
    %2551 = arith.addf %2493, %2496 : vector<8x16xf32>
    %2552 = arith.addf %2499, %2502 : vector<8x16xf32>
    %2553 = arith.addf %2505, %2508 : vector<8x16xf32>
    %2554 = arith.addf %2511, %2514 : vector<8x16xf32>
    %2555 = arith.addf %2517, %2520 : vector<8x16xf32>
    %2556 = arith.addf %2523, %2526 : vector<8x16xf32>
    %2557 = arith.addf %2529, %2532 : vector<8x16xf32>
    %2558 = arith.addf %2535, %2538 : vector<8x16xf32>
    %2559 = arith.addf %2541, %2544 : vector<8x16xf32>
    %2560 = arith.addf %2547, %2550 : vector<8x16xf32>
    %2561 = arith.addf %2551, %2552 : vector<8x16xf32>
    %2562 = arith.addf %2553, %2554 : vector<8x16xf32>
    %2563 = arith.addf %2555, %2556 : vector<8x16xf32>
    %2564 = arith.addf %2557, %2558 : vector<8x16xf32>
    %2565 = arith.addf %2559, %2560 : vector<8x16xf32>
    %2566 = arith.addf %2561, %2562 : vector<8x16xf32>
    %2567 = arith.addf %2563, %2564 : vector<8x16xf32>
    %2568 = arith.addf %2566, %2567 : vector<8x16xf32>
    %2569 = arith.addf %2568, %2565 : vector<8x16xf32>
    %c14_410 = arith.constant 14 : index
    %2570 = memref.load %arg1[%c14_410] : memref<20xf32, #tpu.memory_space<smem>>
    %2571 = vector.broadcast %2570 : f32 to vector<8x16xf32>
    %2572 = arith.addf %2569, %2571 : vector<8x16xf32>
    %2573 = math.tanh %2572 : vector<8x16xf32>
    %c280_411 = arith.constant 280 : index
    %2574 = memref.load %arg4[%c280_411] : memref<400xf32, #tpu.memory_space<smem>>
    %2575 = vector.broadcast %2574 : f32 to vector<8x16xf32>
    %2576 = arith.mulf %2573, %2575 : vector<8x16xf32>
    %2577 = arith.addf %2402, %2576 : vector<8x16xf32>
    %c281_412 = arith.constant 281 : index
    %2578 = memref.load %arg4[%c281_412] : memref<400xf32, #tpu.memory_space<smem>>
    %2579 = vector.broadcast %2578 : f32 to vector<8x16xf32>
    %2580 = arith.mulf %2573, %2579 : vector<8x16xf32>
    %2581 = arith.addf %2406, %2580 : vector<8x16xf32>
    %c282_413 = arith.constant 282 : index
    %2582 = memref.load %arg4[%c282_413] : memref<400xf32, #tpu.memory_space<smem>>
    %2583 = vector.broadcast %2582 : f32 to vector<8x16xf32>
    %2584 = arith.mulf %2573, %2583 : vector<8x16xf32>
    %2585 = arith.addf %2410, %2584 : vector<8x16xf32>
    %c283_414 = arith.constant 283 : index
    %2586 = memref.load %arg4[%c283_414] : memref<400xf32, #tpu.memory_space<smem>>
    %2587 = vector.broadcast %2586 : f32 to vector<8x16xf32>
    %2588 = arith.mulf %2573, %2587 : vector<8x16xf32>
    %2589 = arith.addf %2414, %2588 : vector<8x16xf32>
    %c284_415 = arith.constant 284 : index
    %2590 = memref.load %arg4[%c284_415] : memref<400xf32, #tpu.memory_space<smem>>
    %2591 = vector.broadcast %2590 : f32 to vector<8x16xf32>
    %2592 = arith.mulf %2573, %2591 : vector<8x16xf32>
    %2593 = arith.addf %2418, %2592 : vector<8x16xf32>
    %c285_416 = arith.constant 285 : index
    %2594 = memref.load %arg4[%c285_416] : memref<400xf32, #tpu.memory_space<smem>>
    %2595 = vector.broadcast %2594 : f32 to vector<8x16xf32>
    %2596 = arith.mulf %2573, %2595 : vector<8x16xf32>
    %2597 = arith.addf %2422, %2596 : vector<8x16xf32>
    %c286_417 = arith.constant 286 : index
    %2598 = memref.load %arg4[%c286_417] : memref<400xf32, #tpu.memory_space<smem>>
    %2599 = vector.broadcast %2598 : f32 to vector<8x16xf32>
    %2600 = arith.mulf %2573, %2599 : vector<8x16xf32>
    %2601 = arith.addf %2426, %2600 : vector<8x16xf32>
    %c287_418 = arith.constant 287 : index
    %2602 = memref.load %arg4[%c287_418] : memref<400xf32, #tpu.memory_space<smem>>
    %2603 = vector.broadcast %2602 : f32 to vector<8x16xf32>
    %2604 = arith.mulf %2573, %2603 : vector<8x16xf32>
    %2605 = arith.addf %2430, %2604 : vector<8x16xf32>
    %c288_419 = arith.constant 288 : index
    %2606 = memref.load %arg4[%c288_419] : memref<400xf32, #tpu.memory_space<smem>>
    %2607 = vector.broadcast %2606 : f32 to vector<8x16xf32>
    %2608 = arith.mulf %2573, %2607 : vector<8x16xf32>
    %2609 = arith.addf %2434, %2608 : vector<8x16xf32>
    %c289_420 = arith.constant 289 : index
    %2610 = memref.load %arg4[%c289_420] : memref<400xf32, #tpu.memory_space<smem>>
    %2611 = vector.broadcast %2610 : f32 to vector<8x16xf32>
    %2612 = arith.mulf %2573, %2611 : vector<8x16xf32>
    %2613 = arith.addf %2438, %2612 : vector<8x16xf32>
    %c290_421 = arith.constant 290 : index
    %2614 = memref.load %arg4[%c290_421] : memref<400xf32, #tpu.memory_space<smem>>
    %2615 = vector.broadcast %2614 : f32 to vector<8x16xf32>
    %2616 = arith.mulf %2573, %2615 : vector<8x16xf32>
    %2617 = arith.addf %2442, %2616 : vector<8x16xf32>
    %c291_422 = arith.constant 291 : index
    %2618 = memref.load %arg4[%c291_422] : memref<400xf32, #tpu.memory_space<smem>>
    %2619 = vector.broadcast %2618 : f32 to vector<8x16xf32>
    %2620 = arith.mulf %2573, %2619 : vector<8x16xf32>
    %2621 = arith.addf %2446, %2620 : vector<8x16xf32>
    %c292_423 = arith.constant 292 : index
    %2622 = memref.load %arg4[%c292_423] : memref<400xf32, #tpu.memory_space<smem>>
    %2623 = vector.broadcast %2622 : f32 to vector<8x16xf32>
    %2624 = arith.mulf %2573, %2623 : vector<8x16xf32>
    %2625 = arith.addf %2450, %2624 : vector<8x16xf32>
    %c293_424 = arith.constant 293 : index
    %2626 = memref.load %arg4[%c293_424] : memref<400xf32, #tpu.memory_space<smem>>
    %2627 = vector.broadcast %2626 : f32 to vector<8x16xf32>
    %2628 = arith.mulf %2573, %2627 : vector<8x16xf32>
    %2629 = arith.addf %2454, %2628 : vector<8x16xf32>
    %c294_425 = arith.constant 294 : index
    %2630 = memref.load %arg4[%c294_425] : memref<400xf32, #tpu.memory_space<smem>>
    %2631 = vector.broadcast %2630 : f32 to vector<8x16xf32>
    %2632 = arith.mulf %2573, %2631 : vector<8x16xf32>
    %2633 = arith.addf %2458, %2632 : vector<8x16xf32>
    %c295_426 = arith.constant 295 : index
    %2634 = memref.load %arg4[%c295_426] : memref<400xf32, #tpu.memory_space<smem>>
    %2635 = vector.broadcast %2634 : f32 to vector<8x16xf32>
    %2636 = arith.mulf %2573, %2635 : vector<8x16xf32>
    %2637 = arith.addf %2462, %2636 : vector<8x16xf32>
    %c296_427 = arith.constant 296 : index
    %2638 = memref.load %arg4[%c296_427] : memref<400xf32, #tpu.memory_space<smem>>
    %2639 = vector.broadcast %2638 : f32 to vector<8x16xf32>
    %2640 = arith.mulf %2573, %2639 : vector<8x16xf32>
    %2641 = arith.addf %2466, %2640 : vector<8x16xf32>
    %c297_428 = arith.constant 297 : index
    %2642 = memref.load %arg4[%c297_428] : memref<400xf32, #tpu.memory_space<smem>>
    %2643 = vector.broadcast %2642 : f32 to vector<8x16xf32>
    %2644 = arith.mulf %2573, %2643 : vector<8x16xf32>
    %2645 = arith.addf %2470, %2644 : vector<8x16xf32>
    %c298_429 = arith.constant 298 : index
    %2646 = memref.load %arg4[%c298_429] : memref<400xf32, #tpu.memory_space<smem>>
    %2647 = vector.broadcast %2646 : f32 to vector<8x16xf32>
    %2648 = arith.mulf %2573, %2647 : vector<8x16xf32>
    %2649 = arith.addf %2474, %2648 : vector<8x16xf32>
    %c299_430 = arith.constant 299 : index
    %2650 = memref.load %arg4[%c299_430] : memref<400xf32, #tpu.memory_space<smem>>
    %2651 = vector.broadcast %2650 : f32 to vector<8x16xf32>
    %2652 = arith.mulf %2573, %2651 : vector<8x16xf32>
    %2653 = arith.addf %2478, %2652 : vector<8x16xf32>
    %2654 = arith.mulf %2573, %2573 : vector<8x16xf32>
    %cst_431 = arith.constant 1.000000e+00 : f32
    %2655 = vector.broadcast %cst_431 : f32 to vector<8x16xf32>
    %2656 = arith.subf %2655, %2654 : vector<8x16xf32>
    %c14_432 = arith.constant 14 : index
    %2657 = memref.load %arg2[%c14_432] : memref<20xf32, #tpu.memory_space<smem>>
    %2658 = vector.broadcast %2657 : f32 to vector<8x16xf32>
    %2659 = arith.mulf %2656, %2658 : vector<8x16xf32>
    %cst_433 = arith.constant 1.000000e+00 : f32
    %2660 = vector.broadcast %cst_433 : f32 to vector<8x16xf32>
    %2661 = arith.addf %2660, %2659 : vector<8x16xf32>
    %2662 = math.absf %2661 : vector<8x16xf32>
    %cst_434 = arith.constant 9.99999993E-9 : f32
    %2663 = vector.broadcast %cst_434 : f32 to vector<8x16xf32>
    %2664 = arith.addf %2662, %2663 : vector<8x16xf32>
    %2665 = arith.mulf %2490, %2664 : vector<8x16xf32>
    %c300 = arith.constant 300 : index
    %2666 = memref.load %arg3[%c300] : memref<400xf32, #tpu.memory_space<smem>>
    %2667 = vector.broadcast %2666 : f32 to vector<8x16xf32>
    %2668 = arith.mulf %2577, %2667 : vector<8x16xf32>
    %c301 = arith.constant 301 : index
    %2669 = memref.load %arg3[%c301] : memref<400xf32, #tpu.memory_space<smem>>
    %2670 = vector.broadcast %2669 : f32 to vector<8x16xf32>
    %2671 = arith.mulf %2581, %2670 : vector<8x16xf32>
    %c302 = arith.constant 302 : index
    %2672 = memref.load %arg3[%c302] : memref<400xf32, #tpu.memory_space<smem>>
    %2673 = vector.broadcast %2672 : f32 to vector<8x16xf32>
    %2674 = arith.mulf %2585, %2673 : vector<8x16xf32>
    %c303 = arith.constant 303 : index
    %2675 = memref.load %arg3[%c303] : memref<400xf32, #tpu.memory_space<smem>>
    %2676 = vector.broadcast %2675 : f32 to vector<8x16xf32>
    %2677 = arith.mulf %2589, %2676 : vector<8x16xf32>
    %c304 = arith.constant 304 : index
    %2678 = memref.load %arg3[%c304] : memref<400xf32, #tpu.memory_space<smem>>
    %2679 = vector.broadcast %2678 : f32 to vector<8x16xf32>
    %2680 = arith.mulf %2593, %2679 : vector<8x16xf32>
    %c305 = arith.constant 305 : index
    %2681 = memref.load %arg3[%c305] : memref<400xf32, #tpu.memory_space<smem>>
    %2682 = vector.broadcast %2681 : f32 to vector<8x16xf32>
    %2683 = arith.mulf %2597, %2682 : vector<8x16xf32>
    %c306 = arith.constant 306 : index
    %2684 = memref.load %arg3[%c306] : memref<400xf32, #tpu.memory_space<smem>>
    %2685 = vector.broadcast %2684 : f32 to vector<8x16xf32>
    %2686 = arith.mulf %2601, %2685 : vector<8x16xf32>
    %c307 = arith.constant 307 : index
    %2687 = memref.load %arg3[%c307] : memref<400xf32, #tpu.memory_space<smem>>
    %2688 = vector.broadcast %2687 : f32 to vector<8x16xf32>
    %2689 = arith.mulf %2605, %2688 : vector<8x16xf32>
    %c308 = arith.constant 308 : index
    %2690 = memref.load %arg3[%c308] : memref<400xf32, #tpu.memory_space<smem>>
    %2691 = vector.broadcast %2690 : f32 to vector<8x16xf32>
    %2692 = arith.mulf %2609, %2691 : vector<8x16xf32>
    %c309 = arith.constant 309 : index
    %2693 = memref.load %arg3[%c309] : memref<400xf32, #tpu.memory_space<smem>>
    %2694 = vector.broadcast %2693 : f32 to vector<8x16xf32>
    %2695 = arith.mulf %2613, %2694 : vector<8x16xf32>
    %c310 = arith.constant 310 : index
    %2696 = memref.load %arg3[%c310] : memref<400xf32, #tpu.memory_space<smem>>
    %2697 = vector.broadcast %2696 : f32 to vector<8x16xf32>
    %2698 = arith.mulf %2617, %2697 : vector<8x16xf32>
    %c311 = arith.constant 311 : index
    %2699 = memref.load %arg3[%c311] : memref<400xf32, #tpu.memory_space<smem>>
    %2700 = vector.broadcast %2699 : f32 to vector<8x16xf32>
    %2701 = arith.mulf %2621, %2700 : vector<8x16xf32>
    %c312 = arith.constant 312 : index
    %2702 = memref.load %arg3[%c312] : memref<400xf32, #tpu.memory_space<smem>>
    %2703 = vector.broadcast %2702 : f32 to vector<8x16xf32>
    %2704 = arith.mulf %2625, %2703 : vector<8x16xf32>
    %c313 = arith.constant 313 : index
    %2705 = memref.load %arg3[%c313] : memref<400xf32, #tpu.memory_space<smem>>
    %2706 = vector.broadcast %2705 : f32 to vector<8x16xf32>
    %2707 = arith.mulf %2629, %2706 : vector<8x16xf32>
    %c314 = arith.constant 314 : index
    %2708 = memref.load %arg3[%c314] : memref<400xf32, #tpu.memory_space<smem>>
    %2709 = vector.broadcast %2708 : f32 to vector<8x16xf32>
    %2710 = arith.mulf %2633, %2709 : vector<8x16xf32>
    %c315 = arith.constant 315 : index
    %2711 = memref.load %arg3[%c315] : memref<400xf32, #tpu.memory_space<smem>>
    %2712 = vector.broadcast %2711 : f32 to vector<8x16xf32>
    %2713 = arith.mulf %2637, %2712 : vector<8x16xf32>
    %c316 = arith.constant 316 : index
    %2714 = memref.load %arg3[%c316] : memref<400xf32, #tpu.memory_space<smem>>
    %2715 = vector.broadcast %2714 : f32 to vector<8x16xf32>
    %2716 = arith.mulf %2641, %2715 : vector<8x16xf32>
    %c317 = arith.constant 317 : index
    %2717 = memref.load %arg3[%c317] : memref<400xf32, #tpu.memory_space<smem>>
    %2718 = vector.broadcast %2717 : f32 to vector<8x16xf32>
    %2719 = arith.mulf %2645, %2718 : vector<8x16xf32>
    %c318 = arith.constant 318 : index
    %2720 = memref.load %arg3[%c318] : memref<400xf32, #tpu.memory_space<smem>>
    %2721 = vector.broadcast %2720 : f32 to vector<8x16xf32>
    %2722 = arith.mulf %2649, %2721 : vector<8x16xf32>
    %c319 = arith.constant 319 : index
    %2723 = memref.load %arg3[%c319] : memref<400xf32, #tpu.memory_space<smem>>
    %2724 = vector.broadcast %2723 : f32 to vector<8x16xf32>
    %2725 = arith.mulf %2653, %2724 : vector<8x16xf32>
    %2726 = arith.addf %2668, %2671 : vector<8x16xf32>
    %2727 = arith.addf %2674, %2677 : vector<8x16xf32>
    %2728 = arith.addf %2680, %2683 : vector<8x16xf32>
    %2729 = arith.addf %2686, %2689 : vector<8x16xf32>
    %2730 = arith.addf %2692, %2695 : vector<8x16xf32>
    %2731 = arith.addf %2698, %2701 : vector<8x16xf32>
    %2732 = arith.addf %2704, %2707 : vector<8x16xf32>
    %2733 = arith.addf %2710, %2713 : vector<8x16xf32>
    %2734 = arith.addf %2716, %2719 : vector<8x16xf32>
    %2735 = arith.addf %2722, %2725 : vector<8x16xf32>
    %2736 = arith.addf %2726, %2727 : vector<8x16xf32>
    %2737 = arith.addf %2728, %2729 : vector<8x16xf32>
    %2738 = arith.addf %2730, %2731 : vector<8x16xf32>
    %2739 = arith.addf %2732, %2733 : vector<8x16xf32>
    %2740 = arith.addf %2734, %2735 : vector<8x16xf32>
    %2741 = arith.addf %2736, %2737 : vector<8x16xf32>
    %2742 = arith.addf %2738, %2739 : vector<8x16xf32>
    %2743 = arith.addf %2741, %2742 : vector<8x16xf32>
    %2744 = arith.addf %2743, %2740 : vector<8x16xf32>
    %c15_435 = arith.constant 15 : index
    %2745 = memref.load %arg1[%c15_435] : memref<20xf32, #tpu.memory_space<smem>>
    %2746 = vector.broadcast %2745 : f32 to vector<8x16xf32>
    %2747 = arith.addf %2744, %2746 : vector<8x16xf32>
    %2748 = math.tanh %2747 : vector<8x16xf32>
    %c300_436 = arith.constant 300 : index
    %2749 = memref.load %arg4[%c300_436] : memref<400xf32, #tpu.memory_space<smem>>
    %2750 = vector.broadcast %2749 : f32 to vector<8x16xf32>
    %2751 = arith.mulf %2748, %2750 : vector<8x16xf32>
    %2752 = arith.addf %2577, %2751 : vector<8x16xf32>
    %c301_437 = arith.constant 301 : index
    %2753 = memref.load %arg4[%c301_437] : memref<400xf32, #tpu.memory_space<smem>>
    %2754 = vector.broadcast %2753 : f32 to vector<8x16xf32>
    %2755 = arith.mulf %2748, %2754 : vector<8x16xf32>
    %2756 = arith.addf %2581, %2755 : vector<8x16xf32>
    %c302_438 = arith.constant 302 : index
    %2757 = memref.load %arg4[%c302_438] : memref<400xf32, #tpu.memory_space<smem>>
    %2758 = vector.broadcast %2757 : f32 to vector<8x16xf32>
    %2759 = arith.mulf %2748, %2758 : vector<8x16xf32>
    %2760 = arith.addf %2585, %2759 : vector<8x16xf32>
    %c303_439 = arith.constant 303 : index
    %2761 = memref.load %arg4[%c303_439] : memref<400xf32, #tpu.memory_space<smem>>
    %2762 = vector.broadcast %2761 : f32 to vector<8x16xf32>
    %2763 = arith.mulf %2748, %2762 : vector<8x16xf32>
    %2764 = arith.addf %2589, %2763 : vector<8x16xf32>
    %c304_440 = arith.constant 304 : index
    %2765 = memref.load %arg4[%c304_440] : memref<400xf32, #tpu.memory_space<smem>>
    %2766 = vector.broadcast %2765 : f32 to vector<8x16xf32>
    %2767 = arith.mulf %2748, %2766 : vector<8x16xf32>
    %2768 = arith.addf %2593, %2767 : vector<8x16xf32>
    %c305_441 = arith.constant 305 : index
    %2769 = memref.load %arg4[%c305_441] : memref<400xf32, #tpu.memory_space<smem>>
    %2770 = vector.broadcast %2769 : f32 to vector<8x16xf32>
    %2771 = arith.mulf %2748, %2770 : vector<8x16xf32>
    %2772 = arith.addf %2597, %2771 : vector<8x16xf32>
    %c306_442 = arith.constant 306 : index
    %2773 = memref.load %arg4[%c306_442] : memref<400xf32, #tpu.memory_space<smem>>
    %2774 = vector.broadcast %2773 : f32 to vector<8x16xf32>
    %2775 = arith.mulf %2748, %2774 : vector<8x16xf32>
    %2776 = arith.addf %2601, %2775 : vector<8x16xf32>
    %c307_443 = arith.constant 307 : index
    %2777 = memref.load %arg4[%c307_443] : memref<400xf32, #tpu.memory_space<smem>>
    %2778 = vector.broadcast %2777 : f32 to vector<8x16xf32>
    %2779 = arith.mulf %2748, %2778 : vector<8x16xf32>
    %2780 = arith.addf %2605, %2779 : vector<8x16xf32>
    %c308_444 = arith.constant 308 : index
    %2781 = memref.load %arg4[%c308_444] : memref<400xf32, #tpu.memory_space<smem>>
    %2782 = vector.broadcast %2781 : f32 to vector<8x16xf32>
    %2783 = arith.mulf %2748, %2782 : vector<8x16xf32>
    %2784 = arith.addf %2609, %2783 : vector<8x16xf32>
    %c309_445 = arith.constant 309 : index
    %2785 = memref.load %arg4[%c309_445] : memref<400xf32, #tpu.memory_space<smem>>
    %2786 = vector.broadcast %2785 : f32 to vector<8x16xf32>
    %2787 = arith.mulf %2748, %2786 : vector<8x16xf32>
    %2788 = arith.addf %2613, %2787 : vector<8x16xf32>
    %c310_446 = arith.constant 310 : index
    %2789 = memref.load %arg4[%c310_446] : memref<400xf32, #tpu.memory_space<smem>>
    %2790 = vector.broadcast %2789 : f32 to vector<8x16xf32>
    %2791 = arith.mulf %2748, %2790 : vector<8x16xf32>
    %2792 = arith.addf %2617, %2791 : vector<8x16xf32>
    %c311_447 = arith.constant 311 : index
    %2793 = memref.load %arg4[%c311_447] : memref<400xf32, #tpu.memory_space<smem>>
    %2794 = vector.broadcast %2793 : f32 to vector<8x16xf32>
    %2795 = arith.mulf %2748, %2794 : vector<8x16xf32>
    %2796 = arith.addf %2621, %2795 : vector<8x16xf32>
    %c312_448 = arith.constant 312 : index
    %2797 = memref.load %arg4[%c312_448] : memref<400xf32, #tpu.memory_space<smem>>
    %2798 = vector.broadcast %2797 : f32 to vector<8x16xf32>
    %2799 = arith.mulf %2748, %2798 : vector<8x16xf32>
    %2800 = arith.addf %2625, %2799 : vector<8x16xf32>
    %c313_449 = arith.constant 313 : index
    %2801 = memref.load %arg4[%c313_449] : memref<400xf32, #tpu.memory_space<smem>>
    %2802 = vector.broadcast %2801 : f32 to vector<8x16xf32>
    %2803 = arith.mulf %2748, %2802 : vector<8x16xf32>
    %2804 = arith.addf %2629, %2803 : vector<8x16xf32>
    %c314_450 = arith.constant 314 : index
    %2805 = memref.load %arg4[%c314_450] : memref<400xf32, #tpu.memory_space<smem>>
    %2806 = vector.broadcast %2805 : f32 to vector<8x16xf32>
    %2807 = arith.mulf %2748, %2806 : vector<8x16xf32>
    %2808 = arith.addf %2633, %2807 : vector<8x16xf32>
    %c315_451 = arith.constant 315 : index
    %2809 = memref.load %arg4[%c315_451] : memref<400xf32, #tpu.memory_space<smem>>
    %2810 = vector.broadcast %2809 : f32 to vector<8x16xf32>
    %2811 = arith.mulf %2748, %2810 : vector<8x16xf32>
    %2812 = arith.addf %2637, %2811 : vector<8x16xf32>
    %c316_452 = arith.constant 316 : index
    %2813 = memref.load %arg4[%c316_452] : memref<400xf32, #tpu.memory_space<smem>>
    %2814 = vector.broadcast %2813 : f32 to vector<8x16xf32>
    %2815 = arith.mulf %2748, %2814 : vector<8x16xf32>
    %2816 = arith.addf %2641, %2815 : vector<8x16xf32>
    %c317_453 = arith.constant 317 : index
    %2817 = memref.load %arg4[%c317_453] : memref<400xf32, #tpu.memory_space<smem>>
    %2818 = vector.broadcast %2817 : f32 to vector<8x16xf32>
    %2819 = arith.mulf %2748, %2818 : vector<8x16xf32>
    %2820 = arith.addf %2645, %2819 : vector<8x16xf32>
    %c318_454 = arith.constant 318 : index
    %2821 = memref.load %arg4[%c318_454] : memref<400xf32, #tpu.memory_space<smem>>
    %2822 = vector.broadcast %2821 : f32 to vector<8x16xf32>
    %2823 = arith.mulf %2748, %2822 : vector<8x16xf32>
    %2824 = arith.addf %2649, %2823 : vector<8x16xf32>
    %c319_455 = arith.constant 319 : index
    %2825 = memref.load %arg4[%c319_455] : memref<400xf32, #tpu.memory_space<smem>>
    %2826 = vector.broadcast %2825 : f32 to vector<8x16xf32>
    %2827 = arith.mulf %2748, %2826 : vector<8x16xf32>
    %2828 = arith.addf %2653, %2827 : vector<8x16xf32>
    %2829 = arith.mulf %2748, %2748 : vector<8x16xf32>
    %cst_456 = arith.constant 1.000000e+00 : f32
    %2830 = vector.broadcast %cst_456 : f32 to vector<8x16xf32>
    %2831 = arith.subf %2830, %2829 : vector<8x16xf32>
    %c15_457 = arith.constant 15 : index
    %2832 = memref.load %arg2[%c15_457] : memref<20xf32, #tpu.memory_space<smem>>
    %2833 = vector.broadcast %2832 : f32 to vector<8x16xf32>
    %2834 = arith.mulf %2831, %2833 : vector<8x16xf32>
    %cst_458 = arith.constant 1.000000e+00 : f32
    %2835 = vector.broadcast %cst_458 : f32 to vector<8x16xf32>
    %2836 = arith.addf %2835, %2834 : vector<8x16xf32>
    %2837 = math.absf %2836 : vector<8x16xf32>
    %cst_459 = arith.constant 9.99999993E-9 : f32
    %2838 = vector.broadcast %cst_459 : f32 to vector<8x16xf32>
    %2839 = arith.addf %2837, %2838 : vector<8x16xf32>
    %2840 = arith.mulf %2665, %2839 : vector<8x16xf32>
    %c320 = arith.constant 320 : index
    %2841 = memref.load %arg3[%c320] : memref<400xf32, #tpu.memory_space<smem>>
    %2842 = vector.broadcast %2841 : f32 to vector<8x16xf32>
    %2843 = arith.mulf %2752, %2842 : vector<8x16xf32>
    %c321 = arith.constant 321 : index
    %2844 = memref.load %arg3[%c321] : memref<400xf32, #tpu.memory_space<smem>>
    %2845 = vector.broadcast %2844 : f32 to vector<8x16xf32>
    %2846 = arith.mulf %2756, %2845 : vector<8x16xf32>
    %c322 = arith.constant 322 : index
    %2847 = memref.load %arg3[%c322] : memref<400xf32, #tpu.memory_space<smem>>
    %2848 = vector.broadcast %2847 : f32 to vector<8x16xf32>
    %2849 = arith.mulf %2760, %2848 : vector<8x16xf32>
    %c323 = arith.constant 323 : index
    %2850 = memref.load %arg3[%c323] : memref<400xf32, #tpu.memory_space<smem>>
    %2851 = vector.broadcast %2850 : f32 to vector<8x16xf32>
    %2852 = arith.mulf %2764, %2851 : vector<8x16xf32>
    %c324 = arith.constant 324 : index
    %2853 = memref.load %arg3[%c324] : memref<400xf32, #tpu.memory_space<smem>>
    %2854 = vector.broadcast %2853 : f32 to vector<8x16xf32>
    %2855 = arith.mulf %2768, %2854 : vector<8x16xf32>
    %c325 = arith.constant 325 : index
    %2856 = memref.load %arg3[%c325] : memref<400xf32, #tpu.memory_space<smem>>
    %2857 = vector.broadcast %2856 : f32 to vector<8x16xf32>
    %2858 = arith.mulf %2772, %2857 : vector<8x16xf32>
    %c326 = arith.constant 326 : index
    %2859 = memref.load %arg3[%c326] : memref<400xf32, #tpu.memory_space<smem>>
    %2860 = vector.broadcast %2859 : f32 to vector<8x16xf32>
    %2861 = arith.mulf %2776, %2860 : vector<8x16xf32>
    %c327 = arith.constant 327 : index
    %2862 = memref.load %arg3[%c327] : memref<400xf32, #tpu.memory_space<smem>>
    %2863 = vector.broadcast %2862 : f32 to vector<8x16xf32>
    %2864 = arith.mulf %2780, %2863 : vector<8x16xf32>
    %c328 = arith.constant 328 : index
    %2865 = memref.load %arg3[%c328] : memref<400xf32, #tpu.memory_space<smem>>
    %2866 = vector.broadcast %2865 : f32 to vector<8x16xf32>
    %2867 = arith.mulf %2784, %2866 : vector<8x16xf32>
    %c329 = arith.constant 329 : index
    %2868 = memref.load %arg3[%c329] : memref<400xf32, #tpu.memory_space<smem>>
    %2869 = vector.broadcast %2868 : f32 to vector<8x16xf32>
    %2870 = arith.mulf %2788, %2869 : vector<8x16xf32>
    %c330 = arith.constant 330 : index
    %2871 = memref.load %arg3[%c330] : memref<400xf32, #tpu.memory_space<smem>>
    %2872 = vector.broadcast %2871 : f32 to vector<8x16xf32>
    %2873 = arith.mulf %2792, %2872 : vector<8x16xf32>
    %c331 = arith.constant 331 : index
    %2874 = memref.load %arg3[%c331] : memref<400xf32, #tpu.memory_space<smem>>
    %2875 = vector.broadcast %2874 : f32 to vector<8x16xf32>
    %2876 = arith.mulf %2796, %2875 : vector<8x16xf32>
    %c332 = arith.constant 332 : index
    %2877 = memref.load %arg3[%c332] : memref<400xf32, #tpu.memory_space<smem>>
    %2878 = vector.broadcast %2877 : f32 to vector<8x16xf32>
    %2879 = arith.mulf %2800, %2878 : vector<8x16xf32>
    %c333 = arith.constant 333 : index
    %2880 = memref.load %arg3[%c333] : memref<400xf32, #tpu.memory_space<smem>>
    %2881 = vector.broadcast %2880 : f32 to vector<8x16xf32>
    %2882 = arith.mulf %2804, %2881 : vector<8x16xf32>
    %c334 = arith.constant 334 : index
    %2883 = memref.load %arg3[%c334] : memref<400xf32, #tpu.memory_space<smem>>
    %2884 = vector.broadcast %2883 : f32 to vector<8x16xf32>
    %2885 = arith.mulf %2808, %2884 : vector<8x16xf32>
    %c335 = arith.constant 335 : index
    %2886 = memref.load %arg3[%c335] : memref<400xf32, #tpu.memory_space<smem>>
    %2887 = vector.broadcast %2886 : f32 to vector<8x16xf32>
    %2888 = arith.mulf %2812, %2887 : vector<8x16xf32>
    %c336 = arith.constant 336 : index
    %2889 = memref.load %arg3[%c336] : memref<400xf32, #tpu.memory_space<smem>>
    %2890 = vector.broadcast %2889 : f32 to vector<8x16xf32>
    %2891 = arith.mulf %2816, %2890 : vector<8x16xf32>
    %c337 = arith.constant 337 : index
    %2892 = memref.load %arg3[%c337] : memref<400xf32, #tpu.memory_space<smem>>
    %2893 = vector.broadcast %2892 : f32 to vector<8x16xf32>
    %2894 = arith.mulf %2820, %2893 : vector<8x16xf32>
    %c338 = arith.constant 338 : index
    %2895 = memref.load %arg3[%c338] : memref<400xf32, #tpu.memory_space<smem>>
    %2896 = vector.broadcast %2895 : f32 to vector<8x16xf32>
    %2897 = arith.mulf %2824, %2896 : vector<8x16xf32>
    %c339 = arith.constant 339 : index
    %2898 = memref.load %arg3[%c339] : memref<400xf32, #tpu.memory_space<smem>>
    %2899 = vector.broadcast %2898 : f32 to vector<8x16xf32>
    %2900 = arith.mulf %2828, %2899 : vector<8x16xf32>
    %2901 = arith.addf %2843, %2846 : vector<8x16xf32>
    %2902 = arith.addf %2849, %2852 : vector<8x16xf32>
    %2903 = arith.addf %2855, %2858 : vector<8x16xf32>
    %2904 = arith.addf %2861, %2864 : vector<8x16xf32>
    %2905 = arith.addf %2867, %2870 : vector<8x16xf32>
    %2906 = arith.addf %2873, %2876 : vector<8x16xf32>
    %2907 = arith.addf %2879, %2882 : vector<8x16xf32>
    %2908 = arith.addf %2885, %2888 : vector<8x16xf32>
    %2909 = arith.addf %2891, %2894 : vector<8x16xf32>
    %2910 = arith.addf %2897, %2900 : vector<8x16xf32>
    %2911 = arith.addf %2901, %2902 : vector<8x16xf32>
    %2912 = arith.addf %2903, %2904 : vector<8x16xf32>
    %2913 = arith.addf %2905, %2906 : vector<8x16xf32>
    %2914 = arith.addf %2907, %2908 : vector<8x16xf32>
    %2915 = arith.addf %2909, %2910 : vector<8x16xf32>
    %2916 = arith.addf %2911, %2912 : vector<8x16xf32>
    %2917 = arith.addf %2913, %2914 : vector<8x16xf32>
    %2918 = arith.addf %2916, %2917 : vector<8x16xf32>
    %2919 = arith.addf %2918, %2915 : vector<8x16xf32>
    %c16_460 = arith.constant 16 : index
    %2920 = memref.load %arg1[%c16_460] : memref<20xf32, #tpu.memory_space<smem>>
    %2921 = vector.broadcast %2920 : f32 to vector<8x16xf32>
    %2922 = arith.addf %2919, %2921 : vector<8x16xf32>
    %2923 = math.tanh %2922 : vector<8x16xf32>
    %c320_461 = arith.constant 320 : index
    %2924 = memref.load %arg4[%c320_461] : memref<400xf32, #tpu.memory_space<smem>>
    %2925 = vector.broadcast %2924 : f32 to vector<8x16xf32>
    %2926 = arith.mulf %2923, %2925 : vector<8x16xf32>
    %2927 = arith.addf %2752, %2926 : vector<8x16xf32>
    %c321_462 = arith.constant 321 : index
    %2928 = memref.load %arg4[%c321_462] : memref<400xf32, #tpu.memory_space<smem>>
    %2929 = vector.broadcast %2928 : f32 to vector<8x16xf32>
    %2930 = arith.mulf %2923, %2929 : vector<8x16xf32>
    %2931 = arith.addf %2756, %2930 : vector<8x16xf32>
    %c322_463 = arith.constant 322 : index
    %2932 = memref.load %arg4[%c322_463] : memref<400xf32, #tpu.memory_space<smem>>
    %2933 = vector.broadcast %2932 : f32 to vector<8x16xf32>
    %2934 = arith.mulf %2923, %2933 : vector<8x16xf32>
    %2935 = arith.addf %2760, %2934 : vector<8x16xf32>
    %c323_464 = arith.constant 323 : index
    %2936 = memref.load %arg4[%c323_464] : memref<400xf32, #tpu.memory_space<smem>>
    %2937 = vector.broadcast %2936 : f32 to vector<8x16xf32>
    %2938 = arith.mulf %2923, %2937 : vector<8x16xf32>
    %2939 = arith.addf %2764, %2938 : vector<8x16xf32>
    %c324_465 = arith.constant 324 : index
    %2940 = memref.load %arg4[%c324_465] : memref<400xf32, #tpu.memory_space<smem>>
    %2941 = vector.broadcast %2940 : f32 to vector<8x16xf32>
    %2942 = arith.mulf %2923, %2941 : vector<8x16xf32>
    %2943 = arith.addf %2768, %2942 : vector<8x16xf32>
    %c325_466 = arith.constant 325 : index
    %2944 = memref.load %arg4[%c325_466] : memref<400xf32, #tpu.memory_space<smem>>
    %2945 = vector.broadcast %2944 : f32 to vector<8x16xf32>
    %2946 = arith.mulf %2923, %2945 : vector<8x16xf32>
    %2947 = arith.addf %2772, %2946 : vector<8x16xf32>
    %c326_467 = arith.constant 326 : index
    %2948 = memref.load %arg4[%c326_467] : memref<400xf32, #tpu.memory_space<smem>>
    %2949 = vector.broadcast %2948 : f32 to vector<8x16xf32>
    %2950 = arith.mulf %2923, %2949 : vector<8x16xf32>
    %2951 = arith.addf %2776, %2950 : vector<8x16xf32>
    %c327_468 = arith.constant 327 : index
    %2952 = memref.load %arg4[%c327_468] : memref<400xf32, #tpu.memory_space<smem>>
    %2953 = vector.broadcast %2952 : f32 to vector<8x16xf32>
    %2954 = arith.mulf %2923, %2953 : vector<8x16xf32>
    %2955 = arith.addf %2780, %2954 : vector<8x16xf32>
    %c328_469 = arith.constant 328 : index
    %2956 = memref.load %arg4[%c328_469] : memref<400xf32, #tpu.memory_space<smem>>
    %2957 = vector.broadcast %2956 : f32 to vector<8x16xf32>
    %2958 = arith.mulf %2923, %2957 : vector<8x16xf32>
    %2959 = arith.addf %2784, %2958 : vector<8x16xf32>
    %c329_470 = arith.constant 329 : index
    %2960 = memref.load %arg4[%c329_470] : memref<400xf32, #tpu.memory_space<smem>>
    %2961 = vector.broadcast %2960 : f32 to vector<8x16xf32>
    %2962 = arith.mulf %2923, %2961 : vector<8x16xf32>
    %2963 = arith.addf %2788, %2962 : vector<8x16xf32>
    %c330_471 = arith.constant 330 : index
    %2964 = memref.load %arg4[%c330_471] : memref<400xf32, #tpu.memory_space<smem>>
    %2965 = vector.broadcast %2964 : f32 to vector<8x16xf32>
    %2966 = arith.mulf %2923, %2965 : vector<8x16xf32>
    %2967 = arith.addf %2792, %2966 : vector<8x16xf32>
    %c331_472 = arith.constant 331 : index
    %2968 = memref.load %arg4[%c331_472] : memref<400xf32, #tpu.memory_space<smem>>
    %2969 = vector.broadcast %2968 : f32 to vector<8x16xf32>
    %2970 = arith.mulf %2923, %2969 : vector<8x16xf32>
    %2971 = arith.addf %2796, %2970 : vector<8x16xf32>
    %c332_473 = arith.constant 332 : index
    %2972 = memref.load %arg4[%c332_473] : memref<400xf32, #tpu.memory_space<smem>>
    %2973 = vector.broadcast %2972 : f32 to vector<8x16xf32>
    %2974 = arith.mulf %2923, %2973 : vector<8x16xf32>
    %2975 = arith.addf %2800, %2974 : vector<8x16xf32>
    %c333_474 = arith.constant 333 : index
    %2976 = memref.load %arg4[%c333_474] : memref<400xf32, #tpu.memory_space<smem>>
    %2977 = vector.broadcast %2976 : f32 to vector<8x16xf32>
    %2978 = arith.mulf %2923, %2977 : vector<8x16xf32>
    %2979 = arith.addf %2804, %2978 : vector<8x16xf32>
    %c334_475 = arith.constant 334 : index
    %2980 = memref.load %arg4[%c334_475] : memref<400xf32, #tpu.memory_space<smem>>
    %2981 = vector.broadcast %2980 : f32 to vector<8x16xf32>
    %2982 = arith.mulf %2923, %2981 : vector<8x16xf32>
    %2983 = arith.addf %2808, %2982 : vector<8x16xf32>
    %c335_476 = arith.constant 335 : index
    %2984 = memref.load %arg4[%c335_476] : memref<400xf32, #tpu.memory_space<smem>>
    %2985 = vector.broadcast %2984 : f32 to vector<8x16xf32>
    %2986 = arith.mulf %2923, %2985 : vector<8x16xf32>
    %2987 = arith.addf %2812, %2986 : vector<8x16xf32>
    %c336_477 = arith.constant 336 : index
    %2988 = memref.load %arg4[%c336_477] : memref<400xf32, #tpu.memory_space<smem>>
    %2989 = vector.broadcast %2988 : f32 to vector<8x16xf32>
    %2990 = arith.mulf %2923, %2989 : vector<8x16xf32>
    %2991 = arith.addf %2816, %2990 : vector<8x16xf32>
    %c337_478 = arith.constant 337 : index
    %2992 = memref.load %arg4[%c337_478] : memref<400xf32, #tpu.memory_space<smem>>
    %2993 = vector.broadcast %2992 : f32 to vector<8x16xf32>
    %2994 = arith.mulf %2923, %2993 : vector<8x16xf32>
    %2995 = arith.addf %2820, %2994 : vector<8x16xf32>
    %c338_479 = arith.constant 338 : index
    %2996 = memref.load %arg4[%c338_479] : memref<400xf32, #tpu.memory_space<smem>>
    %2997 = vector.broadcast %2996 : f32 to vector<8x16xf32>
    %2998 = arith.mulf %2923, %2997 : vector<8x16xf32>
    %2999 = arith.addf %2824, %2998 : vector<8x16xf32>
    %c339_480 = arith.constant 339 : index
    %3000 = memref.load %arg4[%c339_480] : memref<400xf32, #tpu.memory_space<smem>>
    %3001 = vector.broadcast %3000 : f32 to vector<8x16xf32>
    %3002 = arith.mulf %2923, %3001 : vector<8x16xf32>
    %3003 = arith.addf %2828, %3002 : vector<8x16xf32>
    %3004 = arith.mulf %2923, %2923 : vector<8x16xf32>
    %cst_481 = arith.constant 1.000000e+00 : f32
    %3005 = vector.broadcast %cst_481 : f32 to vector<8x16xf32>
    %3006 = arith.subf %3005, %3004 : vector<8x16xf32>
    %c16_482 = arith.constant 16 : index
    %3007 = memref.load %arg2[%c16_482] : memref<20xf32, #tpu.memory_space<smem>>
    %3008 = vector.broadcast %3007 : f32 to vector<8x16xf32>
    %3009 = arith.mulf %3006, %3008 : vector<8x16xf32>
    %cst_483 = arith.constant 1.000000e+00 : f32
    %3010 = vector.broadcast %cst_483 : f32 to vector<8x16xf32>
    %3011 = arith.addf %3010, %3009 : vector<8x16xf32>
    %3012 = math.absf %3011 : vector<8x16xf32>
    %cst_484 = arith.constant 9.99999993E-9 : f32
    %3013 = vector.broadcast %cst_484 : f32 to vector<8x16xf32>
    %3014 = arith.addf %3012, %3013 : vector<8x16xf32>
    %3015 = arith.mulf %2840, %3014 : vector<8x16xf32>
    %c340 = arith.constant 340 : index
    %3016 = memref.load %arg3[%c340] : memref<400xf32, #tpu.memory_space<smem>>
    %3017 = vector.broadcast %3016 : f32 to vector<8x16xf32>
    %3018 = arith.mulf %2927, %3017 : vector<8x16xf32>
    %c341 = arith.constant 341 : index
    %3019 = memref.load %arg3[%c341] : memref<400xf32, #tpu.memory_space<smem>>
    %3020 = vector.broadcast %3019 : f32 to vector<8x16xf32>
    %3021 = arith.mulf %2931, %3020 : vector<8x16xf32>
    %c342 = arith.constant 342 : index
    %3022 = memref.load %arg3[%c342] : memref<400xf32, #tpu.memory_space<smem>>
    %3023 = vector.broadcast %3022 : f32 to vector<8x16xf32>
    %3024 = arith.mulf %2935, %3023 : vector<8x16xf32>
    %c343 = arith.constant 343 : index
    %3025 = memref.load %arg3[%c343] : memref<400xf32, #tpu.memory_space<smem>>
    %3026 = vector.broadcast %3025 : f32 to vector<8x16xf32>
    %3027 = arith.mulf %2939, %3026 : vector<8x16xf32>
    %c344 = arith.constant 344 : index
    %3028 = memref.load %arg3[%c344] : memref<400xf32, #tpu.memory_space<smem>>
    %3029 = vector.broadcast %3028 : f32 to vector<8x16xf32>
    %3030 = arith.mulf %2943, %3029 : vector<8x16xf32>
    %c345 = arith.constant 345 : index
    %3031 = memref.load %arg3[%c345] : memref<400xf32, #tpu.memory_space<smem>>
    %3032 = vector.broadcast %3031 : f32 to vector<8x16xf32>
    %3033 = arith.mulf %2947, %3032 : vector<8x16xf32>
    %c346 = arith.constant 346 : index
    %3034 = memref.load %arg3[%c346] : memref<400xf32, #tpu.memory_space<smem>>
    %3035 = vector.broadcast %3034 : f32 to vector<8x16xf32>
    %3036 = arith.mulf %2951, %3035 : vector<8x16xf32>
    %c347 = arith.constant 347 : index
    %3037 = memref.load %arg3[%c347] : memref<400xf32, #tpu.memory_space<smem>>
    %3038 = vector.broadcast %3037 : f32 to vector<8x16xf32>
    %3039 = arith.mulf %2955, %3038 : vector<8x16xf32>
    %c348 = arith.constant 348 : index
    %3040 = memref.load %arg3[%c348] : memref<400xf32, #tpu.memory_space<smem>>
    %3041 = vector.broadcast %3040 : f32 to vector<8x16xf32>
    %3042 = arith.mulf %2959, %3041 : vector<8x16xf32>
    %c349 = arith.constant 349 : index
    %3043 = memref.load %arg3[%c349] : memref<400xf32, #tpu.memory_space<smem>>
    %3044 = vector.broadcast %3043 : f32 to vector<8x16xf32>
    %3045 = arith.mulf %2963, %3044 : vector<8x16xf32>
    %c350 = arith.constant 350 : index
    %3046 = memref.load %arg3[%c350] : memref<400xf32, #tpu.memory_space<smem>>
    %3047 = vector.broadcast %3046 : f32 to vector<8x16xf32>
    %3048 = arith.mulf %2967, %3047 : vector<8x16xf32>
    %c351 = arith.constant 351 : index
    %3049 = memref.load %arg3[%c351] : memref<400xf32, #tpu.memory_space<smem>>
    %3050 = vector.broadcast %3049 : f32 to vector<8x16xf32>
    %3051 = arith.mulf %2971, %3050 : vector<8x16xf32>
    %c352 = arith.constant 352 : index
    %3052 = memref.load %arg3[%c352] : memref<400xf32, #tpu.memory_space<smem>>
    %3053 = vector.broadcast %3052 : f32 to vector<8x16xf32>
    %3054 = arith.mulf %2975, %3053 : vector<8x16xf32>
    %c353 = arith.constant 353 : index
    %3055 = memref.load %arg3[%c353] : memref<400xf32, #tpu.memory_space<smem>>
    %3056 = vector.broadcast %3055 : f32 to vector<8x16xf32>
    %3057 = arith.mulf %2979, %3056 : vector<8x16xf32>
    %c354 = arith.constant 354 : index
    %3058 = memref.load %arg3[%c354] : memref<400xf32, #tpu.memory_space<smem>>
    %3059 = vector.broadcast %3058 : f32 to vector<8x16xf32>
    %3060 = arith.mulf %2983, %3059 : vector<8x16xf32>
    %c355 = arith.constant 355 : index
    %3061 = memref.load %arg3[%c355] : memref<400xf32, #tpu.memory_space<smem>>
    %3062 = vector.broadcast %3061 : f32 to vector<8x16xf32>
    %3063 = arith.mulf %2987, %3062 : vector<8x16xf32>
    %c356 = arith.constant 356 : index
    %3064 = memref.load %arg3[%c356] : memref<400xf32, #tpu.memory_space<smem>>
    %3065 = vector.broadcast %3064 : f32 to vector<8x16xf32>
    %3066 = arith.mulf %2991, %3065 : vector<8x16xf32>
    %c357 = arith.constant 357 : index
    %3067 = memref.load %arg3[%c357] : memref<400xf32, #tpu.memory_space<smem>>
    %3068 = vector.broadcast %3067 : f32 to vector<8x16xf32>
    %3069 = arith.mulf %2995, %3068 : vector<8x16xf32>
    %c358 = arith.constant 358 : index
    %3070 = memref.load %arg3[%c358] : memref<400xf32, #tpu.memory_space<smem>>
    %3071 = vector.broadcast %3070 : f32 to vector<8x16xf32>
    %3072 = arith.mulf %2999, %3071 : vector<8x16xf32>
    %c359 = arith.constant 359 : index
    %3073 = memref.load %arg3[%c359] : memref<400xf32, #tpu.memory_space<smem>>
    %3074 = vector.broadcast %3073 : f32 to vector<8x16xf32>
    %3075 = arith.mulf %3003, %3074 : vector<8x16xf32>
    %3076 = arith.addf %3018, %3021 : vector<8x16xf32>
    %3077 = arith.addf %3024, %3027 : vector<8x16xf32>
    %3078 = arith.addf %3030, %3033 : vector<8x16xf32>
    %3079 = arith.addf %3036, %3039 : vector<8x16xf32>
    %3080 = arith.addf %3042, %3045 : vector<8x16xf32>
    %3081 = arith.addf %3048, %3051 : vector<8x16xf32>
    %3082 = arith.addf %3054, %3057 : vector<8x16xf32>
    %3083 = arith.addf %3060, %3063 : vector<8x16xf32>
    %3084 = arith.addf %3066, %3069 : vector<8x16xf32>
    %3085 = arith.addf %3072, %3075 : vector<8x16xf32>
    %3086 = arith.addf %3076, %3077 : vector<8x16xf32>
    %3087 = arith.addf %3078, %3079 : vector<8x16xf32>
    %3088 = arith.addf %3080, %3081 : vector<8x16xf32>
    %3089 = arith.addf %3082, %3083 : vector<8x16xf32>
    %3090 = arith.addf %3084, %3085 : vector<8x16xf32>
    %3091 = arith.addf %3086, %3087 : vector<8x16xf32>
    %3092 = arith.addf %3088, %3089 : vector<8x16xf32>
    %3093 = arith.addf %3091, %3092 : vector<8x16xf32>
    %3094 = arith.addf %3093, %3090 : vector<8x16xf32>
    %c17_485 = arith.constant 17 : index
    %3095 = memref.load %arg1[%c17_485] : memref<20xf32, #tpu.memory_space<smem>>
    %3096 = vector.broadcast %3095 : f32 to vector<8x16xf32>
    %3097 = arith.addf %3094, %3096 : vector<8x16xf32>
    %3098 = math.tanh %3097 : vector<8x16xf32>
    %c340_486 = arith.constant 340 : index
    %3099 = memref.load %arg4[%c340_486] : memref<400xf32, #tpu.memory_space<smem>>
    %3100 = vector.broadcast %3099 : f32 to vector<8x16xf32>
    %3101 = arith.mulf %3098, %3100 : vector<8x16xf32>
    %3102 = arith.addf %2927, %3101 : vector<8x16xf32>
    %c341_487 = arith.constant 341 : index
    %3103 = memref.load %arg4[%c341_487] : memref<400xf32, #tpu.memory_space<smem>>
    %3104 = vector.broadcast %3103 : f32 to vector<8x16xf32>
    %3105 = arith.mulf %3098, %3104 : vector<8x16xf32>
    %3106 = arith.addf %2931, %3105 : vector<8x16xf32>
    %c342_488 = arith.constant 342 : index
    %3107 = memref.load %arg4[%c342_488] : memref<400xf32, #tpu.memory_space<smem>>
    %3108 = vector.broadcast %3107 : f32 to vector<8x16xf32>
    %3109 = arith.mulf %3098, %3108 : vector<8x16xf32>
    %3110 = arith.addf %2935, %3109 : vector<8x16xf32>
    %c343_489 = arith.constant 343 : index
    %3111 = memref.load %arg4[%c343_489] : memref<400xf32, #tpu.memory_space<smem>>
    %3112 = vector.broadcast %3111 : f32 to vector<8x16xf32>
    %3113 = arith.mulf %3098, %3112 : vector<8x16xf32>
    %3114 = arith.addf %2939, %3113 : vector<8x16xf32>
    %c344_490 = arith.constant 344 : index
    %3115 = memref.load %arg4[%c344_490] : memref<400xf32, #tpu.memory_space<smem>>
    %3116 = vector.broadcast %3115 : f32 to vector<8x16xf32>
    %3117 = arith.mulf %3098, %3116 : vector<8x16xf32>
    %3118 = arith.addf %2943, %3117 : vector<8x16xf32>
    %c345_491 = arith.constant 345 : index
    %3119 = memref.load %arg4[%c345_491] : memref<400xf32, #tpu.memory_space<smem>>
    %3120 = vector.broadcast %3119 : f32 to vector<8x16xf32>
    %3121 = arith.mulf %3098, %3120 : vector<8x16xf32>
    %3122 = arith.addf %2947, %3121 : vector<8x16xf32>
    %c346_492 = arith.constant 346 : index
    %3123 = memref.load %arg4[%c346_492] : memref<400xf32, #tpu.memory_space<smem>>
    %3124 = vector.broadcast %3123 : f32 to vector<8x16xf32>
    %3125 = arith.mulf %3098, %3124 : vector<8x16xf32>
    %3126 = arith.addf %2951, %3125 : vector<8x16xf32>
    %c347_493 = arith.constant 347 : index
    %3127 = memref.load %arg4[%c347_493] : memref<400xf32, #tpu.memory_space<smem>>
    %3128 = vector.broadcast %3127 : f32 to vector<8x16xf32>
    %3129 = arith.mulf %3098, %3128 : vector<8x16xf32>
    %3130 = arith.addf %2955, %3129 : vector<8x16xf32>
    %c348_494 = arith.constant 348 : index
    %3131 = memref.load %arg4[%c348_494] : memref<400xf32, #tpu.memory_space<smem>>
    %3132 = vector.broadcast %3131 : f32 to vector<8x16xf32>
    %3133 = arith.mulf %3098, %3132 : vector<8x16xf32>
    %3134 = arith.addf %2959, %3133 : vector<8x16xf32>
    %c349_495 = arith.constant 349 : index
    %3135 = memref.load %arg4[%c349_495] : memref<400xf32, #tpu.memory_space<smem>>
    %3136 = vector.broadcast %3135 : f32 to vector<8x16xf32>
    %3137 = arith.mulf %3098, %3136 : vector<8x16xf32>
    %3138 = arith.addf %2963, %3137 : vector<8x16xf32>
    %c350_496 = arith.constant 350 : index
    %3139 = memref.load %arg4[%c350_496] : memref<400xf32, #tpu.memory_space<smem>>
    %3140 = vector.broadcast %3139 : f32 to vector<8x16xf32>
    %3141 = arith.mulf %3098, %3140 : vector<8x16xf32>
    %3142 = arith.addf %2967, %3141 : vector<8x16xf32>
    %c351_497 = arith.constant 351 : index
    %3143 = memref.load %arg4[%c351_497] : memref<400xf32, #tpu.memory_space<smem>>
    %3144 = vector.broadcast %3143 : f32 to vector<8x16xf32>
    %3145 = arith.mulf %3098, %3144 : vector<8x16xf32>
    %3146 = arith.addf %2971, %3145 : vector<8x16xf32>
    %c352_498 = arith.constant 352 : index
    %3147 = memref.load %arg4[%c352_498] : memref<400xf32, #tpu.memory_space<smem>>
    %3148 = vector.broadcast %3147 : f32 to vector<8x16xf32>
    %3149 = arith.mulf %3098, %3148 : vector<8x16xf32>
    %3150 = arith.addf %2975, %3149 : vector<8x16xf32>
    %c353_499 = arith.constant 353 : index
    %3151 = memref.load %arg4[%c353_499] : memref<400xf32, #tpu.memory_space<smem>>
    %3152 = vector.broadcast %3151 : f32 to vector<8x16xf32>
    %3153 = arith.mulf %3098, %3152 : vector<8x16xf32>
    %3154 = arith.addf %2979, %3153 : vector<8x16xf32>
    %c354_500 = arith.constant 354 : index
    %3155 = memref.load %arg4[%c354_500] : memref<400xf32, #tpu.memory_space<smem>>
    %3156 = vector.broadcast %3155 : f32 to vector<8x16xf32>
    %3157 = arith.mulf %3098, %3156 : vector<8x16xf32>
    %3158 = arith.addf %2983, %3157 : vector<8x16xf32>
    %c355_501 = arith.constant 355 : index
    %3159 = memref.load %arg4[%c355_501] : memref<400xf32, #tpu.memory_space<smem>>
    %3160 = vector.broadcast %3159 : f32 to vector<8x16xf32>
    %3161 = arith.mulf %3098, %3160 : vector<8x16xf32>
    %3162 = arith.addf %2987, %3161 : vector<8x16xf32>
    %c356_502 = arith.constant 356 : index
    %3163 = memref.load %arg4[%c356_502] : memref<400xf32, #tpu.memory_space<smem>>
    %3164 = vector.broadcast %3163 : f32 to vector<8x16xf32>
    %3165 = arith.mulf %3098, %3164 : vector<8x16xf32>
    %3166 = arith.addf %2991, %3165 : vector<8x16xf32>
    %c357_503 = arith.constant 357 : index
    %3167 = memref.load %arg4[%c357_503] : memref<400xf32, #tpu.memory_space<smem>>
    %3168 = vector.broadcast %3167 : f32 to vector<8x16xf32>
    %3169 = arith.mulf %3098, %3168 : vector<8x16xf32>
    %3170 = arith.addf %2995, %3169 : vector<8x16xf32>
    %c358_504 = arith.constant 358 : index
    %3171 = memref.load %arg4[%c358_504] : memref<400xf32, #tpu.memory_space<smem>>
    %3172 = vector.broadcast %3171 : f32 to vector<8x16xf32>
    %3173 = arith.mulf %3098, %3172 : vector<8x16xf32>
    %3174 = arith.addf %2999, %3173 : vector<8x16xf32>
    %c359_505 = arith.constant 359 : index
    %3175 = memref.load %arg4[%c359_505] : memref<400xf32, #tpu.memory_space<smem>>
    %3176 = vector.broadcast %3175 : f32 to vector<8x16xf32>
    %3177 = arith.mulf %3098, %3176 : vector<8x16xf32>
    %3178 = arith.addf %3003, %3177 : vector<8x16xf32>
    %3179 = arith.mulf %3098, %3098 : vector<8x16xf32>
    %cst_506 = arith.constant 1.000000e+00 : f32
    %3180 = vector.broadcast %cst_506 : f32 to vector<8x16xf32>
    %3181 = arith.subf %3180, %3179 : vector<8x16xf32>
    %c17_507 = arith.constant 17 : index
    %3182 = memref.load %arg2[%c17_507] : memref<20xf32, #tpu.memory_space<smem>>
    %3183 = vector.broadcast %3182 : f32 to vector<8x16xf32>
    %3184 = arith.mulf %3181, %3183 : vector<8x16xf32>
    %cst_508 = arith.constant 1.000000e+00 : f32
    %3185 = vector.broadcast %cst_508 : f32 to vector<8x16xf32>
    %3186 = arith.addf %3185, %3184 : vector<8x16xf32>
    %3187 = math.absf %3186 : vector<8x16xf32>
    %cst_509 = arith.constant 9.99999993E-9 : f32
    %3188 = vector.broadcast %cst_509 : f32 to vector<8x16xf32>
    %3189 = arith.addf %3187, %3188 : vector<8x16xf32>
    %3190 = arith.mulf %3015, %3189 : vector<8x16xf32>
    %c360 = arith.constant 360 : index
    %3191 = memref.load %arg3[%c360] : memref<400xf32, #tpu.memory_space<smem>>
    %3192 = vector.broadcast %3191 : f32 to vector<8x16xf32>
    %3193 = arith.mulf %3102, %3192 : vector<8x16xf32>
    %c361 = arith.constant 361 : index
    %3194 = memref.load %arg3[%c361] : memref<400xf32, #tpu.memory_space<smem>>
    %3195 = vector.broadcast %3194 : f32 to vector<8x16xf32>
    %3196 = arith.mulf %3106, %3195 : vector<8x16xf32>
    %c362 = arith.constant 362 : index
    %3197 = memref.load %arg3[%c362] : memref<400xf32, #tpu.memory_space<smem>>
    %3198 = vector.broadcast %3197 : f32 to vector<8x16xf32>
    %3199 = arith.mulf %3110, %3198 : vector<8x16xf32>
    %c363 = arith.constant 363 : index
    %3200 = memref.load %arg3[%c363] : memref<400xf32, #tpu.memory_space<smem>>
    %3201 = vector.broadcast %3200 : f32 to vector<8x16xf32>
    %3202 = arith.mulf %3114, %3201 : vector<8x16xf32>
    %c364 = arith.constant 364 : index
    %3203 = memref.load %arg3[%c364] : memref<400xf32, #tpu.memory_space<smem>>
    %3204 = vector.broadcast %3203 : f32 to vector<8x16xf32>
    %3205 = arith.mulf %3118, %3204 : vector<8x16xf32>
    %c365 = arith.constant 365 : index
    %3206 = memref.load %arg3[%c365] : memref<400xf32, #tpu.memory_space<smem>>
    %3207 = vector.broadcast %3206 : f32 to vector<8x16xf32>
    %3208 = arith.mulf %3122, %3207 : vector<8x16xf32>
    %c366 = arith.constant 366 : index
    %3209 = memref.load %arg3[%c366] : memref<400xf32, #tpu.memory_space<smem>>
    %3210 = vector.broadcast %3209 : f32 to vector<8x16xf32>
    %3211 = arith.mulf %3126, %3210 : vector<8x16xf32>
    %c367 = arith.constant 367 : index
    %3212 = memref.load %arg3[%c367] : memref<400xf32, #tpu.memory_space<smem>>
    %3213 = vector.broadcast %3212 : f32 to vector<8x16xf32>
    %3214 = arith.mulf %3130, %3213 : vector<8x16xf32>
    %c368 = arith.constant 368 : index
    %3215 = memref.load %arg3[%c368] : memref<400xf32, #tpu.memory_space<smem>>
    %3216 = vector.broadcast %3215 : f32 to vector<8x16xf32>
    %3217 = arith.mulf %3134, %3216 : vector<8x16xf32>
    %c369 = arith.constant 369 : index
    %3218 = memref.load %arg3[%c369] : memref<400xf32, #tpu.memory_space<smem>>
    %3219 = vector.broadcast %3218 : f32 to vector<8x16xf32>
    %3220 = arith.mulf %3138, %3219 : vector<8x16xf32>
    %c370 = arith.constant 370 : index
    %3221 = memref.load %arg3[%c370] : memref<400xf32, #tpu.memory_space<smem>>
    %3222 = vector.broadcast %3221 : f32 to vector<8x16xf32>
    %3223 = arith.mulf %3142, %3222 : vector<8x16xf32>
    %c371 = arith.constant 371 : index
    %3224 = memref.load %arg3[%c371] : memref<400xf32, #tpu.memory_space<smem>>
    %3225 = vector.broadcast %3224 : f32 to vector<8x16xf32>
    %3226 = arith.mulf %3146, %3225 : vector<8x16xf32>
    %c372 = arith.constant 372 : index
    %3227 = memref.load %arg3[%c372] : memref<400xf32, #tpu.memory_space<smem>>
    %3228 = vector.broadcast %3227 : f32 to vector<8x16xf32>
    %3229 = arith.mulf %3150, %3228 : vector<8x16xf32>
    %c373 = arith.constant 373 : index
    %3230 = memref.load %arg3[%c373] : memref<400xf32, #tpu.memory_space<smem>>
    %3231 = vector.broadcast %3230 : f32 to vector<8x16xf32>
    %3232 = arith.mulf %3154, %3231 : vector<8x16xf32>
    %c374 = arith.constant 374 : index
    %3233 = memref.load %arg3[%c374] : memref<400xf32, #tpu.memory_space<smem>>
    %3234 = vector.broadcast %3233 : f32 to vector<8x16xf32>
    %3235 = arith.mulf %3158, %3234 : vector<8x16xf32>
    %c375 = arith.constant 375 : index
    %3236 = memref.load %arg3[%c375] : memref<400xf32, #tpu.memory_space<smem>>
    %3237 = vector.broadcast %3236 : f32 to vector<8x16xf32>
    %3238 = arith.mulf %3162, %3237 : vector<8x16xf32>
    %c376 = arith.constant 376 : index
    %3239 = memref.load %arg3[%c376] : memref<400xf32, #tpu.memory_space<smem>>
    %3240 = vector.broadcast %3239 : f32 to vector<8x16xf32>
    %3241 = arith.mulf %3166, %3240 : vector<8x16xf32>
    %c377 = arith.constant 377 : index
    %3242 = memref.load %arg3[%c377] : memref<400xf32, #tpu.memory_space<smem>>
    %3243 = vector.broadcast %3242 : f32 to vector<8x16xf32>
    %3244 = arith.mulf %3170, %3243 : vector<8x16xf32>
    %c378 = arith.constant 378 : index
    %3245 = memref.load %arg3[%c378] : memref<400xf32, #tpu.memory_space<smem>>
    %3246 = vector.broadcast %3245 : f32 to vector<8x16xf32>
    %3247 = arith.mulf %3174, %3246 : vector<8x16xf32>
    %c379 = arith.constant 379 : index
    %3248 = memref.load %arg3[%c379] : memref<400xf32, #tpu.memory_space<smem>>
    %3249 = vector.broadcast %3248 : f32 to vector<8x16xf32>
    %3250 = arith.mulf %3178, %3249 : vector<8x16xf32>
    %3251 = arith.addf %3193, %3196 : vector<8x16xf32>
    %3252 = arith.addf %3199, %3202 : vector<8x16xf32>
    %3253 = arith.addf %3205, %3208 : vector<8x16xf32>
    %3254 = arith.addf %3211, %3214 : vector<8x16xf32>
    %3255 = arith.addf %3217, %3220 : vector<8x16xf32>
    %3256 = arith.addf %3223, %3226 : vector<8x16xf32>
    %3257 = arith.addf %3229, %3232 : vector<8x16xf32>
    %3258 = arith.addf %3235, %3238 : vector<8x16xf32>
    %3259 = arith.addf %3241, %3244 : vector<8x16xf32>
    %3260 = arith.addf %3247, %3250 : vector<8x16xf32>
    %3261 = arith.addf %3251, %3252 : vector<8x16xf32>
    %3262 = arith.addf %3253, %3254 : vector<8x16xf32>
    %3263 = arith.addf %3255, %3256 : vector<8x16xf32>
    %3264 = arith.addf %3257, %3258 : vector<8x16xf32>
    %3265 = arith.addf %3259, %3260 : vector<8x16xf32>
    %3266 = arith.addf %3261, %3262 : vector<8x16xf32>
    %3267 = arith.addf %3263, %3264 : vector<8x16xf32>
    %3268 = arith.addf %3266, %3267 : vector<8x16xf32>
    %3269 = arith.addf %3268, %3265 : vector<8x16xf32>
    %c18_510 = arith.constant 18 : index
    %3270 = memref.load %arg1[%c18_510] : memref<20xf32, #tpu.memory_space<smem>>
    %3271 = vector.broadcast %3270 : f32 to vector<8x16xf32>
    %3272 = arith.addf %3269, %3271 : vector<8x16xf32>
    %3273 = math.tanh %3272 : vector<8x16xf32>
    %c360_511 = arith.constant 360 : index
    %3274 = memref.load %arg4[%c360_511] : memref<400xf32, #tpu.memory_space<smem>>
    %3275 = vector.broadcast %3274 : f32 to vector<8x16xf32>
    %3276 = arith.mulf %3273, %3275 : vector<8x16xf32>
    %3277 = arith.addf %3102, %3276 : vector<8x16xf32>
    %c361_512 = arith.constant 361 : index
    %3278 = memref.load %arg4[%c361_512] : memref<400xf32, #tpu.memory_space<smem>>
    %3279 = vector.broadcast %3278 : f32 to vector<8x16xf32>
    %3280 = arith.mulf %3273, %3279 : vector<8x16xf32>
    %3281 = arith.addf %3106, %3280 : vector<8x16xf32>
    %c362_513 = arith.constant 362 : index
    %3282 = memref.load %arg4[%c362_513] : memref<400xf32, #tpu.memory_space<smem>>
    %3283 = vector.broadcast %3282 : f32 to vector<8x16xf32>
    %3284 = arith.mulf %3273, %3283 : vector<8x16xf32>
    %3285 = arith.addf %3110, %3284 : vector<8x16xf32>
    %c363_514 = arith.constant 363 : index
    %3286 = memref.load %arg4[%c363_514] : memref<400xf32, #tpu.memory_space<smem>>
    %3287 = vector.broadcast %3286 : f32 to vector<8x16xf32>
    %3288 = arith.mulf %3273, %3287 : vector<8x16xf32>
    %3289 = arith.addf %3114, %3288 : vector<8x16xf32>
    %c364_515 = arith.constant 364 : index
    %3290 = memref.load %arg4[%c364_515] : memref<400xf32, #tpu.memory_space<smem>>
    %3291 = vector.broadcast %3290 : f32 to vector<8x16xf32>
    %3292 = arith.mulf %3273, %3291 : vector<8x16xf32>
    %3293 = arith.addf %3118, %3292 : vector<8x16xf32>
    %c365_516 = arith.constant 365 : index
    %3294 = memref.load %arg4[%c365_516] : memref<400xf32, #tpu.memory_space<smem>>
    %3295 = vector.broadcast %3294 : f32 to vector<8x16xf32>
    %3296 = arith.mulf %3273, %3295 : vector<8x16xf32>
    %3297 = arith.addf %3122, %3296 : vector<8x16xf32>
    %c366_517 = arith.constant 366 : index
    %3298 = memref.load %arg4[%c366_517] : memref<400xf32, #tpu.memory_space<smem>>
    %3299 = vector.broadcast %3298 : f32 to vector<8x16xf32>
    %3300 = arith.mulf %3273, %3299 : vector<8x16xf32>
    %3301 = arith.addf %3126, %3300 : vector<8x16xf32>
    %c367_518 = arith.constant 367 : index
    %3302 = memref.load %arg4[%c367_518] : memref<400xf32, #tpu.memory_space<smem>>
    %3303 = vector.broadcast %3302 : f32 to vector<8x16xf32>
    %3304 = arith.mulf %3273, %3303 : vector<8x16xf32>
    %3305 = arith.addf %3130, %3304 : vector<8x16xf32>
    %c368_519 = arith.constant 368 : index
    %3306 = memref.load %arg4[%c368_519] : memref<400xf32, #tpu.memory_space<smem>>
    %3307 = vector.broadcast %3306 : f32 to vector<8x16xf32>
    %3308 = arith.mulf %3273, %3307 : vector<8x16xf32>
    %3309 = arith.addf %3134, %3308 : vector<8x16xf32>
    %c369_520 = arith.constant 369 : index
    %3310 = memref.load %arg4[%c369_520] : memref<400xf32, #tpu.memory_space<smem>>
    %3311 = vector.broadcast %3310 : f32 to vector<8x16xf32>
    %3312 = arith.mulf %3273, %3311 : vector<8x16xf32>
    %3313 = arith.addf %3138, %3312 : vector<8x16xf32>
    %c370_521 = arith.constant 370 : index
    %3314 = memref.load %arg4[%c370_521] : memref<400xf32, #tpu.memory_space<smem>>
    %3315 = vector.broadcast %3314 : f32 to vector<8x16xf32>
    %3316 = arith.mulf %3273, %3315 : vector<8x16xf32>
    %3317 = arith.addf %3142, %3316 : vector<8x16xf32>
    %c371_522 = arith.constant 371 : index
    %3318 = memref.load %arg4[%c371_522] : memref<400xf32, #tpu.memory_space<smem>>
    %3319 = vector.broadcast %3318 : f32 to vector<8x16xf32>
    %3320 = arith.mulf %3273, %3319 : vector<8x16xf32>
    %3321 = arith.addf %3146, %3320 : vector<8x16xf32>
    %c372_523 = arith.constant 372 : index
    %3322 = memref.load %arg4[%c372_523] : memref<400xf32, #tpu.memory_space<smem>>
    %3323 = vector.broadcast %3322 : f32 to vector<8x16xf32>
    %3324 = arith.mulf %3273, %3323 : vector<8x16xf32>
    %3325 = arith.addf %3150, %3324 : vector<8x16xf32>
    %c373_524 = arith.constant 373 : index
    %3326 = memref.load %arg4[%c373_524] : memref<400xf32, #tpu.memory_space<smem>>
    %3327 = vector.broadcast %3326 : f32 to vector<8x16xf32>
    %3328 = arith.mulf %3273, %3327 : vector<8x16xf32>
    %3329 = arith.addf %3154, %3328 : vector<8x16xf32>
    %c374_525 = arith.constant 374 : index
    %3330 = memref.load %arg4[%c374_525] : memref<400xf32, #tpu.memory_space<smem>>
    %3331 = vector.broadcast %3330 : f32 to vector<8x16xf32>
    %3332 = arith.mulf %3273, %3331 : vector<8x16xf32>
    %3333 = arith.addf %3158, %3332 : vector<8x16xf32>
    %c375_526 = arith.constant 375 : index
    %3334 = memref.load %arg4[%c375_526] : memref<400xf32, #tpu.memory_space<smem>>
    %3335 = vector.broadcast %3334 : f32 to vector<8x16xf32>
    %3336 = arith.mulf %3273, %3335 : vector<8x16xf32>
    %3337 = arith.addf %3162, %3336 : vector<8x16xf32>
    %c376_527 = arith.constant 376 : index
    %3338 = memref.load %arg4[%c376_527] : memref<400xf32, #tpu.memory_space<smem>>
    %3339 = vector.broadcast %3338 : f32 to vector<8x16xf32>
    %3340 = arith.mulf %3273, %3339 : vector<8x16xf32>
    %3341 = arith.addf %3166, %3340 : vector<8x16xf32>
    %c377_528 = arith.constant 377 : index
    %3342 = memref.load %arg4[%c377_528] : memref<400xf32, #tpu.memory_space<smem>>
    %3343 = vector.broadcast %3342 : f32 to vector<8x16xf32>
    %3344 = arith.mulf %3273, %3343 : vector<8x16xf32>
    %3345 = arith.addf %3170, %3344 : vector<8x16xf32>
    %c378_529 = arith.constant 378 : index
    %3346 = memref.load %arg4[%c378_529] : memref<400xf32, #tpu.memory_space<smem>>
    %3347 = vector.broadcast %3346 : f32 to vector<8x16xf32>
    %3348 = arith.mulf %3273, %3347 : vector<8x16xf32>
    %3349 = arith.addf %3174, %3348 : vector<8x16xf32>
    %c379_530 = arith.constant 379 : index
    %3350 = memref.load %arg4[%c379_530] : memref<400xf32, #tpu.memory_space<smem>>
    %3351 = vector.broadcast %3350 : f32 to vector<8x16xf32>
    %3352 = arith.mulf %3273, %3351 : vector<8x16xf32>
    %3353 = arith.addf %3178, %3352 : vector<8x16xf32>
    %3354 = arith.mulf %3273, %3273 : vector<8x16xf32>
    %cst_531 = arith.constant 1.000000e+00 : f32
    %3355 = vector.broadcast %cst_531 : f32 to vector<8x16xf32>
    %3356 = arith.subf %3355, %3354 : vector<8x16xf32>
    %c18_532 = arith.constant 18 : index
    %3357 = memref.load %arg2[%c18_532] : memref<20xf32, #tpu.memory_space<smem>>
    %3358 = vector.broadcast %3357 : f32 to vector<8x16xf32>
    %3359 = arith.mulf %3356, %3358 : vector<8x16xf32>
    %cst_533 = arith.constant 1.000000e+00 : f32
    %3360 = vector.broadcast %cst_533 : f32 to vector<8x16xf32>
    %3361 = arith.addf %3360, %3359 : vector<8x16xf32>
    %3362 = math.absf %3361 : vector<8x16xf32>
    %cst_534 = arith.constant 9.99999993E-9 : f32
    %3363 = vector.broadcast %cst_534 : f32 to vector<8x16xf32>
    %3364 = arith.addf %3362, %3363 : vector<8x16xf32>
    %3365 = arith.mulf %3190, %3364 : vector<8x16xf32>
    %c380 = arith.constant 380 : index
    %3366 = memref.load %arg3[%c380] : memref<400xf32, #tpu.memory_space<smem>>
    %3367 = vector.broadcast %3366 : f32 to vector<8x16xf32>
    %3368 = arith.mulf %3277, %3367 : vector<8x16xf32>
    %c381 = arith.constant 381 : index
    %3369 = memref.load %arg3[%c381] : memref<400xf32, #tpu.memory_space<smem>>
    %3370 = vector.broadcast %3369 : f32 to vector<8x16xf32>
    %3371 = arith.mulf %3281, %3370 : vector<8x16xf32>
    %c382 = arith.constant 382 : index
    %3372 = memref.load %arg3[%c382] : memref<400xf32, #tpu.memory_space<smem>>
    %3373 = vector.broadcast %3372 : f32 to vector<8x16xf32>
    %3374 = arith.mulf %3285, %3373 : vector<8x16xf32>
    %c383 = arith.constant 383 : index
    %3375 = memref.load %arg3[%c383] : memref<400xf32, #tpu.memory_space<smem>>
    %3376 = vector.broadcast %3375 : f32 to vector<8x16xf32>
    %3377 = arith.mulf %3289, %3376 : vector<8x16xf32>
    %c384 = arith.constant 384 : index
    %3378 = memref.load %arg3[%c384] : memref<400xf32, #tpu.memory_space<smem>>
    %3379 = vector.broadcast %3378 : f32 to vector<8x16xf32>
    %3380 = arith.mulf %3293, %3379 : vector<8x16xf32>
    %c385 = arith.constant 385 : index
    %3381 = memref.load %arg3[%c385] : memref<400xf32, #tpu.memory_space<smem>>
    %3382 = vector.broadcast %3381 : f32 to vector<8x16xf32>
    %3383 = arith.mulf %3297, %3382 : vector<8x16xf32>
    %c386 = arith.constant 386 : index
    %3384 = memref.load %arg3[%c386] : memref<400xf32, #tpu.memory_space<smem>>
    %3385 = vector.broadcast %3384 : f32 to vector<8x16xf32>
    %3386 = arith.mulf %3301, %3385 : vector<8x16xf32>
    %c387 = arith.constant 387 : index
    %3387 = memref.load %arg3[%c387] : memref<400xf32, #tpu.memory_space<smem>>
    %3388 = vector.broadcast %3387 : f32 to vector<8x16xf32>
    %3389 = arith.mulf %3305, %3388 : vector<8x16xf32>
    %c388 = arith.constant 388 : index
    %3390 = memref.load %arg3[%c388] : memref<400xf32, #tpu.memory_space<smem>>
    %3391 = vector.broadcast %3390 : f32 to vector<8x16xf32>
    %3392 = arith.mulf %3309, %3391 : vector<8x16xf32>
    %c389 = arith.constant 389 : index
    %3393 = memref.load %arg3[%c389] : memref<400xf32, #tpu.memory_space<smem>>
    %3394 = vector.broadcast %3393 : f32 to vector<8x16xf32>
    %3395 = arith.mulf %3313, %3394 : vector<8x16xf32>
    %c390 = arith.constant 390 : index
    %3396 = memref.load %arg3[%c390] : memref<400xf32, #tpu.memory_space<smem>>
    %3397 = vector.broadcast %3396 : f32 to vector<8x16xf32>
    %3398 = arith.mulf %3317, %3397 : vector<8x16xf32>
    %c391 = arith.constant 391 : index
    %3399 = memref.load %arg3[%c391] : memref<400xf32, #tpu.memory_space<smem>>
    %3400 = vector.broadcast %3399 : f32 to vector<8x16xf32>
    %3401 = arith.mulf %3321, %3400 : vector<8x16xf32>
    %c392 = arith.constant 392 : index
    %3402 = memref.load %arg3[%c392] : memref<400xf32, #tpu.memory_space<smem>>
    %3403 = vector.broadcast %3402 : f32 to vector<8x16xf32>
    %3404 = arith.mulf %3325, %3403 : vector<8x16xf32>
    %c393 = arith.constant 393 : index
    %3405 = memref.load %arg3[%c393] : memref<400xf32, #tpu.memory_space<smem>>
    %3406 = vector.broadcast %3405 : f32 to vector<8x16xf32>
    %3407 = arith.mulf %3329, %3406 : vector<8x16xf32>
    %c394 = arith.constant 394 : index
    %3408 = memref.load %arg3[%c394] : memref<400xf32, #tpu.memory_space<smem>>
    %3409 = vector.broadcast %3408 : f32 to vector<8x16xf32>
    %3410 = arith.mulf %3333, %3409 : vector<8x16xf32>
    %c395 = arith.constant 395 : index
    %3411 = memref.load %arg3[%c395] : memref<400xf32, #tpu.memory_space<smem>>
    %3412 = vector.broadcast %3411 : f32 to vector<8x16xf32>
    %3413 = arith.mulf %3337, %3412 : vector<8x16xf32>
    %c396 = arith.constant 396 : index
    %3414 = memref.load %arg3[%c396] : memref<400xf32, #tpu.memory_space<smem>>
    %3415 = vector.broadcast %3414 : f32 to vector<8x16xf32>
    %3416 = arith.mulf %3341, %3415 : vector<8x16xf32>
    %c397 = arith.constant 397 : index
    %3417 = memref.load %arg3[%c397] : memref<400xf32, #tpu.memory_space<smem>>
    %3418 = vector.broadcast %3417 : f32 to vector<8x16xf32>
    %3419 = arith.mulf %3345, %3418 : vector<8x16xf32>
    %c398 = arith.constant 398 : index
    %3420 = memref.load %arg3[%c398] : memref<400xf32, #tpu.memory_space<smem>>
    %3421 = vector.broadcast %3420 : f32 to vector<8x16xf32>
    %3422 = arith.mulf %3349, %3421 : vector<8x16xf32>
    %c399 = arith.constant 399 : index
    %3423 = memref.load %arg3[%c399] : memref<400xf32, #tpu.memory_space<smem>>
    %3424 = vector.broadcast %3423 : f32 to vector<8x16xf32>
    %3425 = arith.mulf %3353, %3424 : vector<8x16xf32>
    %3426 = arith.addf %3368, %3371 : vector<8x16xf32>
    %3427 = arith.addf %3374, %3377 : vector<8x16xf32>
    %3428 = arith.addf %3380, %3383 : vector<8x16xf32>
    %3429 = arith.addf %3386, %3389 : vector<8x16xf32>
    %3430 = arith.addf %3392, %3395 : vector<8x16xf32>
    %3431 = arith.addf %3398, %3401 : vector<8x16xf32>
    %3432 = arith.addf %3404, %3407 : vector<8x16xf32>
    %3433 = arith.addf %3410, %3413 : vector<8x16xf32>
    %3434 = arith.addf %3416, %3419 : vector<8x16xf32>
    %3435 = arith.addf %3422, %3425 : vector<8x16xf32>
    %3436 = arith.addf %3426, %3427 : vector<8x16xf32>
    %3437 = arith.addf %3428, %3429 : vector<8x16xf32>
    %3438 = arith.addf %3430, %3431 : vector<8x16xf32>
    %3439 = arith.addf %3432, %3433 : vector<8x16xf32>
    %3440 = arith.addf %3434, %3435 : vector<8x16xf32>
    %3441 = arith.addf %3436, %3437 : vector<8x16xf32>
    %3442 = arith.addf %3438, %3439 : vector<8x16xf32>
    %3443 = arith.addf %3441, %3442 : vector<8x16xf32>
    %3444 = arith.addf %3443, %3440 : vector<8x16xf32>
    %c19_535 = arith.constant 19 : index
    %3445 = memref.load %arg1[%c19_535] : memref<20xf32, #tpu.memory_space<smem>>
    %3446 = vector.broadcast %3445 : f32 to vector<8x16xf32>
    %3447 = arith.addf %3444, %3446 : vector<8x16xf32>
    %3448 = math.tanh %3447 : vector<8x16xf32>
    %c380_536 = arith.constant 380 : index
    %3449 = memref.load %arg4[%c380_536] : memref<400xf32, #tpu.memory_space<smem>>
    %3450 = vector.broadcast %3449 : f32 to vector<8x16xf32>
    %3451 = arith.mulf %3448, %3450 : vector<8x16xf32>
    %3452 = arith.addf %3277, %3451 : vector<8x16xf32>
    %c381_537 = arith.constant 381 : index
    %3453 = memref.load %arg4[%c381_537] : memref<400xf32, #tpu.memory_space<smem>>
    %3454 = vector.broadcast %3453 : f32 to vector<8x16xf32>
    %3455 = arith.mulf %3448, %3454 : vector<8x16xf32>
    %3456 = arith.addf %3281, %3455 : vector<8x16xf32>
    %c382_538 = arith.constant 382 : index
    %3457 = memref.load %arg4[%c382_538] : memref<400xf32, #tpu.memory_space<smem>>
    %3458 = vector.broadcast %3457 : f32 to vector<8x16xf32>
    %3459 = arith.mulf %3448, %3458 : vector<8x16xf32>
    %3460 = arith.addf %3285, %3459 : vector<8x16xf32>
    %c383_539 = arith.constant 383 : index
    %3461 = memref.load %arg4[%c383_539] : memref<400xf32, #tpu.memory_space<smem>>
    %3462 = vector.broadcast %3461 : f32 to vector<8x16xf32>
    %3463 = arith.mulf %3448, %3462 : vector<8x16xf32>
    %3464 = arith.addf %3289, %3463 : vector<8x16xf32>
    %c384_540 = arith.constant 384 : index
    %3465 = memref.load %arg4[%c384_540] : memref<400xf32, #tpu.memory_space<smem>>
    %3466 = vector.broadcast %3465 : f32 to vector<8x16xf32>
    %3467 = arith.mulf %3448, %3466 : vector<8x16xf32>
    %3468 = arith.addf %3293, %3467 : vector<8x16xf32>
    %c385_541 = arith.constant 385 : index
    %3469 = memref.load %arg4[%c385_541] : memref<400xf32, #tpu.memory_space<smem>>
    %3470 = vector.broadcast %3469 : f32 to vector<8x16xf32>
    %3471 = arith.mulf %3448, %3470 : vector<8x16xf32>
    %3472 = arith.addf %3297, %3471 : vector<8x16xf32>
    %c386_542 = arith.constant 386 : index
    %3473 = memref.load %arg4[%c386_542] : memref<400xf32, #tpu.memory_space<smem>>
    %3474 = vector.broadcast %3473 : f32 to vector<8x16xf32>
    %3475 = arith.mulf %3448, %3474 : vector<8x16xf32>
    %3476 = arith.addf %3301, %3475 : vector<8x16xf32>
    %c387_543 = arith.constant 387 : index
    %3477 = memref.load %arg4[%c387_543] : memref<400xf32, #tpu.memory_space<smem>>
    %3478 = vector.broadcast %3477 : f32 to vector<8x16xf32>
    %3479 = arith.mulf %3448, %3478 : vector<8x16xf32>
    %3480 = arith.addf %3305, %3479 : vector<8x16xf32>
    %c388_544 = arith.constant 388 : index
    %3481 = memref.load %arg4[%c388_544] : memref<400xf32, #tpu.memory_space<smem>>
    %3482 = vector.broadcast %3481 : f32 to vector<8x16xf32>
    %3483 = arith.mulf %3448, %3482 : vector<8x16xf32>
    %3484 = arith.addf %3309, %3483 : vector<8x16xf32>
    %c389_545 = arith.constant 389 : index
    %3485 = memref.load %arg4[%c389_545] : memref<400xf32, #tpu.memory_space<smem>>
    %3486 = vector.broadcast %3485 : f32 to vector<8x16xf32>
    %3487 = arith.mulf %3448, %3486 : vector<8x16xf32>
    %3488 = arith.addf %3313, %3487 : vector<8x16xf32>
    %c390_546 = arith.constant 390 : index
    %3489 = memref.load %arg4[%c390_546] : memref<400xf32, #tpu.memory_space<smem>>
    %3490 = vector.broadcast %3489 : f32 to vector<8x16xf32>
    %3491 = arith.mulf %3448, %3490 : vector<8x16xf32>
    %3492 = arith.addf %3317, %3491 : vector<8x16xf32>
    %c391_547 = arith.constant 391 : index
    %3493 = memref.load %arg4[%c391_547] : memref<400xf32, #tpu.memory_space<smem>>
    %3494 = vector.broadcast %3493 : f32 to vector<8x16xf32>
    %3495 = arith.mulf %3448, %3494 : vector<8x16xf32>
    %3496 = arith.addf %3321, %3495 : vector<8x16xf32>
    %c392_548 = arith.constant 392 : index
    %3497 = memref.load %arg4[%c392_548] : memref<400xf32, #tpu.memory_space<smem>>
    %3498 = vector.broadcast %3497 : f32 to vector<8x16xf32>
    %3499 = arith.mulf %3448, %3498 : vector<8x16xf32>
    %3500 = arith.addf %3325, %3499 : vector<8x16xf32>
    %c393_549 = arith.constant 393 : index
    %3501 = memref.load %arg4[%c393_549] : memref<400xf32, #tpu.memory_space<smem>>
    %3502 = vector.broadcast %3501 : f32 to vector<8x16xf32>
    %3503 = arith.mulf %3448, %3502 : vector<8x16xf32>
    %3504 = arith.addf %3329, %3503 : vector<8x16xf32>
    %c394_550 = arith.constant 394 : index
    %3505 = memref.load %arg4[%c394_550] : memref<400xf32, #tpu.memory_space<smem>>
    %3506 = vector.broadcast %3505 : f32 to vector<8x16xf32>
    %3507 = arith.mulf %3448, %3506 : vector<8x16xf32>
    %3508 = arith.addf %3333, %3507 : vector<8x16xf32>
    %c395_551 = arith.constant 395 : index
    %3509 = memref.load %arg4[%c395_551] : memref<400xf32, #tpu.memory_space<smem>>
    %3510 = vector.broadcast %3509 : f32 to vector<8x16xf32>
    %3511 = arith.mulf %3448, %3510 : vector<8x16xf32>
    %3512 = arith.addf %3337, %3511 : vector<8x16xf32>
    %c396_552 = arith.constant 396 : index
    %3513 = memref.load %arg4[%c396_552] : memref<400xf32, #tpu.memory_space<smem>>
    %3514 = vector.broadcast %3513 : f32 to vector<8x16xf32>
    %3515 = arith.mulf %3448, %3514 : vector<8x16xf32>
    %3516 = arith.addf %3341, %3515 : vector<8x16xf32>
    %c397_553 = arith.constant 397 : index
    %3517 = memref.load %arg4[%c397_553] : memref<400xf32, #tpu.memory_space<smem>>
    %3518 = vector.broadcast %3517 : f32 to vector<8x16xf32>
    %3519 = arith.mulf %3448, %3518 : vector<8x16xf32>
    %3520 = arith.addf %3345, %3519 : vector<8x16xf32>
    %c398_554 = arith.constant 398 : index
    %3521 = memref.load %arg4[%c398_554] : memref<400xf32, #tpu.memory_space<smem>>
    %3522 = vector.broadcast %3521 : f32 to vector<8x16xf32>
    %3523 = arith.mulf %3448, %3522 : vector<8x16xf32>
    %3524 = arith.addf %3349, %3523 : vector<8x16xf32>
    %c399_555 = arith.constant 399 : index
    %3525 = memref.load %arg4[%c399_555] : memref<400xf32, #tpu.memory_space<smem>>
    %3526 = vector.broadcast %3525 : f32 to vector<8x16xf32>
    %3527 = arith.mulf %3448, %3526 : vector<8x16xf32>
    %3528 = arith.addf %3353, %3527 : vector<8x16xf32>
    %3529 = arith.mulf %3448, %3448 : vector<8x16xf32>
    %cst_556 = arith.constant 1.000000e+00 : f32
    %3530 = vector.broadcast %cst_556 : f32 to vector<8x16xf32>
    %3531 = arith.subf %3530, %3529 : vector<8x16xf32>
    %c19_557 = arith.constant 19 : index
    %3532 = memref.load %arg2[%c19_557] : memref<20xf32, #tpu.memory_space<smem>>
    %3533 = vector.broadcast %3532 : f32 to vector<8x16xf32>
    %3534 = arith.mulf %3531, %3533 : vector<8x16xf32>
    %cst_558 = arith.constant 1.000000e+00 : f32
    %3535 = vector.broadcast %cst_558 : f32 to vector<8x16xf32>
    %3536 = arith.addf %3535, %3534 : vector<8x16xf32>
    %3537 = math.absf %3536 : vector<8x16xf32>
    %cst_559 = arith.constant 9.99999993E-9 : f32
    %3538 = vector.broadcast %cst_559 : f32 to vector<8x16xf32>
    %3539 = arith.addf %3537, %3538 : vector<8x16xf32>
    %3540 = arith.mulf %3365, %3539 : vector<8x16xf32>
    %c0_560 = arith.constant 0 : index
    %c0_561 = arith.constant 0 : index
    %c0_562 = arith.constant 0 : index
    %3541 = vector.load %arg6[%c0_560, %c0_561, %c0_562] : memref<20x8x16xf32, #tpu.memory_space<vmem>>, vector<1x8x16xf32>
    %3542 = vector.shape_cast %3541 : vector<1x8x16xf32> to vector<8x16xf32>
    %3543 = vector.shape_cast %3452 : vector<8x16xf32> to vector<1x8x16xf32>
    tpu.vector_store %arg6[%c0_560, %c0_561, %c0_562], %3543 {strides = array<i32>} : memref<20x8x16xf32, #tpu.memory_space<vmem>>, vector<1x8x16xf32>,
    %c1_563 = arith.constant 1 : index
    %c0_564 = arith.constant 0 : index
    %c0_565 = arith.constant 0 : index
    %3544 = vector.load %arg6[%c1_563, %c0_564, %c0_565] : memref<20x8x16xf32, #tpu.memory_space<vmem>>, vector<1x8x16xf32>
    %3545 = vector.shape_cast %3544 : vector<1x8x16xf32> to vector<8x16xf32>
    %3546 = vector.shape_cast %3456 : vector<8x16xf32> to vector<1x8x16xf32>
    tpu.vector_store %arg6[%c1_563, %c0_564, %c0_565], %3546 {strides = array<i32>} : memref<20x8x16xf32, #tpu.memory_space<vmem>>, vector<1x8x16xf32>,
    %c2_566 = arith.constant 2 : index
    %c0_567 = arith.constant 0 : index
    %c0_568 = arith.constant 0 : index
    %3547 = vector.load %arg6[%c2_566, %c0_567, %c0_568] : memref<20x8x16xf32, #tpu.memory_space<vmem>>, vector<1x8x16xf32>
    %3548 = vector.shape_cast %3547 : vector<1x8x16xf32> to vector<8x16xf32>
    %3549 = vector.shape_cast %3460 : vector<8x16xf32> to vector<1x8x16xf32>
    tpu.vector_store %arg6[%c2_566, %c0_567, %c0_568], %3549 {strides = array<i32>} : memref<20x8x16xf32, #tpu.memory_space<vmem>>, vector<1x8x16xf32>,
    %c3_569 = arith.constant 3 : index
    %c0_570 = arith.constant 0 : index
    %c0_571 = arith.constant 0 : index
    %3550 = vector.load %arg6[%c3_569, %c0_570, %c0_571] : memref<20x8x16xf32, #tpu.memory_space<vmem>>, vector<1x8x16xf32>
    %3551 = vector.shape_cast %3550 : vector<1x8x16xf32> to vector<8x16xf32>
    %3552 = vector.shape_cast %3464 : vector<8x16xf32> to vector<1x8x16xf32>
    tpu.vector_store %arg6[%c3_569, %c0_570, %c0_571], %3552 {strides = array<i32>} : memref<20x8x16xf32, #tpu.memory_space<vmem>>, vector<1x8x16xf32>,
    %c4_572 = arith.constant 4 : index
    %c0_573 = arith.constant 0 : index
    %c0_574 = arith.constant 0 : index
    %3553 = vector.load %arg6[%c4_572, %c0_573, %c0_574] : memref<20x8x16xf32, #tpu.memory_space<vmem>>, vector<1x8x16xf32>
    %3554 = vector.shape_cast %3553 : vector<1x8x16xf32> to vector<8x16xf32>
    %3555 = vector.shape_cast %3468 : vector<8x16xf32> to vector<1x8x16xf32>
    tpu.vector_store %arg6[%c4_572, %c0_573, %c0_574], %3555 {strides = array<i32>} : memref<20x8x16xf32, #tpu.memory_space<vmem>>, vector<1x8x16xf32>,
    %c5_575 = arith.constant 5 : index
    %c0_576 = arith.constant 0 : index
    %c0_577 = arith.constant 0 : index
    %3556 = vector.load %arg6[%c5_575, %c0_576, %c0_577] : memref<20x8x16xf32, #tpu.memory_space<vmem>>, vector<1x8x16xf32>
    %3557 = vector.shape_cast %3556 : vector<1x8x16xf32> to vector<8x16xf32>
    %3558 = vector.shape_cast %3472 : vector<8x16xf32> to vector<1x8x16xf32>
    tpu.vector_store %arg6[%c5_575, %c0_576, %c0_577], %3558 {strides = array<i32>} : memref<20x8x16xf32, #tpu.memory_space<vmem>>, vector<1x8x16xf32>,
    %c6_578 = arith.constant 6 : index
    %c0_579 = arith.constant 0 : index
    %c0_580 = arith.constant 0 : index
    %3559 = vector.load %arg6[%c6_578, %c0_579, %c0_580] : memref<20x8x16xf32, #tpu.memory_space<vmem>>, vector<1x8x16xf32>
    %3560 = vector.shape_cast %3559 : vector<1x8x16xf32> to vector<8x16xf32>
    %3561 = vector.shape_cast %3476 : vector<8x16xf32> to vector<1x8x16xf32>
    tpu.vector_store %arg6[%c6_578, %c0_579, %c0_580], %3561 {strides = array<i32>} : memref<20x8x16xf32, #tpu.memory_space<vmem>>, vector<1x8x16xf32>,
    %c7_581 = arith.constant 7 : index
    %c0_582 = arith.constant 0 : index
    %c0_583 = arith.constant 0 : index
    %3562 = vector.load %arg6[%c7_581, %c0_582, %c0_583] : memref<20x8x16xf32, #tpu.memory_space<vmem>>, vector<1x8x16xf32>
    %3563 = vector.shape_cast %3562 : vector<1x8x16xf32> to vector<8x16xf32>
    %3564 = vector.shape_cast %3480 : vector<8x16xf32> to vector<1x8x16xf32>
    tpu.vector_store %arg6[%c7_581, %c0_582, %c0_583], %3564 {strides = array<i32>} : memref<20x8x16xf32, #tpu.memory_space<vmem>>, vector<1x8x16xf32>,
    %c8_584 = arith.constant 8 : index
    %c0_585 = arith.constant 0 : index
    %c0_586 = arith.constant 0 : index
    %3565 = vector.load %arg6[%c8_584, %c0_585, %c0_586] : memref<20x8x16xf32, #tpu.memory_space<vmem>>, vector<1x8x16xf32>
    %3566 = vector.shape_cast %3565 : vector<1x8x16xf32> to vector<8x16xf32>
    %3567 = vector.shape_cast %3484 : vector<8x16xf32> to vector<1x8x16xf32>
    tpu.vector_store %arg6[%c8_584, %c0_585, %c0_586], %3567 {strides = array<i32>} : memref<20x8x16xf32, #tpu.memory_space<vmem>>, vector<1x8x16xf32>,
    %c9_587 = arith.constant 9 : index
    %c0_588 = arith.constant 0 : index
    %c0_589 = arith.constant 0 : index
    %3568 = vector.load %arg6[%c9_587, %c0_588, %c0_589] : memref<20x8x16xf32, #tpu.memory_space<vmem>>, vector<1x8x16xf32>
    %3569 = vector.shape_cast %3568 : vector<1x8x16xf32> to vector<8x16xf32>
    %3570 = vector.shape_cast %3488 : vector<8x16xf32> to vector<1x8x16xf32>
    tpu.vector_store %arg6[%c9_587, %c0_588, %c0_589], %3570 {strides = array<i32>} : memref<20x8x16xf32, #tpu.memory_space<vmem>>, vector<1x8x16xf32>,
    %c10_590 = arith.constant 10 : index
    %c0_591 = arith.constant 0 : index
    %c0_592 = arith.constant 0 : index
    %3571 = vector.load %arg6[%c10_590, %c0_591, %c0_592] : memref<20x8x16xf32, #tpu.memory_space<vmem>>, vector<1x8x16xf32>
    %3572 = vector.shape_cast %3571 : vector<1x8x16xf32> to vector<8x16xf32>
    %3573 = vector.shape_cast %3492 : vector<8x16xf32> to vector<1x8x16xf32>
    tpu.vector_store %arg6[%c10_590, %c0_591, %c0_592], %3573 {strides = array<i32>} : memref<20x8x16xf32, #tpu.memory_space<vmem>>, vector<1x8x16xf32>,
    %c11_593 = arith.constant 11 : index
    %c0_594 = arith.constant 0 : index
    %c0_595 = arith.constant 0 : index
    %3574 = vector.load %arg6[%c11_593, %c0_594, %c0_595] : memref<20x8x16xf32, #tpu.memory_space<vmem>>, vector<1x8x16xf32>
    %3575 = vector.shape_cast %3574 : vector<1x8x16xf32> to vector<8x16xf32>
    %3576 = vector.shape_cast %3496 : vector<8x16xf32> to vector<1x8x16xf32>
    tpu.vector_store %arg6[%c11_593, %c0_594, %c0_595], %3576 {strides = array<i32>} : memref<20x8x16xf32, #tpu.memory_space<vmem>>, vector<1x8x16xf32>,
    %c12_596 = arith.constant 12 : index
    %c0_597 = arith.constant 0 : index
    %c0_598 = arith.constant 0 : index
    %3577 = vector.load %arg6[%c12_596, %c0_597, %c0_598] : memref<20x8x16xf32, #tpu.memory_space<vmem>>, vector<1x8x16xf32>
    %3578 = vector.shape_cast %3577 : vector<1x8x16xf32> to vector<8x16xf32>
    %3579 = vector.shape_cast %3500 : vector<8x16xf32> to vector<1x8x16xf32>
    tpu.vector_store %arg6[%c12_596, %c0_597, %c0_598], %3579 {strides = array<i32>} : memref<20x8x16xf32, #tpu.memory_space<vmem>>, vector<1x8x16xf32>,
    %c13_599 = arith.constant 13 : index
    %c0_600 = arith.constant 0 : index
    %c0_601 = arith.constant 0 : index
    %3580 = vector.load %arg6[%c13_599, %c0_600, %c0_601] : memref<20x8x16xf32, #tpu.memory_space<vmem>>, vector<1x8x16xf32>
    %3581 = vector.shape_cast %3580 : vector<1x8x16xf32> to vector<8x16xf32>
    %3582 = vector.shape_cast %3504 : vector<8x16xf32> to vector<1x8x16xf32>
    tpu.vector_store %arg6[%c13_599, %c0_600, %c0_601], %3582 {strides = array<i32>} : memref<20x8x16xf32, #tpu.memory_space<vmem>>, vector<1x8x16xf32>,
    %c14_602 = arith.constant 14 : index
    %c0_603 = arith.constant 0 : index
    %c0_604 = arith.constant 0 : index
    %3583 = vector.load %arg6[%c14_602, %c0_603, %c0_604] : memref<20x8x16xf32, #tpu.memory_space<vmem>>, vector<1x8x16xf32>
    %3584 = vector.shape_cast %3583 : vector<1x8x16xf32> to vector<8x16xf32>
    %3585 = vector.shape_cast %3508 : vector<8x16xf32> to vector<1x8x16xf32>
    tpu.vector_store %arg6[%c14_602, %c0_603, %c0_604], %3585 {strides = array<i32>} : memref<20x8x16xf32, #tpu.memory_space<vmem>>, vector<1x8x16xf32>,
    %c15_605 = arith.constant 15 : index
    %c0_606 = arith.constant 0 : index
    %c0_607 = arith.constant 0 : index
    %3586 = vector.load %arg6[%c15_605, %c0_606, %c0_607] : memref<20x8x16xf32, #tpu.memory_space<vmem>>, vector<1x8x16xf32>
    %3587 = vector.shape_cast %3586 : vector<1x8x16xf32> to vector<8x16xf32>
    %3588 = vector.shape_cast %3512 : vector<8x16xf32> to vector<1x8x16xf32>
    tpu.vector_store %arg6[%c15_605, %c0_606, %c0_607], %3588 {strides = array<i32>} : memref<20x8x16xf32, #tpu.memory_space<vmem>>, vector<1x8x16xf32>,
    %c16_608 = arith.constant 16 : index
    %c0_609 = arith.constant 0 : index
    %c0_610 = arith.constant 0 : index
    %3589 = vector.load %arg6[%c16_608, %c0_609, %c0_610] : memref<20x8x16xf32, #tpu.memory_space<vmem>>, vector<1x8x16xf32>
    %3590 = vector.shape_cast %3589 : vector<1x8x16xf32> to vector<8x16xf32>
    %3591 = vector.shape_cast %3516 : vector<8x16xf32> to vector<1x8x16xf32>
    tpu.vector_store %arg6[%c16_608, %c0_609, %c0_610], %3591 {strides = array<i32>} : memref<20x8x16xf32, #tpu.memory_space<vmem>>, vector<1x8x16xf32>,
    %c17_611 = arith.constant 17 : index
    %c0_612 = arith.constant 0 : index
    %c0_613 = arith.constant 0 : index
    %3592 = vector.load %arg6[%c17_611, %c0_612, %c0_613] : memref<20x8x16xf32, #tpu.memory_space<vmem>>, vector<1x8x16xf32>
    %3593 = vector.shape_cast %3592 : vector<1x8x16xf32> to vector<8x16xf32>
    %3594 = vector.shape_cast %3520 : vector<8x16xf32> to vector<1x8x16xf32>
    tpu.vector_store %arg6[%c17_611, %c0_612, %c0_613], %3594 {strides = array<i32>} : memref<20x8x16xf32, #tpu.memory_space<vmem>>, vector<1x8x16xf32>,
    %c18_614 = arith.constant 18 : index
    %c0_615 = arith.constant 0 : index
    %c0_616 = arith.constant 0 : index
    %3595 = vector.load %arg6[%c18_614, %c0_615, %c0_616] : memref<20x8x16xf32, #tpu.memory_space<vmem>>, vector<1x8x16xf32>
    %3596 = vector.shape_cast %3595 : vector<1x8x16xf32> to vector<8x16xf32>
    %3597 = vector.shape_cast %3524 : vector<8x16xf32> to vector<1x8x16xf32>
    tpu.vector_store %arg6[%c18_614, %c0_615, %c0_616], %3597 {strides = array<i32>} : memref<20x8x16xf32, #tpu.memory_space<vmem>>, vector<1x8x16xf32>,
    %c19_617 = arith.constant 19 : index
    %c0_618 = arith.constant 0 : index
    %c0_619 = arith.constant 0 : index
    %3598 = vector.load %arg6[%c19_617, %c0_618, %c0_619] : memref<20x8x16xf32, #tpu.memory_space<vmem>>, vector<1x8x16xf32>
    %3599 = vector.shape_cast %3598 : vector<1x8x16xf32> to vector<8x16xf32>
    %3600 = vector.shape_cast %3528 : vector<8x16xf32> to vector<1x8x16xf32>
    tpu.vector_store %arg6[%c19_617, %c0_618, %c0_619], %3600 {strides = array<i32>} : memref<20x8x16xf32, #tpu.memory_space<vmem>>, vector<1x8x16xf32>,
    %3601 = math.log %3540 : vector<8x16xf32>
    %cst_620 = arith.constant 0.000000e+00 : f32
    %3602 = vector.broadcast %cst_620 : f32 to vector<8x16xf32>
    %3603 = arith.subf %3602, %3601 : vector<8x16xf32>
    %c0_621 = arith.constant 0 : index
    %c0_622 = arith.constant 0 : index
    %3604 = vector.load %arg7[%c0_621, %c0_622] : memref<8x16xf32, #tpu.memory_space<vmem>>, vector<8x16xf32>
    tpu.vector_store %arg7[%c0_621, %c0_622], %3603 {strides = array<i32>} : memref<8x16xf32, #tpu.memory_space<vmem>>, vector<8x16xf32>,
    return
  }
  func.func @transform_0(%arg0: i32) -> i32 {
    %c0_i32 = arith.constant 0 : i32
    %c0_i32_0 = arith.constant 0 : i32
    return %c0_i32 : i32
  }
  func.func @transform_1(%arg0: i32) -> i32 {
    %c0_i32 = arith.constant 0 : i32
    %c0_i32_0 = arith.constant 0 : i32
    return %c0_i32 : i32
  }
  func.func @transform_2(%arg0: i32) -> i32 {
    %c0_i32 = arith.constant 0 : i32
    %c0_i32_0 = arith.constant 0 : i32
    return %c0_i32 : i32
  }
  func.func @transform_3(%arg0: i32) -> i32 {
    %c0_i32 = arith.constant 0 : i32
    %c0_i32_0 = arith.constant 0 : i32
    return %c0_i32 : i32
  }
  func.func @transform_4(%arg0: i32) -> (i32, i32, i32) {
    %c0_i32 = arith.constant 0 : i32
    %c0_i32_0 = arith.constant 0 : i32
    %c0_i32_1 = arith.constant 0 : i32
    return %c0_i32, %c0_i32_0, %arg0 : i32, i32, i32
  }
  func.func @transform_5(%arg0: i32) -> (i32, i32, i32) {
    %c0_i32 = arith.constant 0 : i32
    %c0_i32_0 = arith.constant 0 : i32
    %c0_i32_1 = arith.constant 0 : i32
    return %c0_i32, %c0_i32_0, %arg0 : i32, i32, i32
  }
  func.func @transform_6(%arg0: i32) -> (i32, i32) {
    %c0_i32 = arith.constant 0 : i32
    %c0_i32_0 = arith.constant 0 : i32
    return %c0_i32, %arg0 : i32, i32
  }
}

</mosaic_0001>

<llo_original>
// kernel: tpu_custom_call.1
$region0: #{tpu_custom_call.1}
  #allocation0 [shape = 'u32[]', space=smem, size = 0x4, offset = 0x4, fixed_abs, tag = 'smem constant byte address 0x4 - core index']
  #allocation1 [shape = 'u32[72,128]{1,0:T(1,128)}', space=vmem, size = 0x9000, scoped, tag = 'internal scratch']
  %s0 = inlined_call_operand.vmem [shape: f32[20], index: 0, kind: input, shape index: {}]
  %s1 = inlined_call_operand.vmem [shape: f32[20], index: 1, kind: input, shape index: {}]
  %s2 = inlined_call_operand.vmem [shape: f32[400], index: 2, kind: input, shape index: {}]
  %s3 = inlined_call_operand.vmem [shape: f32[400], index: 3, kind: input, shape index: {}]
  %s4 = inlined_call_operand.vmem [shape: f32[20,8,16], index: 4, kind: input, shape index: {}]
  %s5 = inlined_call_operand.vmem [shape: f32[20,8,16], index: 5, kind: output, shape index: {0}]
  %s6 = inlined_call_operand.hbm [shape: f32[8,16], index: 6, kind: output, shape index: {1}]
  %7 = xla_tuple %s5, %s6
  %s8 = sld [smem:[#allocation0]]
  $region54: #{tpu_custom_call.1} parent=0
    _
  %s10 = ssub.s32 1, %s8
  %s11 = scalar_select 0, %s10, %s8
  $region1: #{tpu_custom_call.1} parent=0
    #allocation2 [shape = 'u8[512]{0}', space=smem, size = 0x200, scoped, tag = 'input window, operand 0, single buffered']
    #allocation3 [shape = 's32[1]{0}', space=sflag, size = 0x4, scoped, tag = 'scoped memory for tpu_custom_call.1']
    #allocation4 [shape = 's32[1]{0}', space=sflag, size = 0x4, scoped, tag = 'scoped memory for tpu_custom_call.1']
    #allocation5 [shape = 'u8[512]{0}', space=smem, size = 0x200, scoped, tag = 'input window, operand 1, single buffered']
    #allocation6 [shape = 's32[1]{0}', space=sflag, size = 0x4, scoped, tag = 'scoped memory for tpu_custom_call.1']
    #allocation7 [shape = 'u8[2048]{0}', space=smem, size = 0x800, scoped, tag = 'input window, operand 2, single buffered']
    #allocation8 [shape = 'u8[2048]{0}', space=smem, size = 0x800, scoped, tag = 'input window, operand 3, single buffered']
    #allocation9 [shape = 's32[1]{0}', space=sflag, size = 0x4, scoped, tag = 'scoped memory for tpu_custom_call.1']
    #allocation10 [shape = 'u8[4096]{0}', space=vmem, size = 0x1000, scoped, tag = 'output window, operand 1, single buffered']
    %12 = vsyncpa [#allocation4], 0
    %13 = vsyncpa [#allocation6], 0
    %14 = vsyncpa [#allocation9], 0
    %15 = vsyncpa [#allocation3], 0
    // Predicated region
    $region2: #{tpu_custom_call.1} parent=1 // pred_check
      _
    $region3: #{tpu_custom_call.1} parent=1 // pred_check_branch
      %17 = sbr.rel (0) target = $region5
    $region4: #{tpu_custom_call.1} parent=1 // pred_region
      %19 = vsyncadd [#allocation4], 0
      %s21 = sshll.u32 %s0, 4
      %s22 = int_to_ptr.vmem [resolvable:$true] %s21
      %24 = dma.vmem_to_smem %s22, 16, [#allocation2], [#allocation4]
    $region5: #{tpu_custom_call.1} parent=1 // pred_fallthru
      _
    // Predicated region
    $region6: #{tpu_custom_call.1} parent=1 // pred_check
      _
    $region7: #{tpu_custom_call.1} parent=1 // pred_check_branch
      %26 = sbr.rel (0) target = $region9
    $region8: #{tpu_custom_call.1} parent=1 // pred_region
      %28 = vsyncadd [#allocation6], 0
      %s30 = sshll.u32 %s1, 4
      %s31 = int_to_ptr.vmem [resolvable:$true] %s30
      %33 = dma.vmem_to_smem %s31, 16, [#allocation5], [#allocation6]
    $region9: #{tpu_custom_call.1} parent=1 // pred_fallthru
      _
    // Predicated region
    $region10: #{tpu_custom_call.1} parent=1 // pred_check
      _
    $region11: #{tpu_custom_call.1} parent=1 // pred_check_branch
      %35 = sbr.rel (0) target = $region13
    $region12: #{tpu_custom_call.1} parent=1 // pred_region
      %37 = vsyncadd [#allocation6], 0
      %s39 = sshll.u32 %s2, 4
      %s40 = int_to_ptr.vmem [resolvable:$true] %s39
      %42 = dma.vmem_to_smem %s40, 64, [#allocation7], [#allocation6]
    $region13: #{tpu_custom_call.1} parent=1 // pred_fallthru
      _
    // Predicated region
    $region14: #{tpu_custom_call.1} parent=1 // pred_check
      _
    $region15: #{tpu_custom_call.1} parent=1 // pred_check_branch
      %44 = sbr.rel (0) target = $region17
    $region16: #{tpu_custom_call.1} parent=1 // pred_region
      %46 = vsyncadd [#allocation9], 0
      %s48 = sshll.u32 %s3, 4
      %s49 = int_to_ptr.vmem [resolvable:$true] %s48
      %51 = dma.vmem_to_smem %s49, 64, [#allocation8], [#allocation9]
    $region17: #{tpu_custom_call.1} parent=1 // pred_fallthru
      _
    // Predicated region
    $region18: #{tpu_custom_call.1} parent=1 // pred_check
      _
    $region19: #{tpu_custom_call.1} parent=1 // pred_check_branch
      %53 = sbr.rel (0) target = $region21
    $region20: #{tpu_custom_call.1} parent=1 // pred_region
      _
    $region21: #{tpu_custom_call.1} parent=1 // pred_fallthru
      _
    // Predicated region
    $region22: #{tpu_custom_call.1} parent=1 // pred_check
      _
    $region23: #{tpu_custom_call.1} parent=1 // pred_check_branch
      %55 = sbr.rel (0) target = $region25
    $region24: #{tpu_custom_call.1} parent=1 // pred_region
      %57 = dma.done [#allocation4], 16
    $region25: #{tpu_custom_call.1} parent=1 // pred_fallthru
      _
    // Predicated region
    $region26: #{tpu_custom_call.1} parent=1 // pred_check
      _
    $region27: #{tpu_custom_call.1} parent=1 // pred_check_branch
      %59 = sbr.rel (0) target = $region29
    $region28: #{tpu_custom_call.1} parent=1 // pred_region
      %61 = dma.done [#allocation6], 16
    $region29: #{tpu_custom_call.1} parent=1 // pred_fallthru
      _
    // Predicated region
    $region30: #{tpu_custom_call.1} parent=1 // pred_check
      _
    $region31: #{tpu_custom_call.1} parent=1 // pred_check_branch
      %63 = sbr.rel (0) target = $region33
    $region32: #{tpu_custom_call.1} parent=1 // pred_region
      %65 = dma.done [#allocation6], 64
    $region33: #{tpu_custom_call.1} parent=1 // pred_fallthru
      _
    // Predicated region
    $region34: #{tpu_custom_call.1} parent=1 // pred_check
      _
    $region35: #{tpu_custom_call.1} parent=1 // pred_check_branch
      %67 = sbr.rel (0) target = $region37
    $region36: #{tpu_custom_call.1} parent=1 // pred_region
      %69 = dma.done [#allocation9], 64
    $region37: #{tpu_custom_call.1} parent=1 // pred_fallthru
      _
    %70 = sfence
    %v71 = vld [vmem:[%s4] sm:$0xff]
    %s72 = scalar_lea.vmem %s4, 8
    %v73 = vld [vmem:[%s72] sm:$0xff]
    %s74 = scalar_lea.vmem %s4, 16
    %v75 = vld [vmem:[%s74] sm:$0xff]
    %s76 = scalar_lea.vmem %s4, 24
    %v77 = vld [vmem:[%s76] sm:$0xff]
    %s78 = scalar_lea.vmem %s4, 32
    %v79 = vld [vmem:[%s78] sm:$0xff]
    %s80 = scalar_lea.vmem %s4, 40
    %v81 = vld [vmem:[%s80] sm:$0xff]
    %s82 = scalar_lea.vmem %s4, 48
    %v83 = vld [vmem:[%s82] sm:$0xff]
    %s84 = scalar_lea.vmem %s4, 56
    %v85 = vld [vmem:[%s84] sm:$0xff]
    %s86 = scalar_lea.vmem %s4, 64
    %v87 = vld [vmem:[%s86] sm:$0xff]
    %s88 = scalar_lea.vmem %s4, 72
    %v89 = vld [vmem:[%s88] sm:$0xff]
    %s90 = scalar_lea.vmem %s4, 80
    %v91 = vld [vmem:[%s90] sm:$0xff]
    %s92 = scalar_lea.vmem %s4, 88
    %v93 = vld [vmem:[%s92] sm:$0xff]
    %s94 = scalar_lea.vmem %s4, 96
    %v95 = vld [vmem:[%s94] sm:$0xff]
    %s96 = scalar_lea.vmem %s4, 104
    %v97 = vld [vmem:[%s96] sm:$0xff]
    %s98 = scalar_lea.vmem %s4, 112
    %v99 = vld [vmem:[%s98] sm:$0xff]
    %s100 = scalar_lea.vmem %s4, 120
    %v101 = vld [vmem:[%s100] sm:$0xff]
    %s102 = scalar_lea.vmem %s4, 128
    %v103 = vld [vmem:[%s102] sm:$0xff]
    %s104 = scalar_lea.vmem %s4, 136
    %v105 = vld [vmem:[%s104] sm:$0xff]
    %s106 = scalar_lea.vmem %s4, 144
    %v107 = vld [vmem:[%s106] sm:$0xff]
    %s108 = scalar_lea.vmem %s4, 152
    %v109 = vld [vmem:[%s108] sm:$0xff]
    %s110 = sld [smem:[#allocation7]]
    %v111 = vstv %s110
    %v112 = vmul.f32 %v71, %v111
    %s113 = sld [smem:[#allocation7 + $0x1]]
    %v114 = vstv %s113
    %v115 = vmul.f32 %v73, %v114
    %s116 = sld [smem:[#allocation7 + $0x2]]
    %v117 = vstv %s116
    %v118 = vmul.f32 %v75, %v117
    %s119 = sld [smem:[#allocation7 + $0x3]]
    %v120 = vstv %s119
    %v121 = vmul.f32 %v77, %v120
    %s122 = sld [smem:[#allocation7 + $0x4]]
    %v123 = vstv %s122
    %v124 = vmul.f32 %v79, %v123
    %s125 = sld [smem:[#allocation7 + $0x5]]
    %v126 = vstv %s125
    %v127 = vmul.f32 %v81, %v126
    %s128 = sld [smem:[#allocation7 + $0x6]]
    %v129 = vstv %s128
    %v130 = vmul.f32 %v83, %v129
    %s131 = sld [smem:[#allocation7 + $0x7]]
    %v132 = vstv %s131
    %v133 = vmul.f32 %v85, %v132
    %s134 = sld [smem:[#allocation7 + $0x8]]
    %v135 = vstv %s134
    %v136 = vmul.f32 %v87, %v135
    %s137 = sld [smem:[#allocation7 + $0x9]]
    %v138 = vstv %s137
    %v139 = vmul.f32 %v89, %v138
    %s140 = sld [smem:[#allocation7 + $0xa]]
    %v141 = vstv %s140
    %v142 = vmul.f32 %v91, %v141
    %s143 = sld [smem:[#allocation7 + $0xb]]
    %v144 = vstv %s143
    %v145 = vmul.f32 %v93, %v144
    %s146 = sld [smem:[#allocation7 + $0xc]]
    %v147 = vstv %s146
    %v148 = vmul.f32 %v95, %v147
    %s149 = sld [smem:[#allocation7 + $0xd]]
    %v150 = vstv %s149
    %v151 = vmul.f32 %v97, %v150
    %s152 = sld [smem:[#allocation7 + $0xe]]
    %v153 = vstv %s152
    %v154 = vmul.f32 %v99, %v153
    %s155 = sld [smem:[#allocation7 + $0xf]]
    %v156 = vstv %s155
    %v157 = vmul.f32 %v101, %v156
    %s158 = sld [smem:[#allocation7 + $0x10]]
    %v159 = vstv %s158
    %v160 = vmul.f32 %v103, %v159
    %s161 = sld [smem:[#allocation7 + $0x11]]
    %v162 = vstv %s161
    %v163 = vmul.f32 %v105, %v162
    %s164 = sld [smem:[#allocation7 + $0x12]]
    %v165 = vstv %s164
    %v166 = vmul.f32 %v107, %v165
    %s167 = sld [smem:[#allocation7 + $0x13]]
    %v168 = vstv %s167
    %v169 = vmul.f32 %v109, %v168
    %v170 = vadd.f32 %v112, %v115
    %v171 = vadd.f32 %v118, %v121
    %v172 = vadd.f32 %v124, %v127
    %v173 = vadd.f32 %v130, %v133
    %v174 = vadd.f32 %v136, %v139
    %v175 = vadd.f32 %v142, %v145
    %v176 = vadd.f32 %v148, %v151
    %v177 = vadd.f32 %v154, %v157
    %v178 = vadd.f32 %v160, %v163
    %v179 = vadd.f32 %v166, %v169
    %v180 = vadd.f32 %v170, %v171
    %v181 = vadd.f32 %v172, %v173
    %v182 = vadd.f32 %v174, %v175
    %v183 = vadd.f32 %v176, %v177
    %v184 = vadd.f32 %v178, %v179
    %v185 = vadd.f32 %v180, %v181
    %v186 = vadd.f32 %v182, %v183
    %v187 = vadd.f32 %v185, %v186
    %v188 = vadd.f32 %v187, %v184
    %s189 = sld [smem:[#allocation2]]
    %v190 = vstv %s189
    %v191 = vadd.f32 %v188, %v190
    %v192 = vtanh.pop %v191
    %s193 = sld [smem:[#allocation8]]
    %v194 = vstv %s193
    %v195 = vmul.f32 %v192, %v194
    %v196 = vadd.f32 %v71, %v195
    %s197 = sld [smem:[#allocation8 + $0x1]]
    %v198 = vstv %s197
    %v199 = vmul.f32 %v192, %v198
    %v200 = vadd.f32 %v73, %v199
    %s201 = sld [smem:[#allocation8 + $0x2]]
    %v202 = vstv %s201
    %v203 = vmul.f32 %v192, %v202
    %v204 = vadd.f32 %v75, %v203
    %s205 = sld [smem:[#allocation8 + $0x3]]
    %v206 = vstv %s205
    %v207 = vmul.f32 %v192, %v206
    %v208 = vadd.f32 %v77, %v207
    %s209 = sld [smem:[#allocation8 + $0x4]]
    %v210 = vstv %s209
    %v211 = vmul.f32 %v192, %v210
    %v212 = vadd.f32 %v79, %v211
    %s213 = sld [smem:[#allocation8 + $0x5]]
    %v214 = vstv %s213
    %v215 = vmul.f32 %v192, %v214
    %v216 = vadd.f32 %v81, %v215
    %s217 = sld [smem:[#allocation8 + $0x6]]
    %v218 = vstv %s217
    %v219 = vmul.f32 %v192, %v218
    %v220 = vadd.f32 %v83, %v219
    %s221 = sld [smem:[#allocation8 + $0x7]]
    %v222 = vstv %s221
    %v223 = vmul.f32 %v192, %v222
    %v224 = vadd.f32 %v85, %v223
    %s225 = sld [smem:[#allocation8 + $0x8]]
    %v226 = vstv %s225
    %v227 = vmul.f32 %v192, %v226
    %v228 = vadd.f32 %v87, %v227
    %s229 = sld [smem:[#allocation8 + $0x9]]
    %v230 = vstv %s229
    %v231 = vmul.f32 %v192, %v230
    %v232 = vadd.f32 %v89, %v231
    %s233 = sld [smem:[#allocation8 + $0xa]]
    %v234 = vstv %s233
    %v235 = vmul.f32 %v192, %v234
    %v236 = vadd.f32 %v91, %v235
    %s237 = sld [smem:[#allocation8 + $0xb]]
    %v238 = vstv %s237
    %v239 = vmul.f32 %v192, %v238
    %v240 = vadd.f32 %v93, %v239
    %s241 = sld [smem:[#allocation8 + $0xc]]
    %v242 = vstv %s241
    %v243 = vmul.f32 %v192, %v242
    %v244 = vadd.f32 %v95, %v243
    %s245 = sld [smem:[#allocation8 + $0xd]]
    %v246 = vstv %s245
    %v247 = vmul.f32 %v192, %v246
    %v248 = vadd.f32 %v97, %v247
    %s249 = sld [smem:[#allocation8 + $0xe]]
    %v250 = vstv %s249
    %v251 = vmul.f32 %v192, %v250
    %v252 = vadd.f32 %v99, %v251
    %s253 = sld [smem:[#allocation8 + $0xf]]
    %v254 = vstv %s253
    %v255 = vmul.f32 %v192, %v254
    %v256 = vadd.f32 %v101, %v255
    %s257 = sld [smem:[#allocation8 + $0x10]]
    %v258 = vstv %s257
    %v259 = vmul.f32 %v192, %v258
    %v260 = vadd.f32 %v103, %v259
    %s261 = sld [smem:[#allocation8 + $0x11]]
    %v262 = vstv %s261
    %v263 = vmul.f32 %v192, %v262
    %v264 = vadd.f32 %v105, %v263
    %s265 = sld [smem:[#allocation8 + $0x12]]
    %v266 = vstv %s265
    %v267 = vmul.f32 %v192, %v266
    %v268 = vadd.f32 %v107, %v267
    %s269 = sld [smem:[#allocation8 + $0x13]]
    %v270 = vstv %s269
    %v271 = vmul.f32 %v192, %v270
    %v272 = vadd.f32 %v109, %v271
    %v273 = vmul.f32 %v192, %v192
    %v274 = vsub.f32 1.0, %v273
    %s275 = sld [smem:[#allocation5]]
    %v276 = vstv %s275
    %v277 = vmul.f32 %v274, %v276
    %v278 = vadd.f32 %v277, 1.0
    %v279 = vand.u32 2147483647, %v278
    %v280 = vadd.f32 %v279, 1e-08
    %s281 = sld [smem:[#allocation7 + $0x14]]
    %v282 = vstv %s281
    %v283 = vmul.f32 %v196, %v282
    %s284 = sld [smem:[#allocation7 + $0x15]]
    %v285 = vstv %s284
    %v286 = vmul.f32 %v200, %v285
    %s287 = sld [smem:[#allocation7 + $0x16]]
    %v288 = vstv %s287
    %v289 = vmul.f32 %v204, %v288
    %s290 = sld [smem:[#allocation7 + $0x17]]
    %v291 = vstv %s290
    %v292 = vmul.f32 %v208, %v291
    %s293 = sld [smem:[#allocation7 + $0x18]]
    %v294 = vstv %s293
    %v295 = vmul.f32 %v212, %v294
    %s296 = sld [smem:[#allocation7 + $0x19]]
    %v297 = vstv %s296
    %v298 = vmul.f32 %v216, %v297
    %s299 = sld [smem:[#allocation7 + $0x1a]]
    %v300 = vstv %s299
    %v301 = vmul.f32 %v220, %v300
    %s302 = sld [smem:[#allocation7 + $0x1b]]
    %v303 = vstv %s302
    %v304 = vmul.f32 %v224, %v303
    %s305 = sld [smem:[#allocation7 + $0x1c]]
    %v306 = vstv %s305
    %v307 = vmul.f32 %v228, %v306
    %s308 = sld [smem:[#allocation7 + $0x1d]]
    %v309 = vstv %s308
    %v310 = vmul.f32 %v232, %v309
    %s311 = sld [smem:[#allocation7 + $0x1e]]
    %v312 = vstv %s311
    %v313 = vmul.f32 %v236, %v312
    %s314 = sld [smem:[#allocation7 + $0x1f]]
    %v315 = vstv %s314
    %v316 = vmul.f32 %v240, %v315
    %s317 = sld [smem:[#allocation7 + $0x20]]
    %v318 = vstv %s317
    %v319 = vmul.f32 %v244, %v318
    %s320 = sld [smem:[#allocation7 + $0x21]]
    %v321 = vstv %s320
    %v322 = vmul.f32 %v248, %v321
    %s323 = sld [smem:[#allocation7 + $0x22]]
    %v324 = vstv %s323
    %v325 = vmul.f32 %v252, %v324
    %s326 = sld [smem:[#allocation7 + $0x23]]
    %v327 = vstv %s326
    %v328 = vmul.f32 %v256, %v327
    %s329 = sld [smem:[#allocation7 + $0x24]]
    %v330 = vstv %s329
    %v331 = vmul.f32 %v260, %v330
    %s332 = sld [smem:[#allocation7 + $0x25]]
    %v333 = vstv %s332
    %v334 = vmul.f32 %v264, %v333
    %s335 = sld [smem:[#allocation7 + $0x26]]
    %v336 = vstv %s335
    %v337 = vmul.f32 %v268, %v336
    %s338 = sld [smem:[#allocation7 + $0x27]]
    %v339 = vstv %s338
    %v340 = vmul.f32 %v272, %v339
    %v341 = vadd.f32 %v283, %v286
    %v342 = vadd.f32 %v289, %v292
    %v343 = vadd.f32 %v295, %v298
    %v344 = vadd.f32 %v301, %v304
    %v345 = vadd.f32 %v307, %v310
    %v346 = vadd.f32 %v313, %v316
    %v347 = vadd.f32 %v319, %v322
    %v348 = vadd.f32 %v325, %v328
    %v349 = vadd.f32 %v331, %v334
    %v350 = vadd.f32 %v337, %v340
    %v351 = vadd.f32 %v341, %v342
    %v352 = vadd.f32 %v343, %v344
    %v353 = vadd.f32 %v345, %v346
    %v354 = vadd.f32 %v347, %v348
    %v355 = vadd.f32 %v349, %v350
    %v356 = vadd.f32 %v351, %v352
    %v357 = vadd.f32 %v353, %v354
    %v358 = vadd.f32 %v356, %v357
    %v359 = vadd.f32 %v358, %v355
    %s360 = sld [smem:[#allocation2 + $0x1]]
    %v361 = vstv %s360
    %v362 = vadd.f32 %v359, %v361
    %v363 = vtanh.pop %v362
    %s364 = sld [smem:[#allocation8 + $0x14]]
    %v365 = vstv %s364
    %v366 = vmul.f32 %v363, %v365
    %v367 = vadd.f32 %v196, %v366
    %s368 = sld [smem:[#allocation8 + $0x15]]
    %v369 = vstv %s368
    %v370 = vmul.f32 %v363, %v369
    %v371 = vadd.f32 %v200, %v370
    %s372 = sld [smem:[#allocation8 + $0x16]]
    %v373 = vstv %s372
    %v374 = vmul.f32 %v363, %v373
    %v375 = vadd.f32 %v204, %v374
    %s376 = sld [smem:[#allocation8 + $0x17]]
    %v377 = vstv %s376
    %v378 = vmul.f32 %v363, %v377
    %v379 = vadd.f32 %v208, %v378
    %s380 = sld [smem:[#allocation8 + $0x18]]
    %v381 = vstv %s380
    %v382 = vmul.f32 %v363, %v381
    %v383 = vadd.f32 %v212, %v382
    %s384 = sld [smem:[#allocation8 + $0x19]]
    %v385 = vstv %s384
    %v386 = vmul.f32 %v363, %v385
    %v387 = vadd.f32 %v216, %v386
    %s388 = sld [smem:[#allocation8 + $0x1a]]
    %v389 = vstv %s388
    %v390 = vmul.f32 %v363, %v389
    %v391 = vadd.f32 %v220, %v390
    %s392 = sld [smem:[#allocation8 + $0x1b]]
    %v393 = vstv %s392
    %v394 = vmul.f32 %v363, %v393
    %v395 = vadd.f32 %v224, %v394
    %s396 = sld [smem:[#allocation8 + $0x1c]]
    %v397 = vstv %s396
    %v398 = vmul.f32 %v363, %v397
    %v399 = vadd.f32 %v228, %v398
    %s400 = sld [smem:[#allocation8 + $0x1d]]
    %v401 = vstv %s400
    %v402 = vmul.f32 %v363, %v401
    %v403 = vadd.f32 %v232, %v402
    %s404 = sld [smem:[#allocation8 + $0x1e]]
    %v405 = vstv %s404
    %v406 = vmul.f32 %v363, %v405
    %v407 = vadd.f32 %v236, %v406
    %s408 = sld [smem:[#allocation8 + $0x1f]]
    %v409 = vstv %s408
    %v410 = vmul.f32 %v363, %v409
    %v411 = vadd.f32 %v240, %v410
    %s412 = sld [smem:[#allocation8 + $0x20]]
    %v413 = vstv %s412
    %v414 = vmul.f32 %v363, %v413
    %v415 = vadd.f32 %v244, %v414
    %s416 = sld [smem:[#allocation8 + $0x21]]
    %v417 = vstv %s416
    %v418 = vmul.f32 %v363, %v417
    %v419 = vadd.f32 %v248, %v418
    %s420 = sld [smem:[#allocation8 + $0x22]]
    %v421 = vstv %s420
    %v422 = vmul.f32 %v363, %v421
    %v423 = vadd.f32 %v252, %v422
    %s424 = sld [smem:[#allocation8 + $0x23]]
    %v425 = vstv %s424
    %v426 = vmul.f32 %v363, %v425
    %v427 = vadd.f32 %v256, %v426
    %s428 = sld [smem:[#allocation8 + $0x24]]
    %v429 = vstv %s428
    %v430 = vmul.f32 %v363, %v429
    %v431 = vadd.f32 %v260, %v430
    %s432 = sld [smem:[#allocation8 + $0x25]]
    %v433 = vstv %s432
    %v434 = vmul.f32 %v363, %v433
    %v435 = vadd.f32 %v264, %v434
    %s436 = sld [smem:[#allocation8 + $0x26]]
    %v437 = vstv %s436
    %v438 = vmul.f32 %v363, %v437
    %v439 = vadd.f32 %v268, %v438
    %s440 = sld [smem:[#allocation8 + $0x27]]
    %v441 = vstv %s440
    %v442 = vmul.f32 %v363, %v441
    %v443 = vadd.f32 %v272, %v442
    %v444 = vmul.f32 %v363, %v363
    %v445 = vsub.f32 1.0, %v444
    %s446 = sld [smem:[#allocation5 + $0x1]]
    %v447 = vstv %s446
    %v448 = vmul.f32 %v445, %v447
    %v449 = vadd.f32 %v448, 1.0
    %v450 = vand.u32 2147483647, %v449
    %v451 = vadd.f32 %v450, 1e-08
    %v452 = vmul.f32 %v280, %v451
    %s453 = sld [smem:[#allocation7 + $0x28]]
    %v454 = vstv %s453
    %v455 = vmul.f32 %v367, %v454
    %s456 = sld [smem:[#allocation7 + $0x29]]
    %v457 = vstv %s456
    %v458 = vmul.f32 %v371, %v457
    %s459 = sld [smem:[#allocation7 + $0x2a]]
    %v460 = vstv %s459
    %v461 = vmul.f32 %v375, %v460
    %s462 = sld [smem:[#allocation7 + $0x2b]]
    %v463 = vstv %s462
    %v464 = vmul.f32 %v379, %v463
    %s465 = sld [smem:[#allocation7 + $0x2c]]
    %v466 = vstv %s465
    %v467 = vmul.f32 %v383, %v466
    %s468 = sld [smem:[#allocation7 + $0x2d]]
    %v469 = vstv %s468
    %v470 = vmul.f32 %v387, %v469
    %s471 = sld [smem:[#allocation7 + $0x2e]]
    %v472 = vstv %s471
    %v473 = vmul.f32 %v391, %v472
    %s474 = sld [smem:[#allocation7 + $0x2f]]
    %v475 = vstv %s474
    %v476 = vmul.f32 %v395, %v475
    %s477 = sld [smem:[#allocation7 + $0x30]]
    %v478 = vstv %s477
    %v479 = vmul.f32 %v399, %v478
    %s480 = sld [smem:[#allocation7 + $0x31]]
    %v481 = vstv %s480
    %v482 = vmul.f32 %v403, %v481
    %s483 = sld [smem:[#allocation7 + $0x32]]
    %v484 = vstv %s483
    %v485 = vmul.f32 %v407, %v484
    %s486 = sld [smem:[#allocation7 + $0x33]]
    %v487 = vstv %s486
    %v488 = vmul.f32 %v411, %v487
    %s489 = sld [smem:[#allocation7 + $0x34]]
    %v490 = vstv %s489
    %v491 = vmul.f32 %v415, %v490
    %s492 = sld [smem:[#allocation7 + $0x35]]
    %v493 = vstv %s492
    %v494 = vmul.f32 %v419, %v493
    %s495 = sld [smem:[#allocation7 + $0x36]]
    %v496 = vstv %s495
    %v497 = vmul.f32 %v423, %v496
    %s498 = sld [smem:[#allocation7 + $0x37]]
    %v499 = vstv %s498
    %v500 = vmul.f32 %v427, %v499
    %s501 = sld [smem:[#allocation7 + $0x38]]
    %v502 = vstv %s501
    %v503 = vmul.f32 %v431, %v502
    %s504 = sld [smem:[#allocation7 + $0x39]]
    %v505 = vstv %s504
    %v506 = vmul.f32 %v435, %v505
    %s507 = sld [smem:[#allocation7 + $0x3a]]
    %v508 = vstv %s507
    %v509 = vmul.f32 %v439, %v508
    %s510 = sld [smem:[#allocation7 + $0x3b]]
    %v511 = vstv %s510
    %v512 = vmul.f32 %v443, %v511
    %v513 = vadd.f32 %v455, %v458
    %v514 = vadd.f32 %v461, %v464
    %v515 = vadd.f32 %v467, %v470
    %v516 = vadd.f32 %v473, %v476
    %v517 = vadd.f32 %v479, %v482
    %v518 = vadd.f32 %v485, %v488
    %v519 = vadd.f32 %v491, %v494
    %v520 = vadd.f32 %v497, %v500
    %v521 = vadd.f32 %v503, %v506
    %v522 = vadd.f32 %v509, %v512
    %v523 = vadd.f32 %v513, %v514
    %v524 = vadd.f32 %v515, %v516
    %v525 = vadd.f32 %v517, %v518
    %v526 = vadd.f32 %v519, %v520
    %v527 = vadd.f32 %v521, %v522
    %v528 = vadd.f32 %v523, %v524
    %v529 = vadd.f32 %v525, %v526
    %v530 = vadd.f32 %v528, %v529
    %v531 = vadd.f32 %v530, %v527
    %s532 = sld [smem:[#allocation2 + $0x2]]
    %v533 = vstv %s532
    %v534 = vadd.f32 %v531, %v533
    %v535 = vtanh.pop %v534
    %s536 = sld [smem:[#allocation8 + $0x28]]
    %v537 = vstv %s536
    %v538 = vmul.f32 %v535, %v537
    %v539 = vadd.f32 %v367, %v538
    %s540 = sld [smem:[#allocation8 + $0x29]]
    %v541 = vstv %s540
    %v542 = vmul.f32 %v535, %v541
    %v543 = vadd.f32 %v371, %v542
    %s544 = sld [smem:[#allocation8 + $0x2a]]
    %v545 = vstv %s544
    %v546 = vmul.f32 %v535, %v545
    %v547 = vadd.f32 %v375, %v546
    %s548 = sld [smem:[#allocation8 + $0x2b]]
    %v549 = vstv %s548
    %v550 = vmul.f32 %v535, %v549
    %v551 = vadd.f32 %v379, %v550
    %s552 = sld [smem:[#allocation8 + $0x2c]]
    %v553 = vstv %s552
    %v554 = vmul.f32 %v535, %v553
    %v555 = vadd.f32 %v383, %v554
    %s556 = sld [smem:[#allocation8 + $0x2d]]
    %v557 = vstv %s556
    %v558 = vmul.f32 %v535, %v557
    %v559 = vadd.f32 %v387, %v558
    %s560 = sld [smem:[#allocation8 + $0x2e]]
    %v561 = vstv %s560
    %v562 = vmul.f32 %v535, %v561
    %v563 = vadd.f32 %v391, %v562
    %s564 = sld [smem:[#allocation8 + $0x2f]]
    %v565 = vstv %s564
    %v566 = vmul.f32 %v535, %v565
    %v567 = vadd.f32 %v395, %v566
    %s568 = sld [smem:[#allocation8 + $0x30]]
    %v569 = vstv %s568
    %v570 = vmul.f32 %v535, %v569
    %v571 = vadd.f32 %v399, %v570
    %s572 = sld [smem:[#allocation8 + $0x31]]
    %v573 = vstv %s572
    %v574 = vmul.f32 %v535, %v573
    %v575 = vadd.f32 %v403, %v574
    %s576 = sld [smem:[#allocation8 + $0x32]]
    %v577 = vstv %s576
    %v578 = vmul.f32 %v535, %v577
    %v579 = vadd.f32 %v407, %v578
    %s580 = sld [smem:[#allocation8 + $0x33]]
    %v581 = vstv %s580
    %v582 = vmul.f32 %v535, %v581
    %v583 = vadd.f32 %v411, %v582
    %s584 = sld [smem:[#allocation8 + $0x34]]
    %v585 = vstv %s584
    %v586 = vmul.f32 %v535, %v585
    %v587 = vadd.f32 %v415, %v586
    %s588 = sld [smem:[#allocation8 + $0x35]]
    %v589 = vstv %s588
    %v590 = vmul.f32 %v535, %v589
    %v591 = vadd.f32 %v419, %v590
    %s592 = sld [smem:[#allocation8 + $0x36]]
    %v593 = vstv %s592
    %v594 = vmul.f32 %v535, %v593
    %v595 = vadd.f32 %v423, %v594
    %s596 = sld [smem:[#allocation8 + $0x37]]
    %v597 = vstv %s596
    %v598 = vmul.f32 %v535, %v597
    %v599 = vadd.f32 %v427, %v598
    %s600 = sld [smem:[#allocation8 + $0x38]]
    %v601 = vstv %s600
    %v602 = vmul.f32 %v535, %v601
    %v603 = vadd.f32 %v431, %v602
    %s604 = sld [smem:[#allocation8 + $0x39]]
    %v605 = vstv %s604
    %v606 = vmul.f32 %v535, %v605
    %v607 = vadd.f32 %v435, %v606
    %s608 = sld [smem:[#allocation8 + $0x3a]]
    %v609 = vstv %s608
    %v610 = vmul.f32 %v535, %v609
    %v611 = vadd.f32 %v439, %v610
    %s612 = sld [smem:[#allocation8 + $0x3b]]
    %v613 = vstv %s612
    %v614 = vmul.f32 %v535, %v613
    %v615 = vadd.f32 %v443, %v614
    %v616 = vmul.f32 %v535, %v535
    %v617 = vsub.f32 1.0, %v616
    %s618 = sld [smem:[#allocation5 + $0x2]]
    %v619 = vstv %s618
    %v620 = vmul.f32 %v617, %v619
    %v621 = vadd.f32 %v620, 1.0
    %v622 = vand.u32 2147483647, %v621
    %v623 = vadd.f32 %v622, 1e-08
    %v624 = vmul.f32 %v452, %v623
    %s625 = sld [smem:[#allocation7 + $0x3c]]
    %v626 = vstv %s625
    %v627 = vmul.f32 %v539, %v626
    %s628 = sld [smem:[#allocation7 + $0x3d]]
    %v629 = vstv %s628
    %v630 = vmul.f32 %v543, %v629
    %s631 = sld [smem:[#allocation7 + $0x3e]]
    %v632 = vstv %s631
    %v633 = vmul.f32 %v547, %v632
    %s634 = sld [smem:[#allocation7 + $0x3f]]
    %v635 = vstv %s634
    %v636 = vmul.f32 %v551, %v635
    %s637 = sld [smem:[#allocation7 + $0x40]]
    %v638 = vstv %s637
    %v639 = vmul.f32 %v555, %v638
    %s640 = sld [smem:[#allocation7 + $0x41]]
    %v641 = vstv %s640
    %v642 = vmul.f32 %v559, %v641
    %s643 = sld [smem:[#allocation7 + $0x42]]
    %v644 = vstv %s643
    %v645 = vmul.f32 %v563, %v644
    %s646 = sld [smem:[#allocation7 + $0x43]]
    %v647 = vstv %s646
    %v648 = vmul.f32 %v567, %v647
    %s649 = sld [smem:[#allocation7 + $0x44]]
    %v650 = vstv %s649
    %v651 = vmul.f32 %v571, %v650
    %s652 = sld [smem:[#allocation7 + $0x45]]
    %v653 = vstv %s652
    %v654 = vmul.f32 %v575, %v653
    %s655 = sld [smem:[#allocation7 + $0x46]]
    %v656 = vstv %s655
    %v657 = vmul.f32 %v579, %v656
    %s658 = sld [smem:[#allocation7 + $0x47]]
    %v659 = vstv %s658
    %v660 = vmul.f32 %v583, %v659
    %s661 = sld [smem:[#allocation7 + $0x48]]
    %v662 = vstv %s661
    %v663 = vmul.f32 %v587, %v662
    %s664 = sld [smem:[#allocation7 + $0x49]]
    %v665 = vstv %s664
    %v666 = vmul.f32 %v591, %v665
    %s667 = sld [smem:[#allocation7 + $0x4a]]
    %v668 = vstv %s667
    %v669 = vmul.f32 %v595, %v668
    %s670 = sld [smem:[#allocation7 + $0x4b]]
    %v671 = vstv %s670
    %v672 = vmul.f32 %v599, %v671
    %s673 = sld [smem:[#allocation7 + $0x4c]]
    %v674 = vstv %s673
    %v675 = vmul.f32 %v603, %v674
    %s676 = sld [smem:[#allocation7 + $0x4d]]
    %v677 = vstv %s676
    %v678 = vmul.f32 %v607, %v677
    %s679 = sld [smem:[#allocation7 + $0x4e]]
    %v680 = vstv %s679
    %v681 = vmul.f32 %v611, %v680
    %s682 = sld [smem:[#allocation7 + $0x4f]]
    %v683 = vstv %s682
    %v684 = vmul.f32 %v615, %v683
    %v685 = vadd.f32 %v627, %v630
    %v686 = vadd.f32 %v633, %v636
    %v687 = vadd.f32 %v639, %v642
    %v688 = vadd.f32 %v645, %v648
    %v689 = vadd.f32 %v651, %v654
    %v690 = vadd.f32 %v657, %v660
    %v691 = vadd.f32 %v663, %v666
    %v692 = vadd.f32 %v669, %v672
    %v693 = vadd.f32 %v675, %v678
    %v694 = vadd.f32 %v681, %v684
    %v695 = vadd.f32 %v685, %v686
    %v696 = vadd.f32 %v687, %v688
    %v697 = vadd.f32 %v689, %v690
    %v698 = vadd.f32 %v691, %v692
    %v699 = vadd.f32 %v693, %v694
    %v700 = vadd.f32 %v695, %v696
    %v701 = vadd.f32 %v697, %v698
    %v702 = vadd.f32 %v700, %v701
    %v703 = vadd.f32 %v702, %v699
    %s704 = sld [smem:[#allocation2 + $0x3]]
    %v705 = vstv %s704
    %v706 = vadd.f32 %v703, %v705
    %v707 = vtanh.pop %v706
    %s708 = sld [smem:[#allocation8 + $0x3c]]
    %v709 = vstv %s708
    %v710 = vmul.f32 %v707, %v709
    %v711 = vadd.f32 %v539, %v710
    %s712 = sld [smem:[#allocation8 + $0x3d]]
    %v713 = vstv %s712
    %v714 = vmul.f32 %v707, %v713
    %v715 = vadd.f32 %v543, %v714
    %s716 = sld [smem:[#allocation8 + $0x3e]]
    %v717 = vstv %s716
    %v718 = vmul.f32 %v707, %v717
    %v719 = vadd.f32 %v547, %v718
    %s720 = sld [smem:[#allocation8 + $0x3f]]
    %v721 = vstv %s720
    %v722 = vmul.f32 %v707, %v721
    %v723 = vadd.f32 %v551, %v722
    %s724 = sld [smem:[#allocation8 + $0x40]]
    %v725 = vstv %s724
    %v726 = vmul.f32 %v707, %v725
    %v727 = vadd.f32 %v555, %v726
    %s728 = sld [smem:[#allocation8 + $0x41]]
    %v729 = vstv %s728
    %v730 = vmul.f32 %v707, %v729
    %v731 = vadd.f32 %v559, %v730
    %s732 = sld [smem:[#allocation8 + $0x42]]
    %v733 = vstv %s732
    %v734 = vmul.f32 %v707, %v733
    %v735 = vadd.f32 %v563, %v734
    %s736 = sld [smem:[#allocation8 + $0x43]]
    %v737 = vstv %s736
    %v738 = vmul.f32 %v707, %v737
    %v739 = vadd.f32 %v567, %v738
    %s740 = sld [smem:[#allocation8 + $0x44]]
    %v741 = vstv %s740
    %v742 = vmul.f32 %v707, %v741
    %v743 = vadd.f32 %v571, %v742
    %s744 = sld [smem:[#allocation8 + $0x45]]
    %v745 = vstv %s744
    %v746 = vmul.f32 %v707, %v745
    %v747 = vadd.f32 %v575, %v746
    %s748 = sld [smem:[#allocation8 + $0x46]]
    %v749 = vstv %s748
    %v750 = vmul.f32 %v707, %v749
    %v751 = vadd.f32 %v579, %v750
    %s752 = sld [smem:[#allocation8 + $0x47]]
    %v753 = vstv %s752
    %v754 = vmul.f32 %v707, %v753
    %v755 = vadd.f32 %v583, %v754
    %s756 = sld [smem:[#allocation8 + $0x48]]
    %v757 = vstv %s756
    %v758 = vmul.f32 %v707, %v757
    %v759 = vadd.f32 %v587, %v758
    %s760 = sld [smem:[#allocation8 + $0x49]]
    %v761 = vstv %s760
    %v762 = vmul.f32 %v707, %v761
    %v763 = vadd.f32 %v591, %v762
    %s764 = sld [smem:[#allocation8 + $0x4a]]
    %v765 = vstv %s764
    %v766 = vmul.f32 %v707, %v765
    %v767 = vadd.f32 %v595, %v766
    %s768 = sld [smem:[#allocation8 + $0x4b]]
    %v769 = vstv %s768
    %v770 = vmul.f32 %v707, %v769
    %v771 = vadd.f32 %v599, %v770
    %s772 = sld [smem:[#allocation8 + $0x4c]]
    %v773 = vstv %s772
    %v774 = vmul.f32 %v707, %v773
    %v775 = vadd.f32 %v603, %v774
    %s776 = sld [smem:[#allocation8 + $0x4d]]
    %v777 = vstv %s776
    %v778 = vmul.f32 %v707, %v777
    %v779 = vadd.f32 %v607, %v778
    %s780 = sld [smem:[#allocation8 + $0x4e]]
    %v781 = vstv %s780
    %v782 = vmul.f32 %v707, %v781
    %v783 = vadd.f32 %v611, %v782
    %s784 = sld [smem:[#allocation8 + $0x4f]]
    %v785 = vstv %s784
    %v786 = vmul.f32 %v707, %v785
    %v787 = vadd.f32 %v615, %v786
    %v788 = vmul.f32 %v707, %v707
    %v789 = vsub.f32 1.0, %v788
    %s790 = sld [smem:[#allocation5 + $0x3]]
    %v791 = vstv %s790
    %v792 = vmul.f32 %v789, %v791
    %v793 = vadd.f32 %v792, 1.0
    %v794 = vand.u32 2147483647, %v793
    %v795 = vadd.f32 %v794, 1e-08
    %v796 = vmul.f32 %v624, %v795
    %s797 = sld [smem:[#allocation7 + $0x50]]
    %v798 = vstv %s797
    %v799 = vmul.f32 %v711, %v798
    %s800 = sld [smem:[#allocation7 + $0x51]]
    %v801 = vstv %s800
    %v802 = vmul.f32 %v715, %v801
    %s803 = sld [smem:[#allocation7 + $0x52]]
    %v804 = vstv %s803
    %v805 = vmul.f32 %v719, %v804
    %s806 = sld [smem:[#allocation7 + $0x53]]
    %v807 = vstv %s806
    %v808 = vmul.f32 %v723, %v807
    %s809 = sld [smem:[#allocation7 + $0x54]]
    %v810 = vstv %s809
    %v811 = vmul.f32 %v727, %v810
    %s812 = sld [smem:[#allocation7 + $0x55]]
    %v813 = vstv %s812
    %v814 = vmul.f32 %v731, %v813
    %s815 = sld [smem:[#allocation7 + $0x56]]
    %v816 = vstv %s815
    %v817 = vmul.f32 %v735, %v816
    %s818 = sld [smem:[#allocation7 + $0x57]]
    %v819 = vstv %s818
    %v820 = vmul.f32 %v739, %v819
    %s821 = sld [smem:[#allocation7 + $0x58]]
    %v822 = vstv %s821
    %v823 = vmul.f32 %v743, %v822
    %s824 = sld [smem:[#allocation7 + $0x59]]
    %v825 = vstv %s824
    %v826 = vmul.f32 %v747, %v825
    %s827 = sld [smem:[#allocation7 + $0x5a]]
    %v828 = vstv %s827
    %v829 = vmul.f32 %v751, %v828
    %s830 = sld [smem:[#allocation7 + $0x5b]]
    %v831 = vstv %s830
    %v832 = vmul.f32 %v755, %v831
    %s833 = sld [smem:[#allocation7 + $0x5c]]
    %v834 = vstv %s833
    %v835 = vmul.f32 %v759, %v834
    %s836 = sld [smem:[#allocation7 + $0x5d]]
    %v837 = vstv %s836
    %v838 = vmul.f32 %v763, %v837
    %s839 = sld [smem:[#allocation7 + $0x5e]]
    %v840 = vstv %s839
    %v841 = vmul.f32 %v767, %v840
    %s842 = sld [smem:[#allocation7 + $0x5f]]
    %v843 = vstv %s842
    %v844 = vmul.f32 %v771, %v843
    %s845 = sld [smem:[#allocation7 + $0x60]]
    %v846 = vstv %s845
    %v847 = vmul.f32 %v775, %v846
    %s848 = sld [smem:[#allocation7 + $0x61]]
    %v849 = vstv %s848
    %v850 = vmul.f32 %v779, %v849
    %s851 = sld [smem:[#allocation7 + $0x62]]
    %v852 = vstv %s851
    %v853 = vmul.f32 %v783, %v852
    %s854 = sld [smem:[#allocation7 + $0x63]]
    %v855 = vstv %s854
    %v856 = vmul.f32 %v787, %v855
    %v857 = vadd.f32 %v799, %v802
    %v858 = vadd.f32 %v805, %v808
    %v859 = vadd.f32 %v811, %v814
    %v860 = vadd.f32 %v817, %v820
    %v861 = vadd.f32 %v823, %v826
    %v862 = vadd.f32 %v829, %v832
    %v863 = vadd.f32 %v835, %v838
    %v864 = vadd.f32 %v841, %v844
    %v865 = vadd.f32 %v847, %v850
    %v866 = vadd.f32 %v853, %v856
    %v867 = vadd.f32 %v857, %v858
    %v868 = vadd.f32 %v859, %v860
    %v869 = vadd.f32 %v861, %v862
    %v870 = vadd.f32 %v863, %v864
    %v871 = vadd.f32 %v865, %v866
    %v872 = vadd.f32 %v867, %v868
    %v873 = vadd.f32 %v869, %v870
    %v874 = vadd.f32 %v872, %v873
    %v875 = vadd.f32 %v874, %v871
    %s876 = sld [smem:[#allocation2 + $0x4]]
    %v877 = vstv %s876
    %v878 = vadd.f32 %v875, %v877
    %v879 = vtanh.pop %v878
    %s880 = sld [smem:[#allocation8 + $0x50]]
    %v881 = vstv %s880
    %v882 = vmul.f32 %v879, %v881
    %v883 = vadd.f32 %v711, %v882
    %s884 = sld [smem:[#allocation8 + $0x51]]
    %v885 = vstv %s884
    %v886 = vmul.f32 %v879, %v885
    %v887 = vadd.f32 %v715, %v886
    %s888 = sld [smem:[#allocation8 + $0x52]]
    %v889 = vstv %s888
    %v890 = vmul.f32 %v879, %v889
    %v891 = vadd.f32 %v719, %v890
    %s892 = sld [smem:[#allocation8 + $0x53]]
    %v893 = vstv %s892
    %v894 = vmul.f32 %v879, %v893
    %v895 = vadd.f32 %v723, %v894
    %s896 = sld [smem:[#allocation8 + $0x54]]
    %v897 = vstv %s896
    %v898 = vmul.f32 %v879, %v897
    %v899 = vadd.f32 %v727, %v898
    %s900 = sld [smem:[#allocation8 + $0x55]]
    %v901 = vstv %s900
    %v902 = vmul.f32 %v879, %v901
    %v903 = vadd.f32 %v731, %v902
    %s904 = sld [smem:[#allocation8 + $0x56]]
    %v905 = vstv %s904
    %v906 = vmul.f32 %v879, %v905
    %v907 = vadd.f32 %v735, %v906
    %s908 = sld [smem:[#allocation8 + $0x57]]
    %v909 = vstv %s908
    %v910 = vmul.f32 %v879, %v909
    %v911 = vadd.f32 %v739, %v910
    %s912 = sld [smem:[#allocation8 + $0x58]]
    %v913 = vstv %s912
    %v914 = vmul.f32 %v879, %v913
    %v915 = vadd.f32 %v743, %v914
    %s916 = sld [smem:[#allocation8 + $0x59]]
    %v917 = vstv %s916
    %v918 = vmul.f32 %v879, %v917
    %v919 = vadd.f32 %v747, %v918
    %s920 = sld [smem:[#allocation8 + $0x5a]]
    %v921 = vstv %s920
    %v922 = vmul.f32 %v879, %v921
    %v923 = vadd.f32 %v751, %v922
    %s924 = sld [smem:[#allocation8 + $0x5b]]
    %v925 = vstv %s924
    %v926 = vmul.f32 %v879, %v925
    %v927 = vadd.f32 %v755, %v926
    %s928 = sld [smem:[#allocation8 + $0x5c]]
    %v929 = vstv %s928
    %v930 = vmul.f32 %v879, %v929
    %v931 = vadd.f32 %v759, %v930
    %s932 = sld [smem:[#allocation8 + $0x5d]]
    %v933 = vstv %s932
    %v934 = vmul.f32 %v879, %v933
    %v935 = vadd.f32 %v763, %v934
    %s936 = sld [smem:[#allocation8 + $0x5e]]
    %v937 = vstv %s936
    %v938 = vmul.f32 %v879, %v937
    %v939 = vadd.f32 %v767, %v938
    %s940 = sld [smem:[#allocation8 + $0x5f]]
    %v941 = vstv %s940
    %v942 = vmul.f32 %v879, %v941
    %v943 = vadd.f32 %v771, %v942
    %s944 = sld [smem:[#allocation8 + $0x60]]
    %v945 = vstv %s944
    %v946 = vmul.f32 %v879, %v945
    %v947 = vadd.f32 %v775, %v946
    %s948 = sld [smem:[#allocation8 + $0x61]]
    %v949 = vstv %s948
    %v950 = vmul.f32 %v879, %v949
    %v951 = vadd.f32 %v779, %v950
    %s952 = sld [smem:[#allocation8 + $0x62]]
    %v953 = vstv %s952
    %v954 = vmul.f32 %v879, %v953
    %v955 = vadd.f32 %v783, %v954
    %s956 = sld [smem:[#allocation8 + $0x63]]
    %v957 = vstv %s956
    %v958 = vmul.f32 %v879, %v957
    %v959 = vadd.f32 %v787, %v958
    %v960 = vmul.f32 %v879, %v879
    %v961 = vsub.f32 1.0, %v960
    %s962 = sld [smem:[#allocation5 + $0x4]]
    %v963 = vstv %s962
    %v964 = vmul.f32 %v961, %v963
    %v965 = vadd.f32 %v964, 1.0
    %v966 = vand.u32 2147483647, %v965
    %v967 = vadd.f32 %v966, 1e-08
    %v968 = vmul.f32 %v796, %v967
    %s969 = sld [smem:[#allocation7 + $0x64]]
    %v970 = vstv %s969
    %v971 = vmul.f32 %v883, %v970
    %s972 = sld [smem:[#allocation7 + $0x65]]
    %v973 = vstv %s972
    %v974 = vmul.f32 %v887, %v973
    %s975 = sld [smem:[#allocation7 + $0x66]]
    %v976 = vstv %s975
    %v977 = vmul.f32 %v891, %v976
    %s978 = sld [smem:[#allocation7 + $0x67]]
    %v979 = vstv %s978
    %v980 = vmul.f32 %v895, %v979
    %s981 = sld [smem:[#allocation7 + $0x68]]
    %v982 = vstv %s981
    %v983 = vmul.f32 %v899, %v982
    %s984 = sld [smem:[#allocation7 + $0x69]]
    %v985 = vstv %s984
    %v986 = vmul.f32 %v903, %v985
    %s987 = sld [smem:[#allocation7 + $0x6a]]
    %v988 = vstv %s987
    %v989 = vmul.f32 %v907, %v988
    %s990 = sld [smem:[#allocation7 + $0x6b]]
    %v991 = vstv %s990
    %v992 = vmul.f32 %v911, %v991
    %s993 = sld [smem:[#allocation7 + $0x6c]]
    %v994 = vstv %s993
    %v995 = vmul.f32 %v915, %v994
    %s996 = sld [smem:[#allocation7 + $0x6d]]
    %v997 = vstv %s996
    %v998 = vmul.f32 %v919, %v997
    %s999 = sld [smem:[#allocation7 + $0x6e]]
    %v1000 = vstv %s999
    %v1001 = vmul.f32 %v923, %v1000
    %s1002 = sld [smem:[#allocation7 + $0x6f]]
    %v1003 = vstv %s1002
    %v1004 = vmul.f32 %v927, %v1003
    %s1005 = sld [smem:[#allocation7 + $0x70]]
    %v1006 = vstv %s1005
    %v1007 = vmul.f32 %v931, %v1006
    %s1008 = sld [smem:[#allocation7 + $0x71]]
    %v1009 = vstv %s1008
    %v1010 = vmul.f32 %v935, %v1009
    %s1011 = sld [smem:[#allocation7 + $0x72]]
    %v1012 = vstv %s1011
    %v1013 = vmul.f32 %v939, %v1012
    %s1014 = sld [smem:[#allocation7 + $0x73]]
    %v1015 = vstv %s1014
    %v1016 = vmul.f32 %v943, %v1015
    %s1017 = sld [smem:[#allocation7 + $0x74]]
    %v1018 = vstv %s1017
    %v1019 = vmul.f32 %v947, %v1018
    %s1020 = sld [smem:[#allocation7 + $0x75]]
    %v1021 = vstv %s1020
    %v1022 = vmul.f32 %v951, %v1021
    %s1023 = sld [smem:[#allocation7 + $0x76]]
    %v1024 = vstv %s1023
    %v1025 = vmul.f32 %v955, %v1024
    %s1026 = sld [smem:[#allocation7 + $0x77]]
    %v1027 = vstv %s1026
    %v1028 = vmul.f32 %v959, %v1027
    %v1029 = vadd.f32 %v971, %v974
    %v1030 = vadd.f32 %v977, %v980
    %v1031 = vadd.f32 %v983, %v986
    %v1032 = vadd.f32 %v989, %v992
    %v1033 = vadd.f32 %v995, %v998
    %v1034 = vadd.f32 %v1001, %v1004
    %v1035 = vadd.f32 %v1007, %v1010
    %v1036 = vadd.f32 %v1013, %v1016
    %v1037 = vadd.f32 %v1019, %v1022
    %v1038 = vadd.f32 %v1025, %v1028
    %v1039 = vadd.f32 %v1029, %v1030
    %v1040 = vadd.f32 %v1031, %v1032
    %v1041 = vadd.f32 %v1033, %v1034
    %v1042 = vadd.f32 %v1035, %v1036
    %v1043 = vadd.f32 %v1037, %v1038
    %v1044 = vadd.f32 %v1039, %v1040
    %v1045 = vadd.f32 %v1041, %v1042
    %v1046 = vadd.f32 %v1044, %v1045
    %v1047 = vadd.f32 %v1046, %v1043
    %s1048 = sld [smem:[#allocation2 + $0x5]]
    %v1049 = vstv %s1048
    %v1050 = vadd.f32 %v1047, %v1049
    %v1051 = vtanh.pop %v1050
    %s1052 = sld [smem:[#allocation8 + $0x64]]
    %v1053 = vstv %s1052
    %v1054 = vmul.f32 %v1051, %v1053
    %v1055 = vadd.f32 %v883, %v1054
    %s1056 = sld [smem:[#allocation8 + $0x65]]
    %v1057 = vstv %s1056
    %v1058 = vmul.f32 %v1051, %v1057
    %v1059 = vadd.f32 %v887, %v1058
    %s1060 = sld [smem:[#allocation8 + $0x66]]
    %v1061 = vstv %s1060
    %v1062 = vmul.f32 %v1051, %v1061
    %v1063 = vadd.f32 %v891, %v1062
    %s1064 = sld [smem:[#allocation8 + $0x67]]
    %v1065 = vstv %s1064
    %v1066 = vmul.f32 %v1051, %v1065
    %v1067 = vadd.f32 %v895, %v1066
    %s1068 = sld [smem:[#allocation8 + $0x68]]
    %v1069 = vstv %s1068
    %v1070 = vmul.f32 %v1051, %v1069
    %v1071 = vadd.f32 %v899, %v1070
    %s1072 = sld [smem:[#allocation8 + $0x69]]
    %v1073 = vstv %s1072
    %v1074 = vmul.f32 %v1051, %v1073
    %v1075 = vadd.f32 %v903, %v1074
    %s1076 = sld [smem:[#allocation8 + $0x6a]]
    %v1077 = vstv %s1076
    %v1078 = vmul.f32 %v1051, %v1077
    %v1079 = vadd.f32 %v907, %v1078
    %s1080 = sld [smem:[#allocation8 + $0x6b]]
    %v1081 = vstv %s1080
    %v1082 = vmul.f32 %v1051, %v1081
    %v1083 = vadd.f32 %v911, %v1082
    %s1084 = sld [smem:[#allocation8 + $0x6c]]
    %v1085 = vstv %s1084
    %v1086 = vmul.f32 %v1051, %v1085
    %v1087 = vadd.f32 %v915, %v1086
    %s1088 = sld [smem:[#allocation8 + $0x6d]]
    %v1089 = vstv %s1088
    %v1090 = vmul.f32 %v1051, %v1089
    %v1091 = vadd.f32 %v919, %v1090
    %s1092 = sld [smem:[#allocation8 + $0x6e]]
    %v1093 = vstv %s1092
    %v1094 = vmul.f32 %v1051, %v1093
    %v1095 = vadd.f32 %v923, %v1094
    %s1096 = sld [smem:[#allocation8 + $0x6f]]
    %v1097 = vstv %s1096
    %v1098 = vmul.f32 %v1051, %v1097
    %v1099 = vadd.f32 %v927, %v1098
    %s1100 = sld [smem:[#allocation8 + $0x70]]
    %v1101 = vstv %s1100
    %v1102 = vmul.f32 %v1051, %v1101
    %v1103 = vadd.f32 %v931, %v1102
    %s1104 = sld [smem:[#allocation8 + $0x71]]
    %v1105 = vstv %s1104
    %v1106 = vmul.f32 %v1051, %v1105
    %v1107 = vadd.f32 %v935, %v1106
    %s1108 = sld [smem:[#allocation8 + $0x72]]
    %v1109 = vstv %s1108
    %v1110 = vmul.f32 %v1051, %v1109
    %v1111 = vadd.f32 %v939, %v1110
    %s1112 = sld [smem:[#allocation8 + $0x73]]
    %v1113 = vstv %s1112
    %v1114 = vmul.f32 %v1051, %v1113
    %v1115 = vadd.f32 %v943, %v1114
    %s1116 = sld [smem:[#allocation8 + $0x74]]
    %v1117 = vstv %s1116
    %v1118 = vmul.f32 %v1051, %v1117
    %v1119 = vadd.f32 %v947, %v1118
    %s1120 = sld [smem:[#allocation8 + $0x75]]
    %v1121 = vstv %s1120
    %v1122 = vmul.f32 %v1051, %v1121
    %v1123 = vadd.f32 %v951, %v1122
    %s1124 = sld [smem:[#allocation8 + $0x76]]
    %v1125 = vstv %s1124
    %v1126 = vmul.f32 %v1051, %v1125
    %v1127 = vadd.f32 %v955, %v1126
    %s1128 = sld [smem:[#allocation8 + $0x77]]
    %v1129 = vstv %s1128
    %v1130 = vmul.f32 %v1051, %v1129
    %v1131 = vadd.f32 %v959, %v1130
    %v1132 = vmul.f32 %v1051, %v1051
    %v1133 = vsub.f32 1.0, %v1132
    %s1134 = sld [smem:[#allocation5 + $0x5]]
    %v1135 = vstv %s1134
    %v1136 = vmul.f32 %v1133, %v1135
    %v1137 = vadd.f32 %v1136, 1.0
    %v1138 = vand.u32 2147483647, %v1137
    %v1139 = vadd.f32 %v1138, 1e-08
    %v1140 = vmul.f32 %v968, %v1139
    %s1141 = sld [smem:[#allocation7 + $0x78]]
    %v1142 = vstv %s1141
    %v1143 = vmul.f32 %v1055, %v1142
    %s1144 = sld [smem:[#allocation7 + $0x79]]
    %v1145 = vstv %s1144
    %v1146 = vmul.f32 %v1059, %v1145
    %s1147 = sld [smem:[#allocation7 + $0x7a]]
    %v1148 = vstv %s1147
    %v1149 = vmul.f32 %v1063, %v1148
    %s1150 = sld [smem:[#allocation7 + $0x7b]]
    %v1151 = vstv %s1150
    %v1152 = vmul.f32 %v1067, %v1151
    %s1153 = sld [smem:[#allocation7 + $0x7c]]
    %v1154 = vstv %s1153
    %v1155 = vmul.f32 %v1071, %v1154
    %s1156 = sld [smem:[#allocation7 + $0x7d]]
    %v1157 = vstv %s1156
    %v1158 = vmul.f32 %v1075, %v1157
    %s1159 = sld [smem:[#allocation7 + $0x7e]]
    %v1160 = vstv %s1159
    %v1161 = vmul.f32 %v1079, %v1160
    %s1162 = sld [smem:[#allocation7 + $0x7f]]
    %v1163 = vstv %s1162
    %v1164 = vmul.f32 %v1083, %v1163
    %s1165 = sld [smem:[#allocation7 + $0x80]]
    %v1166 = vstv %s1165
    %v1167 = vmul.f32 %v1087, %v1166
    %s1168 = sld [smem:[#allocation7 + $0x81]]
    %v1169 = vstv %s1168
    %v1170 = vmul.f32 %v1091, %v1169
    %s1171 = sld [smem:[#allocation7 + $0x82]]
    %v1172 = vstv %s1171
    %v1173 = vmul.f32 %v1095, %v1172
    %s1174 = sld [smem:[#allocation7 + $0x83]]
    %v1175 = vstv %s1174
    %v1176 = vmul.f32 %v1099, %v1175
    %s1177 = sld [smem:[#allocation7 + $0x84]]
    %v1178 = vstv %s1177
    %v1179 = vmul.f32 %v1103, %v1178
    %s1180 = sld [smem:[#allocation7 + $0x85]]
    %v1181 = vstv %s1180
    %v1182 = vmul.f32 %v1107, %v1181
    %s1183 = sld [smem:[#allocation7 + $0x86]]
    %v1184 = vstv %s1183
    %v1185 = vmul.f32 %v1111, %v1184
    %s1186 = sld [smem:[#allocation7 + $0x87]]
    %v1187 = vstv %s1186
    %v1188 = vmul.f32 %v1115, %v1187
    %s1189 = sld [smem:[#allocation7 + $0x88]]
    %v1190 = vstv %s1189
    %v1191 = vmul.f32 %v1119, %v1190
    %s1192 = sld [smem:[#allocation7 + $0x89]]
    %v1193 = vstv %s1192
    %v1194 = vmul.f32 %v1123, %v1193
    %s1195 = sld [smem:[#allocation7 + $0x8a]]
    %v1196 = vstv %s1195
    %v1197 = vmul.f32 %v1127, %v1196
    %s1198 = sld [smem:[#allocation7 + $0x8b]]
    %v1199 = vstv %s1198
    %v1200 = vmul.f32 %v1131, %v1199
    %v1201 = vadd.f32 %v1143, %v1146
    %v1202 = vadd.f32 %v1149, %v1152
    %v1203 = vadd.f32 %v1155, %v1158
    %v1204 = vadd.f32 %v1161, %v1164
    %v1205 = vadd.f32 %v1167, %v1170
    %v1206 = vadd.f32 %v1173, %v1176
    %v1207 = vadd.f32 %v1179, %v1182
    %v1208 = vadd.f32 %v1185, %v1188
    %v1209 = vadd.f32 %v1191, %v1194
    %v1210 = vadd.f32 %v1197, %v1200
    %v1211 = vadd.f32 %v1201, %v1202
    %v1212 = vadd.f32 %v1203, %v1204
    %v1213 = vadd.f32 %v1205, %v1206
    %v1214 = vadd.f32 %v1207, %v1208
    %v1215 = vadd.f32 %v1209, %v1210
    %v1216 = vadd.f32 %v1211, %v1212
    %v1217 = vadd.f32 %v1213, %v1214
    %v1218 = vadd.f32 %v1216, %v1217
    %v1219 = vadd.f32 %v1218, %v1215
    %s1220 = sld [smem:[#allocation2 + $0x6]]
    %v1221 = vstv %s1220
    %v1222 = vadd.f32 %v1219, %v1221
    %v1223 = vtanh.pop %v1222
    %s1224 = sld [smem:[#allocation8 + $0x78]]
    %v1225 = vstv %s1224
    %v1226 = vmul.f32 %v1223, %v1225
    %v1227 = vadd.f32 %v1055, %v1226
    %s1228 = sld [smem:[#allocation8 + $0x79]]
    %v1229 = vstv %s1228
    %v1230 = vmul.f32 %v1223, %v1229
    %v1231 = vadd.f32 %v1059, %v1230
    %s1232 = sld [smem:[#allocation8 + $0x7a]]
    %v1233 = vstv %s1232
    %v1234 = vmul.f32 %v1223, %v1233
    %v1235 = vadd.f32 %v1063, %v1234
    %s1236 = sld [smem:[#allocation8 + $0x7b]]
    %v1237 = vstv %s1236
    %v1238 = vmul.f32 %v1223, %v1237
    %v1239 = vadd.f32 %v1067, %v1238
    %s1240 = sld [smem:[#allocation8 + $0x7c]]
    %v1241 = vstv %s1240
    %v1242 = vmul.f32 %v1223, %v1241
    %v1243 = vadd.f32 %v1071, %v1242
    %s1244 = sld [smem:[#allocation8 + $0x7d]]
    %v1245 = vstv %s1244
    %v1246 = vmul.f32 %v1223, %v1245
    %v1247 = vadd.f32 %v1075, %v1246
    %s1248 = sld [smem:[#allocation8 + $0x7e]]
    %v1249 = vstv %s1248
    %v1250 = vmul.f32 %v1223, %v1249
    %v1251 = vadd.f32 %v1079, %v1250
    %s1252 = sld [smem:[#allocation8 + $0x7f]]
    %v1253 = vstv %s1252
    %v1254 = vmul.f32 %v1223, %v1253
    %v1255 = vadd.f32 %v1083, %v1254
    %s1256 = sld [smem:[#allocation8 + $0x80]]
    %v1257 = vstv %s1256
    %v1258 = vmul.f32 %v1223, %v1257
    %v1259 = vadd.f32 %v1087, %v1258
    %s1260 = sld [smem:[#allocation8 + $0x81]]
    %v1261 = vstv %s1260
    %v1262 = vmul.f32 %v1223, %v1261
    %v1263 = vadd.f32 %v1091, %v1262
    %s1264 = sld [smem:[#allocation8 + $0x82]]
    %v1265 = vstv %s1264
    %v1266 = vmul.f32 %v1223, %v1265
    %v1267 = vadd.f32 %v1095, %v1266
    %s1268 = sld [smem:[#allocation8 + $0x83]]
    %v1269 = vstv %s1268
    %v1270 = vmul.f32 %v1223, %v1269
    %v1271 = vadd.f32 %v1099, %v1270
    %s1272 = sld [smem:[#allocation8 + $0x84]]
    %v1273 = vstv %s1272
    %v1274 = vmul.f32 %v1223, %v1273
    %v1275 = vadd.f32 %v1103, %v1274
    %s1276 = sld [smem:[#allocation8 + $0x85]]
    %v1277 = vstv %s1276
    %v1278 = vmul.f32 %v1223, %v1277
    %v1279 = vadd.f32 %v1107, %v1278
    %s1280 = sld [smem:[#allocation8 + $0x86]]
    %v1281 = vstv %s1280
    %v1282 = vmul.f32 %v1223, %v1281
    %v1283 = vadd.f32 %v1111, %v1282
    %s1284 = sld [smem:[#allocation8 + $0x87]]
    %v1285 = vstv %s1284
    %v1286 = vmul.f32 %v1223, %v1285
    %v1287 = vadd.f32 %v1115, %v1286
    %s1288 = sld [smem:[#allocation8 + $0x88]]
    %v1289 = vstv %s1288
    %v1290 = vmul.f32 %v1223, %v1289
    %v1291 = vadd.f32 %v1119, %v1290
    %s1292 = sld [smem:[#allocation8 + $0x89]]
    %v1293 = vstv %s1292
    %v1294 = vmul.f32 %v1223, %v1293
    %v1295 = vadd.f32 %v1123, %v1294
    %s1296 = sld [smem:[#allocation8 + $0x8a]]
    %v1297 = vstv %s1296
    %v1298 = vmul.f32 %v1223, %v1297
    %v1299 = vadd.f32 %v1127, %v1298
    %s1300 = sld [smem:[#allocation8 + $0x8b]]
    %v1301 = vstv %s1300
    %v1302 = vmul.f32 %v1223, %v1301
    %v1303 = vadd.f32 %v1131, %v1302
    %v1304 = vmul.f32 %v1223, %v1223
    %v1305 = vsub.f32 1.0, %v1304
    %s1306 = sld [smem:[#allocation5 + $0x6]]
    %v1307 = vstv %s1306
    %v1308 = vmul.f32 %v1305, %v1307
    %v1309 = vadd.f32 %v1308, 1.0
    %v1310 = vand.u32 2147483647, %v1309
    %v1311 = vadd.f32 %v1310, 1e-08
    %v1312 = vmul.f32 %v1140, %v1311
    %s1313 = sld [smem:[#allocation7 + $0x8c]]
    %v1314 = vstv %s1313
    %v1315 = vmul.f32 %v1227, %v1314
    %s1316 = sld [smem:[#allocation7 + $0x8d]]
    %v1317 = vstv %s1316
    %v1318 = vmul.f32 %v1231, %v1317
    %s1319 = sld [smem:[#allocation7 + $0x8e]]
    %v1320 = vstv %s1319
    %v1321 = vmul.f32 %v1235, %v1320
    %s1322 = sld [smem:[#allocation7 + $0x8f]]
    %v1323 = vstv %s1322
    %v1324 = vmul.f32 %v1239, %v1323
    %s1325 = sld [smem:[#allocation7 + $0x90]]
    %v1326 = vstv %s1325
    %v1327 = vmul.f32 %v1243, %v1326
    %s1328 = sld [smem:[#allocation7 + $0x91]]
    %v1329 = vstv %s1328
    %v1330 = vmul.f32 %v1247, %v1329
    %s1331 = sld [smem:[#allocation7 + $0x92]]
    %v1332 = vstv %s1331
    %v1333 = vmul.f32 %v1251, %v1332
    %s1334 = sld [smem:[#allocation7 + $0x93]]
    %v1335 = vstv %s1334
    %v1336 = vmul.f32 %v1255, %v1335
    %s1337 = sld [smem:[#allocation7 + $0x94]]
    %v1338 = vstv %s1337
    %v1339 = vmul.f32 %v1259, %v1338
    %s1340 = sld [smem:[#allocation7 + $0x95]]
    %v1341 = vstv %s1340
    %v1342 = vmul.f32 %v1263, %v1341
    %s1343 = sld [smem:[#allocation7 + $0x96]]
    %v1344 = vstv %s1343
    %v1345 = vmul.f32 %v1267, %v1344
    %s1346 = sld [smem:[#allocation7 + $0x97]]
    %v1347 = vstv %s1346
    %v1348 = vmul.f32 %v1271, %v1347
    %s1349 = sld [smem:[#allocation7 + $0x98]]
    %v1350 = vstv %s1349
    %v1351 = vmul.f32 %v1275, %v1350
    %s1352 = sld [smem:[#allocation7 + $0x99]]
    %v1353 = vstv %s1352
    %v1354 = vmul.f32 %v1279, %v1353
    %s1355 = sld [smem:[#allocation7 + $0x9a]]
    %v1356 = vstv %s1355
    %v1357 = vmul.f32 %v1283, %v1356
    %s1358 = sld [smem:[#allocation7 + $0x9b]]
    %v1359 = vstv %s1358
    %v1360 = vmul.f32 %v1287, %v1359
    %s1361 = sld [smem:[#allocation7 + $0x9c]]
    %v1362 = vstv %s1361
    %v1363 = vmul.f32 %v1291, %v1362
    %s1364 = sld [smem:[#allocation7 + $0x9d]]
    %v1365 = vstv %s1364
    %v1366 = vmul.f32 %v1295, %v1365
    %s1367 = sld [smem:[#allocation7 + $0x9e]]
    %v1368 = vstv %s1367
    %v1369 = vmul.f32 %v1299, %v1368
    %s1370 = sld [smem:[#allocation7 + $0x9f]]
    %v1371 = vstv %s1370
    %v1372 = vmul.f32 %v1303, %v1371
    %v1373 = vadd.f32 %v1315, %v1318
    %v1374 = vadd.f32 %v1321, %v1324
    %v1375 = vadd.f32 %v1327, %v1330
    %v1376 = vadd.f32 %v1333, %v1336
    %v1377 = vadd.f32 %v1339, %v1342
    %v1378 = vadd.f32 %v1345, %v1348
    %v1379 = vadd.f32 %v1351, %v1354
    %v1380 = vadd.f32 %v1357, %v1360
    %v1381 = vadd.f32 %v1363, %v1366
    %v1382 = vadd.f32 %v1369, %v1372
    %v1383 = vadd.f32 %v1373, %v1374
    %v1384 = vadd.f32 %v1375, %v1376
    %v1385 = vadd.f32 %v1377, %v1378
    %v1386 = vadd.f32 %v1379, %v1380
    %v1387 = vadd.f32 %v1381, %v1382
    %v1388 = vadd.f32 %v1383, %v1384
    %v1389 = vadd.f32 %v1385, %v1386
    %v1390 = vadd.f32 %v1388, %v1389
    %v1391 = vadd.f32 %v1390, %v1387
    %s1392 = sld [smem:[#allocation2 + $0x7]]
    %v1393 = vstv %s1392
    %v1394 = vadd.f32 %v1391, %v1393
    %v1395 = vtanh.pop %v1394
    %s1396 = sld [smem:[#allocation8 + $0x8c]]
    %v1397 = vstv %s1396
    %v1398 = vmul.f32 %v1395, %v1397
    %v1399 = vadd.f32 %v1227, %v1398
    %s1400 = sld [smem:[#allocation8 + $0x8d]]
    %v1401 = vstv %s1400
    %v1402 = vmul.f32 %v1395, %v1401
    %v1403 = vadd.f32 %v1231, %v1402
    %s1404 = sld [smem:[#allocation8 + $0x8e]]
    %v1405 = vstv %s1404
    %v1406 = vmul.f32 %v1395, %v1405
    %v1407 = vadd.f32 %v1235, %v1406
    %s1408 = sld [smem:[#allocation8 + $0x8f]]
    %v1409 = vstv %s1408
    %v1410 = vmul.f32 %v1395, %v1409
    %v1411 = vadd.f32 %v1239, %v1410
    %s1412 = sld [smem:[#allocation8 + $0x90]]
    %v1413 = vstv %s1412
    %v1414 = vmul.f32 %v1395, %v1413
    %v1415 = vadd.f32 %v1243, %v1414
    %s1416 = sld [smem:[#allocation8 + $0x91]]
    %v1417 = vstv %s1416
    %v1418 = vmul.f32 %v1395, %v1417
    %v1419 = vadd.f32 %v1247, %v1418
    %s1420 = sld [smem:[#allocation8 + $0x92]]
    %v1421 = vstv %s1420
    %v1422 = vmul.f32 %v1395, %v1421
    %v1423 = vadd.f32 %v1251, %v1422
    %s1424 = sld [smem:[#allocation8 + $0x93]]
    %v1425 = vstv %s1424
    %v1426 = vmul.f32 %v1395, %v1425
    %v1427 = vadd.f32 %v1255, %v1426
    %s1428 = sld [smem:[#allocation8 + $0x94]]
    %v1429 = vstv %s1428
    %v1430 = vmul.f32 %v1395, %v1429
    %v1431 = vadd.f32 %v1259, %v1430
    %s1432 = sld [smem:[#allocation8 + $0x95]]
    %v1433 = vstv %s1432
    %v1434 = vmul.f32 %v1395, %v1433
    %v1435 = vadd.f32 %v1263, %v1434
    %s1436 = sld [smem:[#allocation8 + $0x96]]
    %v1437 = vstv %s1436
    %v1438 = vmul.f32 %v1395, %v1437
    %v1439 = vadd.f32 %v1267, %v1438
    %s1440 = sld [smem:[#allocation8 + $0x97]]
    %v1441 = vstv %s1440
    %v1442 = vmul.f32 %v1395, %v1441
    %v1443 = vadd.f32 %v1271, %v1442
    %s1444 = sld [smem:[#allocation8 + $0x98]]
    %v1445 = vstv %s1444
    %v1446 = vmul.f32 %v1395, %v1445
    %v1447 = vadd.f32 %v1275, %v1446
    %s1448 = sld [smem:[#allocation8 + $0x99]]
    %v1449 = vstv %s1448
    %v1450 = vmul.f32 %v1395, %v1449
    %v1451 = vadd.f32 %v1279, %v1450
    %s1452 = sld [smem:[#allocation8 + $0x9a]]
    %v1453 = vstv %s1452
    %v1454 = vmul.f32 %v1395, %v1453
    %v1455 = vadd.f32 %v1283, %v1454
    %s1456 = sld [smem:[#allocation8 + $0x9b]]
    %v1457 = vstv %s1456
    %v1458 = vmul.f32 %v1395, %v1457
    %v1459 = vadd.f32 %v1287, %v1458
    %s1460 = sld [smem:[#allocation8 + $0x9c]]
    %v1461 = vstv %s1460
    %v1462 = vmul.f32 %v1395, %v1461
    %v1463 = vadd.f32 %v1291, %v1462
    %s1464 = sld [smem:[#allocation8 + $0x9d]]
    %v1465 = vstv %s1464
    %v1466 = vmul.f32 %v1395, %v1465
    %v1467 = vadd.f32 %v1295, %v1466
    %s1468 = sld [smem:[#allocation8 + $0x9e]]
    %v1469 = vstv %s1468
    %v1470 = vmul.f32 %v1395, %v1469
    %v1471 = vadd.f32 %v1299, %v1470
    %s1472 = sld [smem:[#allocation8 + $0x9f]]
    %v1473 = vstv %s1472
    %v1474 = vmul.f32 %v1395, %v1473
    %v1475 = vadd.f32 %v1303, %v1474
    %v1476 = vmul.f32 %v1395, %v1395
    %v1477 = vsub.f32 1.0, %v1476
    %s1478 = sld [smem:[#allocation5 + $0x7]]
    %v1479 = vstv %s1478
    %v1480 = vmul.f32 %v1477, %v1479
    %v1481 = vadd.f32 %v1480, 1.0
    %v1482 = vand.u32 2147483647, %v1481
    %v1483 = vadd.f32 %v1482, 1e-08
    %v1484 = vmul.f32 %v1312, %v1483
    %s1485 = sld [smem:[#allocation7 + $0xa0]]
    %v1486 = vstv %s1485
    %v1487 = vmul.f32 %v1399, %v1486
    %s1488 = sld [smem:[#allocation7 + $0xa1]]
    %v1489 = vstv %s1488
    %v1490 = vmul.f32 %v1403, %v1489
    %s1491 = sld [smem:[#allocation7 + $0xa2]]
    %v1492 = vstv %s1491
    %v1493 = vmul.f32 %v1407, %v1492
    %s1494 = sld [smem:[#allocation7 + $0xa3]]
    %v1495 = vstv %s1494
    %v1496 = vmul.f32 %v1411, %v1495
    %s1497 = sld [smem:[#allocation7 + $0xa4]]
    %v1498 = vstv %s1497
    %v1499 = vmul.f32 %v1415, %v1498
    %s1500 = sld [smem:[#allocation7 + $0xa5]]
    %v1501 = vstv %s1500
    %v1502 = vmul.f32 %v1419, %v1501
    %s1503 = sld [smem:[#allocation7 + $0xa6]]
    %v1504 = vstv %s1503
    %v1505 = vmul.f32 %v1423, %v1504
    %s1506 = sld [smem:[#allocation7 + $0xa7]]
    %v1507 = vstv %s1506
    %v1508 = vmul.f32 %v1427, %v1507
    %s1509 = sld [smem:[#allocation7 + $0xa8]]
    %v1510 = vstv %s1509
    %v1511 = vmul.f32 %v1431, %v1510
    %s1512 = sld [smem:[#allocation7 + $0xa9]]
    %v1513 = vstv %s1512
    %v1514 = vmul.f32 %v1435, %v1513
    %s1515 = sld [smem:[#allocation7 + $0xaa]]
    %v1516 = vstv %s1515
    %v1517 = vmul.f32 %v1439, %v1516
    %s1518 = sld [smem:[#allocation7 + $0xab]]
    %v1519 = vstv %s1518
    %v1520 = vmul.f32 %v1443, %v1519
    %s1521 = sld [smem:[#allocation7 + $0xac]]
    %v1522 = vstv %s1521
    %v1523 = vmul.f32 %v1447, %v1522
    %s1524 = sld [smem:[#allocation7 + $0xad]]
    %v1525 = vstv %s1524
    %v1526 = vmul.f32 %v1451, %v1525
    %s1527 = sld [smem:[#allocation7 + $0xae]]
    %v1528 = vstv %s1527
    %v1529 = vmul.f32 %v1455, %v1528
    %s1530 = sld [smem:[#allocation7 + $0xaf]]
    %v1531 = vstv %s1530
    %v1532 = vmul.f32 %v1459, %v1531
    %s1533 = sld [smem:[#allocation7 + $0xb0]]
    %v1534 = vstv %s1533
    %v1535 = vmul.f32 %v1463, %v1534
    %s1536 = sld [smem:[#allocation7 + $0xb1]]
    %v1537 = vstv %s1536
    %v1538 = vmul.f32 %v1467, %v1537
    %s1539 = sld [smem:[#allocation7 + $0xb2]]
    %v1540 = vstv %s1539
    %v1541 = vmul.f32 %v1471, %v1540
    %s1542 = sld [smem:[#allocation7 + $0xb3]]
    %v1543 = vstv %s1542
    %v1544 = vmul.f32 %v1475, %v1543
    %v1545 = vadd.f32 %v1487, %v1490
    %v1546 = vadd.f32 %v1493, %v1496
    %v1547 = vadd.f32 %v1499, %v1502
    %v1548 = vadd.f32 %v1505, %v1508
    %v1549 = vadd.f32 %v1511, %v1514
    %v1550 = vadd.f32 %v1517, %v1520
    %v1551 = vadd.f32 %v1523, %v1526
    %v1552 = vadd.f32 %v1529, %v1532
    %v1553 = vadd.f32 %v1535, %v1538
    %v1554 = vadd.f32 %v1541, %v1544
    %v1555 = vadd.f32 %v1545, %v1546
    %v1556 = vadd.f32 %v1547, %v1548
    %v1557 = vadd.f32 %v1549, %v1550
    %v1558 = vadd.f32 %v1551, %v1552
    %v1559 = vadd.f32 %v1553, %v1554
    %v1560 = vadd.f32 %v1555, %v1556
    %v1561 = vadd.f32 %v1557, %v1558
    %v1562 = vadd.f32 %v1560, %v1561
    %v1563 = vadd.f32 %v1562, %v1559
    %s1564 = sld [smem:[#allocation2 + $0x8]]
    %v1565 = vstv %s1564
    %v1566 = vadd.f32 %v1563, %v1565
    %v1567 = vtanh.pop %v1566
    %s1568 = sld [smem:[#allocation8 + $0xa0]]
    %v1569 = vstv %s1568
    %v1570 = vmul.f32 %v1567, %v1569
    %v1571 = vadd.f32 %v1399, %v1570
    %s1572 = sld [smem:[#allocation8 + $0xa1]]
    %v1573 = vstv %s1572
    %v1574 = vmul.f32 %v1567, %v1573
    %v1575 = vadd.f32 %v1403, %v1574
    %s1576 = sld [smem:[#allocation8 + $0xa2]]
    %v1577 = vstv %s1576
    %v1578 = vmul.f32 %v1567, %v1577
    %v1579 = vadd.f32 %v1407, %v1578
    %s1580 = sld [smem:[#allocation8 + $0xa3]]
    %v1581 = vstv %s1580
    %v1582 = vmul.f32 %v1567, %v1581
    %v1583 = vadd.f32 %v1411, %v1582
    %s1584 = sld [smem:[#allocation8 + $0xa4]]
    %v1585 = vstv %s1584
    %v1586 = vmul.f32 %v1567, %v1585
    %v1587 = vadd.f32 %v1415, %v1586
    %s1588 = sld [smem:[#allocation8 + $0xa5]]
    %v1589 = vstv %s1588
    %v1590 = vmul.f32 %v1567, %v1589
    %v1591 = vadd.f32 %v1419, %v1590
    %s1592 = sld [smem:[#allocation8 + $0xa6]]
    %v1593 = vstv %s1592
    %v1594 = vmul.f32 %v1567, %v1593
    %v1595 = vadd.f32 %v1423, %v1594
    %s1596 = sld [smem:[#allocation8 + $0xa7]]
    %v1597 = vstv %s1596
    %v1598 = vmul.f32 %v1567, %v1597
    %v1599 = vadd.f32 %v1427, %v1598
    %s1600 = sld [smem:[#allocation8 + $0xa8]]
    %v1601 = vstv %s1600
    %v1602 = vmul.f32 %v1567, %v1601
    %v1603 = vadd.f32 %v1431, %v1602
    %s1604 = sld [smem:[#allocation8 + $0xa9]]
    %v1605 = vstv %s1604
    %v1606 = vmul.f32 %v1567, %v1605
    %v1607 = vadd.f32 %v1435, %v1606
    %s1608 = sld [smem:[#allocation8 + $0xaa]]
    %v1609 = vstv %s1608
    %v1610 = vmul.f32 %v1567, %v1609
    %v1611 = vadd.f32 %v1439, %v1610
    %s1612 = sld [smem:[#allocation8 + $0xab]]
    %v1613 = vstv %s1612
    %v1614 = vmul.f32 %v1567, %v1613
    %v1615 = vadd.f32 %v1443, %v1614
    %s1616 = sld [smem:[#allocation8 + $0xac]]
    %v1617 = vstv %s1616
    %v1618 = vmul.f32 %v1567, %v1617
    %v1619 = vadd.f32 %v1447, %v1618
    %s1620 = sld [smem:[#allocation8 + $0xad]]
    %v1621 = vstv %s1620
    %v1622 = vmul.f32 %v1567, %v1621
    %v1623 = vadd.f32 %v1451, %v1622
    %s1624 = sld [smem:[#allocation8 + $0xae]]
    %v1625 = vstv %s1624
    %v1626 = vmul.f32 %v1567, %v1625
    %v1627 = vadd.f32 %v1455, %v1626
    %s1628 = sld [smem:[#allocation8 + $0xaf]]
    %v1629 = vstv %s1628
    %v1630 = vmul.f32 %v1567, %v1629
    %v1631 = vadd.f32 %v1459, %v1630
    %s1632 = sld [smem:[#allocation8 + $0xb0]]
    %v1633 = vstv %s1632
    %v1634 = vmul.f32 %v1567, %v1633
    %v1635 = vadd.f32 %v1463, %v1634
    %s1636 = sld [smem:[#allocation8 + $0xb1]]
    %v1637 = vstv %s1636
    %v1638 = vmul.f32 %v1567, %v1637
    %v1639 = vadd.f32 %v1467, %v1638
    %s1640 = sld [smem:[#allocation8 + $0xb2]]
    %v1641 = vstv %s1640
    %v1642 = vmul.f32 %v1567, %v1641
    %v1643 = vadd.f32 %v1471, %v1642
    %s1644 = sld [smem:[#allocation8 + $0xb3]]
    %v1645 = vstv %s1644
    %v1646 = vmul.f32 %v1567, %v1645
    %v1647 = vadd.f32 %v1475, %v1646
    %v1648 = vmul.f32 %v1567, %v1567
    %v1649 = vsub.f32 1.0, %v1648
    %s1650 = sld [smem:[#allocation5 + $0x8]]
    %v1651 = vstv %s1650
    %v1652 = vmul.f32 %v1649, %v1651
    %v1653 = vadd.f32 %v1652, 1.0
    %v1654 = vand.u32 2147483647, %v1653
    %v1655 = vadd.f32 %v1654, 1e-08
    %v1656 = vmul.f32 %v1484, %v1655
    %s1657 = sld [smem:[#allocation7 + $0xb4]]
    %v1658 = vstv %s1657
    %v1659 = vmul.f32 %v1571, %v1658
    %s1660 = sld [smem:[#allocation7 + $0xb5]]
    %v1661 = vstv %s1660
    %v1662 = vmul.f32 %v1575, %v1661
    %s1663 = sld [smem:[#allocation7 + $0xb6]]
    %v1664 = vstv %s1663
    %v1665 = vmul.f32 %v1579, %v1664
    %s1666 = sld [smem:[#allocation7 + $0xb7]]
    %v1667 = vstv %s1666
    %v1668 = vmul.f32 %v1583, %v1667
    %s1669 = sld [smem:[#allocation7 + $0xb8]]
    %v1670 = vstv %s1669
    %v1671 = vmul.f32 %v1587, %v1670
    %s1672 = sld [smem:[#allocation7 + $0xb9]]
    %v1673 = vstv %s1672
    %v1674 = vmul.f32 %v1591, %v1673
    %s1675 = sld [smem:[#allocation7 + $0xba]]
    %v1676 = vstv %s1675
    %v1677 = vmul.f32 %v1595, %v1676
    %s1678 = sld [smem:[#allocation7 + $0xbb]]
    %v1679 = vstv %s1678
    %v1680 = vmul.f32 %v1599, %v1679
    %s1681 = sld [smem:[#allocation7 + $0xbc]]
    %v1682 = vstv %s1681
    %v1683 = vmul.f32 %v1603, %v1682
    %s1684 = sld [smem:[#allocation7 + $0xbd]]
    %v1685 = vstv %s1684
    %v1686 = vmul.f32 %v1607, %v1685
    %s1687 = sld [smem:[#allocation7 + $0xbe]]
    %v1688 = vstv %s1687
    %v1689 = vmul.f32 %v1611, %v1688
    %s1690 = sld [smem:[#allocation7 + $0xbf]]
    %v1691 = vstv %s1690
    %v1692 = vmul.f32 %v1615, %v1691
    %s1693 = sld [smem:[#allocation7 + $0xc0]]
    %v1694 = vstv %s1693
    %v1695 = vmul.f32 %v1619, %v1694
    %s1696 = sld [smem:[#allocation7 + $0xc1]]
    %v1697 = vstv %s1696
    %v1698 = vmul.f32 %v1623, %v1697
    %s1699 = sld [smem:[#allocation7 + $0xc2]]
    %v1700 = vstv %s1699
    %v1701 = vmul.f32 %v1627, %v1700
    %s1702 = sld [smem:[#allocation7 + $0xc3]]
    %v1703 = vstv %s1702
    %v1704 = vmul.f32 %v1631, %v1703
    %s1705 = sld [smem:[#allocation7 + $0xc4]]
    %v1706 = vstv %s1705
    %v1707 = vmul.f32 %v1635, %v1706
    %s1708 = sld [smem:[#allocation7 + $0xc5]]
    %v1709 = vstv %s1708
    %v1710 = vmul.f32 %v1639, %v1709
    %s1711 = sld [smem:[#allocation7 + $0xc6]]
    %v1712 = vstv %s1711
    %v1713 = vmul.f32 %v1643, %v1712
    %s1714 = sld [smem:[#allocation7 + $0xc7]]
    %v1715 = vstv %s1714
    %v1716 = vmul.f32 %v1647, %v1715
    %v1717 = vadd.f32 %v1659, %v1662
    %v1718 = vadd.f32 %v1665, %v1668
    %v1719 = vadd.f32 %v1671, %v1674
    %v1720 = vadd.f32 %v1677, %v1680
    %v1721 = vadd.f32 %v1683, %v1686
    %v1722 = vadd.f32 %v1689, %v1692
    %v1723 = vadd.f32 %v1695, %v1698
    %v1724 = vadd.f32 %v1701, %v1704
    %v1725 = vadd.f32 %v1707, %v1710
    %v1726 = vadd.f32 %v1713, %v1716
    %v1727 = vadd.f32 %v1717, %v1718
    %v1728 = vadd.f32 %v1719, %v1720
    %v1729 = vadd.f32 %v1721, %v1722
    %v1730 = vadd.f32 %v1723, %v1724
    %v1731 = vadd.f32 %v1725, %v1726
    %v1732 = vadd.f32 %v1727, %v1728
    %v1733 = vadd.f32 %v1729, %v1730
    %v1734 = vadd.f32 %v1732, %v1733
    %v1735 = vadd.f32 %v1734, %v1731
    %s1736 = sld [smem:[#allocation2 + $0x9]]
    %v1737 = vstv %s1736
    %v1738 = vadd.f32 %v1735, %v1737
    %v1739 = vtanh.pop %v1738
    %s1740 = sld [smem:[#allocation8 + $0xb4]]
    %v1741 = vstv %s1740
    %v1742 = vmul.f32 %v1739, %v1741
    %v1743 = vadd.f32 %v1571, %v1742
    %s1744 = sld [smem:[#allocation8 + $0xb5]]
    %v1745 = vstv %s1744
    %v1746 = vmul.f32 %v1739, %v1745
    %v1747 = vadd.f32 %v1575, %v1746
    %s1748 = sld [smem:[#allocation8 + $0xb6]]
    %v1749 = vstv %s1748
    %v1750 = vmul.f32 %v1739, %v1749
    %v1751 = vadd.f32 %v1579, %v1750
    %s1752 = sld [smem:[#allocation8 + $0xb7]]
    %v1753 = vstv %s1752
    %v1754 = vmul.f32 %v1739, %v1753
    %v1755 = vadd.f32 %v1583, %v1754
    %s1756 = sld [smem:[#allocation8 + $0xb8]]
    %v1757 = vstv %s1756
    %v1758 = vmul.f32 %v1739, %v1757
    %v1759 = vadd.f32 %v1587, %v1758
    %s1760 = sld [smem:[#allocation8 + $0xb9]]
    %v1761 = vstv %s1760
    %v1762 = vmul.f32 %v1739, %v1761
    %v1763 = vadd.f32 %v1591, %v1762
    %s1764 = sld [smem:[#allocation8 + $0xba]]
    %v1765 = vstv %s1764
    %v1766 = vmul.f32 %v1739, %v1765
    %v1767 = vadd.f32 %v1595, %v1766
    %s1768 = sld [smem:[#allocation8 + $0xbb]]
    %v1769 = vstv %s1768
    %v1770 = vmul.f32 %v1739, %v1769
    %v1771 = vadd.f32 %v1599, %v1770
    %s1772 = sld [smem:[#allocation8 + $0xbc]]
    %v1773 = vstv %s1772
    %v1774 = vmul.f32 %v1739, %v1773
    %v1775 = vadd.f32 %v1603, %v1774
    %s1776 = sld [smem:[#allocation8 + $0xbd]]
    %v1777 = vstv %s1776
    %v1778 = vmul.f32 %v1739, %v1777
    %v1779 = vadd.f32 %v1607, %v1778
    %s1780 = sld [smem:[#allocation8 + $0xbe]]
    %v1781 = vstv %s1780
    %v1782 = vmul.f32 %v1739, %v1781
    %v1783 = vadd.f32 %v1611, %v1782
    %s1784 = sld [smem:[#allocation8 + $0xbf]]
    %v1785 = vstv %s1784
    %v1786 = vmul.f32 %v1739, %v1785
    %v1787 = vadd.f32 %v1615, %v1786
    %s1788 = sld [smem:[#allocation8 + $0xc0]]
    %v1789 = vstv %s1788
    %v1790 = vmul.f32 %v1739, %v1789
    %v1791 = vadd.f32 %v1619, %v1790
    %s1792 = sld [smem:[#allocation8 + $0xc1]]
    %v1793 = vstv %s1792
    %v1794 = vmul.f32 %v1739, %v1793
    %v1795 = vadd.f32 %v1623, %v1794
    %s1796 = sld [smem:[#allocation8 + $0xc2]]
    %v1797 = vstv %s1796
    %v1798 = vmul.f32 %v1739, %v1797
    %v1799 = vadd.f32 %v1627, %v1798
    %s1800 = sld [smem:[#allocation8 + $0xc3]]
    %v1801 = vstv %s1800
    %v1802 = vmul.f32 %v1739, %v1801
    %v1803 = vadd.f32 %v1631, %v1802
    %s1804 = sld [smem:[#allocation8 + $0xc4]]
    %v1805 = vstv %s1804
    %v1806 = vmul.f32 %v1739, %v1805
    %v1807 = vadd.f32 %v1635, %v1806
    %s1808 = sld [smem:[#allocation8 + $0xc5]]
    %v1809 = vstv %s1808
    %v1810 = vmul.f32 %v1739, %v1809
    %v1811 = vadd.f32 %v1639, %v1810
    %s1812 = sld [smem:[#allocation8 + $0xc6]]
    %v1813 = vstv %s1812
    %v1814 = vmul.f32 %v1739, %v1813
    %v1815 = vadd.f32 %v1643, %v1814
    %s1816 = sld [smem:[#allocation8 + $0xc7]]
    %v1817 = vstv %s1816
    %v1818 = vmul.f32 %v1739, %v1817
    %v1819 = vadd.f32 %v1647, %v1818
    %v1820 = vmul.f32 %v1739, %v1739
    %v1821 = vsub.f32 1.0, %v1820
    %s1822 = sld [smem:[#allocation5 + $0x9]]
    %v1823 = vstv %s1822
    %v1824 = vmul.f32 %v1821, %v1823
    %v1825 = vadd.f32 %v1824, 1.0
    %v1826 = vand.u32 2147483647, %v1825
    %v1827 = vadd.f32 %v1826, 1e-08
    %v1828 = vmul.f32 %v1656, %v1827
    %s1829 = sld [smem:[#allocation7 + $0xc8]]
    %v1830 = vstv %s1829
    %v1831 = vmul.f32 %v1743, %v1830
    %s1832 = sld [smem:[#allocation7 + $0xc9]]
    %v1833 = vstv %s1832
    %v1834 = vmul.f32 %v1747, %v1833
    %s1835 = sld [smem:[#allocation7 + $0xca]]
    %v1836 = vstv %s1835
    %v1837 = vmul.f32 %v1751, %v1836
    %s1838 = sld [smem:[#allocation7 + $0xcb]]
    %v1839 = vstv %s1838
    %v1840 = vmul.f32 %v1755, %v1839
    %s1841 = sld [smem:[#allocation7 + $0xcc]]
    %v1842 = vstv %s1841
    %v1843 = vmul.f32 %v1759, %v1842
    %s1844 = sld [smem:[#allocation7 + $0xcd]]
    %v1845 = vstv %s1844
    %v1846 = vmul.f32 %v1763, %v1845
    %s1847 = sld [smem:[#allocation7 + $0xce]]
    %v1848 = vstv %s1847
    %v1849 = vmul.f32 %v1767, %v1848
    %s1850 = sld [smem:[#allocation7 + $0xcf]]
    %v1851 = vstv %s1850
    %v1852 = vmul.f32 %v1771, %v1851
    %s1853 = sld [smem:[#allocation7 + $0xd0]]
    %v1854 = vstv %s1853
    %v1855 = vmul.f32 %v1775, %v1854
    %s1856 = sld [smem:[#allocation7 + $0xd1]]
    %v1857 = vstv %s1856
    %v1858 = vmul.f32 %v1779, %v1857
    %s1859 = sld [smem:[#allocation7 + $0xd2]]
    %v1860 = vstv %s1859
    %v1861 = vmul.f32 %v1783, %v1860
    %s1862 = sld [smem:[#allocation7 + $0xd3]]
    %v1863 = vstv %s1862
    %v1864 = vmul.f32 %v1787, %v1863
    %s1865 = sld [smem:[#allocation7 + $0xd4]]
    %v1866 = vstv %s1865
    %v1867 = vmul.f32 %v1791, %v1866
    %s1868 = sld [smem:[#allocation7 + $0xd5]]
    %v1869 = vstv %s1868
    %v1870 = vmul.f32 %v1795, %v1869
    %s1871 = sld [smem:[#allocation7 + $0xd6]]
    %v1872 = vstv %s1871
    %v1873 = vmul.f32 %v1799, %v1872
    %s1874 = sld [smem:[#allocation7 + $0xd7]]
    %v1875 = vstv %s1874
    %v1876 = vmul.f32 %v1803, %v1875
    %s1877 = sld [smem:[#allocation7 + $0xd8]]
    %v1878 = vstv %s1877
    %v1879 = vmul.f32 %v1807, %v1878
    %s1880 = sld [smem:[#allocation7 + $0xd9]]
    %v1881 = vstv %s1880
    %v1882 = vmul.f32 %v1811, %v1881
    %s1883 = sld [smem:[#allocation7 + $0xda]]
    %v1884 = vstv %s1883
    %v1885 = vmul.f32 %v1815, %v1884
    %s1886 = sld [smem:[#allocation7 + $0xdb]]
    %v1887 = vstv %s1886
    %v1888 = vmul.f32 %v1819, %v1887
    %v1889 = vadd.f32 %v1831, %v1834
    %v1890 = vadd.f32 %v1837, %v1840
    %v1891 = vadd.f32 %v1843, %v1846
    %v1892 = vadd.f32 %v1849, %v1852
    %v1893 = vadd.f32 %v1855, %v1858
    %v1894 = vadd.f32 %v1861, %v1864
    %v1895 = vadd.f32 %v1867, %v1870
    %v1896 = vadd.f32 %v1873, %v1876
    %v1897 = vadd.f32 %v1879, %v1882
    %v1898 = vadd.f32 %v1885, %v1888
    %v1899 = vadd.f32 %v1889, %v1890
    %v1900 = vadd.f32 %v1891, %v1892
    %v1901 = vadd.f32 %v1893, %v1894
    %v1902 = vadd.f32 %v1895, %v1896
    %v1903 = vadd.f32 %v1897, %v1898
    %v1904 = vadd.f32 %v1899, %v1900
    %v1905 = vadd.f32 %v1901, %v1902
    %v1906 = vadd.f32 %v1904, %v1905
    %v1907 = vadd.f32 %v1906, %v1903
    %s1908 = sld [smem:[#allocation2 + $0xa]]
    %v1909 = vstv %s1908
    %v1910 = vadd.f32 %v1907, %v1909
    %v1911 = vtanh.pop %v1910
    %s1912 = sld [smem:[#allocation8 + $0xc8]]
    %v1913 = vstv %s1912
    %v1914 = vmul.f32 %v1911, %v1913
    %v1915 = vadd.f32 %v1743, %v1914
    %s1916 = sld [smem:[#allocation8 + $0xc9]]
    %v1917 = vstv %s1916
    %v1918 = vmul.f32 %v1911, %v1917
    %v1919 = vadd.f32 %v1747, %v1918
    %s1920 = sld [smem:[#allocation8 + $0xca]]
    %v1921 = vstv %s1920
    %v1922 = vmul.f32 %v1911, %v1921
    %v1923 = vadd.f32 %v1751, %v1922
    %s1924 = sld [smem:[#allocation8 + $0xcb]]
    %v1925 = vstv %s1924
    %v1926 = vmul.f32 %v1911, %v1925
    %v1927 = vadd.f32 %v1755, %v1926
    %s1928 = sld [smem:[#allocation8 + $0xcc]]
    %v1929 = vstv %s1928
    %v1930 = vmul.f32 %v1911, %v1929
    %v1931 = vadd.f32 %v1759, %v1930
    %s1932 = sld [smem:[#allocation8 + $0xcd]]
    %v1933 = vstv %s1932
    %v1934 = vmul.f32 %v1911, %v1933
    %v1935 = vadd.f32 %v1763, %v1934
    %s1936 = sld [smem:[#allocation8 + $0xce]]
    %v1937 = vstv %s1936
    %v1938 = vmul.f32 %v1911, %v1937
    %v1939 = vadd.f32 %v1767, %v1938
    %s1940 = sld [smem:[#allocation8 + $0xcf]]
    %v1941 = vstv %s1940
    %v1942 = vmul.f32 %v1911, %v1941
    %v1943 = vadd.f32 %v1771, %v1942
    %s1944 = sld [smem:[#allocation8 + $0xd0]]
    %v1945 = vstv %s1944
    %v1946 = vmul.f32 %v1911, %v1945
    %v1947 = vadd.f32 %v1775, %v1946
    %s1948 = sld [smem:[#allocation8 + $0xd1]]
    %v1949 = vstv %s1948
    %v1950 = vmul.f32 %v1911, %v1949
    %v1951 = vadd.f32 %v1779, %v1950
    %s1952 = sld [smem:[#allocation8 + $0xd2]]
    %v1953 = vstv %s1952
    %v1954 = vmul.f32 %v1911, %v1953
    %v1955 = vadd.f32 %v1783, %v1954
    %s1956 = sld [smem:[#allocation8 + $0xd3]]
    %v1957 = vstv %s1956
    %v1958 = vmul.f32 %v1911, %v1957
    %v1959 = vadd.f32 %v1787, %v1958
    %s1960 = sld [smem:[#allocation8 + $0xd4]]
    %v1961 = vstv %s1960
    %v1962 = vmul.f32 %v1911, %v1961
    %v1963 = vadd.f32 %v1791, %v1962
    %s1964 = sld [smem:[#allocation8 + $0xd5]]
    %v1965 = vstv %s1964
    %v1966 = vmul.f32 %v1911, %v1965
    %v1967 = vadd.f32 %v1795, %v1966
    %s1968 = sld [smem:[#allocation8 + $0xd6]]
    %v1969 = vstv %s1968
    %v1970 = vmul.f32 %v1911, %v1969
    %v1971 = vadd.f32 %v1799, %v1970
    %s1972 = sld [smem:[#allocation8 + $0xd7]]
    %v1973 = vstv %s1972
    %v1974 = vmul.f32 %v1911, %v1973
    %v1975 = vadd.f32 %v1803, %v1974
    %s1976 = sld [smem:[#allocation8 + $0xd8]]
    %v1977 = vstv %s1976
    %v1978 = vmul.f32 %v1911, %v1977
    %v1979 = vadd.f32 %v1807, %v1978
    %s1980 = sld [smem:[#allocation8 + $0xd9]]
    %v1981 = vstv %s1980
    %v1982 = vmul.f32 %v1911, %v1981
    %v1983 = vadd.f32 %v1811, %v1982
    %s1984 = sld [smem:[#allocation8 + $0xda]]
    %v1985 = vstv %s1984
    %v1986 = vmul.f32 %v1911, %v1985
    %v1987 = vadd.f32 %v1815, %v1986
    %s1988 = sld [smem:[#allocation8 + $0xdb]]
    %v1989 = vstv %s1988
    %v1990 = vmul.f32 %v1911, %v1989
    %v1991 = vadd.f32 %v1819, %v1990
    %v1992 = vmul.f32 %v1911, %v1911
    %v1993 = vsub.f32 1.0, %v1992
    %s1994 = sld [smem:[#allocation5 + $0xa]]
    %v1995 = vstv %s1994
    %v1996 = vmul.f32 %v1993, %v1995
    %v1997 = vadd.f32 %v1996, 1.0
    %v1998 = vand.u32 2147483647, %v1997
    %v1999 = vadd.f32 %v1998, 1e-08
    %v2000 = vmul.f32 %v1828, %v1999
    %s2001 = sld [smem:[#allocation7 + $0xdc]]
    %v2002 = vstv %s2001
    %v2003 = vmul.f32 %v1915, %v2002
    %s2004 = sld [smem:[#allocation7 + $0xdd]]
    %v2005 = vstv %s2004
    %v2006 = vmul.f32 %v1919, %v2005
    %s2007 = sld [smem:[#allocation7 + $0xde]]
    %v2008 = vstv %s2007
    %v2009 = vmul.f32 %v1923, %v2008
    %s2010 = sld [smem:[#allocation7 + $0xdf]]
    %v2011 = vstv %s2010
    %v2012 = vmul.f32 %v1927, %v2011
    %s2013 = sld [smem:[#allocation7 + $0xe0]]
    %v2014 = vstv %s2013
    %v2015 = vmul.f32 %v1931, %v2014
    %s2016 = sld [smem:[#allocation7 + $0xe1]]
    %v2017 = vstv %s2016
    %v2018 = vmul.f32 %v1935, %v2017
    %s2019 = sld [smem:[#allocation7 + $0xe2]]
    %v2020 = vstv %s2019
    %v2021 = vmul.f32 %v1939, %v2020
    %s2022 = sld [smem:[#allocation7 + $0xe3]]
    %v2023 = vstv %s2022
    %v2024 = vmul.f32 %v1943, %v2023
    %s2025 = sld [smem:[#allocation7 + $0xe4]]
    %v2026 = vstv %s2025
    %v2027 = vmul.f32 %v1947, %v2026
    %s2028 = sld [smem:[#allocation7 + $0xe5]]
    %v2029 = vstv %s2028
    %v2030 = vmul.f32 %v1951, %v2029
    %s2031 = sld [smem:[#allocation7 + $0xe6]]
    %v2032 = vstv %s2031
    %v2033 = vmul.f32 %v1955, %v2032
    %s2034 = sld [smem:[#allocation7 + $0xe7]]
    %v2035 = vstv %s2034
    %v2036 = vmul.f32 %v1959, %v2035
    %s2037 = sld [smem:[#allocation7 + $0xe8]]
    %v2038 = vstv %s2037
    %v2039 = vmul.f32 %v1963, %v2038
    %s2040 = sld [smem:[#allocation7 + $0xe9]]
    %v2041 = vstv %s2040
    %v2042 = vmul.f32 %v1967, %v2041
    %s2043 = sld [smem:[#allocation7 + $0xea]]
    %v2044 = vstv %s2043
    %v2045 = vmul.f32 %v1971, %v2044
    %s2046 = sld [smem:[#allocation7 + $0xeb]]
    %v2047 = vstv %s2046
    %v2048 = vmul.f32 %v1975, %v2047
    %s2049 = sld [smem:[#allocation7 + $0xec]]
    %v2050 = vstv %s2049
    %v2051 = vmul.f32 %v1979, %v2050
    %s2052 = sld [smem:[#allocation7 + $0xed]]
    %v2053 = vstv %s2052
    %v2054 = vmul.f32 %v1983, %v2053
    %s2055 = sld [smem:[#allocation7 + $0xee]]
    %v2056 = vstv %s2055
    %v2057 = vmul.f32 %v1987, %v2056
    %s2058 = sld [smem:[#allocation7 + $0xef]]
    %v2059 = vstv %s2058
    %v2060 = vmul.f32 %v1991, %v2059
    %v2061 = vadd.f32 %v2003, %v2006
    %v2062 = vadd.f32 %v2009, %v2012
    %v2063 = vadd.f32 %v2015, %v2018
    %v2064 = vadd.f32 %v2021, %v2024
    %v2065 = vadd.f32 %v2027, %v2030
    %v2066 = vadd.f32 %v2033, %v2036
    %v2067 = vadd.f32 %v2039, %v2042
    %v2068 = vadd.f32 %v2045, %v2048
    %v2069 = vadd.f32 %v2051, %v2054
    %v2070 = vadd.f32 %v2057, %v2060
    %v2071 = vadd.f32 %v2061, %v2062
    %v2072 = vadd.f32 %v2063, %v2064
    %v2073 = vadd.f32 %v2065, %v2066
    %v2074 = vadd.f32 %v2067, %v2068
    %v2075 = vadd.f32 %v2069, %v2070
    %v2076 = vadd.f32 %v2071, %v2072
    %v2077 = vadd.f32 %v2073, %v2074
    %v2078 = vadd.f32 %v2076, %v2077
    %v2079 = vadd.f32 %v2078, %v2075
    %s2080 = sld [smem:[#allocation2 + $0xb]]
    %v2081 = vstv %s2080
    %v2082 = vadd.f32 %v2079, %v2081
    %v2083 = vtanh.pop %v2082
    %s2084 = sld [smem:[#allocation8 + $0xdc]]
    %v2085 = vstv %s2084
    %v2086 = vmul.f32 %v2083, %v2085
    %v2087 = vadd.f32 %v1915, %v2086
    %s2088 = sld [smem:[#allocation8 + $0xdd]]
    %v2089 = vstv %s2088
    %v2090 = vmul.f32 %v2083, %v2089
    %v2091 = vadd.f32 %v1919, %v2090
    %s2092 = sld [smem:[#allocation8 + $0xde]]
    %v2093 = vstv %s2092
    %v2094 = vmul.f32 %v2083, %v2093
    %v2095 = vadd.f32 %v1923, %v2094
    %s2096 = sld [smem:[#allocation8 + $0xdf]]
    %v2097 = vstv %s2096
    %v2098 = vmul.f32 %v2083, %v2097
    %v2099 = vadd.f32 %v1927, %v2098
    %s2100 = sld [smem:[#allocation8 + $0xe0]]
    %v2101 = vstv %s2100
    %v2102 = vmul.f32 %v2083, %v2101
    %v2103 = vadd.f32 %v1931, %v2102
    %s2104 = sld [smem:[#allocation8 + $0xe1]]
    %v2105 = vstv %s2104
    %v2106 = vmul.f32 %v2083, %v2105
    %v2107 = vadd.f32 %v1935, %v2106
    %s2108 = sld [smem:[#allocation8 + $0xe2]]
    %v2109 = vstv %s2108
    %v2110 = vmul.f32 %v2083, %v2109
    %v2111 = vadd.f32 %v1939, %v2110
    %s2112 = sld [smem:[#allocation8 + $0xe3]]
    %v2113 = vstv %s2112
    %v2114 = vmul.f32 %v2083, %v2113
    %v2115 = vadd.f32 %v1943, %v2114
    %s2116 = sld [smem:[#allocation8 + $0xe4]]
    %v2117 = vstv %s2116
    %v2118 = vmul.f32 %v2083, %v2117
    %v2119 = vadd.f32 %v1947, %v2118
    %s2120 = sld [smem:[#allocation8 + $0xe5]]
    %v2121 = vstv %s2120
    %v2122 = vmul.f32 %v2083, %v2121
    %v2123 = vadd.f32 %v1951, %v2122
    %s2124 = sld [smem:[#allocation8 + $0xe6]]
    %v2125 = vstv %s2124
    %v2126 = vmul.f32 %v2083, %v2125
    %v2127 = vadd.f32 %v1955, %v2126
    %s2128 = sld [smem:[#allocation8 + $0xe7]]
    %v2129 = vstv %s2128
    %v2130 = vmul.f32 %v2083, %v2129
    %v2131 = vadd.f32 %v1959, %v2130
    %s2132 = sld [smem:[#allocation8 + $0xe8]]
    %v2133 = vstv %s2132
    %v2134 = vmul.f32 %v2083, %v2133
    %v2135 = vadd.f32 %v1963, %v2134
    %s2136 = sld [smem:[#allocation8 + $0xe9]]
    %v2137 = vstv %s2136
    %v2138 = vmul.f32 %v2083, %v2137
    %v2139 = vadd.f32 %v1967, %v2138
    %s2140 = sld [smem:[#allocation8 + $0xea]]
    %v2141 = vstv %s2140
    %v2142 = vmul.f32 %v2083, %v2141
    %v2143 = vadd.f32 %v1971, %v2142
    %s2144 = sld [smem:[#allocation8 + $0xeb]]
    %v2145 = vstv %s2144
    %v2146 = vmul.f32 %v2083, %v2145
    %v2147 = vadd.f32 %v1975, %v2146
    %s2148 = sld [smem:[#allocation8 + $0xec]]
    %v2149 = vstv %s2148
    %v2150 = vmul.f32 %v2083, %v2149
    %v2151 = vadd.f32 %v1979, %v2150
    %s2152 = sld [smem:[#allocation8 + $0xed]]
    %v2153 = vstv %s2152
    %v2154 = vmul.f32 %v2083, %v2153
    %v2155 = vadd.f32 %v1983, %v2154
    %s2156 = sld [smem:[#allocation8 + $0xee]]
    %v2157 = vstv %s2156
    %v2158 = vmul.f32 %v2083, %v2157
    %v2159 = vadd.f32 %v1987, %v2158
    %s2160 = sld [smem:[#allocation8 + $0xef]]
    %v2161 = vstv %s2160
    %v2162 = vmul.f32 %v2083, %v2161
    %v2163 = vadd.f32 %v1991, %v2162
    %v2164 = vmul.f32 %v2083, %v2083
    %v2165 = vsub.f32 1.0, %v2164
    %s2166 = sld [smem:[#allocation5 + $0xb]]
    %v2167 = vstv %s2166
    %v2168 = vmul.f32 %v2165, %v2167
    %v2169 = vadd.f32 %v2168, 1.0
    %v2170 = vand.u32 2147483647, %v2169
    %v2171 = vadd.f32 %v2170, 1e-08
    %v2172 = vmul.f32 %v2000, %v2171
    %s2173 = sld [smem:[#allocation7 + $0xf0]]
    %v2174 = vstv %s2173
    %v2175 = vmul.f32 %v2087, %v2174
    %s2176 = sld [smem:[#allocation7 + $0xf1]]
    %v2177 = vstv %s2176
    %v2178 = vmul.f32 %v2091, %v2177
    %s2179 = sld [smem:[#allocation7 + $0xf2]]
    %v2180 = vstv %s2179
    %v2181 = vmul.f32 %v2095, %v2180
    %s2182 = sld [smem:[#allocation7 + $0xf3]]
    %v2183 = vstv %s2182
    %v2184 = vmul.f32 %v2099, %v2183
    %s2185 = sld [smem:[#allocation7 + $0xf4]]
    %v2186 = vstv %s2185
    %v2187 = vmul.f32 %v2103, %v2186
    %s2188 = sld [smem:[#allocation7 + $0xf5]]
    %v2189 = vstv %s2188
    %v2190 = vmul.f32 %v2107, %v2189
    %s2191 = sld [smem:[#allocation7 + $0xf6]]
    %v2192 = vstv %s2191
    %v2193 = vmul.f32 %v2111, %v2192
    %s2194 = sld [smem:[#allocation7 + $0xf7]]
    %v2195 = vstv %s2194
    %v2196 = vmul.f32 %v2115, %v2195
    %s2197 = sld [smem:[#allocation7 + $0xf8]]
    %v2198 = vstv %s2197
    %v2199 = vmul.f32 %v2119, %v2198
    %s2200 = sld [smem:[#allocation7 + $0xf9]]
    %v2201 = vstv %s2200
    %v2202 = vmul.f32 %v2123, %v2201
    %s2203 = sld [smem:[#allocation7 + $0xfa]]
    %v2204 = vstv %s2203
    %v2205 = vmul.f32 %v2127, %v2204
    %s2206 = sld [smem:[#allocation7 + $0xfb]]
    %v2207 = vstv %s2206
    %v2208 = vmul.f32 %v2131, %v2207
    %s2209 = sld [smem:[#allocation7 + $0xfc]]
    %v2210 = vstv %s2209
    %v2211 = vmul.f32 %v2135, %v2210
    %s2212 = sld [smem:[#allocation7 + $0xfd]]
    %v2213 = vstv %s2212
    %v2214 = vmul.f32 %v2139, %v2213
    %s2215 = sld [smem:[#allocation7 + $0xfe]]
    %v2216 = vstv %s2215
    %v2217 = vmul.f32 %v2143, %v2216
    %s2218 = sld [smem:[#allocation7 + $0xff]]
    %v2219 = vstv %s2218
    %v2220 = vmul.f32 %v2147, %v2219
    %s2221 = sld [smem:[#allocation7 + $0x100]]
    %v2222 = vstv %s2221
    %v2223 = vmul.f32 %v2151, %v2222
    %s2224 = sld [smem:[#allocation7 + $0x101]]
    %v2225 = vstv %s2224
    %v2226 = vmul.f32 %v2155, %v2225
    %s2227 = sld [smem:[#allocation7 + $0x102]]
    %v2228 = vstv %s2227
    %v2229 = vmul.f32 %v2159, %v2228
    %s2230 = sld [smem:[#allocation7 + $0x103]]
    %v2231 = vstv %s2230
    %v2232 = vmul.f32 %v2163, %v2231
    %v2233 = vadd.f32 %v2175, %v2178
    %v2234 = vadd.f32 %v2181, %v2184
    %v2235 = vadd.f32 %v2187, %v2190
    %v2236 = vadd.f32 %v2193, %v2196
    %v2237 = vadd.f32 %v2199, %v2202
    %v2238 = vadd.f32 %v2205, %v2208
    %v2239 = vadd.f32 %v2211, %v2214
    %v2240 = vadd.f32 %v2217, %v2220
    %v2241 = vadd.f32 %v2223, %v2226
    %v2242 = vadd.f32 %v2229, %v2232
    %v2243 = vadd.f32 %v2233, %v2234
    %v2244 = vadd.f32 %v2235, %v2236
    %v2245 = vadd.f32 %v2237, %v2238
    %v2246 = vadd.f32 %v2239, %v2240
    %v2247 = vadd.f32 %v2241, %v2242
    %v2248 = vadd.f32 %v2243, %v2244
    %v2249 = vadd.f32 %v2245, %v2246
    %v2250 = vadd.f32 %v2248, %v2249
    %v2251 = vadd.f32 %v2250, %v2247
    %s2252 = sld [smem:[#allocation2 + $0xc]]
    %v2253 = vstv %s2252
    %v2254 = vadd.f32 %v2251, %v2253
    %v2255 = vtanh.pop %v2254
    %s2256 = sld [smem:[#allocation8 + $0xf0]]
    %v2257 = vstv %s2256
    %v2258 = vmul.f32 %v2255, %v2257
    %v2259 = vadd.f32 %v2087, %v2258
    %s2260 = sld [smem:[#allocation8 + $0xf1]]
    %v2261 = vstv %s2260
    %v2262 = vmul.f32 %v2255, %v2261
    %v2263 = vadd.f32 %v2091, %v2262
    %s2264 = sld [smem:[#allocation8 + $0xf2]]
    %v2265 = vstv %s2264
    %v2266 = vmul.f32 %v2255, %v2265
    %v2267 = vadd.f32 %v2095, %v2266
    %s2268 = sld [smem:[#allocation8 + $0xf3]]
    %v2269 = vstv %s2268
    %v2270 = vmul.f32 %v2255, %v2269
    %v2271 = vadd.f32 %v2099, %v2270
    %s2272 = sld [smem:[#allocation8 + $0xf4]]
    %v2273 = vstv %s2272
    %v2274 = vmul.f32 %v2255, %v2273
    %v2275 = vadd.f32 %v2103, %v2274
    %s2276 = sld [smem:[#allocation8 + $0xf5]]
    %v2277 = vstv %s2276
    %v2278 = vmul.f32 %v2255, %v2277
    %v2279 = vadd.f32 %v2107, %v2278
    %s2280 = sld [smem:[#allocation8 + $0xf6]]
    %v2281 = vstv %s2280
    %v2282 = vmul.f32 %v2255, %v2281
    %v2283 = vadd.f32 %v2111, %v2282
    %s2284 = sld [smem:[#allocation8 + $0xf7]]
    %v2285 = vstv %s2284
    %v2286 = vmul.f32 %v2255, %v2285
    %v2287 = vadd.f32 %v2115, %v2286
    %s2288 = sld [smem:[#allocation8 + $0xf8]]
    %v2289 = vstv %s2288
    %v2290 = vmul.f32 %v2255, %v2289
    %v2291 = vadd.f32 %v2119, %v2290
    %s2292 = sld [smem:[#allocation8 + $0xf9]]
    %v2293 = vstv %s2292
    %v2294 = vmul.f32 %v2255, %v2293
    %v2295 = vadd.f32 %v2123, %v2294
    %s2296 = sld [smem:[#allocation8 + $0xfa]]
    %v2297 = vstv %s2296
    %v2298 = vmul.f32 %v2255, %v2297
    %v2299 = vadd.f32 %v2127, %v2298
    %s2300 = sld [smem:[#allocation8 + $0xfb]]
    %v2301 = vstv %s2300
    %v2302 = vmul.f32 %v2255, %v2301
    %v2303 = vadd.f32 %v2131, %v2302
    %s2304 = sld [smem:[#allocation8 + $0xfc]]
    %v2305 = vstv %s2304
    %v2306 = vmul.f32 %v2255, %v2305
    %v2307 = vadd.f32 %v2135, %v2306
    %s2308 = sld [smem:[#allocation8 + $0xfd]]
    %v2309 = vstv %s2308
    %v2310 = vmul.f32 %v2255, %v2309
    %v2311 = vadd.f32 %v2139, %v2310
    %s2312 = sld [smem:[#allocation8 + $0xfe]]
    %v2313 = vstv %s2312
    %v2314 = vmul.f32 %v2255, %v2313
    %v2315 = vadd.f32 %v2143, %v2314
    %s2316 = sld [smem:[#allocation8 + $0xff]]
    %v2317 = vstv %s2316
    %v2318 = vmul.f32 %v2255, %v2317
    %v2319 = vadd.f32 %v2147, %v2318
    %s2320 = sld [smem:[#allocation8 + $0x100]]
    %v2321 = vstv %s2320
    %v2322 = vmul.f32 %v2255, %v2321
    %v2323 = vadd.f32 %v2151, %v2322
    %s2324 = sld [smem:[#allocation8 + $0x101]]
    %v2325 = vstv %s2324
    %v2326 = vmul.f32 %v2255, %v2325
    %v2327 = vadd.f32 %v2155, %v2326
    %s2328 = sld [smem:[#allocation8 + $0x102]]
    %v2329 = vstv %s2328
    %v2330 = vmul.f32 %v2255, %v2329
    %v2331 = vadd.f32 %v2159, %v2330
    %s2332 = sld [smem:[#allocation8 + $0x103]]
    %v2333 = vstv %s2332
    %v2334 = vmul.f32 %v2255, %v2333
    %v2335 = vadd.f32 %v2163, %v2334
    %v2336 = vmul.f32 %v2255, %v2255
    %v2337 = vsub.f32 1.0, %v2336
    %s2338 = sld [smem:[#allocation5 + $0xc]]
    %v2339 = vstv %s2338
    %v2340 = vmul.f32 %v2337, %v2339
    %v2341 = vadd.f32 %v2340, 1.0
    %v2342 = vand.u32 2147483647, %v2341
    %v2343 = vadd.f32 %v2342, 1e-08
    %v2344 = vmul.f32 %v2172, %v2343
    %s2345 = sld [smem:[#allocation7 + $0x104]]
    %v2346 = vstv %s2345
    %v2347 = vmul.f32 %v2259, %v2346
    %s2348 = sld [smem:[#allocation7 + $0x105]]
    %v2349 = vstv %s2348
    %v2350 = vmul.f32 %v2263, %v2349
    %s2351 = sld [smem:[#allocation7 + $0x106]]
    %v2352 = vstv %s2351
    %v2353 = vmul.f32 %v2267, %v2352
    %s2354 = sld [smem:[#allocation7 + $0x107]]
    %v2355 = vstv %s2354
    %v2356 = vmul.f32 %v2271, %v2355
    %s2357 = sld [smem:[#allocation7 + $0x108]]
    %v2358 = vstv %s2357
    %v2359 = vmul.f32 %v2275, %v2358
    %s2360 = sld [smem:[#allocation7 + $0x109]]
    %v2361 = vstv %s2360
    %v2362 = vmul.f32 %v2279, %v2361
    %s2363 = sld [smem:[#allocation7 + $0x10a]]
    %v2364 = vstv %s2363
    %v2365 = vmul.f32 %v2283, %v2364
    %s2366 = sld [smem:[#allocation7 + $0x10b]]
    %v2367 = vstv %s2366
    %v2368 = vmul.f32 %v2287, %v2367
    %s2369 = sld [smem:[#allocation7 + $0x10c]]
    %v2370 = vstv %s2369
    %v2371 = vmul.f32 %v2291, %v2370
    %s2372 = sld [smem:[#allocation7 + $0x10d]]
    %v2373 = vstv %s2372
    %v2374 = vmul.f32 %v2295, %v2373
    %s2375 = sld [smem:[#allocation7 + $0x10e]]
    %v2376 = vstv %s2375
    %v2377 = vmul.f32 %v2299, %v2376
    %s2378 = sld [smem:[#allocation7 + $0x10f]]
    %v2379 = vstv %s2378
    %v2380 = vmul.f32 %v2303, %v2379
    %s2381 = sld [smem:[#allocation7 + $0x110]]
    %v2382 = vstv %s2381
    %v2383 = vmul.f32 %v2307, %v2382
    %s2384 = sld [smem:[#allocation7 + $0x111]]
    %v2385 = vstv %s2384
    %v2386 = vmul.f32 %v2311, %v2385
    %s2387 = sld [smem:[#allocation7 + $0x112]]
    %v2388 = vstv %s2387
    %v2389 = vmul.f32 %v2315, %v2388
    %s2390 = sld [smem:[#allocation7 + $0x113]]
    %v2391 = vstv %s2390
    %v2392 = vmul.f32 %v2319, %v2391
    %s2393 = sld [smem:[#allocation7 + $0x114]]
    %v2394 = vstv %s2393
    %v2395 = vmul.f32 %v2323, %v2394
    %s2396 = sld [smem:[#allocation7 + $0x115]]
    %v2397 = vstv %s2396
    %v2398 = vmul.f32 %v2327, %v2397
    %s2399 = sld [smem:[#allocation7 + $0x116]]
    %v2400 = vstv %s2399
    %v2401 = vmul.f32 %v2331, %v2400
    %s2402 = sld [smem:[#allocation7 + $0x117]]
    %v2403 = vstv %s2402
    %v2404 = vmul.f32 %v2335, %v2403
    %v2405 = vadd.f32 %v2347, %v2350
    %v2406 = vadd.f32 %v2353, %v2356
    %v2407 = vadd.f32 %v2359, %v2362
    %v2408 = vadd.f32 %v2365, %v2368
    %v2409 = vadd.f32 %v2371, %v2374
    %v2410 = vadd.f32 %v2377, %v2380
    %v2411 = vadd.f32 %v2383, %v2386
    %v2412 = vadd.f32 %v2389, %v2392
    %v2413 = vadd.f32 %v2395, %v2398
    %v2414 = vadd.f32 %v2401, %v2404
    %v2415 = vadd.f32 %v2405, %v2406
    %v2416 = vadd.f32 %v2407, %v2408
    %v2417 = vadd.f32 %v2409, %v2410
    %v2418 = vadd.f32 %v2411, %v2412
    %v2419 = vadd.f32 %v2413, %v2414
    %v2420 = vadd.f32 %v2415, %v2416
    %v2421 = vadd.f32 %v2417, %v2418
    %v2422 = vadd.f32 %v2420, %v2421
    %v2423 = vadd.f32 %v2422, %v2419
    %s2424 = sld [smem:[#allocation2 + $0xd]]
    %v2425 = vstv %s2424
    %v2426 = vadd.f32 %v2423, %v2425
    %v2427 = vtanh.pop %v2426
    %s2428 = sld [smem:[#allocation8 + $0x104]]
    %v2429 = vstv %s2428
    %v2430 = vmul.f32 %v2427, %v2429
    %v2431 = vadd.f32 %v2259, %v2430
    %s2432 = sld [smem:[#allocation8 + $0x105]]
    %v2433 = vstv %s2432
    %v2434 = vmul.f32 %v2427, %v2433
    %v2435 = vadd.f32 %v2263, %v2434
    %s2436 = sld [smem:[#allocation8 + $0x106]]
    %v2437 = vstv %s2436
    %v2438 = vmul.f32 %v2427, %v2437
    %v2439 = vadd.f32 %v2267, %v2438
    %s2440 = sld [smem:[#allocation8 + $0x107]]
    %v2441 = vstv %s2440
    %v2442 = vmul.f32 %v2427, %v2441
    %v2443 = vadd.f32 %v2271, %v2442
    %s2444 = sld [smem:[#allocation8 + $0x108]]
    %v2445 = vstv %s2444
    %v2446 = vmul.f32 %v2427, %v2445
    %v2447 = vadd.f32 %v2275, %v2446
    %s2448 = sld [smem:[#allocation8 + $0x109]]
    %v2449 = vstv %s2448
    %v2450 = vmul.f32 %v2427, %v2449
    %v2451 = vadd.f32 %v2279, %v2450
    %s2452 = sld [smem:[#allocation8 + $0x10a]]
    %v2453 = vstv %s2452
    %v2454 = vmul.f32 %v2427, %v2453
    %v2455 = vadd.f32 %v2283, %v2454
    %s2456 = sld [smem:[#allocation8 + $0x10b]]
    %v2457 = vstv %s2456
    %v2458 = vmul.f32 %v2427, %v2457
    %v2459 = vadd.f32 %v2287, %v2458
    %s2460 = sld [smem:[#allocation8 + $0x10c]]
    %v2461 = vstv %s2460
    %v2462 = vmul.f32 %v2427, %v2461
    %v2463 = vadd.f32 %v2291, %v2462
    %s2464 = sld [smem:[#allocation8 + $0x10d]]
    %v2465 = vstv %s2464
    %v2466 = vmul.f32 %v2427, %v2465
    %v2467 = vadd.f32 %v2295, %v2466
    %s2468 = sld [smem:[#allocation8 + $0x10e]]
    %v2469 = vstv %s2468
    %v2470 = vmul.f32 %v2427, %v2469
    %v2471 = vadd.f32 %v2299, %v2470
    %s2472 = sld [smem:[#allocation8 + $0x10f]]
    %v2473 = vstv %s2472
    %v2474 = vmul.f32 %v2427, %v2473
    %v2475 = vadd.f32 %v2303, %v2474
    %s2476 = sld [smem:[#allocation8 + $0x110]]
    %v2477 = vstv %s2476
    %v2478 = vmul.f32 %v2427, %v2477
    %v2479 = vadd.f32 %v2307, %v2478
    %s2480 = sld [smem:[#allocation8 + $0x111]]
    %v2481 = vstv %s2480
    %v2482 = vmul.f32 %v2427, %v2481
    %v2483 = vadd.f32 %v2311, %v2482
    %s2484 = sld [smem:[#allocation8 + $0x112]]
    %v2485 = vstv %s2484
    %v2486 = vmul.f32 %v2427, %v2485
    %v2487 = vadd.f32 %v2315, %v2486
    %s2488 = sld [smem:[#allocation8 + $0x113]]
    %v2489 = vstv %s2488
    %v2490 = vmul.f32 %v2427, %v2489
    %v2491 = vadd.f32 %v2319, %v2490
    %s2492 = sld [smem:[#allocation8 + $0x114]]
    %v2493 = vstv %s2492
    %v2494 = vmul.f32 %v2427, %v2493
    %v2495 = vadd.f32 %v2323, %v2494
    %s2496 = sld [smem:[#allocation8 + $0x115]]
    %v2497 = vstv %s2496
    %v2498 = vmul.f32 %v2427, %v2497
    %v2499 = vadd.f32 %v2327, %v2498
    %s2500 = sld [smem:[#allocation8 + $0x116]]
    %v2501 = vstv %s2500
    %v2502 = vmul.f32 %v2427, %v2501
    %v2503 = vadd.f32 %v2331, %v2502
    %s2504 = sld [smem:[#allocation8 + $0x117]]
    %v2505 = vstv %s2504
    %v2506 = vmul.f32 %v2427, %v2505
    %v2507 = vadd.f32 %v2335, %v2506
    %v2508 = vmul.f32 %v2427, %v2427
    %v2509 = vsub.f32 1.0, %v2508
    %s2510 = sld [smem:[#allocation5 + $0xd]]
    %v2511 = vstv %s2510
    %v2512 = vmul.f32 %v2509, %v2511
    %v2513 = vadd.f32 %v2512, 1.0
    %v2514 = vand.u32 2147483647, %v2513
    %v2515 = vadd.f32 %v2514, 1e-08
    %v2516 = vmul.f32 %v2344, %v2515
    %s2517 = sld [smem:[#allocation7 + $0x118]]
    %v2518 = vstv %s2517
    %v2519 = vmul.f32 %v2431, %v2518
    %s2520 = sld [smem:[#allocation7 + $0x119]]
    %v2521 = vstv %s2520
    %v2522 = vmul.f32 %v2435, %v2521
    %s2523 = sld [smem:[#allocation7 + $0x11a]]
    %v2524 = vstv %s2523
    %v2525 = vmul.f32 %v2439, %v2524
    %s2526 = sld [smem:[#allocation7 + $0x11b]]
    %v2527 = vstv %s2526
    %v2528 = vmul.f32 %v2443, %v2527
    %s2529 = sld [smem:[#allocation7 + $0x11c]]
    %v2530 = vstv %s2529
    %v2531 = vmul.f32 %v2447, %v2530
    %s2532 = sld [smem:[#allocation7 + $0x11d]]
    %v2533 = vstv %s2532
    %v2534 = vmul.f32 %v2451, %v2533
    %s2535 = sld [smem:[#allocation7 + $0x11e]]
    %v2536 = vstv %s2535
    %v2537 = vmul.f32 %v2455, %v2536
    %s2538 = sld [smem:[#allocation7 + $0x11f]]
    %v2539 = vstv %s2538
    %v2540 = vmul.f32 %v2459, %v2539
    %s2541 = sld [smem:[#allocation7 + $0x120]]
    %v2542 = vstv %s2541
    %v2543 = vmul.f32 %v2463, %v2542
    %s2544 = sld [smem:[#allocation7 + $0x121]]
    %v2545 = vstv %s2544
    %v2546 = vmul.f32 %v2467, %v2545
    %s2547 = sld [smem:[#allocation7 + $0x122]]
    %v2548 = vstv %s2547
    %v2549 = vmul.f32 %v2471, %v2548
    %s2550 = sld [smem:[#allocation7 + $0x123]]
    %v2551 = vstv %s2550
    %v2552 = vmul.f32 %v2475, %v2551
    %s2553 = sld [smem:[#allocation7 + $0x124]]
    %v2554 = vstv %s2553
    %v2555 = vmul.f32 %v2479, %v2554
    %s2556 = sld [smem:[#allocation7 + $0x125]]
    %v2557 = vstv %s2556
    %v2558 = vmul.f32 %v2483, %v2557
    %s2559 = sld [smem:[#allocation7 + $0x126]]
    %v2560 = vstv %s2559
    %v2561 = vmul.f32 %v2487, %v2560
    %s2562 = sld [smem:[#allocation7 + $0x127]]
    %v2563 = vstv %s2562
    %v2564 = vmul.f32 %v2491, %v2563
    %s2565 = sld [smem:[#allocation7 + $0x128]]
    %v2566 = vstv %s2565
    %v2567 = vmul.f32 %v2495, %v2566
    %s2568 = sld [smem:[#allocation7 + $0x129]]
    %v2569 = vstv %s2568
    %v2570 = vmul.f32 %v2499, %v2569
    %s2571 = sld [smem:[#allocation7 + $0x12a]]
    %v2572 = vstv %s2571
    %v2573 = vmul.f32 %v2503, %v2572
    %s2574 = sld [smem:[#allocation7 + $0x12b]]
    %v2575 = vstv %s2574
    %v2576 = vmul.f32 %v2507, %v2575
    %v2577 = vadd.f32 %v2519, %v2522
    %v2578 = vadd.f32 %v2525, %v2528
    %v2579 = vadd.f32 %v2531, %v2534
    %v2580 = vadd.f32 %v2537, %v2540
    %v2581 = vadd.f32 %v2543, %v2546
    %v2582 = vadd.f32 %v2549, %v2552
    %v2583 = vadd.f32 %v2555, %v2558
    %v2584 = vadd.f32 %v2561, %v2564
    %v2585 = vadd.f32 %v2567, %v2570
    %v2586 = vadd.f32 %v2573, %v2576
    %v2587 = vadd.f32 %v2577, %v2578
    %v2588 = vadd.f32 %v2579, %v2580
    %v2589 = vadd.f32 %v2581, %v2582
    %v2590 = vadd.f32 %v2583, %v2584
    %v2591 = vadd.f32 %v2585, %v2586
    %v2592 = vadd.f32 %v2587, %v2588
    %v2593 = vadd.f32 %v2589, %v2590
    %v2594 = vadd.f32 %v2592, %v2593
    %v2595 = vadd.f32 %v2594, %v2591
    %s2596 = sld [smem:[#allocation2 + $0xe]]
    %v2597 = vstv %s2596
    %v2598 = vadd.f32 %v2595, %v2597
    %v2599 = vtanh.pop %v2598
    %s2600 = sld [smem:[#allocation8 + $0x118]]
    %v2601 = vstv %s2600
    %v2602 = vmul.f32 %v2599, %v2601
    %v2603 = vadd.f32 %v2431, %v2602
    %s2604 = sld [smem:[#allocation8 + $0x119]]
    %v2605 = vstv %s2604
    %v2606 = vmul.f32 %v2599, %v2605
    %v2607 = vadd.f32 %v2435, %v2606
    %s2608 = sld [smem:[#allocation8 + $0x11a]]
    %v2609 = vstv %s2608
    %v2610 = vmul.f32 %v2599, %v2609
    %v2611 = vadd.f32 %v2439, %v2610
    %s2612 = sld [smem:[#allocation8 + $0x11b]]
    %v2613 = vstv %s2612
    %v2614 = vmul.f32 %v2599, %v2613
    %v2615 = vadd.f32 %v2443, %v2614
    %s2616 = sld [smem:[#allocation8 + $0x11c]]
    %v2617 = vstv %s2616
    %v2618 = vmul.f32 %v2599, %v2617
    %v2619 = vadd.f32 %v2447, %v2618
    %s2620 = sld [smem:[#allocation8 + $0x11d]]
    %v2621 = vstv %s2620
    %v2622 = vmul.f32 %v2599, %v2621
    %v2623 = vadd.f32 %v2451, %v2622
    %s2624 = sld [smem:[#allocation8 + $0x11e]]
    %v2625 = vstv %s2624
    %v2626 = vmul.f32 %v2599, %v2625
    %v2627 = vadd.f32 %v2455, %v2626
    %s2628 = sld [smem:[#allocation8 + $0x11f]]
    %v2629 = vstv %s2628
    %v2630 = vmul.f32 %v2599, %v2629
    %v2631 = vadd.f32 %v2459, %v2630
    %s2632 = sld [smem:[#allocation8 + $0x120]]
    %v2633 = vstv %s2632
    %v2634 = vmul.f32 %v2599, %v2633
    %v2635 = vadd.f32 %v2463, %v2634
    %s2636 = sld [smem:[#allocation8 + $0x121]]
    %v2637 = vstv %s2636
    %v2638 = vmul.f32 %v2599, %v2637
    %v2639 = vadd.f32 %v2467, %v2638
    %s2640 = sld [smem:[#allocation8 + $0x122]]
    %v2641 = vstv %s2640
    %v2642 = vmul.f32 %v2599, %v2641
    %v2643 = vadd.f32 %v2471, %v2642
    %s2644 = sld [smem:[#allocation8 + $0x123]]
    %v2645 = vstv %s2644
    %v2646 = vmul.f32 %v2599, %v2645
    %v2647 = vadd.f32 %v2475, %v2646
    %s2648 = sld [smem:[#allocation8 + $0x124]]
    %v2649 = vstv %s2648
    %v2650 = vmul.f32 %v2599, %v2649
    %v2651 = vadd.f32 %v2479, %v2650
    %s2652 = sld [smem:[#allocation8 + $0x125]]
    %v2653 = vstv %s2652
    %v2654 = vmul.f32 %v2599, %v2653
    %v2655 = vadd.f32 %v2483, %v2654
    %s2656 = sld [smem:[#allocation8 + $0x126]]
    %v2657 = vstv %s2656
    %v2658 = vmul.f32 %v2599, %v2657
    %v2659 = vadd.f32 %v2487, %v2658
    %s2660 = sld [smem:[#allocation8 + $0x127]]
    %v2661 = vstv %s2660
    %v2662 = vmul.f32 %v2599, %v2661
    %v2663 = vadd.f32 %v2491, %v2662
    %s2664 = sld [smem:[#allocation8 + $0x128]]
    %v2665 = vstv %s2664
    %v2666 = vmul.f32 %v2599, %v2665
    %v2667 = vadd.f32 %v2495, %v2666
    %s2668 = sld [smem:[#allocation8 + $0x129]]
    %v2669 = vstv %s2668
    %v2670 = vmul.f32 %v2599, %v2669
    %v2671 = vadd.f32 %v2499, %v2670
    %s2672 = sld [smem:[#allocation8 + $0x12a]]
    %v2673 = vstv %s2672
    %v2674 = vmul.f32 %v2599, %v2673
    %v2675 = vadd.f32 %v2503, %v2674
    %s2676 = sld [smem:[#allocation8 + $0x12b]]
    %v2677 = vstv %s2676
    %v2678 = vmul.f32 %v2599, %v2677
    %v2679 = vadd.f32 %v2507, %v2678
    %v2680 = vmul.f32 %v2599, %v2599
    %v2681 = vsub.f32 1.0, %v2680
    %s2682 = sld [smem:[#allocation5 + $0xe]]
    %v2683 = vstv %s2682
    %v2684 = vmul.f32 %v2681, %v2683
    %v2685 = vadd.f32 %v2684, 1.0
    %v2686 = vand.u32 2147483647, %v2685
    %v2687 = vadd.f32 %v2686, 1e-08
    %v2688 = vmul.f32 %v2516, %v2687
    %s2689 = sld [smem:[#allocation7 + $0x12c]]
    %v2690 = vstv %s2689
    %v2691 = vmul.f32 %v2603, %v2690
    %s2692 = sld [smem:[#allocation7 + $0x12d]]
    %v2693 = vstv %s2692
    %v2694 = vmul.f32 %v2607, %v2693
    %s2695 = sld [smem:[#allocation7 + $0x12e]]
    %v2696 = vstv %s2695
    %v2697 = vmul.f32 %v2611, %v2696
    %s2698 = sld [smem:[#allocation7 + $0x12f]]
    %v2699 = vstv %s2698
    %v2700 = vmul.f32 %v2615, %v2699
    %s2701 = sld [smem:[#allocation7 + $0x130]]
    %v2702 = vstv %s2701
    %v2703 = vmul.f32 %v2619, %v2702
    %s2704 = sld [smem:[#allocation7 + $0x131]]
    %v2705 = vstv %s2704
    %v2706 = vmul.f32 %v2623, %v2705
    %s2707 = sld [smem:[#allocation7 + $0x132]]
    %v2708 = vstv %s2707
    %v2709 = vmul.f32 %v2627, %v2708
    %s2710 = sld [smem:[#allocation7 + $0x133]]
    %v2711 = vstv %s2710
    %v2712 = vmul.f32 %v2631, %v2711
    %s2713 = sld [smem:[#allocation7 + $0x134]]
    %v2714 = vstv %s2713
    %v2715 = vmul.f32 %v2635, %v2714
    %s2716 = sld [smem:[#allocation7 + $0x135]]
    %v2717 = vstv %s2716
    %v2718 = vmul.f32 %v2639, %v2717
    %s2719 = sld [smem:[#allocation7 + $0x136]]
    %v2720 = vstv %s2719
    %v2721 = vmul.f32 %v2643, %v2720
    %s2722 = sld [smem:[#allocation7 + $0x137]]
    %v2723 = vstv %s2722
    %v2724 = vmul.f32 %v2647, %v2723
    %s2725 = sld [smem:[#allocation7 + $0x138]]
    %v2726 = vstv %s2725
    %v2727 = vmul.f32 %v2651, %v2726
    %s2728 = sld [smem:[#allocation7 + $0x139]]
    %v2729 = vstv %s2728
    %v2730 = vmul.f32 %v2655, %v2729
    %s2731 = sld [smem:[#allocation7 + $0x13a]]
    %v2732 = vstv %s2731
    %v2733 = vmul.f32 %v2659, %v2732
    %s2734 = sld [smem:[#allocation7 + $0x13b]]
    %v2735 = vstv %s2734
    %v2736 = vmul.f32 %v2663, %v2735
    %s2737 = sld [smem:[#allocation7 + $0x13c]]
    %v2738 = vstv %s2737
    %v2739 = vmul.f32 %v2667, %v2738
    %s2740 = sld [smem:[#allocation7 + $0x13d]]
    %v2741 = vstv %s2740
    %v2742 = vmul.f32 %v2671, %v2741
    %s2743 = sld [smem:[#allocation7 + $0x13e]]
    %v2744 = vstv %s2743
    %v2745 = vmul.f32 %v2675, %v2744
    %s2746 = sld [smem:[#allocation7 + $0x13f]]
    %v2747 = vstv %s2746
    %v2748 = vmul.f32 %v2679, %v2747
    %v2749 = vadd.f32 %v2691, %v2694
    %v2750 = vadd.f32 %v2697, %v2700
    %v2751 = vadd.f32 %v2703, %v2706
    %v2752 = vadd.f32 %v2709, %v2712
    %v2753 = vadd.f32 %v2715, %v2718
    %v2754 = vadd.f32 %v2721, %v2724
    %v2755 = vadd.f32 %v2727, %v2730
    %v2756 = vadd.f32 %v2733, %v2736
    %v2757 = vadd.f32 %v2739, %v2742
    %v2758 = vadd.f32 %v2745, %v2748
    %v2759 = vadd.f32 %v2749, %v2750
    %v2760 = vadd.f32 %v2751, %v2752
    %v2761 = vadd.f32 %v2753, %v2754
    %v2762 = vadd.f32 %v2755, %v2756
    %v2763 = vadd.f32 %v2757, %v2758
    %v2764 = vadd.f32 %v2759, %v2760
    %v2765 = vadd.f32 %v2761, %v2762
    %v2766 = vadd.f32 %v2764, %v2765
    %v2767 = vadd.f32 %v2766, %v2763
    %s2768 = sld [smem:[#allocation2 + $0xf]]
    %v2769 = vstv %s2768
    %v2770 = vadd.f32 %v2767, %v2769
    %v2771 = vtanh.pop %v2770
    %s2772 = sld [smem:[#allocation8 + $0x12c]]
    %v2773 = vstv %s2772
    %v2774 = vmul.f32 %v2771, %v2773
    %v2775 = vadd.f32 %v2603, %v2774
    %s2776 = sld [smem:[#allocation8 + $0x12d]]
    %v2777 = vstv %s2776
    %v2778 = vmul.f32 %v2771, %v2777
    %v2779 = vadd.f32 %v2607, %v2778
    %s2780 = sld [smem:[#allocation8 + $0x12e]]
    %v2781 = vstv %s2780
    %v2782 = vmul.f32 %v2771, %v2781
    %v2783 = vadd.f32 %v2611, %v2782
    %s2784 = sld [smem:[#allocation8 + $0x12f]]
    %v2785 = vstv %s2784
    %v2786 = vmul.f32 %v2771, %v2785
    %v2787 = vadd.f32 %v2615, %v2786
    %s2788 = sld [smem:[#allocation8 + $0x130]]
    %v2789 = vstv %s2788
    %v2790 = vmul.f32 %v2771, %v2789
    %v2791 = vadd.f32 %v2619, %v2790
    %s2792 = sld [smem:[#allocation8 + $0x131]]
    %v2793 = vstv %s2792
    %v2794 = vmul.f32 %v2771, %v2793
    %v2795 = vadd.f32 %v2623, %v2794
    %s2796 = sld [smem:[#allocation8 + $0x132]]
    %v2797 = vstv %s2796
    %v2798 = vmul.f32 %v2771, %v2797
    %v2799 = vadd.f32 %v2627, %v2798
    %s2800 = sld [smem:[#allocation8 + $0x133]]
    %v2801 = vstv %s2800
    %v2802 = vmul.f32 %v2771, %v2801
    %v2803 = vadd.f32 %v2631, %v2802
    %s2804 = sld [smem:[#allocation8 + $0x134]]
    %v2805 = vstv %s2804
    %v2806 = vmul.f32 %v2771, %v2805
    %v2807 = vadd.f32 %v2635, %v2806
    %s2808 = sld [smem:[#allocation8 + $0x135]]
    %v2809 = vstv %s2808
    %v2810 = vmul.f32 %v2771, %v2809
    %v2811 = vadd.f32 %v2639, %v2810
    %s2812 = sld [smem:[#allocation8 + $0x136]]
    %v2813 = vstv %s2812
    %v2814 = vmul.f32 %v2771, %v2813
    %v2815 = vadd.f32 %v2643, %v2814
    %s2816 = sld [smem:[#allocation8 + $0x137]]
    %v2817 = vstv %s2816
    %v2818 = vmul.f32 %v2771, %v2817
    %v2819 = vadd.f32 %v2647, %v2818
    %s2820 = sld [smem:[#allocation8 + $0x138]]
    %v2821 = vstv %s2820
    %v2822 = vmul.f32 %v2771, %v2821
    %v2823 = vadd.f32 %v2651, %v2822
    %s2824 = sld [smem:[#allocation8 + $0x139]]
    %v2825 = vstv %s2824
    %v2826 = vmul.f32 %v2771, %v2825
    %v2827 = vadd.f32 %v2655, %v2826
    %s2828 = sld [smem:[#allocation8 + $0x13a]]
    %v2829 = vstv %s2828
    %v2830 = vmul.f32 %v2771, %v2829
    %v2831 = vadd.f32 %v2659, %v2830
    %s2832 = sld [smem:[#allocation8 + $0x13b]]
    %v2833 = vstv %s2832
    %v2834 = vmul.f32 %v2771, %v2833
    %v2835 = vadd.f32 %v2663, %v2834
    %s2836 = sld [smem:[#allocation8 + $0x13c]]
    %v2837 = vstv %s2836
    %v2838 = vmul.f32 %v2771, %v2837
    %v2839 = vadd.f32 %v2667, %v2838
    %s2840 = sld [smem:[#allocation8 + $0x13d]]
    %v2841 = vstv %s2840
    %v2842 = vmul.f32 %v2771, %v2841
    %v2843 = vadd.f32 %v2671, %v2842
    %s2844 = sld [smem:[#allocation8 + $0x13e]]
    %v2845 = vstv %s2844
    %v2846 = vmul.f32 %v2771, %v2845
    %v2847 = vadd.f32 %v2675, %v2846
    %s2848 = sld [smem:[#allocation8 + $0x13f]]
    %v2849 = vstv %s2848
    %v2850 = vmul.f32 %v2771, %v2849
    %v2851 = vadd.f32 %v2679, %v2850
    %v2852 = vmul.f32 %v2771, %v2771
    %v2853 = vsub.f32 1.0, %v2852
    %s2854 = sld [smem:[#allocation5 + $0xf]]
    %v2855 = vstv %s2854
    %v2856 = vmul.f32 %v2853, %v2855
    %v2857 = vadd.f32 %v2856, 1.0
    %v2858 = vand.u32 2147483647, %v2857
    %v2859 = vadd.f32 %v2858, 1e-08
    %v2860 = vmul.f32 %v2688, %v2859
    %s2861 = sld [smem:[#allocation7 + $0x140]]
    %v2862 = vstv %s2861
    %v2863 = vmul.f32 %v2775, %v2862
    %s2864 = sld [smem:[#allocation7 + $0x141]]
    %v2865 = vstv %s2864
    %v2866 = vmul.f32 %v2779, %v2865
    %s2867 = sld [smem:[#allocation7 + $0x142]]
    %v2868 = vstv %s2867
    %v2869 = vmul.f32 %v2783, %v2868
    %s2870 = sld [smem:[#allocation7 + $0x143]]
    %v2871 = vstv %s2870
    %v2872 = vmul.f32 %v2787, %v2871
    %s2873 = sld [smem:[#allocation7 + $0x144]]
    %v2874 = vstv %s2873
    %v2875 = vmul.f32 %v2791, %v2874
    %s2876 = sld [smem:[#allocation7 + $0x145]]
    %v2877 = vstv %s2876
    %v2878 = vmul.f32 %v2795, %v2877
    %s2879 = sld [smem:[#allocation7 + $0x146]]
    %v2880 = vstv %s2879
    %v2881 = vmul.f32 %v2799, %v2880
    %s2882 = sld [smem:[#allocation7 + $0x147]]
    %v2883 = vstv %s2882
    %v2884 = vmul.f32 %v2803, %v2883
    %s2885 = sld [smem:[#allocation7 + $0x148]]
    %v2886 = vstv %s2885
    %v2887 = vmul.f32 %v2807, %v2886
    %s2888 = sld [smem:[#allocation7 + $0x149]]
    %v2889 = vstv %s2888
    %v2890 = vmul.f32 %v2811, %v2889
    %s2891 = sld [smem:[#allocation7 + $0x14a]]
    %v2892 = vstv %s2891
    %v2893 = vmul.f32 %v2815, %v2892
    %s2894 = sld [smem:[#allocation7 + $0x14b]]
    %v2895 = vstv %s2894
    %v2896 = vmul.f32 %v2819, %v2895
    %s2897 = sld [smem:[#allocation7 + $0x14c]]
    %v2898 = vstv %s2897
    %v2899 = vmul.f32 %v2823, %v2898
    %s2900 = sld [smem:[#allocation7 + $0x14d]]
    %v2901 = vstv %s2900
    %v2902 = vmul.f32 %v2827, %v2901
    %s2903 = sld [smem:[#allocation7 + $0x14e]]
    %v2904 = vstv %s2903
    %v2905 = vmul.f32 %v2831, %v2904
    %s2906 = sld [smem:[#allocation7 + $0x14f]]
    %v2907 = vstv %s2906
    %v2908 = vmul.f32 %v2835, %v2907
    %s2909 = sld [smem:[#allocation7 + $0x150]]
    %v2910 = vstv %s2909
    %v2911 = vmul.f32 %v2839, %v2910
    %s2912 = sld [smem:[#allocation7 + $0x151]]
    %v2913 = vstv %s2912
    %v2914 = vmul.f32 %v2843, %v2913
    %s2915 = sld [smem:[#allocation7 + $0x152]]
    %v2916 = vstv %s2915
    %v2917 = vmul.f32 %v2847, %v2916
    %s2918 = sld [smem:[#allocation7 + $0x153]]
    %v2919 = vstv %s2918
    %v2920 = vmul.f32 %v2851, %v2919
    %v2921 = vadd.f32 %v2863, %v2866
    %v2922 = vadd.f32 %v2869, %v2872
    %v2923 = vadd.f32 %v2875, %v2878
    %v2924 = vadd.f32 %v2881, %v2884
    %v2925 = vadd.f32 %v2887, %v2890
    %v2926 = vadd.f32 %v2893, %v2896
    %v2927 = vadd.f32 %v2899, %v2902
    %v2928 = vadd.f32 %v2905, %v2908
    %v2929 = vadd.f32 %v2911, %v2914
    %v2930 = vadd.f32 %v2917, %v2920
    %v2931 = vadd.f32 %v2921, %v2922
    %v2932 = vadd.f32 %v2923, %v2924
    %v2933 = vadd.f32 %v2925, %v2926
    %v2934 = vadd.f32 %v2927, %v2928
    %v2935 = vadd.f32 %v2929, %v2930
    %v2936 = vadd.f32 %v2931, %v2932
    %v2937 = vadd.f32 %v2933, %v2934
    %v2938 = vadd.f32 %v2936, %v2937
    %v2939 = vadd.f32 %v2938, %v2935
    %s2940 = sld [smem:[#allocation2 + $0x10]]
    %v2941 = vstv %s2940
    %v2942 = vadd.f32 %v2939, %v2941
    %v2943 = vtanh.pop %v2942
    %s2944 = sld [smem:[#allocation8 + $0x140]]
    %v2945 = vstv %s2944
    %v2946 = vmul.f32 %v2943, %v2945
    %v2947 = vadd.f32 %v2775, %v2946
    %s2948 = sld [smem:[#allocation8 + $0x141]]
    %v2949 = vstv %s2948
    %v2950 = vmul.f32 %v2943, %v2949
    %v2951 = vadd.f32 %v2779, %v2950
    %s2952 = sld [smem:[#allocation8 + $0x142]]
    %v2953 = vstv %s2952
    %v2954 = vmul.f32 %v2943, %v2953
    %v2955 = vadd.f32 %v2783, %v2954
    %s2956 = sld [smem:[#allocation8 + $0x143]]
    %v2957 = vstv %s2956
    %v2958 = vmul.f32 %v2943, %v2957
    %v2959 = vadd.f32 %v2787, %v2958
    %s2960 = sld [smem:[#allocation8 + $0x144]]
    %v2961 = vstv %s2960
    %v2962 = vmul.f32 %v2943, %v2961
    %v2963 = vadd.f32 %v2791, %v2962
    %s2964 = sld [smem:[#allocation8 + $0x145]]
    %v2965 = vstv %s2964
    %v2966 = vmul.f32 %v2943, %v2965
    %v2967 = vadd.f32 %v2795, %v2966
    %s2968 = sld [smem:[#allocation8 + $0x146]]
    %v2969 = vstv %s2968
    %v2970 = vmul.f32 %v2943, %v2969
    %v2971 = vadd.f32 %v2799, %v2970
    %s2972 = sld [smem:[#allocation8 + $0x147]]
    %v2973 = vstv %s2972
    %v2974 = vmul.f32 %v2943, %v2973
    %v2975 = vadd.f32 %v2803, %v2974
    %s2976 = sld [smem:[#allocation8 + $0x148]]
    %v2977 = vstv %s2976
    %v2978 = vmul.f32 %v2943, %v2977
    %v2979 = vadd.f32 %v2807, %v2978
    %s2980 = sld [smem:[#allocation8 + $0x149]]
    %v2981 = vstv %s2980
    %v2982 = vmul.f32 %v2943, %v2981
    %v2983 = vadd.f32 %v2811, %v2982
    %s2984 = sld [smem:[#allocation8 + $0x14a]]
    %v2985 = vstv %s2984
    %v2986 = vmul.f32 %v2943, %v2985
    %v2987 = vadd.f32 %v2815, %v2986
    %s2988 = sld [smem:[#allocation8 + $0x14b]]
    %v2989 = vstv %s2988
    %v2990 = vmul.f32 %v2943, %v2989
    %v2991 = vadd.f32 %v2819, %v2990
    %s2992 = sld [smem:[#allocation8 + $0x14c]]
    %v2993 = vstv %s2992
    %v2994 = vmul.f32 %v2943, %v2993
    %v2995 = vadd.f32 %v2823, %v2994
    %s2996 = sld [smem:[#allocation8 + $0x14d]]
    %v2997 = vstv %s2996
    %v2998 = vmul.f32 %v2943, %v2997
    %v2999 = vadd.f32 %v2827, %v2998
    %s3000 = sld [smem:[#allocation8 + $0x14e]]
    %v3001 = vstv %s3000
    %v3002 = vmul.f32 %v2943, %v3001
    %v3003 = vadd.f32 %v2831, %v3002
    %s3004 = sld [smem:[#allocation8 + $0x14f]]
    %v3005 = vstv %s3004
    %v3006 = vmul.f32 %v2943, %v3005
    %v3007 = vadd.f32 %v2835, %v3006
    %s3008 = sld [smem:[#allocation8 + $0x150]]
    %v3009 = vstv %s3008
    %v3010 = vmul.f32 %v2943, %v3009
    %v3011 = vadd.f32 %v2839, %v3010
    %s3012 = sld [smem:[#allocation8 + $0x151]]
    %v3013 = vstv %s3012
    %v3014 = vmul.f32 %v2943, %v3013
    %v3015 = vadd.f32 %v2843, %v3014
    %s3016 = sld [smem:[#allocation8 + $0x152]]
    %v3017 = vstv %s3016
    %v3018 = vmul.f32 %v2943, %v3017
    %v3019 = vadd.f32 %v2847, %v3018
    %s3020 = sld [smem:[#allocation8 + $0x153]]
    %v3021 = vstv %s3020
    %v3022 = vmul.f32 %v2943, %v3021
    %v3023 = vadd.f32 %v2851, %v3022
    %v3024 = vmul.f32 %v2943, %v2943
    %v3025 = vsub.f32 1.0, %v3024
    %s3026 = sld [smem:[#allocation5 + $0x10]]
    %v3027 = vstv %s3026
    %v3028 = vmul.f32 %v3025, %v3027
    %v3029 = vadd.f32 %v3028, 1.0
    %v3030 = vand.u32 2147483647, %v3029
    %v3031 = vadd.f32 %v3030, 1e-08
    %v3032 = vmul.f32 %v2860, %v3031
    %s3033 = sld [smem:[#allocation7 + $0x154]]
    %v3034 = vstv %s3033
    %v3035 = vmul.f32 %v2947, %v3034
    %s3036 = sld [smem:[#allocation7 + $0x155]]
    %v3037 = vstv %s3036
    %v3038 = vmul.f32 %v2951, %v3037
    %s3039 = sld [smem:[#allocation7 + $0x156]]
    %v3040 = vstv %s3039
    %v3041 = vmul.f32 %v2955, %v3040
    %s3042 = sld [smem:[#allocation7 + $0x157]]
    %v3043 = vstv %s3042
    %v3044 = vmul.f32 %v2959, %v3043
    %s3045 = sld [smem:[#allocation7 + $0x158]]
    %v3046 = vstv %s3045
    %v3047 = vmul.f32 %v2963, %v3046
    %s3048 = sld [smem:[#allocation7 + $0x159]]
    %v3049 = vstv %s3048
    %v3050 = vmul.f32 %v2967, %v3049
    %s3051 = sld [smem:[#allocation7 + $0x15a]]
    %v3052 = vstv %s3051
    %v3053 = vmul.f32 %v2971, %v3052
    %s3054 = sld [smem:[#allocation7 + $0x15b]]
    %v3055 = vstv %s3054
    %v3056 = vmul.f32 %v2975, %v3055
    %s3057 = sld [smem:[#allocation7 + $0x15c]]
    %v3058 = vstv %s3057
    %v3059 = vmul.f32 %v2979, %v3058
    %s3060 = sld [smem:[#allocation7 + $0x15d]]
    %v3061 = vstv %s3060
    %v3062 = vmul.f32 %v2983, %v3061
    %s3063 = sld [smem:[#allocation7 + $0x15e]]
    %v3064 = vstv %s3063
    %v3065 = vmul.f32 %v2987, %v3064
    %s3066 = sld [smem:[#allocation7 + $0x15f]]
    %v3067 = vstv %s3066
    %v3068 = vmul.f32 %v2991, %v3067
    %s3069 = sld [smem:[#allocation7 + $0x160]]
    %v3070 = vstv %s3069
    %v3071 = vmul.f32 %v2995, %v3070
    %s3072 = sld [smem:[#allocation7 + $0x161]]
    %v3073 = vstv %s3072
    %v3074 = vmul.f32 %v2999, %v3073
    %s3075 = sld [smem:[#allocation7 + $0x162]]
    %v3076 = vstv %s3075
    %v3077 = vmul.f32 %v3003, %v3076
    %s3078 = sld [smem:[#allocation7 + $0x163]]
    %v3079 = vstv %s3078
    %v3080 = vmul.f32 %v3007, %v3079
    %s3081 = sld [smem:[#allocation7 + $0x164]]
    %v3082 = vstv %s3081
    %v3083 = vmul.f32 %v3011, %v3082
    %s3084 = sld [smem:[#allocation7 + $0x165]]
    %v3085 = vstv %s3084
    %v3086 = vmul.f32 %v3015, %v3085
    %s3087 = sld [smem:[#allocation7 + $0x166]]
    %v3088 = vstv %s3087
    %v3089 = vmul.f32 %v3019, %v3088
    %s3090 = sld [smem:[#allocation7 + $0x167]]
    %v3091 = vstv %s3090
    %v3092 = vmul.f32 %v3023, %v3091
    %v3093 = vadd.f32 %v3035, %v3038
    %v3094 = vadd.f32 %v3041, %v3044
    %v3095 = vadd.f32 %v3047, %v3050
    %v3096 = vadd.f32 %v3053, %v3056
    %v3097 = vadd.f32 %v3059, %v3062
    %v3098 = vadd.f32 %v3065, %v3068
    %v3099 = vadd.f32 %v3071, %v3074
    %v3100 = vadd.f32 %v3077, %v3080
    %v3101 = vadd.f32 %v3083, %v3086
    %v3102 = vadd.f32 %v3089, %v3092
    %v3103 = vadd.f32 %v3093, %v3094
    %v3104 = vadd.f32 %v3095, %v3096
    %v3105 = vadd.f32 %v3097, %v3098
    %v3106 = vadd.f32 %v3099, %v3100
    %v3107 = vadd.f32 %v3101, %v3102
    %v3108 = vadd.f32 %v3103, %v3104
    %v3109 = vadd.f32 %v3105, %v3106
    %v3110 = vadd.f32 %v3108, %v3109
    %v3111 = vadd.f32 %v3110, %v3107
    %s3112 = sld [smem:[#allocation2 + $0x11]]
    %v3113 = vstv %s3112
    %v3114 = vadd.f32 %v3111, %v3113
    %v3115 = vtanh.pop %v3114
    %s3116 = sld [smem:[#allocation8 + $0x154]]
    %v3117 = vstv %s3116
    %v3118 = vmul.f32 %v3115, %v3117
    %v3119 = vadd.f32 %v2947, %v3118
    %s3120 = sld [smem:[#allocation8 + $0x155]]
    %v3121 = vstv %s3120
    %v3122 = vmul.f32 %v3115, %v3121
    %v3123 = vadd.f32 %v2951, %v3122
    %s3124 = sld [smem:[#allocation8 + $0x156]]
    %v3125 = vstv %s3124
    %v3126 = vmul.f32 %v3115, %v3125
    %v3127 = vadd.f32 %v2955, %v3126
    %s3128 = sld [smem:[#allocation8 + $0x157]]
    %v3129 = vstv %s3128
    %v3130 = vmul.f32 %v3115, %v3129
    %v3131 = vadd.f32 %v2959, %v3130
    %s3132 = sld [smem:[#allocation8 + $0x158]]
    %v3133 = vstv %s3132
    %v3134 = vmul.f32 %v3115, %v3133
    %v3135 = vadd.f32 %v2963, %v3134
    %s3136 = sld [smem:[#allocation8 + $0x159]]
    %v3137 = vstv %s3136
    %v3138 = vmul.f32 %v3115, %v3137
    %v3139 = vadd.f32 %v2967, %v3138
    %s3140 = sld [smem:[#allocation8 + $0x15a]]
    %v3141 = vstv %s3140
    %v3142 = vmul.f32 %v3115, %v3141
    %v3143 = vadd.f32 %v2971, %v3142
    %s3144 = sld [smem:[#allocation8 + $0x15b]]
    %v3145 = vstv %s3144
    %v3146 = vmul.f32 %v3115, %v3145
    %v3147 = vadd.f32 %v2975, %v3146
    %s3148 = sld [smem:[#allocation8 + $0x15c]]
    %v3149 = vstv %s3148
    %v3150 = vmul.f32 %v3115, %v3149
    %v3151 = vadd.f32 %v2979, %v3150
    %s3152 = sld [smem:[#allocation8 + $0x15d]]
    %v3153 = vstv %s3152
    %v3154 = vmul.f32 %v3115, %v3153
    %v3155 = vadd.f32 %v2983, %v3154
    %s3156 = sld [smem:[#allocation8 + $0x15e]]
    %v3157 = vstv %s3156
    %v3158 = vmul.f32 %v3115, %v3157
    %v3159 = vadd.f32 %v2987, %v3158
    %s3160 = sld [smem:[#allocation8 + $0x15f]]
    %v3161 = vstv %s3160
    %v3162 = vmul.f32 %v3115, %v3161
    %v3163 = vadd.f32 %v2991, %v3162
    %s3164 = sld [smem:[#allocation8 + $0x160]]
    %v3165 = vstv %s3164
    %v3166 = vmul.f32 %v3115, %v3165
    %v3167 = vadd.f32 %v2995, %v3166
    %s3168 = sld [smem:[#allocation8 + $0x161]]
    %v3169 = vstv %s3168
    %v3170 = vmul.f32 %v3115, %v3169
    %v3171 = vadd.f32 %v2999, %v3170
    %s3172 = sld [smem:[#allocation8 + $0x162]]
    %v3173 = vstv %s3172
    %v3174 = vmul.f32 %v3115, %v3173
    %v3175 = vadd.f32 %v3003, %v3174
    %s3176 = sld [smem:[#allocation8 + $0x163]]
    %v3177 = vstv %s3176
    %v3178 = vmul.f32 %v3115, %v3177
    %v3179 = vadd.f32 %v3007, %v3178
    %s3180 = sld [smem:[#allocation8 + $0x164]]
    %v3181 = vstv %s3180
    %v3182 = vmul.f32 %v3115, %v3181
    %v3183 = vadd.f32 %v3011, %v3182
    %s3184 = sld [smem:[#allocation8 + $0x165]]
    %v3185 = vstv %s3184
    %v3186 = vmul.f32 %v3115, %v3185
    %v3187 = vadd.f32 %v3015, %v3186
    %s3188 = sld [smem:[#allocation8 + $0x166]]
    %v3189 = vstv %s3188
    %v3190 = vmul.f32 %v3115, %v3189
    %v3191 = vadd.f32 %v3019, %v3190
    %s3192 = sld [smem:[#allocation8 + $0x167]]
    %v3193 = vstv %s3192
    %v3194 = vmul.f32 %v3115, %v3193
    %v3195 = vadd.f32 %v3023, %v3194
    %v3196 = vmul.f32 %v3115, %v3115
    %v3197 = vsub.f32 1.0, %v3196
    %s3198 = sld [smem:[#allocation5 + $0x11]]
    %v3199 = vstv %s3198
    %v3200 = vmul.f32 %v3197, %v3199
    %v3201 = vadd.f32 %v3200, 1.0
    %v3202 = vand.u32 2147483647, %v3201
    %v3203 = vadd.f32 %v3202, 1e-08
    %v3204 = vmul.f32 %v3032, %v3203
    %s3205 = sld [smem:[#allocation7 + $0x168]]
    %v3206 = vstv %s3205
    %v3207 = vmul.f32 %v3119, %v3206
    %s3208 = sld [smem:[#allocation7 + $0x169]]
    %v3209 = vstv %s3208
    %v3210 = vmul.f32 %v3123, %v3209
    %s3211 = sld [smem:[#allocation7 + $0x16a]]
    %v3212 = vstv %s3211
    %v3213 = vmul.f32 %v3127, %v3212
    %s3214 = sld [smem:[#allocation7 + $0x16b]]
    %v3215 = vstv %s3214
    %v3216 = vmul.f32 %v3131, %v3215
    %s3217 = sld [smem:[#allocation7 + $0x16c]]
    %v3218 = vstv %s3217
    %v3219 = vmul.f32 %v3135, %v3218
    %s3220 = sld [smem:[#allocation7 + $0x16d]]
    %v3221 = vstv %s3220
    %v3222 = vmul.f32 %v3139, %v3221
    %s3223 = sld [smem:[#allocation7 + $0x16e]]
    %v3224 = vstv %s3223
    %v3225 = vmul.f32 %v3143, %v3224
    %s3226 = sld [smem:[#allocation7 + $0x16f]]
    %v3227 = vstv %s3226
    %v3228 = vmul.f32 %v3147, %v3227
    %s3229 = sld [smem:[#allocation7 + $0x170]]
    %v3230 = vstv %s3229
    %v3231 = vmul.f32 %v3151, %v3230
    %s3232 = sld [smem:[#allocation7 + $0x171]]
    %v3233 = vstv %s3232
    %v3234 = vmul.f32 %v3155, %v3233
    %s3235 = sld [smem:[#allocation7 + $0x172]]
    %v3236 = vstv %s3235
    %v3237 = vmul.f32 %v3159, %v3236
    %s3238 = sld [smem:[#allocation7 + $0x173]]
    %v3239 = vstv %s3238
    %v3240 = vmul.f32 %v3163, %v3239
    %s3241 = sld [smem:[#allocation7 + $0x174]]
    %v3242 = vstv %s3241
    %v3243 = vmul.f32 %v3167, %v3242
    %s3244 = sld [smem:[#allocation7 + $0x175]]
    %v3245 = vstv %s3244
    %v3246 = vmul.f32 %v3171, %v3245
    %s3247 = sld [smem:[#allocation7 + $0x176]]
    %v3248 = vstv %s3247
    %v3249 = vmul.f32 %v3175, %v3248
    %s3250 = sld [smem:[#allocation7 + $0x177]]
    %v3251 = vstv %s3250
    %v3252 = vmul.f32 %v3179, %v3251
    %s3253 = sld [smem:[#allocation7 + $0x178]]
    %v3254 = vstv %s3253
    %v3255 = vmul.f32 %v3183, %v3254
    %s3256 = sld [smem:[#allocation7 + $0x179]]
    %v3257 = vstv %s3256
    %v3258 = vmul.f32 %v3187, %v3257
    %s3259 = sld [smem:[#allocation7 + $0x17a]]
    %v3260 = vstv %s3259
    %v3261 = vmul.f32 %v3191, %v3260
    %s3262 = sld [smem:[#allocation7 + $0x17b]]
    %v3263 = vstv %s3262
    %v3264 = vmul.f32 %v3195, %v3263
    %v3265 = vadd.f32 %v3207, %v3210
    %v3266 = vadd.f32 %v3213, %v3216
    %v3267 = vadd.f32 %v3219, %v3222
    %v3268 = vadd.f32 %v3225, %v3228
    %v3269 = vadd.f32 %v3231, %v3234
    %v3270 = vadd.f32 %v3237, %v3240
    %v3271 = vadd.f32 %v3243, %v3246
    %v3272 = vadd.f32 %v3249, %v3252
    %v3273 = vadd.f32 %v3255, %v3258
    %v3274 = vadd.f32 %v3261, %v3264
    %v3275 = vadd.f32 %v3265, %v3266
    %v3276 = vadd.f32 %v3267, %v3268
    %v3277 = vadd.f32 %v3269, %v3270
    %v3278 = vadd.f32 %v3271, %v3272
    %v3279 = vadd.f32 %v3273, %v3274
    %v3280 = vadd.f32 %v3275, %v3276
    %v3281 = vadd.f32 %v3277, %v3278
    %v3282 = vadd.f32 %v3280, %v3281
    %v3283 = vadd.f32 %v3282, %v3279
    %s3284 = sld [smem:[#allocation2 + $0x12]]
    %v3285 = vstv %s3284
    %v3286 = vadd.f32 %v3283, %v3285
    %v3287 = vtanh.pop %v3286
    %s3288 = sld [smem:[#allocation8 + $0x168]]
    %v3289 = vstv %s3288
    %v3290 = vmul.f32 %v3287, %v3289
    %v3291 = vadd.f32 %v3119, %v3290
    %s3292 = sld [smem:[#allocation8 + $0x169]]
    %v3293 = vstv %s3292
    %v3294 = vmul.f32 %v3287, %v3293
    %v3295 = vadd.f32 %v3123, %v3294
    %s3296 = sld [smem:[#allocation8 + $0x16a]]
    %v3297 = vstv %s3296
    %v3298 = vmul.f32 %v3287, %v3297
    %v3299 = vadd.f32 %v3127, %v3298
    %s3300 = sld [smem:[#allocation8 + $0x16b]]
    %v3301 = vstv %s3300
    %v3302 = vmul.f32 %v3287, %v3301
    %v3303 = vadd.f32 %v3131, %v3302
    %s3304 = sld [smem:[#allocation8 + $0x16c]]
    %v3305 = vstv %s3304
    %v3306 = vmul.f32 %v3287, %v3305
    %v3307 = vadd.f32 %v3135, %v3306
    %s3308 = sld [smem:[#allocation8 + $0x16d]]
    %v3309 = vstv %s3308
    %v3310 = vmul.f32 %v3287, %v3309
    %v3311 = vadd.f32 %v3139, %v3310
    %s3312 = sld [smem:[#allocation8 + $0x16e]]
    %v3313 = vstv %s3312
    %v3314 = vmul.f32 %v3287, %v3313
    %v3315 = vadd.f32 %v3143, %v3314
    %s3316 = sld [smem:[#allocation8 + $0x16f]]
    %v3317 = vstv %s3316
    %v3318 = vmul.f32 %v3287, %v3317
    %v3319 = vadd.f32 %v3147, %v3318
    %s3320 = sld [smem:[#allocation8 + $0x170]]
    %v3321 = vstv %s3320
    %v3322 = vmul.f32 %v3287, %v3321
    %v3323 = vadd.f32 %v3151, %v3322
    %s3324 = sld [smem:[#allocation8 + $0x171]]
    %v3325 = vstv %s3324
    %v3326 = vmul.f32 %v3287, %v3325
    %v3327 = vadd.f32 %v3155, %v3326
    %s3328 = sld [smem:[#allocation8 + $0x172]]
    %v3329 = vstv %s3328
    %v3330 = vmul.f32 %v3287, %v3329
    %v3331 = vadd.f32 %v3159, %v3330
    %s3332 = sld [smem:[#allocation8 + $0x173]]
    %v3333 = vstv %s3332
    %v3334 = vmul.f32 %v3287, %v3333
    %v3335 = vadd.f32 %v3163, %v3334
    %s3336 = sld [smem:[#allocation8 + $0x174]]
    %v3337 = vstv %s3336
    %v3338 = vmul.f32 %v3287, %v3337
    %v3339 = vadd.f32 %v3167, %v3338
    %s3340 = sld [smem:[#allocation8 + $0x175]]
    %v3341 = vstv %s3340
    %v3342 = vmul.f32 %v3287, %v3341
    %v3343 = vadd.f32 %v3171, %v3342
    %s3344 = sld [smem:[#allocation8 + $0x176]]
    %v3345 = vstv %s3344
    %v3346 = vmul.f32 %v3287, %v3345
    %v3347 = vadd.f32 %v3175, %v3346
    %s3348 = sld [smem:[#allocation8 + $0x177]]
    %v3349 = vstv %s3348
    %v3350 = vmul.f32 %v3287, %v3349
    %v3351 = vadd.f32 %v3179, %v3350
    %s3352 = sld [smem:[#allocation8 + $0x178]]
    %v3353 = vstv %s3352
    %v3354 = vmul.f32 %v3287, %v3353
    %v3355 = vadd.f32 %v3183, %v3354
    %s3356 = sld [smem:[#allocation8 + $0x179]]
    %v3357 = vstv %s3356
    %v3358 = vmul.f32 %v3287, %v3357
    %v3359 = vadd.f32 %v3187, %v3358
    %s3360 = sld [smem:[#allocation8 + $0x17a]]
    %v3361 = vstv %s3360
    %v3362 = vmul.f32 %v3287, %v3361
    %v3363 = vadd.f32 %v3191, %v3362
    %s3364 = sld [smem:[#allocation8 + $0x17b]]
    %v3365 = vstv %s3364
    %v3366 = vmul.f32 %v3287, %v3365
    %v3367 = vadd.f32 %v3195, %v3366
    %v3368 = vmul.f32 %v3287, %v3287
    %v3369 = vsub.f32 1.0, %v3368
    %s3370 = sld [smem:[#allocation5 + $0x12]]
    %v3371 = vstv %s3370
    %v3372 = vmul.f32 %v3369, %v3371
    %v3373 = vadd.f32 %v3372, 1.0
    %v3374 = vand.u32 2147483647, %v3373
    %v3375 = vadd.f32 %v3374, 1e-08
    %v3376 = vmul.f32 %v3204, %v3375
    %s3377 = sld [smem:[#allocation7 + $0x17c]]
    %v3378 = vstv %s3377
    %v3379 = vmul.f32 %v3291, %v3378
    %s3380 = sld [smem:[#allocation7 + $0x17d]]
    %v3381 = vstv %s3380
    %v3382 = vmul.f32 %v3295, %v3381
    %s3383 = sld [smem:[#allocation7 + $0x17e]]
    %v3384 = vstv %s3383
    %v3385 = vmul.f32 %v3299, %v3384
    %s3386 = sld [smem:[#allocation7 + $0x17f]]
    %v3387 = vstv %s3386
    %v3388 = vmul.f32 %v3303, %v3387
    %s3389 = sld [smem:[#allocation7 + $0x180]]
    %v3390 = vstv %s3389
    %v3391 = vmul.f32 %v3307, %v3390
    %s3392 = sld [smem:[#allocation7 + $0x181]]
    %v3393 = vstv %s3392
    %v3394 = vmul.f32 %v3311, %v3393
    %s3395 = sld [smem:[#allocation7 + $0x182]]
    %v3396 = vstv %s3395
    %v3397 = vmul.f32 %v3315, %v3396
    %s3398 = sld [smem:[#allocation7 + $0x183]]
    %v3399 = vstv %s3398
    %v3400 = vmul.f32 %v3319, %v3399
    %s3401 = sld [smem:[#allocation7 + $0x184]]
    %v3402 = vstv %s3401
    %v3403 = vmul.f32 %v3323, %v3402
    %s3404 = sld [smem:[#allocation7 + $0x185]]
    %v3405 = vstv %s3404
    %v3406 = vmul.f32 %v3327, %v3405
    %s3407 = sld [smem:[#allocation7 + $0x186]]
    %v3408 = vstv %s3407
    %v3409 = vmul.f32 %v3331, %v3408
    %s3410 = sld [smem:[#allocation7 + $0x187]]
    %v3411 = vstv %s3410
    %v3412 = vmul.f32 %v3335, %v3411
    %s3413 = sld [smem:[#allocation7 + $0x188]]
    %v3414 = vstv %s3413
    %v3415 = vmul.f32 %v3339, %v3414
    %s3416 = sld [smem:[#allocation7 + $0x189]]
    %v3417 = vstv %s3416
    %v3418 = vmul.f32 %v3343, %v3417
    %s3419 = sld [smem:[#allocation7 + $0x18a]]
    %v3420 = vstv %s3419
    %v3421 = vmul.f32 %v3347, %v3420
    %s3422 = sld [smem:[#allocation7 + $0x18b]]
    %v3423 = vstv %s3422
    %v3424 = vmul.f32 %v3351, %v3423
    %s3425 = sld [smem:[#allocation7 + $0x18c]]
    %v3426 = vstv %s3425
    %v3427 = vmul.f32 %v3355, %v3426
    %s3428 = sld [smem:[#allocation7 + $0x18d]]
    %v3429 = vstv %s3428
    %v3430 = vmul.f32 %v3359, %v3429
    %s3431 = sld [smem:[#allocation7 + $0x18e]]
    %v3432 = vstv %s3431
    %v3433 = vmul.f32 %v3363, %v3432
    %s3434 = sld [smem:[#allocation7 + $0x18f]]
    %v3435 = vstv %s3434
    %v3436 = vmul.f32 %v3367, %v3435
    %v3437 = vadd.f32 %v3379, %v3382
    %v3438 = vadd.f32 %v3385, %v3388
    %v3439 = vadd.f32 %v3391, %v3394
    %v3440 = vadd.f32 %v3397, %v3400
    %v3441 = vadd.f32 %v3403, %v3406
    %v3442 = vadd.f32 %v3409, %v3412
    %v3443 = vadd.f32 %v3415, %v3418
    %v3444 = vadd.f32 %v3421, %v3424
    %v3445 = vadd.f32 %v3427, %v3430
    %v3446 = vadd.f32 %v3433, %v3436
    %v3447 = vadd.f32 %v3437, %v3438
    %v3448 = vadd.f32 %v3439, %v3440
    %v3449 = vadd.f32 %v3441, %v3442
    %v3450 = vadd.f32 %v3443, %v3444
    %v3451 = vadd.f32 %v3445, %v3446
    %v3452 = vadd.f32 %v3447, %v3448
    %v3453 = vadd.f32 %v3449, %v3450
    %v3454 = vadd.f32 %v3452, %v3453
    %v3455 = vadd.f32 %v3454, %v3451
    %s3456 = sld [smem:[#allocation2 + $0x13]]
    %v3457 = vstv %s3456
    %v3458 = vadd.f32 %v3455, %v3457
    %v3459 = vtanh.pop %v3458
    %s3460 = sld [smem:[#allocation8 + $0x17c]]
    %v3461 = vstv %s3460
    %v3462 = vmul.f32 %v3459, %v3461
    %v3463 = vadd.f32 %v3291, %v3462
    %s3464 = sld [smem:[#allocation8 + $0x17d]]
    %v3465 = vstv %s3464
    %v3466 = vmul.f32 %v3459, %v3465
    %v3467 = vadd.f32 %v3295, %v3466
    %s3468 = sld [smem:[#allocation8 + $0x17e]]
    %v3469 = vstv %s3468
    %v3470 = vmul.f32 %v3459, %v3469
    %v3471 = vadd.f32 %v3299, %v3470
    %s3472 = sld [smem:[#allocation8 + $0x17f]]
    %v3473 = vstv %s3472
    %v3474 = vmul.f32 %v3459, %v3473
    %v3475 = vadd.f32 %v3303, %v3474
    %s3476 = sld [smem:[#allocation8 + $0x180]]
    %v3477 = vstv %s3476
    %v3478 = vmul.f32 %v3459, %v3477
    %v3479 = vadd.f32 %v3307, %v3478
    %s3480 = sld [smem:[#allocation8 + $0x181]]
    %v3481 = vstv %s3480
    %v3482 = vmul.f32 %v3459, %v3481
    %v3483 = vadd.f32 %v3311, %v3482
    %s3484 = sld [smem:[#allocation8 + $0x182]]
    %v3485 = vstv %s3484
    %v3486 = vmul.f32 %v3459, %v3485
    %v3487 = vadd.f32 %v3315, %v3486
    %s3488 = sld [smem:[#allocation8 + $0x183]]
    %v3489 = vstv %s3488
    %v3490 = vmul.f32 %v3459, %v3489
    %v3491 = vadd.f32 %v3319, %v3490
    %s3492 = sld [smem:[#allocation8 + $0x184]]
    %v3493 = vstv %s3492
    %v3494 = vmul.f32 %v3459, %v3493
    %v3495 = vadd.f32 %v3323, %v3494
    %s3496 = sld [smem:[#allocation8 + $0x185]]
    %v3497 = vstv %s3496
    %v3498 = vmul.f32 %v3459, %v3497
    %v3499 = vadd.f32 %v3327, %v3498
    %s3500 = sld [smem:[#allocation8 + $0x186]]
    %v3501 = vstv %s3500
    %v3502 = vmul.f32 %v3459, %v3501
    %v3503 = vadd.f32 %v3331, %v3502
    %s3504 = sld [smem:[#allocation8 + $0x187]]
    %v3505 = vstv %s3504
    %v3506 = vmul.f32 %v3459, %v3505
    %v3507 = vadd.f32 %v3335, %v3506
    %s3508 = sld [smem:[#allocation8 + $0x188]]
    %v3509 = vstv %s3508
    %v3510 = vmul.f32 %v3459, %v3509
    %v3511 = vadd.f32 %v3339, %v3510
    %s3512 = sld [smem:[#allocation8 + $0x189]]
    %v3513 = vstv %s3512
    %v3514 = vmul.f32 %v3459, %v3513
    %v3515 = vadd.f32 %v3343, %v3514
    %s3516 = sld [smem:[#allocation8 + $0x18a]]
    %v3517 = vstv %s3516
    %v3518 = vmul.f32 %v3459, %v3517
    %v3519 = vadd.f32 %v3347, %v3518
    %s3520 = sld [smem:[#allocation8 + $0x18b]]
    %v3521 = vstv %s3520
    %v3522 = vmul.f32 %v3459, %v3521
    %v3523 = vadd.f32 %v3351, %v3522
    %s3524 = sld [smem:[#allocation8 + $0x18c]]
    %v3525 = vstv %s3524
    %v3526 = vmul.f32 %v3459, %v3525
    %v3527 = vadd.f32 %v3355, %v3526
    %s3528 = sld [smem:[#allocation8 + $0x18d]]
    %v3529 = vstv %s3528
    %v3530 = vmul.f32 %v3459, %v3529
    %v3531 = vadd.f32 %v3359, %v3530
    %s3532 = sld [smem:[#allocation8 + $0x18e]]
    %v3533 = vstv %s3532
    %v3534 = vmul.f32 %v3459, %v3533
    %v3535 = vadd.f32 %v3363, %v3534
    %s3536 = sld [smem:[#allocation8 + $0x18f]]
    %v3537 = vstv %s3536
    %v3538 = vmul.f32 %v3459, %v3537
    %v3539 = vadd.f32 %v3367, %v3538
    %v3540 = vmul.f32 %v3459, %v3459
    %v3541 = vsub.f32 1.0, %v3540
    %s3542 = sld [smem:[#allocation5 + $0x13]]
    %v3543 = vstv %s3542
    %v3544 = vmul.f32 %v3541, %v3543
    %v3545 = vadd.f32 %v3544, 1.0
    %v3546 = vand.u32 2147483647, %v3545
    %v3547 = vadd.f32 %v3546, 1e-08
    %v3548 = vmul.f32 %v3376, %v3547
    %vm3549 = vcmask 130048
    %3550 = vst.msk [vmem:[%s5] sm:$0xff] %vm3549, %v3463
    %s3551 = scalar_lea.vmem %s5, 8
    %3552 = vst.msk [vmem:[%s3551] sm:$0xff] %vm3549, %v3467
    %s3553 = scalar_lea.vmem %s5, 16
    %3554 = vst.msk [vmem:[%s3553] sm:$0xff] %vm3549, %v3471
    %s3555 = scalar_lea.vmem %s5, 24
    %3556 = vst.msk [vmem:[%s3555] sm:$0xff] %vm3549, %v3475
    %s3557 = scalar_lea.vmem %s5, 32
    %3558 = vst.msk [vmem:[%s3557] sm:$0xff] %vm3549, %v3479
    %s3559 = scalar_lea.vmem %s5, 40
    %3560 = vst.msk [vmem:[%s3559] sm:$0xff] %vm3549, %v3483
    %s3561 = scalar_lea.vmem %s5, 48
    %3562 = vst.msk [vmem:[%s3561] sm:$0xff] %vm3549, %v3487
    %s3563 = scalar_lea.vmem %s5, 56
    %3564 = vst.msk [vmem:[%s3563] sm:$0xff] %vm3549, %v3491
    %s3565 = scalar_lea.vmem %s5, 64
    %3566 = vst.msk [vmem:[%s3565] sm:$0xff] %vm3549, %v3495
    %s3567 = scalar_lea.vmem %s5, 72
    %3568 = vst.msk [vmem:[%s3567] sm:$0xff] %vm3549, %v3499
    %s3569 = scalar_lea.vmem %s5, 80
    %3570 = vst.msk [vmem:[%s3569] sm:$0xff] %vm3549, %v3503
    %s3571 = scalar_lea.vmem %s5, 88
    %3572 = vst.msk [vmem:[%s3571] sm:$0xff] %vm3549, %v3507
    %s3573 = scalar_lea.vmem %s5, 96
    %3574 = vst.msk [vmem:[%s3573] sm:$0xff] %vm3549, %v3511
    %s3575 = scalar_lea.vmem %s5, 104
    %3576 = vst.msk [vmem:[%s3575] sm:$0xff] %vm3549, %v3515
    %s3577 = scalar_lea.vmem %s5, 112
    %3578 = vst.msk [vmem:[%s3577] sm:$0xff] %vm3549, %v3519
    %s3579 = scalar_lea.vmem %s5, 120
    %3580 = vst.msk [vmem:[%s3579] sm:$0xff] %vm3549, %v3523
    %s3581 = scalar_lea.vmem %s5, 128
    %3582 = vst.msk [vmem:[%s3581] sm:$0xff] %vm3549, %v3527
    %s3583 = scalar_lea.vmem %s5, 136
    %3584 = vst.msk [vmem:[%s3583] sm:$0xff] %vm3549, %v3531
    %s3585 = scalar_lea.vmem %s5, 144
    %3586 = vst.msk [vmem:[%s3585] sm:$0xff] %vm3549, %v3535
    %s3587 = scalar_lea.vmem %s5, 152
    %3588 = vst.msk [vmem:[%s3587] sm:$0xff] %vm3549, %v3539
    %v3589 = vlog2.pop %v3548
    %v3590 = vmul.f32 %v3589, 0.6931472
    %v3591 = vsub.f32 0.0, %v3590
    %3592 = vst.msk [vmem:[#allocation10] sm:$0xff] %vm3549, %v3591
    // Predicated region
    $region38: #{tpu_custom_call.1} parent=1 // pred_check
      _
    $region39: #{tpu_custom_call.1} parent=1 // pred_check_branch
      %3594 = sbr.rel (0) target = $region41
    $region40: #{tpu_custom_call.1} parent=1 // pred_region
      _
    $region41: #{tpu_custom_call.1} parent=1 // pred_fallthru
      _
    // Predicated region
    $region42: #{tpu_custom_call.1} parent=1 // pred_check
      _
    $region43: #{tpu_custom_call.1} parent=1 // pred_check_branch
      %3596 = sbr.rel (0) target = $region45
    $region44: #{tpu_custom_call.1} parent=1 // pred_region
      %3598 = vsyncadd [#allocation3], 0
      %s3600 = sshll.u32 [#allocation10], 4
      %s3601 = int_to_ptr.vmem [resolvable:$true] %s3600
      %s3602 = sshll.u32 %s6, 4
      %s3603 = int_to_ptr.hbm [resolvable:$true] %s3602
      %3605 = dma.vmem_to_hbm [thread:$0]  %s3601, 128, %s3603, [#allocation3]
    $region45: #{tpu_custom_call.1} parent=1 // pred_fallthru
      _
    // Predicated region
    $region46: #{tpu_custom_call.1} parent=1 // pred_check
      _
    $region47: #{tpu_custom_call.1} parent=1 // pred_check_branch
      %3607 = sbr.rel (0) target = $region49
    $region48: #{tpu_custom_call.1} parent=1 // pred_region
      _
    $region49: #{tpu_custom_call.1} parent=1 // pred_fallthru
      _
    // Predicated region
    $region50: #{tpu_custom_call.1} parent=1 // pred_check
      _
    $region51: #{tpu_custom_call.1} parent=1 // pred_check_branch
      %3609 = sbr.rel (0) target = $region53
    $region52: #{tpu_custom_call.1} parent=1 // pred_region
      %3611 = dma.done [#allocation3], 128
    $region53: #{tpu_custom_call.1} parent=1 // pred_fallthru
      _
    %3612 = vsyncpa [#allocation3], 1
    %3613 = vsyncpa [#allocation4], 1
    %3614 = vsyncpa [#allocation6], 1
    %3615 = vsyncpa [#allocation9], 1

</llo_original>
